<compile_context>
chip_gen: v7x
topology: tpu7x:2x2x1
jax: 0.10.0
libtpu: 0.0.40
codegen_flags: <defaults>
</compile_context>

<pallas_src>
import functools

import numpy as np
import jax
import jax.numpy as jnp
from jax.experimental import pallas as pl
from jax.experimental.pallas import tpu as pltpu

EPS = 1e-5  # nn.LayerNorm / TransformerEncoderLayer default eps


# ---------------------------------------------------------------------------
# Math helpers
# ---------------------------------------------------------------------------
def _ln(v, g, b):
    mu = jnp.mean(v, axis=-1, keepdims=True)
    var = jnp.mean((v - mu) ** 2, axis=-1, keepdims=True)
    return (v - mu) * jax.lax.rsqrt(var + EPS) * g + b


def _gelu_tanh(x):
    # tanh-approximated GELU: jnp.tanh runs on the EUP slot.
    c = float(np.sqrt(2.0 / np.pi))
    return 0.5 * x * (1.0 + jnp.tanh(c * (x + 0.044715 * (x * x * x))))


def _erf(x):
    # Abramowitz & Stegun 7.1.26 — used only in the pure-JAX reference.
    p = 0.3275911
    a1, a2, a3, a4, a5 = 0.254829592, -0.284496736, 1.421413741, -1.453152027, 1.061405429
    sgn = jnp.where(x >= 0, 1.0, -1.0)
    ax = jnp.abs(x)
    t = 1.0 / (1.0 + p * ax)
    poly = ((((a5 * t + a4) * t + a3) * t + a2) * t + a1) * t
    return sgn * (1.0 - poly * jnp.exp(-ax * ax))


def _gelu_erf(x):
    return 0.5 * x * (1.0 + _erf(x * (1.0 / np.sqrt(2.0))))


# ---------------------------------------------------------------------------
# Fused Pallas kernel: tokenizer + all transformer layers + final LN + MLP head
# ---------------------------------------------------------------------------
def fused_forward_kernel(cat_ref, cont_ref, numw_ref, numb_ref, cls_ref,
                         wqkv_ref, wo_ref, w1_ref, w2_ref,
                         g1_ref, be1_ref, g2_ref, be2_ref,
                         bqkv_ref, bo_ref, bf1_ref, bf2_ref,
                         flng_ref, flnb_ref,
                         *rest, nhead):
    # rest = (hw_0, hb_0, hg_0, hbe_0, ..., out_w, out_b, out_ref)
    out_ref = rest[-1]
    outw_ref, outb_ref = rest[-3], rest[-2]
    head_refs = rest[:-3]

    f32, bf16 = jnp.float32, jnp.bfloat16
    cat_tok = cat_ref[...].astype(f32)            # (bt, n_cat, D)
    cont3 = cont_ref[...]                          # (bt, n_num, 1) f32
    bt, n_cat, D = cat_tok.shape
    n_num = cont3.shape[1]
    S = 1 + n_cat + n_num
    dh = D // nhead

    # ---- token assembly as a value: [CLS | categorical | NumEncoder(x)] ----
    cls_tok = jnp.broadcast_to(cls_ref[...], (bt, 1, D))
    # NumEncoder: out[b, i, :] = x[b, i] * W_i + b_i   (per-feature Linear(1, D))
    num_tok = cont3 * numw_ref[...] + numb_ref[...]
    x = jnp.concatenate([cls_tok, cat_tok, num_tok], axis=1)   # (bt, S, D) f32 residual

    L = wqkv_ref.shape[0]
    # Static layer loop (L is small here).
    # TODO(synk): for large L switch to lax.fori_loop / a layer grid axis with dynamic
    # wqkv_ref[l] indexing to bound vreg live ranges and stream per-layer weights.
    for l in range(L):
        wqkv = wqkv_ref[l]        # (D, 3D) bf16, Q columns pre-scaled by 1/sqrt(dh)
        wo = wo_ref[l]            # (D, D)  bf16
        w1 = w1_ref[l]            # (D, ff) bf16
        w2 = w2_ref[l]            # (ff, D) bf16
        g1, be1 = g1_ref[l], be1_ref[l]
        g2, be2 = g2_ref[l], be2_ref[l]
        bqkv, bo = bqkv_ref[l], bo_ref[l]
        bf1, bf2 = bf1_ref[l], bf2_ref[l]

        # --- pre-LN multi-head self-attention (all heads batched in axis 0) ---
        h = _ln(x, g1, be1).reshape(bt * S, D)
        qkv = jnp.dot(h.astype(bf16), wqkv, preferred_element_type=f32) + bqkv   # (bt*S, 3D)
        q_p, k_p, v_p = [], [], []
        for hi in range(nhead):
            lo = hi * dh
            q_p.append(qkv[:, lo:lo + dh].reshape(bt, S, dh))
            k_p.append(qkv[:, D + lo:D + lo + dh].reshape(bt, S, dh))
            v_p.append(qkv[:, 2 * D + lo:2 * D + lo + dh].reshape(bt, S, dh))
        qh = jnp.concatenate(q_p, axis=0).astype(bf16)          # (H*bt, S, dh)
        kh = jnp.concatenate(k_p, axis=0).astype(bf16)
        vh = jnp.concatenate(v_p, axis=0).astype(bf16)
        s = jnp.einsum('bqd,bkd->bqk', qh, kh,
                       preferred_element_type=f32)              # (H*bt, S, S), scale pre-folded
        s = s - jnp.max(s, axis=-1, keepdims=True)
        p = jnp.exp(s)
        p = p * pl.reciprocal(jnp.sum(p, axis=-1, keepdims=True), approx=True)
        o = jnp.einsum('bqk,bkd->bqd', p.astype(bf16), vh,
                       preferred_element_type=f32)               # (H*bt, S, dh)
        o = jnp.concatenate([o[hi * bt:(hi + 1) * bt] for hi in range(nhead)],
                            axis=-1)                             # (bt, S, D) head-major
        attn = jnp.dot(o.reshape(bt * S, D).astype(bf16), wo,
                       preferred_element_type=f32) + bo          # single Wo matmul
        x = x + attn.reshape(bt, S, D)

        # --- pre-LN feed-forward (tanh GELU; dropout = identity in eval) ---
        h2 = _ln(x, g2, be2).reshape(bt * S, D)
        ffh = jnp.dot(h2.astype(bf16), w1, preferred_element_type=f32) + bf1
        ffh = _gelu_tanh(ffh)
        ffo = jnp.dot(ffh.astype(bf16), w2, preferred_element_type=f32) + bf2
        x = x + ffo.reshape(bt, S, D)

    # ---- final LayerNorm + MLP head on the CLS token (row-wise ops -> slice first) ----
    c = x[:, 0:1, :].reshape(bt, D)                 # static slice (no iota / where / sum)
    c = _ln(c, flng_ref[...], flnb_ref[...])
    for i in range(0, len(head_refs), 4):
        w = head_refs[i][...]
        b_ = head_refs[i + 1][...]
        g_ = head_refs[i + 2][...]
        be_ = head_refs[i + 3][...]
        c = jnp.dot(c, w, preferred_element_type=f32) + b_
        c = jnp.maximum(_ln(c, g_, be_), 0.0)       # activation='relu'; dropout = identity
    out = jnp.dot(c, outw_ref[...], preferred_element_type=f32) + outb_ref[...]
    out_ref[...] = out.astype(out_ref.dtype)


# ---------------------------------------------------------------------------
# Wrapper: one pallas_call, batch grid axis, weights resident via constant index_map
# ---------------------------------------------------------------------------
def feature_tokenizer_transformer(cat_x, cont_x, packed, *, batch_tile=8):
    B = cat_x.shape[0]
    D = packed['cls'].shape[-1]
    n_cat = cat_x.shape[1]
    n_num = cont_x.shape[1]
    out_dim = packed['out_w'].shape[1]

    # CatEncoder: one vectorized gather over the concatenated embedding table (host side).
    cat_tok = jnp.take(packed['emb_all'], cat_x + packed['emb_off'][None, :], axis=0)
    cont3 = cont_x[:, :, None].astype(jnp.float32)

    bt = batch_tile if (B % batch_tile == 0) else B
    grid = (B // bt,)

    def batched(shape):
        nd = len(shape)
        return pl.BlockSpec(shape, lambda b, _nd=nd: (b,) + (0,) * (_nd - 1))

    def resident(arr):
        nd = arr.ndim
        return pl.BlockSpec(arr.shape, lambda b, _nd=nd: (0,) * _nd)

    param_arrays = [packed['num_w'], packed['num_b'], packed['cls'],
                    packed['wqkv'], packed['wo'], packed['w1'], packed['w2'],
                    packed['g1'], packed['be1'], packed['g2'], packed['be2'],
                    packed['bqkv'], packed['bo'], packed['bf1'], packed['bf2'],
                    packed['fln_g'], packed['fln_b'],
                    *packed['head'], packed['out_w'], packed['out_b']]
    args = [cat_tok, cont3] + param_arrays
    in_specs = [batched((bt, n_cat, D)), batched((bt, n_num, 1))] + \
               [resident(a) for a in param_arrays]

    # Scoped-VMEM budget: resident params + (double-buffered) per-step activations + headroom.
    param_bytes = sum(int(np.prod(a.shape)) * a.dtype.itemsize for a in param_arrays)
    act_bytes = 2 * (bt * n_cat * D * 4 + bt * n_num * 4 + bt * out_dim * 4)
    vmem_limit = int(min(100 * 1024 * 1024,
                         max(16 * 1024 * 1024, 4 * (param_bytes + act_bytes))))

    return pl.pallas_call(
        functools.partial(fused_forward_kernel, nhead=packed['nhead']),
        grid=grid,
        out_shape=jax.ShapeDtypeStruct((B, out_dim), jnp.float32),
        in_specs=in_specs,
        out_specs=pl.BlockSpec((bt, out_dim), lambda b: (b, 0)),
        compiler_params=pltpu.CompilerParams(
            dimension_semantics=("parallel",),
            vmem_limit_bytes=vmem_limit),
    )(*args)


# ---------------------------------------------------------------------------
# Parameter construction + host-side packing (bf16 weights, pre-scaled Q, lane-aligned layout)
# ---------------------------------------------------------------------------
def init_params(key, vocab_sizes, num_cont, d, nhead, num_layers, ff,
                mlp_hidden_dims, out_dim):
    keys = iter(jax.random.split(key, 64))

    def nrm(shape, scale=0.05):
        return (scale * jax.random.normal(next(keys), shape)).astype(jnp.float32)

    params = dict(nhead=nhead)
    params['emb'] = [nrm((v, d)) for v in vocab_sizes]
    params['num_w'] = nrm((num_cont, d))
    params['num_b'] = nrm((num_cont, d))
    params['cls'] = nrm((1, 1, d))

    layers = []
    for _ in range(num_layers):
        layers.append(dict(
            g1=jnp.ones((1, d), jnp.float32), be1=jnp.zeros((1, d), jnp.float32),
            wqkv=nrm((d, 3 * d)), bqkv=nrm((1, 3 * d)),
            wo=nrm((d, d)), bo=nrm((1, d)),
            g2=jnp.ones((1, d), jnp.float32), be2=jnp.zeros((1, d), jnp.float32),
            w1=nrm((d, ff)), bf1=nrm((1, ff)),
            w2=nrm((ff, d)), bf2=nrm((1, d)),
        ))
    params['layers'] = layers
    params['final_ln_g'] = jnp.ones((1, d), jnp.float32)
    params['final_ln_b'] = jnp.zeros((1, d), jnp.float32)

    dims = [d] + list(mlp_hidden_dims)
    mlp = []
    for i in range(len(mlp_hidden_dims)):
        mlp.append(dict(w=nrm((dims[i], dims[i + 1])), b=nrm((1, dims[i + 1])),
                        g=jnp.ones((1, dims[i + 1]), jnp.float32),
                        be=jnp.zeros((1, dims[i + 1]), jnp.float32)))
    params['mlp_hidden'] = mlp
    params['out_w'] = nrm((dims[-1], out_dim))
    params['out_b'] = nrm((1, out_dim))
    return params


def pack_params(params):
    """Per-tensor stacked arrays (leading layer axis): bf16 matmul weights, f32 vectors,
    attention scale folded into the Q projection at pack time."""
    D = params['cls'].shape[-1]
    nhead = params['nhead']
    dh = D // nhead
    scale = 1.0 / np.sqrt(dh)
    layers = params['layers']
    bf16 = jnp.bfloat16

    def scale_q(mat):   # scale the Q block (first D entries along the last axis)
        return jnp.concatenate([mat[..., :D] * scale, mat[..., D:]], axis=-1)

    wqkv = jnp.stack([scale_q(lp['wqkv']) for lp in layers]).astype(bf16)   # (L, D, 3D)
    wo = jnp.stack([lp['wo'] for lp in layers]).astype(bf16)                # (L, D, D)
    w1 = jnp.stack([lp['w1'] for lp in layers]).astype(bf16)                # (L, D, ff)
    w2 = jnp.stack([lp['w2'] for lp in layers]).astype(bf16)                # (L, ff, D)
    g1 = jnp.stack([lp['g1'] for lp in layers])                             # (L, 1, D)
    be1 = jnp.stack([lp['be1'] for lp in layers])
    g2 = jnp.stack([lp['g2'] for lp in layers])
    be2 = jnp.stack([lp['be2'] for lp in layers])
    bqkv = jnp.stack([scale_q(lp['bqkv']) for lp in layers])                # (L, 1, 3D)
    bo = jnp.stack([lp['bo'] for lp in layers])
    bf1 = jnp.stack([lp['bf1'] for lp in layers])
    bf2 = jnp.stack([lp['bf2'] for lp in layers])

    head = []
    for m in params['mlp_hidden']:
        head += [m['w'], m['b'], m['g'], m['be']]

    emb_all = jnp.concatenate(params['emb'], axis=0)
    sizes = np.array([int(t.shape[0]) for t in params['emb']])
    emb_off = jnp.asarray(np.concatenate([[0], np.cumsum(sizes)[:-1]]), jnp.int32)

    return dict(nhead=nhead, cls=params['cls'],
                num_w=params['num_w'], num_b=params['num_b'],
                emb_all=emb_all, emb_off=emb_off,
                wqkv=wqkv, wo=wo, w1=w1, w2=w2,
                g1=g1, be1=be1, g2=g2, be2=be2,
                bqkv=bqkv, bo=bo, bf1=bf1, bf2=bf2,
                fln_g=params['final_ln_g'], fln_b=params['final_ln_b'],
                head=head, out_w=params['out_w'], out_b=params['out_b'])


# ---------------------------------------------------------------------------
# Pure-JAX reference (exact-erf GELU, f32 everywhere) for correctness check
# ---------------------------------------------------------------------------
def ref_forward(cat_x, cont_x, params):
    B = cat_x.shape[0]
    D = params['cls'].shape[-1]
    nhead = params['nhead']
    dh = D // nhead
    cat_tok = jnp.stack([tbl[cat_x[:, i]] for i, tbl in enumerate(params['emb'])], axis=1)
    num_tok = cont_x[:, :, None] * params['num_w'][None] + params['num_b'][None]
    x = jnp.concatenate([jnp.broadcast_to(params['cls'], (B, 1, D)), cat_tok, num_tok], axis=1)
    for lp in params['layers']:
        h = _ln(x, lp['g1'], lp['be1'])
        qkv = jnp.einsum('bsd,de->bse', h, lp['wqkv']) + lp['bqkv']
        q, k, v = qkv[..., :D], qkv[..., D:2 * D], qkv[..., 2 * D:]
        q = q.reshape(B, -1, nhead, dh)
        k = k.reshape(B, -1, nhead, dh)
        v = v.reshape(B, -1, nhead, dh)
        s = jnp.einsum('bqhd,bkhd->bhqk', q, k) / np.sqrt(dh)
        p = jax.nn.softmax(s, axis=-1)
        o = jnp.einsum('bhqk,bkhd->bqhd', p, v).reshape(B, -1, D)
        x = x + jnp.einsum('bsd,de->bse', o, lp['wo']) + lp['bo']
        h2 = _ln(x, lp['g2'], lp['be2'])
        ff = _gelu_erf(jnp.einsum('bsd,df->bsf', h2, lp['w1']) + lp['bf1'])
        x = x + jnp.einsum('bsf,fd->bsd', ff, lp['w2']) + lp['bf2']
    x = _ln(x, params['final_ln_g'], params['final_ln_b'])
    c = x[:, 0, :]
    for m in params['mlp_hidden']:
        c = jnp.maximum(_ln(c @ m['w'] + m['b'], m['g'], m['be']), 0.0)
    return c @ params['out_w'] + params['out_b']


# ---------------------------------------------------------------------------
if __name__ == "__main__":
    key = jax.random.PRNGKey(0)
    vocab_sizes = (5, 7, 4)      # 3 categorical columns
    num_cont = 4                 # 4 continuous features  ->  seq length S = 1 + 3 + 4 = 8
    d_model, nhead, num_layers, dim_ff = 32, 4, 2, 64
    mlp_hidden_dims = (48, 24)
    out_dim = 3
    B = 16                       # 2 batch tiles of 8 -> exercises the parallel batch grid

    kp, kc, kn = jax.random.split(key, 3)
    params = init_params(kp, vocab_sizes, num_cont, d_model, nhead,
                         num_layers, dim_ff, mlp_hidden_dims, out_dim)
    packed = pack_params(params)

    cat_x = jnp.stack([jax.random.randint(jax.random.fold_in(kc, i), (B,), 0, v)
                       for i, v in enumerate(vocab_sizes)], axis=1)        # (B, 3) int32
    cont_x = jax.random.normal(kn, (B, num_cont), dtype=jnp.float32)       # (B, 4) f32

    out = feature_tokenizer_transformer(cat_x, cont_x, packed)
    out = jax.block_until_ready(out)

    ref = ref_forward(cat_x, cont_x, params)
    assert out.shape == (B, out_dim)
    assert bool(jnp.all(jnp.isfinite(out)))
    np.testing.assert_allclose(np.asarray(out), np.asarray(ref), atol=5e-2, rtol=5e-2)
    print("KERNEL_OK")
</pallas_src>

<mosaic_0001>
module attributes {stable_mosaic.version = 11 : i64} {
  func.func @fused_forward_kernel(%arg0: i32, %arg1: memref<8x3x32xf32, #tpu.memory_space<vmem>>, %arg2: memref<8x4x1xf32, #tpu.memory_space<vmem>>, %arg3: memref<4x32xf32, #tpu.memory_space<vmem>>, %arg4: memref<4x32xf32, #tpu.memory_space<vmem>>, %arg5: memref<1x1x32xf32, #tpu.memory_space<vmem>>, %arg6: memref<2x32x96xbf16, #tpu.memory_space<vmem>>, %arg7: memref<2x32x32xbf16, #tpu.memory_space<vmem>>, %arg8: memref<2x32x64xbf16, #tpu.memory_space<vmem>>, %arg9: memref<2x64x32xbf16, #tpu.memory_space<vmem>>, %arg10: memref<2x1x32xf32, #tpu.memory_space<vmem>>, %arg11: memref<2x1x32xf32, #tpu.memory_space<vmem>>, %arg12: memref<2x1x32xf32, #tpu.memory_space<vmem>>, %arg13: memref<2x1x32xf32, #tpu.memory_space<vmem>>, %arg14: memref<2x1x96xf32, #tpu.memory_space<vmem>>, %arg15: memref<2x1x32xf32, #tpu.memory_space<vmem>>, %arg16: memref<2x1x64xf32, #tpu.memory_space<vmem>>, %arg17: memref<2x1x32xf32, #tpu.memory_space<vmem>>, %arg18: memref<1x32xf32, #tpu.memory_space<vmem>>, %arg19: memref<1x32xf32, #tpu.memory_space<vmem>>, %arg20: memref<32x48xf32, #tpu.memory_space<vmem>>, %arg21: memref<1x48xf32, #tpu.memory_space<vmem>>, %arg22: memref<1x48xf32, #tpu.memory_space<vmem>>, %arg23: memref<1x48xf32, #tpu.memory_space<vmem>>, %arg24: memref<48x24xf32, #tpu.memory_space<vmem>>, %arg25: memref<1x24xf32, #tpu.memory_space<vmem>>, %arg26: memref<1x24xf32, #tpu.memory_space<vmem>>, %arg27: memref<1x24xf32, #tpu.memory_space<vmem>>, %arg28: memref<24x3xf32, #tpu.memory_space<vmem>>, %arg29: memref<1x3xf32, #tpu.memory_space<vmem>>, %arg30: memref<8x3xf32, #tpu.memory_space<vmem>>) attributes {dimension_semantics = [#tpu.dimension_semantics<parallel>], iteration_bounds = array<i64: 2>, scalar_prefetch = 0 : i64, scratch_operands = 0 : i64, tpu.core_type = #tpu.core_type<tc>, window_params = [{transform_indices = @transform_0, window_bounds = array<i64: 8, 3, 32>}, {transform_indices = @transform_1, window_bounds = array<i64: 8, 4, 1>}, {pipeline_mode = #tpu.pipeline_mode<synchronous>, transform_indices = @transform_2, window_bounds = array<i64: 4, 32>}, {pipeline_mode = #tpu.pipeline_mode<synchronous>, transform_indices = @transform_3, window_bounds = array<i64: 4, 32>}, {pipeline_mode = #tpu.pipeline_mode<synchronous>, transform_indices = @transform_4, window_bounds = array<i64: 1, 1, 32>}, {pipeline_mode = #tpu.pipeline_mode<synchronous>, transform_indices = @transform_5, window_bounds = array<i64: 2, 32, 96>}, {pipeline_mode = #tpu.pipeline_mode<synchronous>, transform_indices = @transform_6, window_bounds = array<i64: 2, 32, 32>}, {pipeline_mode = #tpu.pipeline_mode<synchronous>, transform_indices = @transform_7, window_bounds = array<i64: 2, 32, 64>}, {pipeline_mode = #tpu.pipeline_mode<synchronous>, transform_indices = @transform_8, window_bounds = array<i64: 2, 64, 32>}, {pipeline_mode = #tpu.pipeline_mode<synchronous>, transform_indices = @transform_9, window_bounds = array<i64: 2, 1, 32>}, {pipeline_mode = #tpu.pipeline_mode<synchronous>, transform_indices = @transform_10, window_bounds = array<i64: 2, 1, 32>}, {pipeline_mode = #tpu.pipeline_mode<synchronous>, transform_indices = @transform_11, window_bounds = array<i64: 2, 1, 32>}, {pipeline_mode = #tpu.pipeline_mode<synchronous>, transform_indices = @transform_12, window_bounds = array<i64: 2, 1, 32>}, {pipeline_mode = #tpu.pipeline_mode<synchronous>, transform_indices = @transform_13, window_bounds = array<i64: 2, 1, 96>}, {pipeline_mode = #tpu.pipeline_mode<synchronous>, transform_indices = @transform_14, window_bounds = array<i64: 2, 1, 32>}, {pipeline_mode = #tpu.pipeline_mode<synchronous>, transform_indices = @transform_15, window_bounds = array<i64: 2, 1, 64>}, {pipeline_mode = #tpu.pipeline_mode<synchronous>, transform_indices = @transform_16, window_bounds = array<i64: 2, 1, 32>}, {pipeline_mode = #tpu.pipeline_mode<synchronous>, transform_indices = @transform_17, window_bounds = array<i64: 1, 32>}, {pipeline_mode = #tpu.pipeline_mode<synchronous>, transform_indices = @transform_18, window_bounds = array<i64: 1, 32>}, {pipeline_mode = #tpu.pipeline_mode<synchronous>, transform_indices = @transform_19, window_bounds = array<i64: 32, 48>}, {pipeline_mode = #tpu.pipeline_mode<synchronous>, transform_indices = @transform_20, window_bounds = array<i64: 1, 48>}, {pipeline_mode = #tpu.pipeline_mode<synchronous>, transform_indices = @transform_21, window_bounds = array<i64: 1, 48>}, {pipeline_mode = #tpu.pipeline_mode<synchronous>, transform_indices = @transform_22, window_bounds = array<i64: 1, 48>}, {pipeline_mode = #tpu.pipeline_mode<synchronous>, transform_indices = @transform_23, window_bounds = array<i64: 48, 24>}, {pipeline_mode = #tpu.pipeline_mode<synchronous>, transform_indices = @transform_24, window_bounds = array<i64: 1, 24>}, {pipeline_mode = #tpu.pipeline_mode<synchronous>, transform_indices = @transform_25, window_bounds = array<i64: 1, 24>}, {pipeline_mode = #tpu.pipeline_mode<synchronous>, transform_indices = @transform_26, window_bounds = array<i64: 1, 24>}, {pipeline_mode = #tpu.pipeline_mode<synchronous>, transform_indices = @transform_27, window_bounds = array<i64: 24, 3>}, {pipeline_mode = #tpu.pipeline_mode<synchronous>, transform_indices = @transform_28, window_bounds = array<i64: 1, 3>}, {transform_indices = @transform_29, window_bounds = array<i64: 8, 3>}]} {
    %c0 = arith.constant 0 : index
    %c0_0 = arith.constant 0 : index
    %c0_1 = arith.constant 0 : index
    %0 = vector.load %arg1[%c0, %c0_0, %c0_1] : memref<8x3x32xf32, #tpu.memory_space<vmem>>, vector<8x3x32xf32>
    %c0_2 = arith.constant 0 : index
    %c0_3 = arith.constant 0 : index
    %c0_4 = arith.constant 0 : index
    %1 = vector.load %arg2[%c0_2, %c0_3, %c0_4] : memref<8x4x1xf32, #tpu.memory_space<vmem>>, vector<8x4x1xf32>
    %c0_5 = arith.constant 0 : index
    %c0_6 = arith.constant 0 : index
    %c0_7 = arith.constant 0 : index
    %2 = vector.load %arg5[%c0_5, %c0_6, %c0_7] : memref<1x1x32xf32, #tpu.memory_space<vmem>>, vector<1x1x32xf32>
    %3 = vector.shape_cast %2 : vector<1x1x32xf32> to vector<1x1x32xf32>
    %4 = vector.broadcast %3 : vector<1x1x32xf32> to vector<8x1x32xf32>
    %c0_8 = arith.constant 0 : index
    %c0_9 = arith.constant 0 : index
    %5 = vector.load %arg3[%c0_8, %c0_9] : memref<4x32xf32, #tpu.memory_space<vmem>>, vector<4x32xf32>
    %6 = vector.shape_cast %5 : vector<4x32xf32> to vector<1x4x32xf32>
    %7 = vector.broadcast %1 : vector<8x4x1xf32> to vector<8x4x32xf32>
    %8 = vector.broadcast %6 : vector<1x4x32xf32> to vector<8x4x32xf32>
    %9 = arith.mulf %7, %8 : vector<8x4x32xf32>
    %c0_10 = arith.constant 0 : index
    %c0_11 = arith.constant 0 : index
    %10 = vector.load %arg4[%c0_10, %c0_11] : memref<4x32xf32, #tpu.memory_space<vmem>>, vector<4x32xf32>
    %11 = vector.shape_cast %10 : vector<4x32xf32> to vector<1x4x32xf32>
    %12 = vector.broadcast %11 : vector<1x4x32xf32> to vector<8x4x32xf32>
    %13 = arith.addf %9, %12 : vector<8x4x32xf32>
    %14 = tpu.concatenate %4, %0, %13 in 1 : vector<8x1x32xf32>, vector<8x3x32xf32>, vector<8x4x32xf32> -> vector<8x8x32xf32>
    %c0_12 = arith.constant 0 : index
    %c0_13 = arith.constant 0 : index
    %c0_14 = arith.constant 0 : index
    %15 = vector.load %arg6[%c0_12, %c0_13, %c0_14] : memref<2x32x96xbf16, #tpu.memory_space<vmem>>, vector<1x32x96xbf16>
    %16 = vector.shape_cast %15 : vector<1x32x96xbf16> to vector<32x96xbf16>
    %c0_15 = arith.constant 0 : index
    %c0_16 = arith.constant 0 : index
    %c0_17 = arith.constant 0 : index
    %17 = vector.load %arg7[%c0_15, %c0_16, %c0_17] : memref<2x32x32xbf16, #tpu.memory_space<vmem>>, vector<1x32x32xbf16>
    %18 = vector.shape_cast %17 : vector<1x32x32xbf16> to vector<32x32xbf16>
    %c0_18 = arith.constant 0 : index
    %c0_19 = arith.constant 0 : index
    %c0_20 = arith.constant 0 : index
    %19 = vector.load %arg8[%c0_18, %c0_19, %c0_20] : memref<2x32x64xbf16, #tpu.memory_space<vmem>>, vector<1x32x64xbf16>
    %20 = vector.shape_cast %19 : vector<1x32x64xbf16> to vector<32x64xbf16>
    %c0_21 = arith.constant 0 : index
    %c0_22 = arith.constant 0 : index
    %c0_23 = arith.constant 0 : index
    %21 = vector.load %arg9[%c0_21, %c0_22, %c0_23] : memref<2x64x32xbf16, #tpu.memory_space<vmem>>, vector<1x64x32xbf16>
    %22 = vector.shape_cast %21 : vector<1x64x32xbf16> to vector<64x32xbf16>
    %c0_24 = arith.constant 0 : index
    %c0_25 = arith.constant 0 : index
    %c0_26 = arith.constant 0 : index
    %23 = vector.load %arg10[%c0_24, %c0_25, %c0_26] : memref<2x1x32xf32, #tpu.memory_space<vmem>>, vector<1x1x32xf32>
    %24 = vector.shape_cast %23 : vector<1x1x32xf32> to vector<1x32xf32>
    %c0_27 = arith.constant 0 : index
    %c0_28 = arith.constant 0 : index
    %c0_29 = arith.constant 0 : index
    %25 = vector.load %arg11[%c0_27, %c0_28, %c0_29] : memref<2x1x32xf32, #tpu.memory_space<vmem>>, vector<1x1x32xf32>
    %26 = vector.shape_cast %25 : vector<1x1x32xf32> to vector<1x32xf32>
    %c0_30 = arith.constant 0 : index
    %c0_31 = arith.constant 0 : index
    %c0_32 = arith.constant 0 : index
    %27 = vector.load %arg12[%c0_30, %c0_31, %c0_32] : memref<2x1x32xf32, #tpu.memory_space<vmem>>, vector<1x1x32xf32>
    %28 = vector.shape_cast %27 : vector<1x1x32xf32> to vector<1x32xf32>
    %c0_33 = arith.constant 0 : index
    %c0_34 = arith.constant 0 : index
    %c0_35 = arith.constant 0 : index
    %29 = vector.load %arg13[%c0_33, %c0_34, %c0_35] : memref<2x1x32xf32, #tpu.memory_space<vmem>>, vector<1x1x32xf32>
    %30 = vector.shape_cast %29 : vector<1x1x32xf32> to vector<1x32xf32>
    %c0_36 = arith.constant 0 : index
    %c0_37 = arith.constant 0 : index
    %c0_38 = arith.constant 0 : index
    %31 = vector.load %arg14[%c0_36, %c0_37, %c0_38] : memref<2x1x96xf32, #tpu.memory_space<vmem>>, vector<1x1x96xf32>
    %32 = vector.shape_cast %31 : vector<1x1x96xf32> to vector<1x96xf32>
    %c0_39 = arith.constant 0 : index
    %c0_40 = arith.constant 0 : index
    %c0_41 = arith.constant 0 : index
    %33 = vector.load %arg15[%c0_39, %c0_40, %c0_41] : memref<2x1x32xf32, #tpu.memory_space<vmem>>, vector<1x1x32xf32>
    %34 = vector.shape_cast %33 : vector<1x1x32xf32> to vector<1x32xf32>
    %c0_42 = arith.constant 0 : index
    %c0_43 = arith.constant 0 : index
    %c0_44 = arith.constant 0 : index
    %35 = vector.load %arg16[%c0_42, %c0_43, %c0_44] : memref<2x1x64xf32, #tpu.memory_space<vmem>>, vector<1x1x64xf32>
    %36 = vector.shape_cast %35 : vector<1x1x64xf32> to vector<1x64xf32>
    %c0_45 = arith.constant 0 : index
    %c0_46 = arith.constant 0 : index
    %c0_47 = arith.constant 0 : index
    %37 = vector.load %arg17[%c0_45, %c0_46, %c0_47] : memref<2x1x32xf32, #tpu.memory_space<vmem>>, vector<1x1x32xf32>
    %38 = vector.shape_cast %37 : vector<1x1x32xf32> to vector<1x32xf32>
    %cst = arith.constant dense<0.000000e+00> : vector<8x8xf32>
    %39 = vector.multi_reduction <add>, %14, %cst [2] : vector<8x8x32xf32> to vector<8x8xf32>
    %40 = vector.shape_cast %39 : vector<8x8xf32> to vector<8x8x1xf32>
    %cst_48 = arith.constant 3.200000e+01 : f32
    %41 = vector.broadcast %cst_48 : f32 to vector<8x8x1xf32>
    %42 = arith.divf %40, %41 : vector<8x8x1xf32>
    %43 = vector.broadcast %42 : vector<8x8x1xf32> to vector<8x8x32xf32>
    %44 = arith.subf %14, %43 : vector<8x8x32xf32>
    %45 = arith.mulf %44, %44 : vector<8x8x32xf32>
    %cst_49 = arith.constant dense<0.000000e+00> : vector<8x8xf32>
    %46 = vector.multi_reduction <add>, %45, %cst_49 [2] : vector<8x8x32xf32> to vector<8x8xf32>
    %47 = vector.shape_cast %46 : vector<8x8xf32> to vector<8x8x1xf32>
    %cst_50 = arith.constant 3.200000e+01 : f32
    %48 = vector.broadcast %cst_50 : f32 to vector<8x8x1xf32>
    %49 = arith.divf %47, %48 : vector<8x8x1xf32>
    %50 = vector.broadcast %42 : vector<8x8x1xf32> to vector<8x8x32xf32>
    %51 = arith.subf %14, %50 : vector<8x8x32xf32>
    %cst_51 = arith.constant 9.99999974E-6 : f32
    %52 = vector.broadcast %cst_51 : f32 to vector<8x8x1xf32>
    %53 = arith.addf %49, %52 : vector<8x8x1xf32>
    %54 = math.rsqrt %53 : vector<8x8x1xf32>
    %55 = vector.broadcast %54 : vector<8x8x1xf32> to vector<8x8x32xf32>
    %56 = arith.mulf %51, %55 : vector<8x8x32xf32>
    %57 = vector.shape_cast %24 : vector<1x32xf32> to vector<1x1x32xf32>
    %58 = vector.broadcast %57 : vector<1x1x32xf32> to vector<8x8x32xf32>
    %59 = arith.mulf %56, %58 : vector<8x8x32xf32>
    %60 = vector.shape_cast %26 : vector<1x32xf32> to vector<1x1x32xf32>
    %61 = vector.broadcast %60 : vector<1x1x32xf32> to vector<8x8x32xf32>
    %62 = arith.addf %59, %61 : vector<8x8x32xf32>
    %63 = vector.shape_cast %62 : vector<8x8x32xf32> to vector<64x32xf32>
    %64 = arith.truncf %63 : vector<64x32xf32> to vector<64x32xbf16>
    %cst_52 = arith.constant dense<0.000000e+00> : vector<64x96xf32>
    %65 = tpu.matmul %64, %16, %cst_52 {dimension_numbers = #tpu.dot_dimension_numbers<[1], [0], [0], [1], [0, 0, 1, 1], [], []>} : vector<64x32xbf16>, vector<32x96xbf16>, vector<64x96xf32> -> vector<64x96xf32>
    %66 = vector.broadcast %32 : vector<1x96xf32> to vector<64x96xf32>
    %67 = arith.addf %65, %66 : vector<64x96xf32>
    %68 = vector.extract_strided_slice %67 {offsets = [0, 0], sizes = [64, 8], strides = [1, 1]} : vector<64x96xf32> to vector<64x8xf32>
    %69 = vector.shape_cast %68 : vector<64x8xf32> to vector<8x8x8xf32>
    %70 = vector.extract_strided_slice %67 {offsets = [0, 32], sizes = [64, 8], strides = [1, 1]} : vector<64x96xf32> to vector<64x8xf32>
    %71 = vector.shape_cast %70 : vector<64x8xf32> to vector<8x8x8xf32>
    %72 = vector.extract_strided_slice %67 {offsets = [0, 64], sizes = [64, 8], strides = [1, 1]} : vector<64x96xf32> to vector<64x8xf32>
    %73 = vector.shape_cast %72 : vector<64x8xf32> to vector<8x8x8xf32>
    %74 = vector.extract_strided_slice %67 {offsets = [0, 8], sizes = [64, 8], strides = [1, 1]} : vector<64x96xf32> to vector<64x8xf32>
    %75 = vector.shape_cast %74 : vector<64x8xf32> to vector<8x8x8xf32>
    %76 = vector.extract_strided_slice %67 {offsets = [0, 40], sizes = [64, 8], strides = [1, 1]} : vector<64x96xf32> to vector<64x8xf32>
    %77 = vector.shape_cast %76 : vector<64x8xf32> to vector<8x8x8xf32>
    %78 = vector.extract_strided_slice %67 {offsets = [0, 72], sizes = [64, 8], strides = [1, 1]} : vector<64x96xf32> to vector<64x8xf32>
    %79 = vector.shape_cast %78 : vector<64x8xf32> to vector<8x8x8xf32>
    %80 = vector.extract_strided_slice %67 {offsets = [0, 16], sizes = [64, 8], strides = [1, 1]} : vector<64x96xf32> to vector<64x8xf32>
    %81 = vector.shape_cast %80 : vector<64x8xf32> to vector<8x8x8xf32>
    %82 = vector.extract_strided_slice %67 {offsets = [0, 48], sizes = [64, 8], strides = [1, 1]} : vector<64x96xf32> to vector<64x8xf32>
    %83 = vector.shape_cast %82 : vector<64x8xf32> to vector<8x8x8xf32>
    %84 = vector.extract_strided_slice %67 {offsets = [0, 80], sizes = [64, 8], strides = [1, 1]} : vector<64x96xf32> to vector<64x8xf32>
    %85 = vector.shape_cast %84 : vector<64x8xf32> to vector<8x8x8xf32>
    %86 = vector.extract_strided_slice %67 {offsets = [0, 24], sizes = [64, 8], strides = [1, 1]} : vector<64x96xf32> to vector<64x8xf32>
    %87 = vector.shape_cast %86 : vector<64x8xf32> to vector<8x8x8xf32>
    %88 = vector.extract_strided_slice %67 {offsets = [0, 56], sizes = [64, 8], strides = [1, 1]} : vector<64x96xf32> to vector<64x8xf32>
    %89 = vector.shape_cast %88 : vector<64x8xf32> to vector<8x8x8xf32>
    %90 = vector.extract_strided_slice %67 {offsets = [0, 88], sizes = [64, 8], strides = [1, 1]} : vector<64x96xf32> to vector<64x8xf32>
    %91 = vector.shape_cast %90 : vector<64x8xf32> to vector<8x8x8xf32>
    %92 = tpu.concatenate %69, %75, %81, %87 in 0 : vector<8x8x8xf32>, vector<8x8x8xf32>, vector<8x8x8xf32>, vector<8x8x8xf32> -> vector<32x8x8xf32>
    %93 = arith.truncf %92 : vector<32x8x8xf32> to vector<32x8x8xbf16>
    %94 = tpu.concatenate %71, %77, %83, %89 in 0 : vector<8x8x8xf32>, vector<8x8x8xf32>, vector<8x8x8xf32>, vector<8x8x8xf32> -> vector<32x8x8xf32>
    %95 = arith.truncf %94 : vector<32x8x8xf32> to vector<32x8x8xbf16>
    %96 = tpu.concatenate %73, %79, %85, %91 in 0 : vector<8x8x8xf32>, vector<8x8x8xf32>, vector<8x8x8xf32>, vector<8x8x8xf32> -> vector<32x8x8xf32>
    %97 = arith.truncf %96 : vector<32x8x8xf32> to vector<32x8x8xbf16>
    "tpu.trace_start"() <{level = 10 : i32, message = "bqd,bkd->bqk"}> : () -> ()
    %cst_53 = arith.constant dense<0.000000e+00> : vector<32x8x8xf32>
    %98 = tpu.matmul %93, %95, %cst_53 {dimension_numbers = #tpu.dot_dimension_numbers<[2], [2], [1], [1], [0, 0, 0, 1, 1, 1], [0], [0]>} : vector<32x8x8xbf16>, vector<32x8x8xbf16>, vector<32x8x8xf32> -> vector<32x8x8xf32>
    "tpu.trace_stop"() : () -> ()
    %cst_54 = arith.constant dense<0xFF800000> : vector<32x8xf32>
    %99 = vector.multi_reduction <maximumf>, %98, %cst_54 [2] : vector<32x8x8xf32> to vector<32x8xf32>
    %100 = vector.shape_cast %99 : vector<32x8xf32> to vector<32x8x1xf32>
    %101 = vector.broadcast %100 : vector<32x8x1xf32> to vector<32x8x8xf32>
    %102 = arith.subf %98, %101 : vector<32x8x8xf32>
    %103 = math.exp %102 : vector<32x8x8xf32>
    %cst_55 = arith.constant dense<0.000000e+00> : vector<32x8xf32>
    %104 = vector.multi_reduction <add>, %103, %cst_55 [2] : vector<32x8x8xf32> to vector<32x8xf32>
    %105 = vector.shape_cast %104 : vector<32x8xf32> to vector<32x8x1xf32>
    %106 = tpu.reciprocal %105 {approx = true} : vector<32x8x1xf32> -> vector<32x8x1xf32>
    %107 = vector.broadcast %106 : vector<32x8x1xf32> to vector<32x8x8xf32>
    %108 = arith.mulf %103, %107 : vector<32x8x8xf32>
    %109 = arith.truncf %108 : vector<32x8x8xf32> to vector<32x8x8xbf16>
    "tpu.trace_start"() <{level = 10 : i32, message = "bqk,bkd->bqd"}> : () -> ()
    %cst_56 = arith.constant dense<0.000000e+00> : vector<32x8x8xf32>
    %110 = tpu.matmul %109, %97, %cst_56 {dimension_numbers = #tpu.dot_dimension_numbers<[2], [1], [1], [2], [0, 0, 0, 1, 1, 2], [0], [0]>} : vector<32x8x8xbf16>, vector<32x8x8xbf16>, vector<32x8x8xf32> -> vector<32x8x8xf32>
    "tpu.trace_stop"() : () -> ()
    %111 = vector.extract_strided_slice %110 {offsets = [0, 0, 0], sizes = [8, 8, 8], strides = [1, 1, 1]} : vector<32x8x8xf32> to vector<8x8x8xf32>
    %112 = vector.extract_strided_slice %110 {offsets = [8, 0, 0], sizes = [8, 8, 8], strides = [1, 1, 1]} : vector<32x8x8xf32> to vector<8x8x8xf32>
    %113 = vector.extract_strided_slice %110 {offsets = [16, 0, 0], sizes = [8, 8, 8], strides = [1, 1, 1]} : vector<32x8x8xf32> to vector<8x8x8xf32>
    %114 = vector.extract_strided_slice %110 {offsets = [24, 0, 0], sizes = [8, 8, 8], strides = [1, 1, 1]} : vector<32x8x8xf32> to vector<8x8x8xf32>
    %115 = tpu.concatenate %111, %112, %113, %114 in 2 : vector<8x8x8xf32>, vector<8x8x8xf32>, vector<8x8x8xf32>, vector<8x8x8xf32> -> vector<8x8x32xf32>
    %116 = vector.shape_cast %115 : vector<8x8x32xf32> to vector<64x32xf32>
    %117 = arith.truncf %116 : vector<64x32xf32> to vector<64x32xbf16>
    %cst_57 = arith.constant dense<0.000000e+00> : vector<64x32xf32>
    %118 = tpu.matmul %117, %18, %cst_57 {dimension_numbers = #tpu.dot_dimension_numbers<[1], [0], [0], [1], [0, 0, 1, 1], [], []>} : vector<64x32xbf16>, vector<32x32xbf16>, vector<64x32xf32> -> vector<64x32xf32>
    %119 = vector.broadcast %34 : vector<1x32xf32> to vector<64x32xf32>
    %120 = arith.addf %118, %119 : vector<64x32xf32>
    %121 = vector.shape_cast %120 : vector<64x32xf32> to vector<8x8x32xf32>
    %122 = arith.addf %14, %121 : vector<8x8x32xf32>
    %cst_58 = arith.constant dense<0.000000e+00> : vector<8x8xf32>
    %123 = vector.multi_reduction <add>, %122, %cst_58 [2] : vector<8x8x32xf32> to vector<8x8xf32>
    %124 = vector.shape_cast %123 : vector<8x8xf32> to vector<8x8x1xf32>
    %cst_59 = arith.constant 3.200000e+01 : f32
    %125 = vector.broadcast %cst_59 : f32 to vector<8x8x1xf32>
    %126 = arith.divf %124, %125 : vector<8x8x1xf32>
    %127 = vector.broadcast %126 : vector<8x8x1xf32> to vector<8x8x32xf32>
    %128 = arith.subf %122, %127 : vector<8x8x32xf32>
    %129 = arith.mulf %128, %128 : vector<8x8x32xf32>
    %cst_60 = arith.constant dense<0.000000e+00> : vector<8x8xf32>
    %130 = vector.multi_reduction <add>, %129, %cst_60 [2] : vector<8x8x32xf32> to vector<8x8xf32>
    %131 = vector.shape_cast %130 : vector<8x8xf32> to vector<8x8x1xf32>
    %cst_61 = arith.constant 3.200000e+01 : f32
    %132 = vector.broadcast %cst_61 : f32 to vector<8x8x1xf32>
    %133 = arith.divf %131, %132 : vector<8x8x1xf32>
    %134 = vector.broadcast %126 : vector<8x8x1xf32> to vector<8x8x32xf32>
    %135 = arith.subf %122, %134 : vector<8x8x32xf32>
    %cst_62 = arith.constant 9.99999974E-6 : f32
    %136 = vector.broadcast %cst_62 : f32 to vector<8x8x1xf32>
    %137 = arith.addf %133, %136 : vector<8x8x1xf32>
    %138 = math.rsqrt %137 : vector<8x8x1xf32>
    %139 = vector.broadcast %138 : vector<8x8x1xf32> to vector<8x8x32xf32>
    %140 = arith.mulf %135, %139 : vector<8x8x32xf32>
    %141 = vector.shape_cast %28 : vector<1x32xf32> to vector<1x1x32xf32>
    %142 = vector.broadcast %141 : vector<1x1x32xf32> to vector<8x8x32xf32>
    %143 = arith.mulf %140, %142 : vector<8x8x32xf32>
    %144 = vector.shape_cast %30 : vector<1x32xf32> to vector<1x1x32xf32>
    %145 = vector.broadcast %144 : vector<1x1x32xf32> to vector<8x8x32xf32>
    %146 = arith.addf %143, %145 : vector<8x8x32xf32>
    %147 = vector.shape_cast %146 : vector<8x8x32xf32> to vector<64x32xf32>
    %148 = arith.truncf %147 : vector<64x32xf32> to vector<64x32xbf16>
    %cst_63 = arith.constant dense<0.000000e+00> : vector<64x64xf32>
    %149 = tpu.matmul %148, %20, %cst_63 {dimension_numbers = #tpu.dot_dimension_numbers<[1], [0], [0], [1], [0, 0, 1, 1], [], []>} : vector<64x32xbf16>, vector<32x64xbf16>, vector<64x64xf32> -> vector<64x64xf32>
    %150 = vector.broadcast %36 : vector<1x64xf32> to vector<64x64xf32>
    %151 = arith.addf %149, %150 : vector<64x64xf32>
    %cst_64 = arith.constant 5.000000e-01 : f32
    %152 = vector.broadcast %cst_64 : f32 to vector<64x64xf32>
    %153 = arith.mulf %152, %151 : vector<64x64xf32>
    %154 = arith.mulf %151, %151 : vector<64x64xf32>
    %155 = arith.mulf %154, %151 : vector<64x64xf32>
    %cst_65 = arith.constant 4.471500e-02 : f32
    %156 = vector.broadcast %cst_65 : f32 to vector<64x64xf32>
    %157 = arith.mulf %156, %155 : vector<64x64xf32>
    %158 = arith.addf %151, %157 : vector<64x64xf32>
    %cst_66 = arith.constant 0.797884583 : f32
    %159 = vector.broadcast %cst_66 : f32 to vector<64x64xf32>
    %160 = arith.mulf %159, %158 : vector<64x64xf32>
    %161 = math.tanh %160 : vector<64x64xf32>
    %cst_67 = arith.constant 1.000000e+00 : f32
    %162 = vector.broadcast %cst_67 : f32 to vector<64x64xf32>
    %163 = arith.addf %162, %161 : vector<64x64xf32>
    %164 = arith.mulf %153, %163 : vector<64x64xf32>
    %165 = arith.truncf %164 : vector<64x64xf32> to vector<64x64xbf16>
    %cst_68 = arith.constant dense<0.000000e+00> : vector<64x32xf32>
    %166 = tpu.matmul %165, %22, %cst_68 {dimension_numbers = #tpu.dot_dimension_numbers<[1], [0], [0], [1], [0, 0, 1, 1], [], []>} : vector<64x64xbf16>, vector<64x32xbf16>, vector<64x32xf32> -> vector<64x32xf32>
    %167 = vector.broadcast %38 : vector<1x32xf32> to vector<64x32xf32>
    %168 = arith.addf %166, %167 : vector<64x32xf32>
    %169 = vector.shape_cast %168 : vector<64x32xf32> to vector<8x8x32xf32>
    %170 = arith.addf %122, %169 : vector<8x8x32xf32>
    %c1 = arith.constant 1 : index
    %c0_69 = arith.constant 0 : index
    %c0_70 = arith.constant 0 : index
    %171 = vector.load %arg6[%c1, %c0_69, %c0_70] : memref<2x32x96xbf16, #tpu.memory_space<vmem>>, vector<1x32x96xbf16>
    %172 = vector.shape_cast %171 : vector<1x32x96xbf16> to vector<32x96xbf16>
    %c1_71 = arith.constant 1 : index
    %c0_72 = arith.constant 0 : index
    %c0_73 = arith.constant 0 : index
    %173 = vector.load %arg7[%c1_71, %c0_72, %c0_73] : memref<2x32x32xbf16, #tpu.memory_space<vmem>>, vector<1x32x32xbf16>
    %174 = vector.shape_cast %173 : vector<1x32x32xbf16> to vector<32x32xbf16>
    %c1_74 = arith.constant 1 : index
    %c0_75 = arith.constant 0 : index
    %c0_76 = arith.constant 0 : index
    %175 = vector.load %arg8[%c1_74, %c0_75, %c0_76] : memref<2x32x64xbf16, #tpu.memory_space<vmem>>, vector<1x32x64xbf16>
    %176 = vector.shape_cast %175 : vector<1x32x64xbf16> to vector<32x64xbf16>
    %c1_77 = arith.constant 1 : index
    %c0_78 = arith.constant 0 : index
    %c0_79 = arith.constant 0 : index
    %177 = vector.load %arg9[%c1_77, %c0_78, %c0_79] : memref<2x64x32xbf16, #tpu.memory_space<vmem>>, vector<1x64x32xbf16>
    %178 = vector.shape_cast %177 : vector<1x64x32xbf16> to vector<64x32xbf16>
    %c1_80 = arith.constant 1 : index
    %c0_81 = arith.constant 0 : index
    %c0_82 = arith.constant 0 : index
    %179 = vector.load %arg10[%c1_80, %c0_81, %c0_82] : memref<2x1x32xf32, #tpu.memory_space<vmem>>, vector<1x1x32xf32>
    %180 = vector.shape_cast %179 : vector<1x1x32xf32> to vector<1x32xf32>
    %c1_83 = arith.constant 1 : index
    %c0_84 = arith.constant 0 : index
    %c0_85 = arith.constant 0 : index
    %181 = vector.load %arg11[%c1_83, %c0_84, %c0_85] : memref<2x1x32xf32, #tpu.memory_space<vmem>>, vector<1x1x32xf32>
    %182 = vector.shape_cast %181 : vector<1x1x32xf32> to vector<1x32xf32>
    %c1_86 = arith.constant 1 : index
    %c0_87 = arith.constant 0 : index
    %c0_88 = arith.constant 0 : index
    %183 = vector.load %arg12[%c1_86, %c0_87, %c0_88] : memref<2x1x32xf32, #tpu.memory_space<vmem>>, vector<1x1x32xf32>
    %184 = vector.shape_cast %183 : vector<1x1x32xf32> to vector<1x32xf32>
    %c1_89 = arith.constant 1 : index
    %c0_90 = arith.constant 0 : index
    %c0_91 = arith.constant 0 : index
    %185 = vector.load %arg13[%c1_89, %c0_90, %c0_91] : memref<2x1x32xf32, #tpu.memory_space<vmem>>, vector<1x1x32xf32>
    %186 = vector.shape_cast %185 : vector<1x1x32xf32> to vector<1x32xf32>
    %c1_92 = arith.constant 1 : index
    %c0_93 = arith.constant 0 : index
    %c0_94 = arith.constant 0 : index
    %187 = vector.load %arg14[%c1_92, %c0_93, %c0_94] : memref<2x1x96xf32, #tpu.memory_space<vmem>>, vector<1x1x96xf32>
    %188 = vector.shape_cast %187 : vector<1x1x96xf32> to vector<1x96xf32>
    %c1_95 = arith.constant 1 : index
    %c0_96 = arith.constant 0 : index
    %c0_97 = arith.constant 0 : index
    %189 = vector.load %arg15[%c1_95, %c0_96, %c0_97] : memref<2x1x32xf32, #tpu.memory_space<vmem>>, vector<1x1x32xf32>
    %190 = vector.shape_cast %189 : vector<1x1x32xf32> to vector<1x32xf32>
    %c1_98 = arith.constant 1 : index
    %c0_99 = arith.constant 0 : index
    %c0_100 = arith.constant 0 : index
    %191 = vector.load %arg16[%c1_98, %c0_99, %c0_100] : memref<2x1x64xf32, #tpu.memory_space<vmem>>, vector<1x1x64xf32>
    %192 = vector.shape_cast %191 : vector<1x1x64xf32> to vector<1x64xf32>
    %c1_101 = arith.constant 1 : index
    %c0_102 = arith.constant 0 : index
    %c0_103 = arith.constant 0 : index
    %193 = vector.load %arg17[%c1_101, %c0_102, %c0_103] : memref<2x1x32xf32, #tpu.memory_space<vmem>>, vector<1x1x32xf32>
    %194 = vector.shape_cast %193 : vector<1x1x32xf32> to vector<1x32xf32>
    %cst_104 = arith.constant dense<0.000000e+00> : vector<8x8xf32>
    %195 = vector.multi_reduction <add>, %170, %cst_104 [2] : vector<8x8x32xf32> to vector<8x8xf32>
    %196 = vector.shape_cast %195 : vector<8x8xf32> to vector<8x8x1xf32>
    %cst_105 = arith.constant 3.200000e+01 : f32
    %197 = vector.broadcast %cst_105 : f32 to vector<8x8x1xf32>
    %198 = arith.divf %196, %197 : vector<8x8x1xf32>
    %199 = vector.broadcast %198 : vector<8x8x1xf32> to vector<8x8x32xf32>
    %200 = arith.subf %170, %199 : vector<8x8x32xf32>
    %201 = arith.mulf %200, %200 : vector<8x8x32xf32>
    %cst_106 = arith.constant dense<0.000000e+00> : vector<8x8xf32>
    %202 = vector.multi_reduction <add>, %201, %cst_106 [2] : vector<8x8x32xf32> to vector<8x8xf32>
    %203 = vector.shape_cast %202 : vector<8x8xf32> to vector<8x8x1xf32>
    %cst_107 = arith.constant 3.200000e+01 : f32
    %204 = vector.broadcast %cst_107 : f32 to vector<8x8x1xf32>
    %205 = arith.divf %203, %204 : vector<8x8x1xf32>
    %206 = vector.broadcast %198 : vector<8x8x1xf32> to vector<8x8x32xf32>
    %207 = arith.subf %170, %206 : vector<8x8x32xf32>
    %cst_108 = arith.constant 9.99999974E-6 : f32
    %208 = vector.broadcast %cst_108 : f32 to vector<8x8x1xf32>
    %209 = arith.addf %205, %208 : vector<8x8x1xf32>
    %210 = math.rsqrt %209 : vector<8x8x1xf32>
    %211 = vector.broadcast %210 : vector<8x8x1xf32> to vector<8x8x32xf32>
    %212 = arith.mulf %207, %211 : vector<8x8x32xf32>
    %213 = vector.shape_cast %180 : vector<1x32xf32> to vector<1x1x32xf32>
    %214 = vector.broadcast %213 : vector<1x1x32xf32> to vector<8x8x32xf32>
    %215 = arith.mulf %212, %214 : vector<8x8x32xf32>
    %216 = vector.shape_cast %182 : vector<1x32xf32> to vector<1x1x32xf32>
    %217 = vector.broadcast %216 : vector<1x1x32xf32> to vector<8x8x32xf32>
    %218 = arith.addf %215, %217 : vector<8x8x32xf32>
    %219 = vector.shape_cast %218 : vector<8x8x32xf32> to vector<64x32xf32>
    %220 = arith.truncf %219 : vector<64x32xf32> to vector<64x32xbf16>
    %cst_109 = arith.constant dense<0.000000e+00> : vector<64x96xf32>
    %221 = tpu.matmul %220, %172, %cst_109 {dimension_numbers = #tpu.dot_dimension_numbers<[1], [0], [0], [1], [0, 0, 1, 1], [], []>} : vector<64x32xbf16>, vector<32x96xbf16>, vector<64x96xf32> -> vector<64x96xf32>
    %222 = vector.broadcast %188 : vector<1x96xf32> to vector<64x96xf32>
    %223 = arith.addf %221, %222 : vector<64x96xf32>
    %224 = vector.extract_strided_slice %223 {offsets = [0, 0], sizes = [64, 8], strides = [1, 1]} : vector<64x96xf32> to vector<64x8xf32>
    %225 = vector.shape_cast %224 : vector<64x8xf32> to vector<8x8x8xf32>
    %226 = vector.extract_strided_slice %223 {offsets = [0, 32], sizes = [64, 8], strides = [1, 1]} : vector<64x96xf32> to vector<64x8xf32>
    %227 = vector.shape_cast %226 : vector<64x8xf32> to vector<8x8x8xf32>
    %228 = vector.extract_strided_slice %223 {offsets = [0, 64], sizes = [64, 8], strides = [1, 1]} : vector<64x96xf32> to vector<64x8xf32>
    %229 = vector.shape_cast %228 : vector<64x8xf32> to vector<8x8x8xf32>
    %230 = vector.extract_strided_slice %223 {offsets = [0, 8], sizes = [64, 8], strides = [1, 1]} : vector<64x96xf32> to vector<64x8xf32>
    %231 = vector.shape_cast %230 : vector<64x8xf32> to vector<8x8x8xf32>
    %232 = vector.extract_strided_slice %223 {offsets = [0, 40], sizes = [64, 8], strides = [1, 1]} : vector<64x96xf32> to vector<64x8xf32>
    %233 = vector.shape_cast %232 : vector<64x8xf32> to vector<8x8x8xf32>
    %234 = vector.extract_strided_slice %223 {offsets = [0, 72], sizes = [64, 8], strides = [1, 1]} : vector<64x96xf32> to vector<64x8xf32>
    %235 = vector.shape_cast %234 : vector<64x8xf32> to vector<8x8x8xf32>
    %236 = vector.extract_strided_slice %223 {offsets = [0, 16], sizes = [64, 8], strides = [1, 1]} : vector<64x96xf32> to vector<64x8xf32>
    %237 = vector.shape_cast %236 : vector<64x8xf32> to vector<8x8x8xf32>
    %238 = vector.extract_strided_slice %223 {offsets = [0, 48], sizes = [64, 8], strides = [1, 1]} : vector<64x96xf32> to vector<64x8xf32>
    %239 = vector.shape_cast %238 : vector<64x8xf32> to vector<8x8x8xf32>
    %240 = vector.extract_strided_slice %223 {offsets = [0, 80], sizes = [64, 8], strides = [1, 1]} : vector<64x96xf32> to vector<64x8xf32>
    %241 = vector.shape_cast %240 : vector<64x8xf32> to vector<8x8x8xf32>
    %242 = vector.extract_strided_slice %223 {offsets = [0, 24], sizes = [64, 8], strides = [1, 1]} : vector<64x96xf32> to vector<64x8xf32>
    %243 = vector.shape_cast %242 : vector<64x8xf32> to vector<8x8x8xf32>
    %244 = vector.extract_strided_slice %223 {offsets = [0, 56], sizes = [64, 8], strides = [1, 1]} : vector<64x96xf32> to vector<64x8xf32>
    %245 = vector.shape_cast %244 : vector<64x8xf32> to vector<8x8x8xf32>
    %246 = vector.extract_strided_slice %223 {offsets = [0, 88], sizes = [64, 8], strides = [1, 1]} : vector<64x96xf32> to vector<64x8xf32>
    %247 = vector.shape_cast %246 : vector<64x8xf32> to vector<8x8x8xf32>
    %248 = tpu.concatenate %225, %231, %237, %243 in 0 : vector<8x8x8xf32>, vector<8x8x8xf32>, vector<8x8x8xf32>, vector<8x8x8xf32> -> vector<32x8x8xf32>
    %249 = arith.truncf %248 : vector<32x8x8xf32> to vector<32x8x8xbf16>
    %250 = tpu.concatenate %227, %233, %239, %245 in 0 : vector<8x8x8xf32>, vector<8x8x8xf32>, vector<8x8x8xf32>, vector<8x8x8xf32> -> vector<32x8x8xf32>
    %251 = arith.truncf %250 : vector<32x8x8xf32> to vector<32x8x8xbf16>
    %252 = tpu.concatenate %229, %235, %241, %247 in 0 : vector<8x8x8xf32>, vector<8x8x8xf32>, vector<8x8x8xf32>, vector<8x8x8xf32> -> vector<32x8x8xf32>
    %253 = arith.truncf %252 : vector<32x8x8xf32> to vector<32x8x8xbf16>
    "tpu.trace_start"() <{level = 10 : i32, message = "bqd,bkd->bqk"}> : () -> ()
    %cst_110 = arith.constant dense<0.000000e+00> : vector<32x8x8xf32>
    %254 = tpu.matmul %249, %251, %cst_110 {dimension_numbers = #tpu.dot_dimension_numbers<[2], [2], [1], [1], [0, 0, 0, 1, 1, 1], [0], [0]>} : vector<32x8x8xbf16>, vector<32x8x8xbf16>, vector<32x8x8xf32> -> vector<32x8x8xf32>
    "tpu.trace_stop"() : () -> ()
    %cst_111 = arith.constant dense<0xFF800000> : vector<32x8xf32>
    %255 = vector.multi_reduction <maximumf>, %254, %cst_111 [2] : vector<32x8x8xf32> to vector<32x8xf32>
    %256 = vector.shape_cast %255 : vector<32x8xf32> to vector<32x8x1xf32>
    %257 = vector.broadcast %256 : vector<32x8x1xf32> to vector<32x8x8xf32>
    %258 = arith.subf %254, %257 : vector<32x8x8xf32>
    %259 = math.exp %258 : vector<32x8x8xf32>
    %cst_112 = arith.constant dense<0.000000e+00> : vector<32x8xf32>
    %260 = vector.multi_reduction <add>, %259, %cst_112 [2] : vector<32x8x8xf32> to vector<32x8xf32>
    %261 = vector.shape_cast %260 : vector<32x8xf32> to vector<32x8x1xf32>
    %262 = tpu.reciprocal %261 {approx = true} : vector<32x8x1xf32> -> vector<32x8x1xf32>
    %263 = vector.broadcast %262 : vector<32x8x1xf32> to vector<32x8x8xf32>
    %264 = arith.mulf %259, %263 : vector<32x8x8xf32>
    %265 = arith.truncf %264 : vector<32x8x8xf32> to vector<32x8x8xbf16>
    "tpu.trace_start"() <{level = 10 : i32, message = "bqk,bkd->bqd"}> : () -> ()
    %cst_113 = arith.constant dense<0.000000e+00> : vector<32x8x8xf32>
    %266 = tpu.matmul %265, %253, %cst_113 {dimension_numbers = #tpu.dot_dimension_numbers<[2], [1], [1], [2], [0, 0, 0, 1, 1, 2], [0], [0]>} : vector<32x8x8xbf16>, vector<32x8x8xbf16>, vector<32x8x8xf32> -> vector<32x8x8xf32>
    "tpu.trace_stop"() : () -> ()
    %267 = vector.extract_strided_slice %266 {offsets = [0, 0, 0], sizes = [8, 8, 8], strides = [1, 1, 1]} : vector<32x8x8xf32> to vector<8x8x8xf32>
    %268 = vector.extract_strided_slice %266 {offsets = [8, 0, 0], sizes = [8, 8, 8], strides = [1, 1, 1]} : vector<32x8x8xf32> to vector<8x8x8xf32>
    %269 = vector.extract_strided_slice %266 {offsets = [16, 0, 0], sizes = [8, 8, 8], strides = [1, 1, 1]} : vector<32x8x8xf32> to vector<8x8x8xf32>
    %270 = vector.extract_strided_slice %266 {offsets = [24, 0, 0], sizes = [8, 8, 8], strides = [1, 1, 1]} : vector<32x8x8xf32> to vector<8x8x8xf32>
    %271 = tpu.concatenate %267, %268, %269, %270 in 2 : vector<8x8x8xf32>, vector<8x8x8xf32>, vector<8x8x8xf32>, vector<8x8x8xf32> -> vector<8x8x32xf32>
    %272 = vector.shape_cast %271 : vector<8x8x32xf32> to vector<64x32xf32>
    %273 = arith.truncf %272 : vector<64x32xf32> to vector<64x32xbf16>
    %cst_114 = arith.constant dense<0.000000e+00> : vector<64x32xf32>
    %274 = tpu.matmul %273, %174, %cst_114 {dimension_numbers = #tpu.dot_dimension_numbers<[1], [0], [0], [1], [0, 0, 1, 1], [], []>} : vector<64x32xbf16>, vector<32x32xbf16>, vector<64x32xf32> -> vector<64x32xf32>
    %275 = vector.broadcast %190 : vector<1x32xf32> to vector<64x32xf32>
    %276 = arith.addf %274, %275 : vector<64x32xf32>
    %277 = vector.shape_cast %276 : vector<64x32xf32> to vector<8x8x32xf32>
    %278 = arith.addf %170, %277 : vector<8x8x32xf32>
    %cst_115 = arith.constant dense<0.000000e+00> : vector<8x8xf32>
    %279 = vector.multi_reduction <add>, %278, %cst_115 [2] : vector<8x8x32xf32> to vector<8x8xf32>
    %280 = vector.shape_cast %279 : vector<8x8xf32> to vector<8x8x1xf32>
    %cst_116 = arith.constant 3.200000e+01 : f32
    %281 = vector.broadcast %cst_116 : f32 to vector<8x8x1xf32>
    %282 = arith.divf %280, %281 : vector<8x8x1xf32>
    %283 = vector.broadcast %282 : vector<8x8x1xf32> to vector<8x8x32xf32>
    %284 = arith.subf %278, %283 : vector<8x8x32xf32>
    %285 = arith.mulf %284, %284 : vector<8x8x32xf32>
    %cst_117 = arith.constant dense<0.000000e+00> : vector<8x8xf32>
    %286 = vector.multi_reduction <add>, %285, %cst_117 [2] : vector<8x8x32xf32> to vector<8x8xf32>
    %287 = vector.shape_cast %286 : vector<8x8xf32> to vector<8x8x1xf32>
    %cst_118 = arith.constant 3.200000e+01 : f32
    %288 = vector.broadcast %cst_118 : f32 to vector<8x8x1xf32>
    %289 = arith.divf %287, %288 : vector<8x8x1xf32>
    %290 = vector.broadcast %282 : vector<8x8x1xf32> to vector<8x8x32xf32>
    %291 = arith.subf %278, %290 : vector<8x8x32xf32>
    %cst_119 = arith.constant 9.99999974E-6 : f32
    %292 = vector.broadcast %cst_119 : f32 to vector<8x8x1xf32>
    %293 = arith.addf %289, %292 : vector<8x8x1xf32>
    %294 = math.rsqrt %293 : vector<8x8x1xf32>
    %295 = vector.broadcast %294 : vector<8x8x1xf32> to vector<8x8x32xf32>
    %296 = arith.mulf %291, %295 : vector<8x8x32xf32>
    %297 = vector.shape_cast %184 : vector<1x32xf32> to vector<1x1x32xf32>
    %298 = vector.broadcast %297 : vector<1x1x32xf32> to vector<8x8x32xf32>
    %299 = arith.mulf %296, %298 : vector<8x8x32xf32>
    %300 = vector.shape_cast %186 : vector<1x32xf32> to vector<1x1x32xf32>
    %301 = vector.broadcast %300 : vector<1x1x32xf32> to vector<8x8x32xf32>
    %302 = arith.addf %299, %301 : vector<8x8x32xf32>
    %303 = vector.shape_cast %302 : vector<8x8x32xf32> to vector<64x32xf32>
    %304 = arith.truncf %303 : vector<64x32xf32> to vector<64x32xbf16>
    %cst_120 = arith.constant dense<0.000000e+00> : vector<64x64xf32>
    %305 = tpu.matmul %304, %176, %cst_120 {dimension_numbers = #tpu.dot_dimension_numbers<[1], [0], [0], [1], [0, 0, 1, 1], [], []>} : vector<64x32xbf16>, vector<32x64xbf16>, vector<64x64xf32> -> vector<64x64xf32>
    %306 = vector.broadcast %192 : vector<1x64xf32> to vector<64x64xf32>
    %307 = arith.addf %305, %306 : vector<64x64xf32>
    %cst_121 = arith.constant 5.000000e-01 : f32
    %308 = vector.broadcast %cst_121 : f32 to vector<64x64xf32>
    %309 = arith.mulf %308, %307 : vector<64x64xf32>
    %310 = arith.mulf %307, %307 : vector<64x64xf32>
    %311 = arith.mulf %310, %307 : vector<64x64xf32>
    %cst_122 = arith.constant 4.471500e-02 : f32
    %312 = vector.broadcast %cst_122 : f32 to vector<64x64xf32>
    %313 = arith.mulf %312, %311 : vector<64x64xf32>
    %314 = arith.addf %307, %313 : vector<64x64xf32>
    %cst_123 = arith.constant 0.797884583 : f32
    %315 = vector.broadcast %cst_123 : f32 to vector<64x64xf32>
    %316 = arith.mulf %315, %314 : vector<64x64xf32>
    %317 = math.tanh %316 : vector<64x64xf32>
    %cst_124 = arith.constant 1.000000e+00 : f32
    %318 = vector.broadcast %cst_124 : f32 to vector<64x64xf32>
    %319 = arith.addf %318, %317 : vector<64x64xf32>
    %320 = arith.mulf %309, %319 : vector<64x64xf32>
    %321 = arith.truncf %320 : vector<64x64xf32> to vector<64x64xbf16>
    %cst_125 = arith.constant dense<0.000000e+00> : vector<64x32xf32>
    %322 = tpu.matmul %321, %178, %cst_125 {dimension_numbers = #tpu.dot_dimension_numbers<[1], [0], [0], [1], [0, 0, 1, 1], [], []>} : vector<64x64xbf16>, vector<64x32xbf16>, vector<64x32xf32> -> vector<64x32xf32>
    %323 = vector.broadcast %194 : vector<1x32xf32> to vector<64x32xf32>
    %324 = arith.addf %322, %323 : vector<64x32xf32>
    %325 = vector.shape_cast %324 : vector<64x32xf32> to vector<8x8x32xf32>
    %326 = arith.addf %278, %325 : vector<8x8x32xf32>
    %327 = vector.extract_strided_slice %326 {offsets = [0, 0, 0], sizes = [8, 1, 32], strides = [1, 1, 1]} : vector<8x8x32xf32> to vector<8x1x32xf32>
    %328 = vector.shape_cast %327 : vector<8x1x32xf32> to vector<8x32xf32>
    %c0_126 = arith.constant 0 : index
    %c0_127 = arith.constant 0 : index
    %329 = vector.load %arg18[%c0_126, %c0_127] : memref<1x32xf32, #tpu.memory_space<vmem>>, vector<1x32xf32>
    %c0_128 = arith.constant 0 : index
    %c0_129 = arith.constant 0 : index
    %330 = vector.load %arg19[%c0_128, %c0_129] : memref<1x32xf32, #tpu.memory_space<vmem>>, vector<1x32xf32>
    %cst_130 = arith.constant dense<0.000000e+00> : vector<8xf32>
    %331 = vector.multi_reduction <add>, %328, %cst_130 [1] : vector<8x32xf32> to vector<8xf32>
    %332 = vector.shape_cast %331 : vector<8xf32> to vector<8x1xf32>
    %cst_131 = arith.constant 3.200000e+01 : f32
    %333 = vector.broadcast %cst_131 : f32 to vector<8x1xf32>
    %334 = arith.divf %332, %333 : vector<8x1xf32>
    %335 = vector.broadcast %334 : vector<8x1xf32> to vector<8x32xf32>
    %336 = arith.subf %328, %335 : vector<8x32xf32>
    %337 = arith.mulf %336, %336 : vector<8x32xf32>
    %cst_132 = arith.constant dense<0.000000e+00> : vector<8xf32>
    %338 = vector.multi_reduction <add>, %337, %cst_132 [1] : vector<8x32xf32> to vector<8xf32>
    %339 = vector.shape_cast %338 : vector<8xf32> to vector<8x1xf32>
    %cst_133 = arith.constant 3.200000e+01 : f32
    %340 = vector.broadcast %cst_133 : f32 to vector<8x1xf32>
    %341 = arith.divf %339, %340 : vector<8x1xf32>
    %342 = vector.broadcast %334 : vector<8x1xf32> to vector<8x32xf32>
    %343 = arith.subf %328, %342 : vector<8x32xf32>
    %cst_134 = arith.constant 9.99999974E-6 : f32
    %344 = vector.broadcast %cst_134 : f32 to vector<8x1xf32>
    %345 = arith.addf %341, %344 : vector<8x1xf32>
    %346 = math.rsqrt %345 : vector<8x1xf32>
    %347 = vector.broadcast %346 : vector<8x1xf32> to vector<8x32xf32>
    %348 = arith.mulf %343, %347 : vector<8x32xf32>
    %349 = vector.broadcast %329 : vector<1x32xf32> to vector<8x32xf32>
    %350 = arith.mulf %348, %349 : vector<8x32xf32>
    %351 = vector.broadcast %330 : vector<1x32xf32> to vector<8x32xf32>
    %352 = arith.addf %350, %351 : vector<8x32xf32>
    %c0_135 = arith.constant 0 : index
    %c0_136 = arith.constant 0 : index
    %353 = vector.load %arg20[%c0_135, %c0_136] : memref<32x48xf32, #tpu.memory_space<vmem>>, vector<32x48xf32>
    %c0_137 = arith.constant 0 : index
    %c0_138 = arith.constant 0 : index
    %354 = vector.load %arg21[%c0_137, %c0_138] : memref<1x48xf32, #tpu.memory_space<vmem>>, vector<1x48xf32>
    %c0_139 = arith.constant 0 : index
    %c0_140 = arith.constant 0 : index
    %355 = vector.load %arg22[%c0_139, %c0_140] : memref<1x48xf32, #tpu.memory_space<vmem>>, vector<1x48xf32>
    %c0_141 = arith.constant 0 : index
    %c0_142 = arith.constant 0 : index
    %356 = vector.load %arg23[%c0_141, %c0_142] : memref<1x48xf32, #tpu.memory_space<vmem>>, vector<1x48xf32>
    %cst_143 = arith.constant dense<0.000000e+00> : vector<8x48xf32>
    %357 = tpu.matmul %352, %353, %cst_143 {dimension_numbers = #tpu.dot_dimension_numbers<[1], [0], [0], [1], [0, 0, 1, 1], [], []>} : vector<8x32xf32>, vector<32x48xf32>, vector<8x48xf32> -> vector<8x48xf32>
    %358 = vector.broadcast %354 : vector<1x48xf32> to vector<8x48xf32>
    %359 = arith.addf %357, %358 : vector<8x48xf32>
    %cst_144 = arith.constant dense<0.000000e+00> : vector<8xf32>
    %360 = vector.multi_reduction <add>, %359, %cst_144 [1] : vector<8x48xf32> to vector<8xf32>
    %361 = vector.shape_cast %360 : vector<8xf32> to vector<8x1xf32>
    %cst_145 = arith.constant 4.800000e+01 : f32
    %362 = vector.broadcast %cst_145 : f32 to vector<8x1xf32>
    %363 = arith.divf %361, %362 : vector<8x1xf32>
    %364 = vector.broadcast %363 : vector<8x1xf32> to vector<8x48xf32>
    %365 = arith.subf %359, %364 : vector<8x48xf32>
    %366 = arith.mulf %365, %365 : vector<8x48xf32>
    %cst_146 = arith.constant dense<0.000000e+00> : vector<8xf32>
    %367 = vector.multi_reduction <add>, %366, %cst_146 [1] : vector<8x48xf32> to vector<8xf32>
    %368 = vector.shape_cast %367 : vector<8xf32> to vector<8x1xf32>
    %cst_147 = arith.constant 4.800000e+01 : f32
    %369 = vector.broadcast %cst_147 : f32 to vector<8x1xf32>
    %370 = arith.divf %368, %369 : vector<8x1xf32>
    %371 = vector.broadcast %363 : vector<8x1xf32> to vector<8x48xf32>
    %372 = arith.subf %359, %371 : vector<8x48xf32>
    %cst_148 = arith.constant 9.99999974E-6 : f32
    %373 = vector.broadcast %cst_148 : f32 to vector<8x1xf32>
    %374 = arith.addf %370, %373 : vector<8x1xf32>
    %375 = math.rsqrt %374 : vector<8x1xf32>
    %376 = vector.broadcast %375 : vector<8x1xf32> to vector<8x48xf32>
    %377 = arith.mulf %372, %376 : vector<8x48xf32>
    %378 = vector.broadcast %355 : vector<1x48xf32> to vector<8x48xf32>
    %379 = arith.mulf %377, %378 : vector<8x48xf32>
    %380 = vector.broadcast %356 : vector<1x48xf32> to vector<8x48xf32>
    %381 = arith.addf %379, %380 : vector<8x48xf32>
    %cst_149 = arith.constant 0.000000e+00 : f32
    %382 = vector.broadcast %cst_149 : f32 to vector<8x48xf32>
    %383 = arith.maximumf %381, %382 : vector<8x48xf32>
    %c0_150 = arith.constant 0 : index
    %c0_151 = arith.constant 0 : index
    %384 = vector.load %arg24[%c0_150, %c0_151] : memref<48x24xf32, #tpu.memory_space<vmem>>, vector<48x24xf32>
    %c0_152 = arith.constant 0 : index
    %c0_153 = arith.constant 0 : index
    %385 = vector.load %arg25[%c0_152, %c0_153] : memref<1x24xf32, #tpu.memory_space<vmem>>, vector<1x24xf32>
    %c0_154 = arith.constant 0 : index
    %c0_155 = arith.constant 0 : index
    %386 = vector.load %arg26[%c0_154, %c0_155] : memref<1x24xf32, #tpu.memory_space<vmem>>, vector<1x24xf32>
    %c0_156 = arith.constant 0 : index
    %c0_157 = arith.constant 0 : index
    %387 = vector.load %arg27[%c0_156, %c0_157] : memref<1x24xf32, #tpu.memory_space<vmem>>, vector<1x24xf32>
    %cst_158 = arith.constant dense<0.000000e+00> : vector<8x24xf32>
    %388 = tpu.matmul %383, %384, %cst_158 {dimension_numbers = #tpu.dot_dimension_numbers<[1], [0], [0], [1], [0, 0, 1, 1], [], []>} : vector<8x48xf32>, vector<48x24xf32>, vector<8x24xf32> -> vector<8x24xf32>
    %389 = vector.broadcast %385 : vector<1x24xf32> to vector<8x24xf32>
    %390 = arith.addf %388, %389 : vector<8x24xf32>
    %cst_159 = arith.constant dense<0.000000e+00> : vector<8xf32>
    %391 = vector.multi_reduction <add>, %390, %cst_159 [1] : vector<8x24xf32> to vector<8xf32>
    %392 = vector.shape_cast %391 : vector<8xf32> to vector<8x1xf32>
    %cst_160 = arith.constant 2.400000e+01 : f32
    %393 = vector.broadcast %cst_160 : f32 to vector<8x1xf32>
    %394 = arith.divf %392, %393 : vector<8x1xf32>
    %395 = vector.broadcast %394 : vector<8x1xf32> to vector<8x24xf32>
    %396 = arith.subf %390, %395 : vector<8x24xf32>
    %397 = arith.mulf %396, %396 : vector<8x24xf32>
    %cst_161 = arith.constant dense<0.000000e+00> : vector<8xf32>
    %398 = vector.multi_reduction <add>, %397, %cst_161 [1] : vector<8x24xf32> to vector<8xf32>
    %399 = vector.shape_cast %398 : vector<8xf32> to vector<8x1xf32>
    %cst_162 = arith.constant 2.400000e+01 : f32
    %400 = vector.broadcast %cst_162 : f32 to vector<8x1xf32>
    %401 = arith.divf %399, %400 : vector<8x1xf32>
    %402 = vector.broadcast %394 : vector<8x1xf32> to vector<8x24xf32>
    %403 = arith.subf %390, %402 : vector<8x24xf32>
    %cst_163 = arith.constant 9.99999974E-6 : f32
    %404 = vector.broadcast %cst_163 : f32 to vector<8x1xf32>
    %405 = arith.addf %401, %404 : vector<8x1xf32>
    %406 = math.rsqrt %405 : vector<8x1xf32>
    %407 = vector.broadcast %406 : vector<8x1xf32> to vector<8x24xf32>
    %408 = arith.mulf %403, %407 : vector<8x24xf32>
    %409 = vector.broadcast %386 : vector<1x24xf32> to vector<8x24xf32>
    %410 = arith.mulf %408, %409 : vector<8x24xf32>
    %411 = vector.broadcast %387 : vector<1x24xf32> to vector<8x24xf32>
    %412 = arith.addf %410, %411 : vector<8x24xf32>
    %cst_164 = arith.constant 0.000000e+00 : f32
    %413 = vector.broadcast %cst_164 : f32 to vector<8x24xf32>
    %414 = arith.maximumf %412, %413 : vector<8x24xf32>
    %c0_165 = arith.constant 0 : index
    %c0_166 = arith.constant 0 : index
    %415 = vector.load %arg28[%c0_165, %c0_166] : memref<24x3xf32, #tpu.memory_space<vmem>>, vector<24x3xf32>
    %cst_167 = arith.constant dense<0.000000e+00> : vector<8x3xf32>
    %416 = tpu.matmul %414, %415, %cst_167 {dimension_numbers = #tpu.dot_dimension_numbers<[1], [0], [0], [1], [0, 0, 1, 1], [], []>} : vector<8x24xf32>, vector<24x3xf32>, vector<8x3xf32> -> vector<8x3xf32>
    %c0_168 = arith.constant 0 : index
    %c0_169 = arith.constant 0 : index
    %417 = vector.load %arg29[%c0_168, %c0_169] : memref<1x3xf32, #tpu.memory_space<vmem>>, vector<1x3xf32>
    %418 = vector.broadcast %417 : vector<1x3xf32> to vector<8x3xf32>
    %419 = arith.addf %416, %418 : vector<8x3xf32>
    %c0_170 = arith.constant 0 : index
    %c0_171 = arith.constant 0 : index
    %420 = vector.load %arg30[%c0_170, %c0_171] : memref<8x3xf32, #tpu.memory_space<vmem>>, vector<8x3xf32>
    tpu.vector_store %arg30[%c0_170, %c0_171], %419 {strides = array<i32>} : memref<8x3xf32, #tpu.memory_space<vmem>>, vector<8x3xf32>,
    return
  }
  func.func @transform_0(%arg0: i32) -> (i32, i32, i32) {
    %c0_i32 = arith.constant 0 : i32
    %c0_i32_0 = arith.constant 0 : i32
    %c0_i32_1 = arith.constant 0 : i32
    return %arg0, %c0_i32, %c0_i32_0 : i32, i32, i32
  }
  func.func @transform_1(%arg0: i32) -> (i32, i32, i32) {
    %c0_i32 = arith.constant 0 : i32
    %c0_i32_0 = arith.constant 0 : i32
    %c0_i32_1 = arith.constant 0 : i32
    return %arg0, %c0_i32, %c0_i32_0 : i32, i32, i32
  }
  func.func @transform_2(%arg0: i32) -> (i32, i32) {
    %c0_i32 = arith.constant 0 : i32
    %c0_i32_0 = arith.constant 0 : i32
    %c0_i32_1 = arith.constant 0 : i32
    return %c0_i32, %c0_i32_0 : i32, i32
  }
  func.func @transform_3(%arg0: i32) -> (i32, i32) {
    %c0_i32 = arith.constant 0 : i32
    %c0_i32_0 = arith.constant 0 : i32
    %c0_i32_1 = arith.constant 0 : i32
    return %c0_i32, %c0_i32_0 : i32, i32
  }
  func.func @transform_4(%arg0: i32) -> (i32, i32, i32) {
    %c0_i32 = arith.constant 0 : i32
    %c0_i32_0 = arith.constant 0 : i32
    %c0_i32_1 = arith.constant 0 : i32
    %c0_i32_2 = arith.constant 0 : i32
    return %c0_i32, %c0_i32_0, %c0_i32_1 : i32, i32, i32
  }
  func.func @transform_5(%arg0: i32) -> (i32, i32, i32) {
    %c0_i32 = arith.constant 0 : i32
    %c0_i32_0 = arith.constant 0 : i32
    %c0_i32_1 = arith.constant 0 : i32
    %c0_i32_2 = arith.constant 0 : i32
    return %c0_i32, %c0_i32_0, %c0_i32_1 : i32, i32, i32
  }
  func.func @transform_6(%arg0: i32) -> (i32, i32, i32) {
    %c0_i32 = arith.constant 0 : i32
    %c0_i32_0 = arith.constant 0 : i32
    %c0_i32_1 = arith.constant 0 : i32
    %c0_i32_2 = arith.constant 0 : i32
    return %c0_i32, %c0_i32_0, %c0_i32_1 : i32, i32, i32
  }
  func.func @transform_7(%arg0: i32) -> (i32, i32, i32) {
    %c0_i32 = arith.constant 0 : i32
    %c0_i32_0 = arith.constant 0 : i32
    %c0_i32_1 = arith.constant 0 : i32
    %c0_i32_2 = arith.constant 0 : i32
    return %c0_i32, %c0_i32_0, %c0_i32_1 : i32, i32, i32
  }
  func.func @transform_8(%arg0: i32) -> (i32, i32, i32) {
    %c0_i32 = arith.constant 0 : i32
    %c0_i32_0 = arith.constant 0 : i32
    %c0_i32_1 = arith.constant 0 : i32
    %c0_i32_2 = arith.constant 0 : i32
    return %c0_i32, %c0_i32_0, %c0_i32_1 : i32, i32, i32
  }
  func.func @transform_9(%arg0: i32) -> (i32, i32, i32) {
    %c0_i32 = arith.constant 0 : i32
    %c0_i32_0 = arith.constant 0 : i32
    %c0_i32_1 = arith.constant 0 : i32
    %c0_i32_2 = arith.constant 0 : i32
    return %c0_i32, %c0_i32_0, %c0_i32_1 : i32, i32, i32
  }
  func.func @transform_10(%arg0: i32) -> (i32, i32, i32) {
    %c0_i32 = arith.constant 0 : i32
    %c0_i32_0 = arith.constant 0 : i32
    %c0_i32_1 = arith.constant 0 : i32
    %c0_i32_2 = arith.constant 0 : i32
    return %c0_i32, %c0_i32_0, %c0_i32_1 : i32, i32, i32
  }
  func.func @transform_11(%arg0: i32) -> (i32, i32, i32) {
    %c0_i32 = arith.constant 0 : i32
    %c0_i32_0 = arith.constant 0 : i32
    %c0_i32_1 = arith.constant 0 : i32
    %c0_i32_2 = arith.constant 0 : i32
    return %c0_i32, %c0_i32_0, %c0_i32_1 : i32, i32, i32
  }
  func.func @transform_12(%arg0: i32) -> (i32, i32, i32) {
    %c0_i32 = arith.constant 0 : i32
    %c0_i32_0 = arith.constant 0 : i32
    %c0_i32_1 = arith.constant 0 : i32
    %c0_i32_2 = arith.constant 0 : i32
    return %c0_i32, %c0_i32_0, %c0_i32_1 : i32, i32, i32
  }
  func.func @transform_13(%arg0: i32) -> (i32, i32, i32) {
    %c0_i32 = arith.constant 0 : i32
    %c0_i32_0 = arith.constant 0 : i32
    %c0_i32_1 = arith.constant 0 : i32
    %c0_i32_2 = arith.constant 0 : i32
    return %c0_i32, %c0_i32_0, %c0_i32_1 : i32, i32, i32
  }
  func.func @transform_14(%arg0: i32) -> (i32, i32, i32) {
    %c0_i32 = arith.constant 0 : i32
    %c0_i32_0 = arith.constant 0 : i32
    %c0_i32_1 = arith.constant 0 : i32
    %c0_i32_2 = arith.constant 0 : i32
    return %c0_i32, %c0_i32_0, %c0_i32_1 : i32, i32, i32
  }
  func.func @transform_15(%arg0: i32) -> (i32, i32, i32) {
    %c0_i32 = arith.constant 0 : i32
    %c0_i32_0 = arith.constant 0 : i32
    %c0_i32_1 = arith.constant 0 : i32
    %c0_i32_2 = arith.constant 0 : i32
    return %c0_i32, %c0_i32_0, %c0_i32_1 : i32, i32, i32
  }
  func.func @transform_16(%arg0: i32) -> (i32, i32, i32) {
    %c0_i32 = arith.constant 0 : i32
    %c0_i32_0 = arith.constant 0 : i32
    %c0_i32_1 = arith.constant 0 : i32
    %c0_i32_2 = arith.constant 0 : i32
    return %c0_i32, %c0_i32_0, %c0_i32_1 : i32, i32, i32
  }
  func.func @transform_17(%arg0: i32) -> (i32, i32) {
    %c0_i32 = arith.constant 0 : i32
    %c0_i32_0 = arith.constant 0 : i32
    %c0_i32_1 = arith.constant 0 : i32
    return %c0_i32, %c0_i32_0 : i32, i32
  }
  func.func @transform_18(%arg0: i32) -> (i32, i32) {
    %c0_i32 = arith.constant 0 : i32
    %c0_i32_0 = arith.constant 0 : i32
    %c0_i32_1 = arith.constant 0 : i32
    return %c0_i32, %c0_i32_0 : i32, i32
  }
  func.func @transform_19(%arg0: i32) -> (i32, i32) {
    %c0_i32 = arith.constant 0 : i32
    %c0_i32_0 = arith.constant 0 : i32
    %c0_i32_1 = arith.constant 0 : i32
    return %c0_i32, %c0_i32_0 : i32, i32
  }
  func.func @transform_20(%arg0: i32) -> (i32, i32) {
    %c0_i32 = arith.constant 0 : i32
    %c0_i32_0 = arith.constant 0 : i32
    %c0_i32_1 = arith.constant 0 : i32
    return %c0_i32, %c0_i32_0 : i32, i32
  }
  func.func @transform_21(%arg0: i32) -> (i32, i32) {
    %c0_i32 = arith.constant 0 : i32
    %c0_i32_0 = arith.constant 0 : i32
    %c0_i32_1 = arith.constant 0 : i32
    return %c0_i32, %c0_i32_0 : i32, i32
  }
  func.func @transform_22(%arg0: i32) -> (i32, i32) {
    %c0_i32 = arith.constant 0 : i32
    %c0_i32_0 = arith.constant 0 : i32
    %c0_i32_1 = arith.constant 0 : i32
    return %c0_i32, %c0_i32_0 : i32, i32
  }
  func.func @transform_23(%arg0: i32) -> (i32, i32) {
    %c0_i32 = arith.constant 0 : i32
    %c0_i32_0 = arith.constant 0 : i32
    %c0_i32_1 = arith.constant 0 : i32
    return %c0_i32, %c0_i32_0 : i32, i32
  }
  func.func @transform_24(%arg0: i32) -> (i32, i32) {
    %c0_i32 = arith.constant 0 : i32
    %c0_i32_0 = arith.constant 0 : i32
    %c0_i32_1 = arith.constant 0 : i32
    return %c0_i32, %c0_i32_0 : i32, i32
  }
  func.func @transform_25(%arg0: i32) -> (i32, i32) {
    %c0_i32 = arith.constant 0 : i32
    %c0_i32_0 = arith.constant 0 : i32
    %c0_i32_1 = arith.constant 0 : i32
    return %c0_i32, %c0_i32_0 : i32, i32
  }
  func.func @transform_26(%arg0: i32) -> (i32, i32) {
    %c0_i32 = arith.constant 0 : i32
    %c0_i32_0 = arith.constant 0 : i32
    %c0_i32_1 = arith.constant 0 : i32
    return %c0_i32, %c0_i32_0 : i32, i32
  }
  func.func @transform_27(%arg0: i32) -> (i32, i32) {
    %c0_i32 = arith.constant 0 : i32
    %c0_i32_0 = arith.constant 0 : i32
    %c0_i32_1 = arith.constant 0 : i32
    return %c0_i32, %c0_i32_0 : i32, i32
  }
  func.func @transform_28(%arg0: i32) -> (i32, i32) {
    %c0_i32 = arith.constant 0 : i32
    %c0_i32_0 = arith.constant 0 : i32
    %c0_i32_1 = arith.constant 0 : i32
    return %c0_i32, %c0_i32_0 : i32, i32
  }
  func.func @transform_29(%arg0: i32) -> (i32, i32) {
    %c0_i32 = arith.constant 0 : i32
    %c0_i32_0 = arith.constant 0 : i32
    return %arg0, %c0_i32 : i32, i32
  }
}

</mosaic_0001>

<llo_original>
// kernel: tpu_custom_call.1
$region0: #{tpu_custom_call.1}
  #allocation0 [shape = 'u32[]', space=smem, size = 0x4, offset = 0x4, fixed_abs, tag = 'smem constant byte address 0x4 - core index']
  #allocation1 [shape = 'u32[144,128]{1,0:T(1,128)}', space=vmem, size = 0x12000, scoped, tag = 'internal scratch']
  %s0 = inlined_call_operand.smem [shape: u32[30], index: -1, kind: input, shape index: {}]
  %s1 = sld [smem:[%s0]]
  %s2 = scalar_lea.smem %s0, 1
  %s3 = sld [smem:[%s2]]
  %s4 = scalar_lea.smem %s0, 2
  %s5 = sld [smem:[%s4]]
  %s6 = scalar_lea.smem %s0, 3
  %s7 = sld [smem:[%s6]]
  %s8 = scalar_lea.smem %s0, 4
  %s9 = sld [smem:[%s8]]
  %s10 = scalar_lea.smem %s0, 5
  %s11 = sld [smem:[%s10]]
  %s12 = scalar_lea.smem %s0, 6
  %s13 = sld [smem:[%s12]]
  %s14 = scalar_lea.smem %s0, 7
  %s15 = sld [smem:[%s14]]
  %s16 = scalar_lea.smem %s0, 8
  %s17 = sld [smem:[%s16]]
  %s18 = scalar_lea.smem %s0, 9
  %s19 = sld [smem:[%s18]]
  %s20 = scalar_lea.smem %s0, 10
  %s21 = sld [smem:[%s20]]
  %s22 = scalar_lea.smem %s0, 11
  %s23 = sld [smem:[%s22]]
  %s24 = scalar_lea.smem %s0, 12
  %s25 = sld [smem:[%s24]]
  %s26 = scalar_lea.smem %s0, 13
  %s27 = sld [smem:[%s26]]
  %s28 = scalar_lea.smem %s0, 14
  %s29 = sld [smem:[%s28]]
  %s30 = scalar_lea.smem %s0, 15
  %s31 = sld [smem:[%s30]]
  %s32 = scalar_lea.smem %s0, 16
  %s33 = sld [smem:[%s32]]
  %s34 = scalar_lea.smem %s0, 17
  %s35 = sld [smem:[%s34]]
  %s36 = scalar_lea.smem %s0, 18
  %s37 = sld [smem:[%s36]]
  %s38 = scalar_lea.smem %s0, 19
  %s39 = sld [smem:[%s38]]
  %s40 = scalar_lea.smem %s0, 20
  %s41 = sld [smem:[%s40]]
  %s42 = scalar_lea.smem %s0, 21
  %s43 = sld [smem:[%s42]]
  %s44 = scalar_lea.smem %s0, 22
  %s45 = sld [smem:[%s44]]
  %s46 = scalar_lea.smem %s0, 23
  %s47 = sld [smem:[%s46]]
  %s48 = scalar_lea.smem %s0, 24
  %s49 = sld [smem:[%s48]]
  %s50 = scalar_lea.smem %s0, 25
  %s51 = sld [smem:[%s50]]
  %s52 = scalar_lea.smem %s0, 26
  %s53 = sld [smem:[%s52]]
  %s54 = scalar_lea.smem %s0, 27
  %s55 = sld [smem:[%s54]]
  %s56 = scalar_lea.smem %s0, 28
  %s57 = sld [smem:[%s56]]
  %s58 = scalar_lea.smem %s0, 29
  %s59 = sld [smem:[%s58]]
  %s60 = sld [smem:[#allocation0]]
  $region149: #{tpu_custom_call.1} parent=0
    _
  %s62 = ssub.s32 1, %s60
  %s63 = scalar_select 0, %s62, %s60
  loop: start=0, step=1, limit=4
  $region2: #{tpu_custom_call.1} parent=0 // loop_pre_header
    _
  $region3: #{tpu_custom_call.1} parent=0 // loop_header
    %s65 = sphi 0, %s69
    %p66 = scmp.ge.s32.totalorder %s65, 4
    %s75 = sphi 0, %s77
    %s78 = sphi 0, %s75
    %s79 = sphi 0, %s78
    %s95 = sphi 0, %s79
    %s101 = sphi 0, %s103
    %s104 = sphi 0, %s101
    %s105 = sphi 0, %s104
    %s121 = sphi 0, %s105
    %s125 = sphi 0, %s125
    %s127 = sphi 0, %s125
    %s128 = sphi 0, %s127
    %s142 = sphi 0, %s128
    %s146 = sphi 0, %s146
    %s148 = sphi 0, %s146
    %s149 = sphi 0, %s148
    %s163 = sphi 0, %s149
    %s167 = sphi 0, %s167
    %s169 = sphi 0, %s167
    %s170 = sphi 0, %s169
    %s184 = sphi 0, %s170
    %s188 = sphi 0, %s188
    %s190 = sphi 0, %s188
    %s191 = sphi 0, %s190
    %s205 = sphi 0, %s191
    %s209 = sphi 0, %s209
    %s211 = sphi 0, %s209
    %s212 = sphi 0, %s211
    %s226 = sphi 0, %s212
    %s230 = sphi 0, %s230
    %s232 = sphi 0, %s230
    %s233 = sphi 0, %s232
    %s247 = sphi 0, %s233
    %s251 = sphi 0, %s251
    %s253 = sphi 0, %s251
    %s254 = sphi 0, %s253
    %s268 = sphi 0, %s254
    %s272 = sphi 0, %s272
    %s274 = sphi 0, %s272
    %s275 = sphi 0, %s274
    %s289 = sphi 0, %s275
    %s293 = sphi 0, %s293
    %s295 = sphi 0, %s293
    %s296 = sphi 0, %s295
    %s310 = sphi 0, %s296
    %s314 = sphi 0, %s314
    %s316 = sphi 0, %s314
    %s317 = sphi 0, %s316
    %s331 = sphi 0, %s317
    %s335 = sphi 0, %s335
    %s337 = sphi 0, %s335
    %s338 = sphi 0, %s337
    %s352 = sphi 0, %s338
    %s356 = sphi 0, %s356
    %s358 = sphi 0, %s356
    %s359 = sphi 0, %s358
    %s373 = sphi 0, %s359
    %s377 = sphi 0, %s377
    %s379 = sphi 0, %s377
    %s380 = sphi 0, %s379
    %s394 = sphi 0, %s380
    %s398 = sphi 0, %s398
    %s400 = sphi 0, %s398
    %s401 = sphi 0, %s400
    %s415 = sphi 0, %s401
    %s419 = sphi 0, %s419
    %s421 = sphi 0, %s419
    %s422 = sphi 0, %s421
    %s436 = sphi 0, %s422
    %s440 = sphi 0, %s440
    %s442 = sphi 0, %s440
    %s443 = sphi 0, %s442
    %s457 = sphi 0, %s443
    %s461 = sphi 0, %s461
    %s463 = sphi 0, %s461
    %s464 = sphi 0, %s463
    %s478 = sphi 0, %s464
    %s482 = sphi 0, %s482
    %s484 = sphi 0, %s482
    %s485 = sphi 0, %s484
    %s499 = sphi 0, %s485
    %s503 = sphi 0, %s503
    %s505 = sphi 0, %s503
    %s506 = sphi 0, %s505
    %s520 = sphi 0, %s506
    %s524 = sphi 0, %s524
    %s526 = sphi 0, %s524
    %s527 = sphi 0, %s526
    %s541 = sphi 0, %s527
    %s545 = sphi 0, %s545
    %s547 = sphi 0, %s545
    %s548 = sphi 0, %s547
    %s562 = sphi 0, %s548
    %s566 = sphi 0, %s566
    %s568 = sphi 0, %s566
    %s569 = sphi 0, %s568
    %s583 = sphi 0, %s569
    %s587 = sphi 0, %s587
    %s589 = sphi 0, %s587
    %s590 = sphi 0, %s589
    %s604 = sphi 0, %s590
    %s608 = sphi 0, %s608
    %s610 = sphi 0, %s608
    %s611 = sphi 0, %s610
    %s625 = sphi 0, %s611
    %s629 = sphi 0, %s629
    %s631 = sphi 0, %s629
    %s632 = sphi 0, %s631
    %s646 = sphi 0, %s632
    %s650 = sphi 0, %s650
    %s652 = sphi 0, %s650
    %s653 = sphi 0, %s652
    %s667 = sphi 0, %s653
    %s671 = sphi 0, %s671
    %s673 = sphi 0, %s671
    %s674 = sphi 0, %s673
    %s688 = sphi 0, %s674
    %s694 = sphi 0, %s696
    %s697 = sphi 0, %s694
    %s698 = sphi 0, %s697
    %s714 = sphi 0, %s698
  $region4: #{tpu_custom_call.1} parent=0 // loop_header_branch
    %68 = sbr.rel (%p66) target = $region8
  $region5: #{tpu_custom_call.1} parent=0 // loop_body
    %s70 = ssub.s32 %s65, 1
    %s71 = ssub.s32 %s65, 2
    %s72 = sadd.s32 %s65, 1
    %s73 = ssub.s32 %s65, %s72
    %p74 = scmp.eq.s32.totalorder %s73, 0
    %s76 = sadd.s32 %s75, 1
    %s77 = scalar_select %p74, %s75, %s76
    %p80 = pneg %p74
    %p81 = scmp.eq.s32.totalorder %s65, 1
    %p82 = por %p80, %p81
    %p83 = scmp.ne.s32.totalorder %s75, %s78
    %p84 = scmp.eq.s32.totalorder %s65, 0
    %p85 = por %p83, %p84
    %p86 = scmp.ne.s32.totalorder %s75, %s78
    %p87 = scmp.eq.s32.totalorder %s70, 1
    %p88 = por %p86, %p87
    %p89 = scmp.ne.s32.totalorder %s78, %s79
    %p90 = scmp.eq.s32.totalorder %s70, 0
    %p91 = por %p89, %p90
    %p92 = scmp.ne.s32.totalorder %s78, %s79
    %p93 = scmp.eq.s32.totalorder %s71, 1
    %p94 = por %p92, %p93
    %p96 = scmp.ne.s32.totalorder %s79, %s95
    %p97 = scmp.eq.s32.totalorder %s71, 0
    %p98 = por %p96, %p97
    %s99 = ssub.s32 %s65, %s72
    %p100 = scmp.eq.s32.totalorder %s99, 0
    %s102 = sadd.s32 %s101, 1
    %s103 = scalar_select %p100, %s101, %s102
    %p106 = pneg %p100
    %p107 = scmp.eq.s32.totalorder %s65, 1
    %p108 = por %p106, %p107
    %p109 = scmp.ne.s32.totalorder %s101, %s104
    %p110 = scmp.eq.s32.totalorder %s65, 0
    %p111 = por %p109, %p110
    %p112 = scmp.ne.s32.totalorder %s101, %s104
    %p113 = scmp.eq.s32.totalorder %s70, 1
    %p114 = por %p112, %p113
    %p115 = scmp.ne.s32.totalorder %s104, %s105
    %p116 = scmp.eq.s32.totalorder %s70, 0
    %p117 = por %p115, %p116
    %p118 = scmp.ne.s32.totalorder %s104, %s105
    %p119 = scmp.eq.s32.totalorder %s71, 1
    %p120 = por %p118, %p119
    %p122 = scmp.ne.s32.totalorder %s105, %s121
    %p123 = scmp.eq.s32.totalorder %s71, 0
    %p124 = por %p122, %p123
    %s126 = sadd.s32 %s125, 1
    %p129 = scmp.eq.s32.totalorder %s65, 1
    %p130 = scmp.ne.s32.totalorder %s125, %s127
    %p131 = scmp.eq.s32.totalorder %s65, 0
    %p132 = por %p130, %p131
    %p133 = scmp.ne.s32.totalorder %s125, %s127
    %p134 = scmp.eq.s32.totalorder %s70, 1
    %p135 = por %p133, %p134
    %p136 = scmp.ne.s32.totalorder %s127, %s128
    %p137 = scmp.eq.s32.totalorder %s70, 0
    %p138 = por %p136, %p137
    %p139 = scmp.ne.s32.totalorder %s127, %s128
    %p140 = scmp.eq.s32.totalorder %s71, 1
    %p141 = por %p139, %p140
    %p143 = scmp.ne.s32.totalorder %s128, %s142
    %p144 = scmp.eq.s32.totalorder %s71, 0
    %p145 = por %p143, %p144
    %s147 = sadd.s32 %s146, 1
    %p150 = scmp.eq.s32.totalorder %s65, 1
    %p151 = scmp.ne.s32.totalorder %s146, %s148
    %p152 = scmp.eq.s32.totalorder %s65, 0
    %p153 = por %p151, %p152
    %p154 = scmp.ne.s32.totalorder %s146, %s148
    %p155 = scmp.eq.s32.totalorder %s70, 1
    %p156 = por %p154, %p155
    %p157 = scmp.ne.s32.totalorder %s148, %s149
    %p158 = scmp.eq.s32.totalorder %s70, 0
    %p159 = por %p157, %p158
    %p160 = scmp.ne.s32.totalorder %s148, %s149
    %p161 = scmp.eq.s32.totalorder %s71, 1
    %p162 = por %p160, %p161
    %p164 = scmp.ne.s32.totalorder %s149, %s163
    %p165 = scmp.eq.s32.totalorder %s71, 0
    %p166 = por %p164, %p165
    %s168 = sadd.s32 %s167, 1
    %p171 = scmp.eq.s32.totalorder %s65, 1
    %p172 = scmp.ne.s32.totalorder %s167, %s169
    %p173 = scmp.eq.s32.totalorder %s65, 0
    %p174 = por %p172, %p173
    %p175 = scmp.ne.s32.totalorder %s167, %s169
    %p176 = scmp.eq.s32.totalorder %s70, 1
    %p177 = por %p175, %p176
    %p178 = scmp.ne.s32.totalorder %s169, %s170
    %p179 = scmp.eq.s32.totalorder %s70, 0
    %p180 = por %p178, %p179
    %p181 = scmp.ne.s32.totalorder %s169, %s170
    %p182 = scmp.eq.s32.totalorder %s71, 1
    %p183 = por %p181, %p182
    %p185 = scmp.ne.s32.totalorder %s170, %s184
    %p186 = scmp.eq.s32.totalorder %s71, 0
    %p187 = por %p185, %p186
    %s189 = sadd.s32 %s188, 1
    %p192 = scmp.eq.s32.totalorder %s65, 1
    %p193 = scmp.ne.s32.totalorder %s188, %s190
    %p194 = scmp.eq.s32.totalorder %s65, 0
    %p195 = por %p193, %p194
    %p196 = scmp.ne.s32.totalorder %s188, %s190
    %p197 = scmp.eq.s32.totalorder %s70, 1
    %p198 = por %p196, %p197
    %p199 = scmp.ne.s32.totalorder %s190, %s191
    %p200 = scmp.eq.s32.totalorder %s70, 0
    %p201 = por %p199, %p200
    %p202 = scmp.ne.s32.totalorder %s190, %s191
    %p203 = scmp.eq.s32.totalorder %s71, 1
    %p204 = por %p202, %p203
    %p206 = scmp.ne.s32.totalorder %s191, %s205
    %p207 = scmp.eq.s32.totalorder %s71, 0
    %p208 = por %p206, %p207
    %s210 = sadd.s32 %s209, 1
    %p213 = scmp.eq.s32.totalorder %s65, 1
    %p214 = scmp.ne.s32.totalorder %s209, %s211
    %p215 = scmp.eq.s32.totalorder %s65, 0
    %p216 = por %p214, %p215
    %p217 = scmp.ne.s32.totalorder %s209, %s211
    %p218 = scmp.eq.s32.totalorder %s70, 1
    %p219 = por %p217, %p218
    %p220 = scmp.ne.s32.totalorder %s211, %s212
    %p221 = scmp.eq.s32.totalorder %s70, 0
    %p222 = por %p220, %p221
    %p223 = scmp.ne.s32.totalorder %s211, %s212
    %p224 = scmp.eq.s32.totalorder %s71, 1
    %p225 = por %p223, %p224
    %p227 = scmp.ne.s32.totalorder %s212, %s226
    %p228 = scmp.eq.s32.totalorder %s71, 0
    %p229 = por %p227, %p228
    %s231 = sadd.s32 %s230, 1
    %p234 = scmp.eq.s32.totalorder %s65, 1
    %p235 = scmp.ne.s32.totalorder %s230, %s232
    %p236 = scmp.eq.s32.totalorder %s65, 0
    %p237 = por %p235, %p236
    %p238 = scmp.ne.s32.totalorder %s230, %s232
    %p239 = scmp.eq.s32.totalorder %s70, 1
    %p240 = por %p238, %p239
    %p241 = scmp.ne.s32.totalorder %s232, %s233
    %p242 = scmp.eq.s32.totalorder %s70, 0
    %p243 = por %p241, %p242
    %p244 = scmp.ne.s32.totalorder %s232, %s233
    %p245 = scmp.eq.s32.totalorder %s71, 1
    %p246 = por %p244, %p245
    %p248 = scmp.ne.s32.totalorder %s233, %s247
    %p249 = scmp.eq.s32.totalorder %s71, 0
    %p250 = por %p248, %p249
    %s252 = sadd.s32 %s251, 1
    %p255 = scmp.eq.s32.totalorder %s65, 1
    %p256 = scmp.ne.s32.totalorder %s251, %s253
    %p257 = scmp.eq.s32.totalorder %s65, 0
    %p258 = por %p256, %p257
    %p259 = scmp.ne.s32.totalorder %s251, %s253
    %p260 = scmp.eq.s32.totalorder %s70, 1
    %p261 = por %p259, %p260
    %p262 = scmp.ne.s32.totalorder %s253, %s254
    %p263 = scmp.eq.s32.totalorder %s70, 0
    %p264 = por %p262, %p263
    %p265 = scmp.ne.s32.totalorder %s253, %s254
    %p266 = scmp.eq.s32.totalorder %s71, 1
    %p267 = por %p265, %p266
    %p269 = scmp.ne.s32.totalorder %s254, %s268
    %p270 = scmp.eq.s32.totalorder %s71, 0
    %p271 = por %p269, %p270
    %s273 = sadd.s32 %s272, 1
    %p276 = scmp.eq.s32.totalorder %s65, 1
    %p277 = scmp.ne.s32.totalorder %s272, %s274
    %p278 = scmp.eq.s32.totalorder %s65, 0
    %p279 = por %p277, %p278
    %p280 = scmp.ne.s32.totalorder %s272, %s274
    %p281 = scmp.eq.s32.totalorder %s70, 1
    %p282 = por %p280, %p281
    %p283 = scmp.ne.s32.totalorder %s274, %s275
    %p284 = scmp.eq.s32.totalorder %s70, 0
    %p285 = por %p283, %p284
    %p286 = scmp.ne.s32.totalorder %s274, %s275
    %p287 = scmp.eq.s32.totalorder %s71, 1
    %p288 = por %p286, %p287
    %p290 = scmp.ne.s32.totalorder %s275, %s289
    %p291 = scmp.eq.s32.totalorder %s71, 0
    %p292 = por %p290, %p291
    %s294 = sadd.s32 %s293, 1
    %p297 = scmp.eq.s32.totalorder %s65, 1
    %p298 = scmp.ne.s32.totalorder %s293, %s295
    %p299 = scmp.eq.s32.totalorder %s65, 0
    %p300 = por %p298, %p299
    %p301 = scmp.ne.s32.totalorder %s293, %s295
    %p302 = scmp.eq.s32.totalorder %s70, 1
    %p303 = por %p301, %p302
    %p304 = scmp.ne.s32.totalorder %s295, %s296
    %p305 = scmp.eq.s32.totalorder %s70, 0
    %p306 = por %p304, %p305
    %p307 = scmp.ne.s32.totalorder %s295, %s296
    %p308 = scmp.eq.s32.totalorder %s71, 1
    %p309 = por %p307, %p308
    %p311 = scmp.ne.s32.totalorder %s296, %s310
    %p312 = scmp.eq.s32.totalorder %s71, 0
    %p313 = por %p311, %p312
    %s315 = sadd.s32 %s314, 1
    %p318 = scmp.eq.s32.totalorder %s65, 1
    %p319 = scmp.ne.s32.totalorder %s314, %s316
    %p320 = scmp.eq.s32.totalorder %s65, 0
    %p321 = por %p319, %p320
    %p322 = scmp.ne.s32.totalorder %s314, %s316
    %p323 = scmp.eq.s32.totalorder %s70, 1
    %p324 = por %p322, %p323
    %p325 = scmp.ne.s32.totalorder %s316, %s317
    %p326 = scmp.eq.s32.totalorder %s70, 0
    %p327 = por %p325, %p326
    %p328 = scmp.ne.s32.totalorder %s316, %s317
    %p329 = scmp.eq.s32.totalorder %s71, 1
    %p330 = por %p328, %p329
    %p332 = scmp.ne.s32.totalorder %s317, %s331
    %p333 = scmp.eq.s32.totalorder %s71, 0
    %p334 = por %p332, %p333
    %s336 = sadd.s32 %s335, 1
    %p339 = scmp.eq.s32.totalorder %s65, 1
    %p340 = scmp.ne.s32.totalorder %s335, %s337
    %p341 = scmp.eq.s32.totalorder %s65, 0
    %p342 = por %p340, %p341
    %p343 = scmp.ne.s32.totalorder %s335, %s337
    %p344 = scmp.eq.s32.totalorder %s70, 1
    %p345 = por %p343, %p344
    %p346 = scmp.ne.s32.totalorder %s337, %s338
    %p347 = scmp.eq.s32.totalorder %s70, 0
    %p348 = por %p346, %p347
    %p349 = scmp.ne.s32.totalorder %s337, %s338
    %p350 = scmp.eq.s32.totalorder %s71, 1
    %p351 = por %p349, %p350
    %p353 = scmp.ne.s32.totalorder %s338, %s352
    %p354 = scmp.eq.s32.totalorder %s71, 0
    %p355 = por %p353, %p354
    %s357 = sadd.s32 %s356, 1
    %p360 = scmp.eq.s32.totalorder %s65, 1
    %p361 = scmp.ne.s32.totalorder %s356, %s358
    %p362 = scmp.eq.s32.totalorder %s65, 0
    %p363 = por %p361, %p362
    %p364 = scmp.ne.s32.totalorder %s356, %s358
    %p365 = scmp.eq.s32.totalorder %s70, 1
    %p366 = por %p364, %p365
    %p367 = scmp.ne.s32.totalorder %s358, %s359
    %p368 = scmp.eq.s32.totalorder %s70, 0
    %p369 = por %p367, %p368
    %p370 = scmp.ne.s32.totalorder %s358, %s359
    %p371 = scmp.eq.s32.totalorder %s71, 1
    %p372 = por %p370, %p371
    %p374 = scmp.ne.s32.totalorder %s359, %s373
    %p375 = scmp.eq.s32.totalorder %s71, 0
    %p376 = por %p374, %p375
    %s378 = sadd.s32 %s377, 1
    %p381 = scmp.eq.s32.totalorder %s65, 1
    %p382 = scmp.ne.s32.totalorder %s377, %s379
    %p383 = scmp.eq.s32.totalorder %s65, 0
    %p384 = por %p382, %p383
    %p385 = scmp.ne.s32.totalorder %s377, %s379
    %p386 = scmp.eq.s32.totalorder %s70, 1
    %p387 = por %p385, %p386
    %p388 = scmp.ne.s32.totalorder %s379, %s380
    %p389 = scmp.eq.s32.totalorder %s70, 0
    %p390 = por %p388, %p389
    %p391 = scmp.ne.s32.totalorder %s379, %s380
    %p392 = scmp.eq.s32.totalorder %s71, 1
    %p393 = por %p391, %p392
    %p395 = scmp.ne.s32.totalorder %s380, %s394
    %p396 = scmp.eq.s32.totalorder %s71, 0
    %p397 = por %p395, %p396
    %s399 = sadd.s32 %s398, 1
    %p402 = scmp.eq.s32.totalorder %s65, 1
    %p403 = scmp.ne.s32.totalorder %s398, %s400
    %p404 = scmp.eq.s32.totalorder %s65, 0
    %p405 = por %p403, %p404
    %p406 = scmp.ne.s32.totalorder %s398, %s400
    %p407 = scmp.eq.s32.totalorder %s70, 1
    %p408 = por %p406, %p407
    %p409 = scmp.ne.s32.totalorder %s400, %s401
    %p410 = scmp.eq.s32.totalorder %s70, 0
    %p411 = por %p409, %p410
    %p412 = scmp.ne.s32.totalorder %s400, %s401
    %p413 = scmp.eq.s32.totalorder %s71, 1
    %p414 = por %p412, %p413
    %p416 = scmp.ne.s32.totalorder %s401, %s415
    %p417 = scmp.eq.s32.totalorder %s71, 0
    %p418 = por %p416, %p417
    %s420 = sadd.s32 %s419, 1
    %p423 = scmp.eq.s32.totalorder %s65, 1
    %p424 = scmp.ne.s32.totalorder %s419, %s421
    %p425 = scmp.eq.s32.totalorder %s65, 0
    %p426 = por %p424, %p425
    %p427 = scmp.ne.s32.totalorder %s419, %s421
    %p428 = scmp.eq.s32.totalorder %s70, 1
    %p429 = por %p427, %p428
    %p430 = scmp.ne.s32.totalorder %s421, %s422
    %p431 = scmp.eq.s32.totalorder %s70, 0
    %p432 = por %p430, %p431
    %p433 = scmp.ne.s32.totalorder %s421, %s422
    %p434 = scmp.eq.s32.totalorder %s71, 1
    %p435 = por %p433, %p434
    %p437 = scmp.ne.s32.totalorder %s422, %s436
    %p438 = scmp.eq.s32.totalorder %s71, 0
    %p439 = por %p437, %p438
    %s441 = sadd.s32 %s440, 1
    %p444 = scmp.eq.s32.totalorder %s65, 1
    %p445 = scmp.ne.s32.totalorder %s440, %s442
    %p446 = scmp.eq.s32.totalorder %s65, 0
    %p447 = por %p445, %p446
    %p448 = scmp.ne.s32.totalorder %s440, %s442
    %p449 = scmp.eq.s32.totalorder %s70, 1
    %p450 = por %p448, %p449
    %p451 = scmp.ne.s32.totalorder %s442, %s443
    %p452 = scmp.eq.s32.totalorder %s70, 0
    %p453 = por %p451, %p452
    %p454 = scmp.ne.s32.totalorder %s442, %s443
    %p455 = scmp.eq.s32.totalorder %s71, 1
    %p456 = por %p454, %p455
    %p458 = scmp.ne.s32.totalorder %s443, %s457
    %p459 = scmp.eq.s32.totalorder %s71, 0
    %p460 = por %p458, %p459
    %s462 = sadd.s32 %s461, 1
    %p465 = scmp.eq.s32.totalorder %s65, 1
    %p466 = scmp.ne.s32.totalorder %s461, %s463
    %p467 = scmp.eq.s32.totalorder %s65, 0
    %p468 = por %p466, %p467
    %p469 = scmp.ne.s32.totalorder %s461, %s463
    %p470 = scmp.eq.s32.totalorder %s70, 1
    %p471 = por %p469, %p470
    %p472 = scmp.ne.s32.totalorder %s463, %s464
    %p473 = scmp.eq.s32.totalorder %s70, 0
    %p474 = por %p472, %p473
    %p475 = scmp.ne.s32.totalorder %s463, %s464
    %p476 = scmp.eq.s32.totalorder %s71, 1
    %p477 = por %p475, %p476
    %p479 = scmp.ne.s32.totalorder %s464, %s478
    %p480 = scmp.eq.s32.totalorder %s71, 0
    %p481 = por %p479, %p480
    %s483 = sadd.s32 %s482, 1
    %p486 = scmp.eq.s32.totalorder %s65, 1
    %p487 = scmp.ne.s32.totalorder %s482, %s484
    %p488 = scmp.eq.s32.totalorder %s65, 0
    %p489 = por %p487, %p488
    %p490 = scmp.ne.s32.totalorder %s482, %s484
    %p491 = scmp.eq.s32.totalorder %s70, 1
    %p492 = por %p490, %p491
    %p493 = scmp.ne.s32.totalorder %s484, %s485
    %p494 = scmp.eq.s32.totalorder %s70, 0
    %p495 = por %p493, %p494
    %p496 = scmp.ne.s32.totalorder %s484, %s485
    %p497 = scmp.eq.s32.totalorder %s71, 1
    %p498 = por %p496, %p497
    %p500 = scmp.ne.s32.totalorder %s485, %s499
    %p501 = scmp.eq.s32.totalorder %s71, 0
    %p502 = por %p500, %p501
    %s504 = sadd.s32 %s503, 1
    %p507 = scmp.eq.s32.totalorder %s65, 1
    %p508 = scmp.ne.s32.totalorder %s503, %s505
    %p509 = scmp.eq.s32.totalorder %s65, 0
    %p510 = por %p508, %p509
    %p511 = scmp.ne.s32.totalorder %s503, %s505
    %p512 = scmp.eq.s32.totalorder %s70, 1
    %p513 = por %p511, %p512
    %p514 = scmp.ne.s32.totalorder %s505, %s506
    %p515 = scmp.eq.s32.totalorder %s70, 0
    %p516 = por %p514, %p515
    %p517 = scmp.ne.s32.totalorder %s505, %s506
    %p518 = scmp.eq.s32.totalorder %s71, 1
    %p519 = por %p517, %p518
    %p521 = scmp.ne.s32.totalorder %s506, %s520
    %p522 = scmp.eq.s32.totalorder %s71, 0
    %p523 = por %p521, %p522
    %s525 = sadd.s32 %s524, 1
    %p528 = scmp.eq.s32.totalorder %s65, 1
    %p529 = scmp.ne.s32.totalorder %s524, %s526
    %p530 = scmp.eq.s32.totalorder %s65, 0
    %p531 = por %p529, %p530
    %p532 = scmp.ne.s32.totalorder %s524, %s526
    %p533 = scmp.eq.s32.totalorder %s70, 1
    %p534 = por %p532, %p533
    %p535 = scmp.ne.s32.totalorder %s526, %s527
    %p536 = scmp.eq.s32.totalorder %s70, 0
    %p537 = por %p535, %p536
    %p538 = scmp.ne.s32.totalorder %s526, %s527
    %p539 = scmp.eq.s32.totalorder %s71, 1
    %p540 = por %p538, %p539
    %p542 = scmp.ne.s32.totalorder %s527, %s541
    %p543 = scmp.eq.s32.totalorder %s71, 0
    %p544 = por %p542, %p543
    %s546 = sadd.s32 %s545, 1
    %p549 = scmp.eq.s32.totalorder %s65, 1
    %p550 = scmp.ne.s32.totalorder %s545, %s547
    %p551 = scmp.eq.s32.totalorder %s65, 0
    %p552 = por %p550, %p551
    %p553 = scmp.ne.s32.totalorder %s545, %s547
    %p554 = scmp.eq.s32.totalorder %s70, 1
    %p555 = por %p553, %p554
    %p556 = scmp.ne.s32.totalorder %s547, %s548
    %p557 = scmp.eq.s32.totalorder %s70, 0
    %p558 = por %p556, %p557
    %p559 = scmp.ne.s32.totalorder %s547, %s548
    %p560 = scmp.eq.s32.totalorder %s71, 1
    %p561 = por %p559, %p560
    %p563 = scmp.ne.s32.totalorder %s548, %s562
    %p564 = scmp.eq.s32.totalorder %s71, 0
    %p565 = por %p563, %p564
    %s567 = sadd.s32 %s566, 1
    %p570 = scmp.eq.s32.totalorder %s65, 1
    %p571 = scmp.ne.s32.totalorder %s566, %s568
    %p572 = scmp.eq.s32.totalorder %s65, 0
    %p573 = por %p571, %p572
    %p574 = scmp.ne.s32.totalorder %s566, %s568
    %p575 = scmp.eq.s32.totalorder %s70, 1
    %p576 = por %p574, %p575
    %p577 = scmp.ne.s32.totalorder %s568, %s569
    %p578 = scmp.eq.s32.totalorder %s70, 0
    %p579 = por %p577, %p578
    %p580 = scmp.ne.s32.totalorder %s568, %s569
    %p581 = scmp.eq.s32.totalorder %s71, 1
    %p582 = por %p580, %p581
    %p584 = scmp.ne.s32.totalorder %s569, %s583
    %p585 = scmp.eq.s32.totalorder %s71, 0
    %p586 = por %p584, %p585
    %s588 = sadd.s32 %s587, 1
    %p591 = scmp.eq.s32.totalorder %s65, 1
    %p592 = scmp.ne.s32.totalorder %s587, %s589
    %p593 = scmp.eq.s32.totalorder %s65, 0
    %p594 = por %p592, %p593
    %p595 = scmp.ne.s32.totalorder %s587, %s589
    %p596 = scmp.eq.s32.totalorder %s70, 1
    %p597 = por %p595, %p596
    %p598 = scmp.ne.s32.totalorder %s589, %s590
    %p599 = scmp.eq.s32.totalorder %s70, 0
    %p600 = por %p598, %p599
    %p601 = scmp.ne.s32.totalorder %s589, %s590
    %p602 = scmp.eq.s32.totalorder %s71, 1
    %p603 = por %p601, %p602
    %p605 = scmp.ne.s32.totalorder %s590, %s604
    %p606 = scmp.eq.s32.totalorder %s71, 0
    %p607 = por %p605, %p606
    %s609 = sadd.s32 %s608, 1
    %p612 = scmp.eq.s32.totalorder %s65, 1
    %p613 = scmp.ne.s32.totalorder %s608, %s610
    %p614 = scmp.eq.s32.totalorder %s65, 0
    %p615 = por %p613, %p614
    %p616 = scmp.ne.s32.totalorder %s608, %s610
    %p617 = scmp.eq.s32.totalorder %s70, 1
    %p618 = por %p616, %p617
    %p619 = scmp.ne.s32.totalorder %s610, %s611
    %p620 = scmp.eq.s32.totalorder %s70, 0
    %p621 = por %p619, %p620
    %p622 = scmp.ne.s32.totalorder %s610, %s611
    %p623 = scmp.eq.s32.totalorder %s71, 1
    %p624 = por %p622, %p623
    %p626 = scmp.ne.s32.totalorder %s611, %s625
    %p627 = scmp.eq.s32.totalorder %s71, 0
    %p628 = por %p626, %p627
    %s630 = sadd.s32 %s629, 1
    %p633 = scmp.eq.s32.totalorder %s65, 1
    %p634 = scmp.ne.s32.totalorder %s629, %s631
    %p635 = scmp.eq.s32.totalorder %s65, 0
    %p636 = por %p634, %p635
    %p637 = scmp.ne.s32.totalorder %s629, %s631
    %p638 = scmp.eq.s32.totalorder %s70, 1
    %p639 = por %p637, %p638
    %p640 = scmp.ne.s32.totalorder %s631, %s632
    %p641 = scmp.eq.s32.totalorder %s70, 0
    %p642 = por %p640, %p641
    %p643 = scmp.ne.s32.totalorder %s631, %s632
    %p644 = scmp.eq.s32.totalorder %s71, 1
    %p645 = por %p643, %p644
    %p647 = scmp.ne.s32.totalorder %s632, %s646
    %p648 = scmp.eq.s32.totalorder %s71, 0
    %p649 = por %p647, %p648
    %s651 = sadd.s32 %s650, 1
    %p654 = scmp.eq.s32.totalorder %s65, 1
    %p655 = scmp.ne.s32.totalorder %s650, %s652
    %p656 = scmp.eq.s32.totalorder %s65, 0
    %p657 = por %p655, %p656
    %p658 = scmp.ne.s32.totalorder %s650, %s652
    %p659 = scmp.eq.s32.totalorder %s70, 1
    %p660 = por %p658, %p659
    %p661 = scmp.ne.s32.totalorder %s652, %s653
    %p662 = scmp.eq.s32.totalorder %s70, 0
    %p663 = por %p661, %p662
    %p664 = scmp.ne.s32.totalorder %s652, %s653
    %p665 = scmp.eq.s32.totalorder %s71, 1
    %p666 = por %p664, %p665
    %p668 = scmp.ne.s32.totalorder %s653, %s667
    %p669 = scmp.eq.s32.totalorder %s71, 0
    %p670 = por %p668, %p669
    %s672 = sadd.s32 %s671, 1
    %p675 = scmp.eq.s32.totalorder %s65, 1
    %p676 = scmp.ne.s32.totalorder %s671, %s673
    %p677 = scmp.eq.s32.totalorder %s65, 0
    %p678 = por %p676, %p677
    %p679 = scmp.ne.s32.totalorder %s671, %s673
    %p680 = scmp.eq.s32.totalorder %s70, 1
    %p681 = por %p679, %p680
    %p682 = scmp.ne.s32.totalorder %s673, %s674
    %p683 = scmp.eq.s32.totalorder %s70, 0
    %p684 = por %p682, %p683
    %p685 = scmp.ne.s32.totalorder %s673, %s674
    %p686 = scmp.eq.s32.totalorder %s71, 1
    %p687 = por %p685, %p686
    %p689 = scmp.ne.s32.totalorder %s674, %s688
    %p690 = scmp.eq.s32.totalorder %s71, 0
    %p691 = por %p689, %p690
    %s692 = ssub.s32 %s65, %s72
    %p693 = scmp.eq.s32.totalorder %s692, 0
    %s695 = sadd.s32 %s694, 1
    %s696 = scalar_select %p693, %s694, %s695
    %p699 = pneg %p693
    %p700 = scmp.eq.s32.totalorder %s65, 1
    %p701 = por %p699, %p700
    %p702 = scmp.ne.s32.totalorder %s694, %s697
    %p703 = scmp.eq.s32.totalorder %s65, 0
    %p704 = por %p702, %p703
    %p705 = scmp.ne.s32.totalorder %s694, %s697
    %p706 = scmp.eq.s32.totalorder %s70, 1
    %p707 = por %p705, %p706
    %p708 = scmp.ne.s32.totalorder %s697, %s698
    %p709 = scmp.eq.s32.totalorder %s70, 0
    %p710 = por %p708, %p709
    %p711 = scmp.ne.s32.totalorder %s697, %s698
    %p712 = scmp.eq.s32.totalorder %s71, 1
    %p713 = por %p711, %p712
    %p715 = scmp.ne.s32.totalorder %s698, %s714
    %p716 = scmp.eq.s32.totalorder %s71, 0
    %p717 = por %p715, %p716
    %p718 = scmp.le.s32.totalorder 1, %s65
    %p719 = scmp.lt.s32.totalorder %s65, 3
    %p720 = pnand %p718, %p719
    %p721 = pneg %p720
    // Predicated region
    $region9: #{tpu_custom_call.1} parent=5 // pred_check
      _
    $region10: #{tpu_custom_call.1} parent=5 // pred_check_branch
      %723 = sbr.rel (%p720) target = $region12
    $region11: #{tpu_custom_call.1} parent=5 // pred_region
      %s724 = ssub.s32 %s65, 1
      // Predicated region
      $region13: #{tpu_custom_call.1} parent=11 // pred_check
        %p725 = pneg %p138
      $region14: #{tpu_custom_call.1} parent=11 // pred_check_branch
        %727 = sbr.rel (%p725) target = $region16
      $region15: #{tpu_custom_call.1} parent=11 // pred_region
        _
      $region16: #{tpu_custom_call.1} parent=11 // pred_fallthru
        _
      // Predicated region
      $region17: #{tpu_custom_call.1} parent=11 // pred_check
        %p728 = pneg %p159
      $region18: #{tpu_custom_call.1} parent=11 // pred_check_branch
        %730 = sbr.rel (%p728) target = $region20
      $region19: #{tpu_custom_call.1} parent=11 // pred_region
        _
      $region20: #{tpu_custom_call.1} parent=11 // pred_fallthru
        _
      // Predicated region
      $region21: #{tpu_custom_call.1} parent=11 // pred_check
        %p731 = pneg %p180
      $region22: #{tpu_custom_call.1} parent=11 // pred_check_branch
        %733 = sbr.rel (%p731) target = $region24
      $region23: #{tpu_custom_call.1} parent=11 // pred_region
        _
      $region24: #{tpu_custom_call.1} parent=11 // pred_fallthru
        _
      // Predicated region
      $region25: #{tpu_custom_call.1} parent=11 // pred_check
        %p734 = pneg %p201
      $region26: #{tpu_custom_call.1} parent=11 // pred_check_branch
        %736 = sbr.rel (%p734) target = $region28
      $region27: #{tpu_custom_call.1} parent=11 // pred_region
        _
      $region28: #{tpu_custom_call.1} parent=11 // pred_fallthru
        _
      // Predicated region
      $region29: #{tpu_custom_call.1} parent=11 // pred_check
        %p737 = pneg %p222
      $region30: #{tpu_custom_call.1} parent=11 // pred_check_branch
        %739 = sbr.rel (%p737) target = $region32
      $region31: #{tpu_custom_call.1} parent=11 // pred_region
        _
      $region32: #{tpu_custom_call.1} parent=11 // pred_fallthru
        _
      // Predicated region
      $region33: #{tpu_custom_call.1} parent=11 // pred_check
        %p740 = pneg %p243
      $region34: #{tpu_custom_call.1} parent=11 // pred_check_branch
        %742 = sbr.rel (%p740) target = $region36
      $region35: #{tpu_custom_call.1} parent=11 // pred_region
        _
      $region36: #{tpu_custom_call.1} parent=11 // pred_fallthru
        _
      // Predicated region
      $region37: #{tpu_custom_call.1} parent=11 // pred_check
        %p743 = pneg %p264
      $region38: #{tpu_custom_call.1} parent=11 // pred_check_branch
        %745 = sbr.rel (%p743) target = $region40
      $region39: #{tpu_custom_call.1} parent=11 // pred_region
        _
      $region40: #{tpu_custom_call.1} parent=11 // pred_fallthru
        _
      // Predicated region
      $region41: #{tpu_custom_call.1} parent=11 // pred_check
        %p746 = pneg %p285
      $region42: #{tpu_custom_call.1} parent=11 // pred_check_branch
        %748 = sbr.rel (%p746) target = $region44
      $region43: #{tpu_custom_call.1} parent=11 // pred_region
        _
      $region44: #{tpu_custom_call.1} parent=11 // pred_fallthru
        _
      // Predicated region
      $region45: #{tpu_custom_call.1} parent=11 // pred_check
        %p749 = pneg %p306
      $region46: #{tpu_custom_call.1} parent=11 // pred_check_branch
        %751 = sbr.rel (%p749) target = $region48
      $region47: #{tpu_custom_call.1} parent=11 // pred_region
        _
      $region48: #{tpu_custom_call.1} parent=11 // pred_fallthru
        _
      // Predicated region
      $region49: #{tpu_custom_call.1} parent=11 // pred_check
        %p752 = pneg %p327
      $region50: #{tpu_custom_call.1} parent=11 // pred_check_branch
        %754 = sbr.rel (%p752) target = $region52
      $region51: #{tpu_custom_call.1} parent=11 // pred_region
        _
      $region52: #{tpu_custom_call.1} parent=11 // pred_fallthru
        _
      // Predicated region
      $region53: #{tpu_custom_call.1} parent=11 // pred_check
        %p755 = pneg %p348
      $region54: #{tpu_custom_call.1} parent=11 // pred_check_branch
        %757 = sbr.rel (%p755) target = $region56
      $region55: #{tpu_custom_call.1} parent=11 // pred_region
        _
      $region56: #{tpu_custom_call.1} parent=11 // pred_fallthru
        _
      // Predicated region
      $region57: #{tpu_custom_call.1} parent=11 // pred_check
        %p758 = pneg %p369
      $region58: #{tpu_custom_call.1} parent=11 // pred_check_branch
        %760 = sbr.rel (%p758) target = $region60
      $region59: #{tpu_custom_call.1} parent=11 // pred_region
        _
      $region60: #{tpu_custom_call.1} parent=11 // pred_fallthru
        _
      // Predicated region
      $region61: #{tpu_custom_call.1} parent=11 // pred_check
        %p761 = pneg %p390
      $region62: #{tpu_custom_call.1} parent=11 // pred_check_branch
        %763 = sbr.rel (%p761) target = $region64
      $region63: #{tpu_custom_call.1} parent=11 // pred_region
        _
      $region64: #{tpu_custom_call.1} parent=11 // pred_fallthru
        _
      // Predicated region
      $region65: #{tpu_custom_call.1} parent=11 // pred_check
        %p764 = pneg %p411
      $region66: #{tpu_custom_call.1} parent=11 // pred_check_branch
        %766 = sbr.rel (%p764) target = $region68
      $region67: #{tpu_custom_call.1} parent=11 // pred_region
        _
      $region68: #{tpu_custom_call.1} parent=11 // pred_fallthru
        _
      // Predicated region
      $region69: #{tpu_custom_call.1} parent=11 // pred_check
        %p767 = pneg %p432
      $region70: #{tpu_custom_call.1} parent=11 // pred_check_branch
        %769 = sbr.rel (%p767) target = $region72
      $region71: #{tpu_custom_call.1} parent=11 // pred_region
        _
      $region72: #{tpu_custom_call.1} parent=11 // pred_fallthru
        _
      // Predicated region
      $region73: #{tpu_custom_call.1} parent=11 // pred_check
        %p770 = pneg %p453
      $region74: #{tpu_custom_call.1} parent=11 // pred_check_branch
        %772 = sbr.rel (%p770) target = $region76
      $region75: #{tpu_custom_call.1} parent=11 // pred_region
        _
      $region76: #{tpu_custom_call.1} parent=11 // pred_fallthru
        _
      // Predicated region
      $region77: #{tpu_custom_call.1} parent=11 // pred_check
        %p773 = pneg %p474
      $region78: #{tpu_custom_call.1} parent=11 // pred_check_branch
        %775 = sbr.rel (%p773) target = $region80
      $region79: #{tpu_custom_call.1} parent=11 // pred_region
        _
      $region80: #{tpu_custom_call.1} parent=11 // pred_fallthru
        _
      // Predicated region
      $region81: #{tpu_custom_call.1} parent=11 // pred_check
        %p776 = pneg %p495
      $region82: #{tpu_custom_call.1} parent=11 // pred_check_branch
        %778 = sbr.rel (%p776) target = $region84
      $region83: #{tpu_custom_call.1} parent=11 // pred_region
        _
      $region84: #{tpu_custom_call.1} parent=11 // pred_fallthru
        _
      // Predicated region
      $region85: #{tpu_custom_call.1} parent=11 // pred_check
        %p779 = pneg %p516
      $region86: #{tpu_custom_call.1} parent=11 // pred_check_branch
        %781 = sbr.rel (%p779) target = $region88
      $region87: #{tpu_custom_call.1} parent=11 // pred_region
        _
      $region88: #{tpu_custom_call.1} parent=11 // pred_fallthru
        _
      // Predicated region
      $region89: #{tpu_custom_call.1} parent=11 // pred_check
        %p782 = pneg %p537
      $region90: #{tpu_custom_call.1} parent=11 // pred_check_branch
        %784 = sbr.rel (%p782) target = $region92
      $region91: #{tpu_custom_call.1} parent=11 // pred_region
        _
      $region92: #{tpu_custom_call.1} parent=11 // pred_fallthru
        _
      // Predicated region
      $region93: #{tpu_custom_call.1} parent=11 // pred_check
        %p785 = pneg %p558
      $region94: #{tpu_custom_call.1} parent=11 // pred_check_branch
        %787 = sbr.rel (%p785) target = $region96
      $region95: #{tpu_custom_call.1} parent=11 // pred_region
        _
      $region96: #{tpu_custom_call.1} parent=11 // pred_fallthru
        _
      // Predicated region
      $region97: #{tpu_custom_call.1} parent=11 // pred_check
        %p788 = pneg %p579
      $region98: #{tpu_custom_call.1} parent=11 // pred_check_branch
        %790 = sbr.rel (%p788) target = $region100
      $region99: #{tpu_custom_call.1} parent=11 // pred_region
        _
      $region100: #{tpu_custom_call.1} parent=11 // pred_fallthru
        _
      // Predicated region
      $region101: #{tpu_custom_call.1} parent=11 // pred_check
        %p791 = pneg %p600
      $region102: #{tpu_custom_call.1} parent=11 // pred_check_branch
        %793 = sbr.rel (%p791) target = $region104
      $region103: #{tpu_custom_call.1} parent=11 // pred_region
        _
      $region104: #{tpu_custom_call.1} parent=11 // pred_fallthru
        _
      // Predicated region
      $region105: #{tpu_custom_call.1} parent=11 // pred_check
        %p794 = pneg %p621
      $region106: #{tpu_custom_call.1} parent=11 // pred_check_branch
        %796 = sbr.rel (%p794) target = $region108
      $region107: #{tpu_custom_call.1} parent=11 // pred_region
        _
      $region108: #{tpu_custom_call.1} parent=11 // pred_fallthru
        _
      // Predicated region
      $region109: #{tpu_custom_call.1} parent=11 // pred_check
        %p797 = pneg %p642
      $region110: #{tpu_custom_call.1} parent=11 // pred_check_branch
        %799 = sbr.rel (%p797) target = $region112
      $region111: #{tpu_custom_call.1} parent=11 // pred_region
        _
      $region112: #{tpu_custom_call.1} parent=11 // pred_fallthru
        _
      // Predicated region
      $region113: #{tpu_custom_call.1} parent=11 // pred_check
        %p800 = pneg %p663
      $region114: #{tpu_custom_call.1} parent=11 // pred_check_branch
        %802 = sbr.rel (%p800) target = $region116
      $region115: #{tpu_custom_call.1} parent=11 // pred_region
        _
      $region116: #{tpu_custom_call.1} parent=11 // pred_fallthru
        _
      // Predicated region
      $region117: #{tpu_custom_call.1} parent=11 // pred_check
        %p803 = pneg %p684
      $region118: #{tpu_custom_call.1} parent=11 // pred_check_branch
        %805 = sbr.rel (%p803) target = $region120
      $region119: #{tpu_custom_call.1} parent=11 // pred_region
        _
      $region120: #{tpu_custom_call.1} parent=11 // pred_fallthru
        _
    $region12: #{tpu_custom_call.1} parent=5 // pred_fallthru
      _
    %p806 = scmp.lt.s32.totalorder %s65, 2
    // Predicated region
    $region121: #{tpu_custom_call.1} parent=5 // pred_check
      %p807 = pneg %p806
    $region122: #{tpu_custom_call.1} parent=5 // pred_check_branch
      %809 = sbr.rel (%p807) target = $region124
    $region123: #{tpu_custom_call.1} parent=5 // pred_region
      // Predicated region
      $region125: #{tpu_custom_call.1} parent=123 // pred_check
        %p810 = pneg %p85
      $region126: #{tpu_custom_call.1} parent=123 // pred_check_branch
        %812 = sbr.rel (%p810) target = $region128
      $region127: #{tpu_custom_call.1} parent=123 // pred_region
        %s813 = smul.u32 8, %s65
        %p814 = scmp.lt.s32.totalorder %s813, 15
        %s815 = scalar_select %p814, %s813, 15
        %s816 = smul.addr %s815, 4
        %s817 = scalar_lea.vmem %s1, %s816
        %s818 = smul.u32 8, %s65
      $region128: #{tpu_custom_call.1} parent=123 // pred_fallthru
        _
      // Predicated region
      $region129: #{tpu_custom_call.1} parent=123 // pred_check
        %p819 = pneg %p111
      $region130: #{tpu_custom_call.1} parent=123 // pred_check_branch
        %821 = sbr.rel (%p819) target = $region132
      $region131: #{tpu_custom_call.1} parent=123 // pred_region
        %s822 = smul.u32 8, %s65
        %p823 = scmp.lt.s32.totalorder %s822, 15
        %s824 = scalar_select %p823, %s822, 15
        %s825 = smul.addr %s824, 4
        %s826 = scalar_lea.vmem %s3, %s825
        %s827 = smul.u32 8, %s65
      $region132: #{tpu_custom_call.1} parent=123 // pred_fallthru
        _
    $region124: #{tpu_custom_call.1} parent=5 // pred_fallthru
      _
    %p828 = scmp.le.s32.totalorder 1, %s65
    %p829 = scmp.lt.s32.totalorder %s65, 3
    %p830 = pnand %p828, %p829
    %p831 = pneg %p830
    // Predicated region
    $region133: #{tpu_custom_call.1} parent=5 // pred_check
      _
    $region134: #{tpu_custom_call.1} parent=5 // pred_check_branch
      %833 = sbr.rel (%p830) target = $region136
    $region135: #{tpu_custom_call.1} parent=5 // pred_region
      %s834 = ssub.s32 %s65, 1
      %s835 = smul.u32 8, %s70
      %p836 = scmp.lt.s32.totalorder %s835, 15
      %s837 = scalar_select %p836, %s835, 15
      %s838 = smul.addr %s837, 4
      %s839 = scalar_lea.vmem %s1, %s838
      %p840 = pneg %p91
      %p841 = pneg %p88
      %s842 = smul.u32 8, %s70
      %p843 = scmp.lt.s32.totalorder %s842, 15
      %s844 = scalar_select %p843, %s842, 15
      %s845 = smul.addr %s844, 4
      %s846 = scalar_lea.vmem %s3, %s845
      %p847 = pneg %p117
      %p848 = pneg %p114
      %p849 = pneg %p138
      %p850 = pneg %p135
      %p851 = pneg %p159
      %p852 = pneg %p156
      %p853 = pneg %p180
      %p854 = pneg %p177
      %p855 = pneg %p201
      %p856 = pneg %p198
      %p857 = pneg %p222
      %p858 = pneg %p219
      %p859 = pneg %p243
      %p860 = pneg %p240
      %p861 = pneg %p264
      %p862 = pneg %p261
      %p863 = pneg %p285
      %p864 = pneg %p282
      %p865 = pneg %p306
      %p866 = pneg %p303
      %p867 = pneg %p327
      %p868 = pneg %p324
      %p869 = pneg %p348
      %p870 = pneg %p345
      %p871 = pneg %p369
      %p872 = pneg %p366
      %p873 = pneg %p390
      %p874 = pneg %p387
      %p875 = pneg %p411
      %p876 = pneg %p408
      %p877 = pneg %p432
      %p878 = pneg %p429
      %p879 = pneg %p453
      %p880 = pneg %p450
      %p881 = pneg %p474
      %p882 = pneg %p471
      %p883 = pneg %p495
      %p884 = pneg %p492
      %p885 = pneg %p516
      %p886 = pneg %p513
      %p887 = pneg %p537
      %p888 = pneg %p534
      %p889 = pneg %p558
      %p890 = pneg %p555
      %p891 = pneg %p579
      %p892 = pneg %p576
      %p893 = pneg %p600
      %p894 = pneg %p597
      %p895 = pneg %p621
      %p896 = pneg %p618
      %p897 = pneg %p642
      %p898 = pneg %p639
      %p899 = pneg %p663
      %p900 = pneg %p660
      %p901 = pneg %p684
      %p902 = pneg %p681
      %p903 = pneg %p710
      %p904 = pneg %p707
      %p905 = scmp.lt.s32.totalorder %s70, 1
      %s906 = scalar_select %p905, %s70, 1
      %s907 = smul.addr %s906, 8
      %s908 = scalar_lea.vmem %s59, %s907
      %s909 = smul.u32 8, %s70
      %p910 = scmp.lt.s32.totalorder %s909, 15
      %s911 = scalar_select %p910, %s909, 15
      %s912 = smul.addr %s911, 4
      %s913 = scalar_lea.vmem %s1, %s912
      %s914 = smul.u32 8, %s70
      %s915 = smul.u32 8, %s70
      %p916 = scmp.lt.s32.totalorder %s915, 15
      %s917 = scalar_select %p916, %s915, 15
      %s918 = smul.addr %s917, 4
      %s919 = scalar_lea.vmem %s3, %s918
      %s920 = smul.u32 8, %s70
      %p921 = scmp.lt.s32.totalorder %s70, 1
      %s922 = scalar_select %p921, %s70, 1
      %s923 = smul.addr %s922, 8
      %s924 = scalar_lea.vmem %s59, %s923
      %v926 = vld [vmem:[%s913] sm:$0x7]
      %v927 = vld [vmem:[%s913 + $0x4] sm:$0x7]
      %v928 = vld [vmem:[%s913 + $0x8] sm:$0x7]
      %v929 = vld [vmem:[%s913 + $0xc] sm:$0x7]
      %v930 = vld [vmem:[%s913 + $0x10] sm:$0x7]
      %v931 = vld [vmem:[%s913 + $0x14] sm:$0x7]
      %v932 = vld [vmem:[%s913 + $0x18] sm:$0x7]
      %v933 = vld [vmem:[%s913 + $0x1c] sm:$0x7]
      %v934 = vld [vmem:[%s919] sm:$0xf]
      %v935 = vld [vmem:[%s919 + $0x4] sm:$0xf]
      %v936 = vld [vmem:[%s919 + $0x8] sm:$0xf]
      %v937 = vld [vmem:[%s919 + $0xc] sm:$0xf]
      %v938 = vld [vmem:[%s919 + $0x10] sm:$0xf]
      %v939 = vld [vmem:[%s919 + $0x14] sm:$0xf]
      %v940 = vld [vmem:[%s919 + $0x18] sm:$0xf]
      %v941 = vld [vmem:[%s919 + $0x1c] sm:$0xf]
      %v942 = vld [vmem:[%s9] sm:$0x1]
      %v943 = vld [vmem:[%s5] sm:$0xf]
      %945 = vset.pattern.permute.xlu0 0
      %946 = vperm.xlu0 %945, %v934
      %v947 = vpop.permute.xlu0 %946
      %950 = vset.pattern.permute.xlu0 0
      %951 = vperm.xlu0 %950, %v935
      %v952 = vpop.permute.xlu0 %951
      %955 = vset.pattern.permute.xlu0 0
      %956 = vperm.xlu0 %955, %v936
      %v957 = vpop.permute.xlu0 %956
      %960 = vset.pattern.permute.xlu0 0
      %961 = vperm.xlu0 %960, %v937
      %v962 = vpop.permute.xlu0 %961
      %965 = vset.pattern.permute.xlu0 0
      %966 = vperm.xlu0 %965, %v938
      %v967 = vpop.permute.xlu0 %966
      %970 = vset.pattern.permute.xlu0 0
      %971 = vperm.xlu0 %970, %v939
      %v972 = vpop.permute.xlu0 %971
      %975 = vset.pattern.permute.xlu0 0
      %976 = vperm.xlu0 %975, %v940
      %v977 = vpop.permute.xlu0 %976
      %980 = vset.pattern.permute.xlu0 0
      %981 = vperm.xlu0 %980, %v941
      %v982 = vpop.permute.xlu0 %981
      %v984 = vmul.f32 %v947, %v943
      %v985 = vmul.f32 %v952, %v943
      %v986 = vmul.f32 %v957, %v943
      %v987 = vmul.f32 %v962, %v943
      %v988 = vmul.f32 %v967, %v943
      %v989 = vmul.f32 %v972, %v943
      %v990 = vmul.f32 %v977, %v943
      %v991 = vmul.f32 %v982, %v943
      %v992 = vld [vmem:[%s7] sm:$0xf]
      %v993 = vadd.f32 %v984, %v992
      %v994 = vadd.f32 %v985, %v992
      %v995 = vadd.f32 %v986, %v992
      %v996 = vadd.f32 %v987, %v992
      %v997 = vadd.f32 %v988, %v992
      %v998 = vadd.f32 %v989, %v992
      %v999 = vadd.f32 %v990, %v992
      %v1000 = vadd.f32 %v991, %v992
      %v1009 = vrot.slane %v926, 7
      %v1010 = vrot.slane %v927, 7
      %v1011 = vrot.slane %v928, 7
      %v1012 = vrot.slane %v929, 7
      %v1013 = vrot.slane %v930, 7
      %v1014 = vrot.slane %v931, 7
      %v1015 = vrot.slane %v932, 7
      %v1016 = vrot.slane %v933, 7
      %v1033 = vrot.slane %v993, 4
      %v1034 = vrot.slane %v994, 4
      %v1035 = vrot.slane %v995, 4
      %v1036 = vrot.slane %v996, 4
      %v1037 = vrot.slane %v997, 4
      %v1038 = vrot.slane %v998, 4
      %v1039 = vrot.slane %v999, 4
      %v1040 = vrot.slane %v1000, 4
      %vm1049 = vcmask 1040384
      %v1050 = vsel %vm1049, %v942, %v1009
      %v1051 = vsel %vm1049, %v942, %v1010
      %v1052 = vsel %vm1049, %v942, %v1011
      %v1053 = vsel %vm1049, %v942, %v1012
      %v1054 = vsel %vm1049, %v942, %v1013
      %v1055 = vsel %vm1049, %v942, %v1014
      %v1056 = vsel %vm1049, %v942, %v1015
      %v1057 = vsel %vm1049, %v942, %v1016
      %vm1058 = vcmask 1043456
      %v1059 = vsel %vm1058, %v1050, %v1033
      %v1060 = vsel %vm1058, %v1051, %v1034
      %v1061 = vsel %vm1058, %v1052, %v1035
      %v1062 = vsel %vm1058, %v1053, %v1036
      %v1063 = vsel %vm1058, %v1054, %v1037
      %v1064 = vsel %vm1058, %v1055, %v1038
      %v1065 = vsel %vm1058, %v1056, %v1039
      %v1066 = vsel %vm1058, %v1057, %v1040
      %v1067 = vld [vmem:[%s11] sm:$0xf]
      %v1068 = vld [vmem:[%s11 + $0x4] sm:$0xf]
      %v1069 = vld [vmem:[%s11 + $0x8] sm:$0xf]
      %v1070 = vld [vmem:[%s11 + $0xc] sm:$0xf]
      %v1071 = vld [vmem:[%s13] sm:$0xf]
      %v1072 = vld [vmem:[%s13 + $0x4] sm:$0xf]
      %v1073 = vld [vmem:[%s13 + $0x8] sm:$0xf]
      %v1074 = vld [vmem:[%s13 + $0xc] sm:$0xf]
      %v1075 = vld [vmem:[%s15] sm:$0xf]
      %v1076 = vld [vmem:[%s15 + $0x4] sm:$0xf]
      %v1077 = vld [vmem:[%s15 + $0x8] sm:$0xf]
      %v1078 = vld [vmem:[%s15 + $0xc] sm:$0xf]
      %v1079 = vld [vmem:[%s17] sm:$0xf]
      %v1080 = vld [vmem:[%s17 + $0x4] sm:$0xf]
      %v1081 = vld [vmem:[%s17 + $0x8] sm:$0xf]
      %v1082 = vld [vmem:[%s17 + $0xc] sm:$0xf]
      %v1083 = vld [vmem:[%s17 + $0x10] sm:$0xf]
      %v1084 = vld [vmem:[%s17 + $0x14] sm:$0xf]
      %v1085 = vld [vmem:[%s17 + $0x18] sm:$0xf]
      %v1086 = vld [vmem:[%s17 + $0x1c] sm:$0xf]
      %v1087 = vld [vmem:[%s19] sm:$0x1]
      %v1088 = vld [vmem:[%s21] sm:$0x1]
      %v1089 = vld [vmem:[%s23] sm:$0x1]
      %v1090 = vld [vmem:[%s25] sm:$0x1]
      %v1091 = vld [vmem:[%s27] sm:$0x1]
      %v1092 = vld [vmem:[%s29] sm:$0x1]
      %v1093 = vld [vmem:[%s31] sm:$0x1]
      %v1094 = vld [vmem:[%s33] sm:$0x1]
      %vm1095 = vcmask 261120
      %v1096 = vsel %vm1095, %v1059, 0.0
      %1097 = vadd.xlane.f32.xlu0 %v1096
      %v1098 = vpop.xlane.xlu0 %1097
      %v1099 = vsel %vm1095, %v1060, 0.0
      %1100 = vadd.xlane.f32.xlu0 %v1099
      %v1101 = vpop.xlane.xlu0 %1100
      %v1102 = vsel %vm1095, %v1061, 0.0
      %1103 = vadd.xlane.f32.xlu0 %v1102
      %v1104 = vpop.xlane.xlu0 %1103
      %v1105 = vsel %vm1095, %v1062, 0.0
      %1106 = vadd.xlane.f32.xlu0 %v1105
      %v1107 = vpop.xlane.xlu0 %1106
      %v1108 = vsel %vm1095, %v1063, 0.0
      %1109 = vadd.xlane.f32.xlu0 %v1108
      %v1110 = vpop.xlane.xlu0 %1109
      %v1111 = vsel %vm1095, %v1064, 0.0
      %1112 = vadd.xlane.f32.xlu0 %v1111
      %v1113 = vpop.xlane.xlu0 %1112
      %v1114 = vsel %vm1095, %v1065, 0.0
      %1115 = vadd.xlane.f32.xlu0 %v1114
      %v1116 = vpop.xlane.xlu0 %1115
      %v1117 = vsel %vm1095, %v1066, 0.0
      %1118 = vadd.xlane.f32.xlu0 %v1117
      %v1119 = vpop.xlane.xlu0 %1118
      %v1120 = vrcp.pop 32.0
      %v1121 = vmul.f32 %v1098, %v1120
      %v1122 = vmul.f32 %v1101, %v1120
      %v1123 = vmul.f32 %v1104, %v1120
      %v1124 = vmul.f32 %v1107, %v1120
      %v1125 = vmul.f32 %v1110, %v1120
      %v1126 = vmul.f32 %v1113, %v1120
      %v1127 = vmul.f32 %v1116, %v1120
      %v1128 = vmul.f32 %v1119, %v1120
      %v1129 = vsub.f32 %v1059, %v1121
      %v1130 = vsub.f32 %v1060, %v1122
      %v1131 = vsub.f32 %v1061, %v1123
      %v1132 = vsub.f32 %v1062, %v1124
      %v1133 = vsub.f32 %v1063, %v1125
      %v1134 = vsub.f32 %v1064, %v1126
      %v1135 = vsub.f32 %v1065, %v1127
      %v1136 = vsub.f32 %v1066, %v1128
      %v1137 = vmul.f32 %v1129, %v1129
      %v1138 = vmul.f32 %v1130, %v1130
      %v1139 = vmul.f32 %v1131, %v1131
      %v1140 = vmul.f32 %v1132, %v1132
      %v1141 = vmul.f32 %v1133, %v1133
      %v1142 = vmul.f32 %v1134, %v1134
      %v1143 = vmul.f32 %v1135, %v1135
      %v1144 = vmul.f32 %v1136, %v1136
      %v1145 = vsel %vm1095, %v1137, 0.0
      %1146 = vadd.xlane.f32.xlu0 %v1145
      %v1147 = vpop.xlane.xlu0 %1146
      %v1148 = vsel %vm1095, %v1138, 0.0
      %1149 = vadd.xlane.f32.xlu0 %v1148
      %v1150 = vpop.xlane.xlu0 %1149
      %v1151 = vsel %vm1095, %v1139, 0.0
      %1152 = vadd.xlane.f32.xlu0 %v1151
      %v1153 = vpop.xlane.xlu0 %1152
      %v1154 = vsel %vm1095, %v1140, 0.0
      %1155 = vadd.xlane.f32.xlu0 %v1154
      %v1156 = vpop.xlane.xlu0 %1155
      %v1157 = vsel %vm1095, %v1141, 0.0
      %1158 = vadd.xlane.f32.xlu0 %v1157
      %v1159 = vpop.xlane.xlu0 %1158
      %v1160 = vsel %vm1095, %v1142, 0.0
      %1161 = vadd.xlane.f32.xlu0 %v1160
      %v1162 = vpop.xlane.xlu0 %1161
      %v1163 = vsel %vm1095, %v1143, 0.0
      %1164 = vadd.xlane.f32.xlu0 %v1163
      %v1165 = vpop.xlane.xlu0 %1164
      %v1166 = vsel %vm1095, %v1144, 0.0
      %1167 = vadd.xlane.f32.xlu0 %v1166
      %v1168 = vpop.xlane.xlu0 %1167
      %v1169 = vmul.f32 %v1147, %v1120
      %v1170 = vmul.f32 %v1150, %v1120
      %v1171 = vmul.f32 %v1153, %v1120
      %v1172 = vmul.f32 %v1156, %v1120
      %v1173 = vmul.f32 %v1159, %v1120
      %v1174 = vmul.f32 %v1162, %v1120
      %v1175 = vmul.f32 %v1165, %v1120
      %v1176 = vmul.f32 %v1168, %v1120
      %v1177 = vadd.f32 %v1169, 1e-05
      %v1178 = vadd.f32 %v1170, 1e-05
      %v1179 = vadd.f32 %v1171, 1e-05
      %v1180 = vadd.f32 %v1172, 1e-05
      %v1181 = vadd.f32 %v1173, 1e-05
      %v1182 = vadd.f32 %v1174, 1e-05
      %v1183 = vadd.f32 %v1175, 1e-05
      %v1184 = vadd.f32 %v1176, 1e-05
      %v1185 = vrsqrt.pop %v1177
      %v1186 = vrsqrt.pop %v1178
      %v1187 = vrsqrt.pop %v1179
      %v1188 = vrsqrt.pop %v1180
      %v1189 = vrsqrt.pop %v1181
      %v1190 = vrsqrt.pop %v1182
      %v1191 = vrsqrt.pop %v1183
      %v1192 = vrsqrt.pop %v1184
      %v1193 = vmul.f32 %v1129, %v1185
      %v1194 = vmul.f32 %v1130, %v1186
      %v1195 = vmul.f32 %v1131, %v1187
      %v1196 = vmul.f32 %v1132, %v1188
      %v1197 = vmul.f32 %v1133, %v1189
      %v1198 = vmul.f32 %v1134, %v1190
      %v1199 = vmul.f32 %v1135, %v1191
      %v1200 = vmul.f32 %v1136, %v1192
      %v1202 = vlaneseq
      %v1203 = vshrl.u32 %v1202, 7
      %v1204 = vsub.s32 0, %v1203
      %v1205 = vrot.slane %v1087, %v1204
      %v1207 = vmul.f32 %v1193, %v1205
      %v1208 = vmul.f32 %v1194, %v1205
      %v1209 = vmul.f32 %v1195, %v1205
      %v1210 = vmul.f32 %v1196, %v1205
      %v1211 = vmul.f32 %v1197, %v1205
      %v1212 = vmul.f32 %v1198, %v1205
      %v1213 = vmul.f32 %v1199, %v1205
      %v1214 = vmul.f32 %v1200, %v1205
      %v1216 = vlaneseq
      %v1217 = vshrl.u32 %v1216, 7
      %v1218 = vsub.s32 0, %v1217
      %v1219 = vrot.slane %v1088, %v1218
      %v1221 = vadd.f32 %v1207, %v1219
      %v1222 = vadd.f32 %v1208, %v1219
      %v1223 = vadd.f32 %v1209, %v1219
      %v1224 = vadd.f32 %v1210, %v1219
      %v1225 = vadd.f32 %v1211, %v1219
      %v1226 = vadd.f32 %v1212, %v1219
      %v1227 = vadd.f32 %v1213, %v1219
      %v1228 = vadd.f32 %v1214, %v1219
      %v1229 = vpack.c.bf16 %v1222, %v1221
      %v1230 = vpack.c.bf16 %v1224, %v1223
      %v1231 = vpack.c.bf16 %v1226, %v1225
      %v1232 = vpack.c.bf16 %v1228, %v1227
      %v1234 = vlaneseq
      %v1235 = vshrl.u32 %v1234, 7
      %v1236 = vsub.s32 0, %v1235
      %v1237 = vrot.slane %v1091, %v1236
      %v1243 = vunpack.c.l.b16 %v1067
      %v1244 = vunpack.c.l.b16 %v1068
      %v1245 = vunpack.c.l.b16 %v1069
      %v1246 = vunpack.c.l.b16 %v1070
      %v1247 = vpack.c.b16 %v1244, %v1243
      %v1248 = vpack.c.b16 %v1246, %v1245
      %v1252 = vsel %vm1095, %v1229, 0
      %v1255 = vsel %vm1095, %v1230, 0
      %v1258 = vsel %vm1095, %v1231, 0
      %v1261 = vsel %vm1095, %v1232, 0
      %1263 = vmatprep.subr.bf16.mxu0 0
      %1264 = vmatpush1.bf16.msra.mxu0 %v1247
      %1265 = vmatprep.subr.bf16.mxu0 0
      %1266 = vmatpush1.bf16.msra.mxu0 %v1248
      %1267 = vmatprep.subr.bf16.mxu0 0
      %1268 = vmatpush1.bf16.msra.mxu0 0
      %1269 = vmatprep.subr.bf16.mxu0 0
      %1270 = vmatpush1.bf16.msra.mxu0 0
      %1271 = vmatprep.subr.bf16.mxu0 0
      %1272 = vmatpush1.bf16.msra.mxu0 0
      %1273 = vmatprep.subr.bf16.mxu0 0
      %1274 = vmatpush1.bf16.msra.mxu0 0
      %1275 = vmatprep.subr.bf16.mxu0 0
      %1276 = vmatpush1.bf16.msra.mxu0 0
      %1277 = vmatprep.subr.bf16.mxu0 0
      %1278 = vmatpush1.bf16.msra.mxu0 0
      %1279 = vmatprep.subr.bf16.mxu0 0
      %1280 = vmatpush1.bf16.msra.mxu0 0
      %1281 = vmatprep.subr.bf16.mxu0 0
      %1282 = vmatpush1.bf16.msra.mxu0 0
      %1283 = vmatprep.subr.bf16.mxu0 0
      %1284 = vmatpush1.bf16.msra.mxu0 0
      %1285 = vmatprep.subr.bf16.mxu0 0
      %1286 = vmatpush1.bf16.msra.mxu0 0
      %1287 = vmatprep.subr.bf16.mxu0 0
      %1288 = vmatpush1.bf16.msra.mxu0 0
      %1289 = vmatprep.subr.bf16.mxu0 0
      %1290 = vmatpush1.bf16.msra.mxu0 0
      %1291 = vmatprep.subr.bf16.mxu0 0
      %1292 = vmatpush1.bf16.msra.mxu0 0
      %1293 = vmatprep.subr.bf16.mxu0 0
      %1294 = vmatpush1.bf16.msra.mxu0 0
      %1295 = vmatprep.mubr.bf16.mxu0 0
      %1296 = vmatmul.mubr.bf16.gmra.mrb[0].mxu0 %v1252
      %v1297 = vpop.f32.mrb[0].mxu0
      %v1298 = vadd.f32 %v1237, %v1297
      %v1299 = vpop.f32.mrb[0].mxu0
      %v1300 = vpop.f32.mrb[0].mxu0
      %v1301 = vadd.f32 %v1237, %v1300
      %v1302 = vpop.f32.mrb[0].mxu0
      %1303 = vmatprep.mubr.bf16.mxu0 0
      %1304 = vmatmul.mubr.bf16.gmra.mrb[0].mxu0 %v1255
      %v1305 = vpop.f32.mrb[0].mxu0
      %v1306 = vadd.f32 %v1237, %v1305
      %v1307 = vpop.f32.mrb[0].mxu0
      %v1308 = vpop.f32.mrb[0].mxu0
      %v1309 = vadd.f32 %v1237, %v1308
      %v1310 = vpop.f32.mrb[0].mxu0
      %1311 = vmatprep.mubr.bf16.mxu0 0
      %1312 = vmatmul.mubr.bf16.gmra.mrb[0].mxu0 %v1258
      %v1313 = vpop.f32.mrb[0].mxu0
      %v1314 = vadd.f32 %v1237, %v1313
      %v1315 = vpop.f32.mrb[0].mxu0
      %v1316 = vpop.f32.mrb[0].mxu0
      %v1317 = vadd.f32 %v1237, %v1316
      %v1318 = vpop.f32.mrb[0].mxu0
      %1319 = vmatprep.mubr.bf16.mxu0 0
      %1320 = vmatmul.mubr.bf16.gmra.mrb[0].mxu0 %v1261
      %v1321 = vpop.f32.mrb[0].mxu0
      %v1322 = vadd.f32 %v1237, %v1321
      %v1323 = vpop.f32.mrb[0].mxu0
      %v1324 = vpop.f32.mrb[0].mxu0
      %v1325 = vadd.f32 %v1237, %v1324
      %v1326 = vpop.f32.mrb[0].mxu0
      %1327 = vdwg.mxu0
      %1336 = vrot.lane.b32.xlu0 %v1298, 120
      %v1337 = vpop.permute.xlu0 %1336
      %1338 = vrot.lane.b32.xlu0 %v1301, 120
      %v1339 = vpop.permute.xlu0 %1338
      %1340 = vrot.lane.b32.xlu0 %v1306, 120
      %v1341 = vpop.permute.xlu0 %1340
      %1342 = vrot.lane.b32.xlu0 %v1309, 120
      %v1343 = vpop.permute.xlu0 %1342
      %1344 = vrot.lane.b32.xlu0 %v1314, 120
      %v1345 = vpop.permute.xlu0 %1344
      %1346 = vrot.lane.b32.xlu0 %v1317, 120
      %v1347 = vpop.permute.xlu0 %1346
      %1348 = vrot.lane.b32.xlu0 %v1322, 120
      %v1349 = vpop.permute.xlu0 %1348
      %1350 = vrot.lane.b32.xlu0 %v1325, 120
      %v1351 = vpop.permute.xlu0 %1350
      %1360 = vrot.lane.b32.xlu0 %v1298, 112
      %v1361 = vpop.permute.xlu0 %1360
      %1362 = vrot.lane.b32.xlu0 %v1301, 112
      %v1363 = vpop.permute.xlu0 %1362
      %1364 = vrot.lane.b32.xlu0 %v1306, 112
      %v1365 = vpop.permute.xlu0 %1364
      %1366 = vrot.lane.b32.xlu0 %v1309, 112
      %v1367 = vpop.permute.xlu0 %1366
      %1368 = vrot.lane.b32.xlu0 %v1314, 112
      %v1369 = vpop.permute.xlu0 %1368
      %1370 = vrot.lane.b32.xlu0 %v1317, 112
      %v1371 = vpop.permute.xlu0 %1370
      %1372 = vrot.lane.b32.xlu0 %v1322, 112
      %v1373 = vpop.permute.xlu0 %1372
      %1374 = vrot.lane.b32.xlu0 %v1325, 112
      %v1375 = vpop.permute.xlu0 %1374
      %1384 = vrot.lane.b32.xlu0 %v1298, 104
      %v1385 = vpop.permute.xlu0 %1384
      %1386 = vrot.lane.b32.xlu0 %v1301, 104
      %v1387 = vpop.permute.xlu0 %1386
      %1388 = vrot.lane.b32.xlu0 %v1306, 104
      %v1389 = vpop.permute.xlu0 %1388
      %1390 = vrot.lane.b32.xlu0 %v1309, 104
      %v1391 = vpop.permute.xlu0 %1390
      %1392 = vrot.lane.b32.xlu0 %v1314, 104
      %v1393 = vpop.permute.xlu0 %1392
      %1394 = vrot.lane.b32.xlu0 %v1317, 104
      %v1395 = vpop.permute.xlu0 %1394
      %1396 = vrot.lane.b32.xlu0 %v1322, 104
      %v1397 = vpop.permute.xlu0 %1396
      %1398 = vrot.lane.b32.xlu0 %v1325, 104
      %v1399 = vpop.permute.xlu0 %1398
      %v1408 = vpack.c.bf16 %v1298, %v1298
      %v1409 = vpack.c.bf16 %v1301, %v1301
      %v1410 = vpack.c.bf16 %v1306, %v1306
      %v1411 = vpack.c.bf16 %v1309, %v1309
      %v1412 = vpack.c.bf16 %v1314, %v1314
      %v1413 = vpack.c.bf16 %v1317, %v1317
      %v1414 = vpack.c.bf16 %v1322, %v1322
      %v1415 = vpack.c.bf16 %v1325, %v1325
      %v1416 = vpack.c.bf16 %v1337, %v1337
      %v1417 = vpack.c.bf16 %v1339, %v1339
      %v1418 = vpack.c.bf16 %v1341, %v1341
      %v1419 = vpack.c.bf16 %v1343, %v1343
      %v1420 = vpack.c.bf16 %v1345, %v1345
      %v1421 = vpack.c.bf16 %v1347, %v1347
      %v1422 = vpack.c.bf16 %v1349, %v1349
      %v1423 = vpack.c.bf16 %v1351, %v1351
      %v1424 = vpack.c.bf16 %v1361, %v1361
      %v1425 = vpack.c.bf16 %v1363, %v1363
      %v1426 = vpack.c.bf16 %v1365, %v1365
      %v1427 = vpack.c.bf16 %v1367, %v1367
      %v1428 = vpack.c.bf16 %v1369, %v1369
      %v1429 = vpack.c.bf16 %v1371, %v1371
      %v1430 = vpack.c.bf16 %v1373, %v1373
      %v1431 = vpack.c.bf16 %v1375, %v1375
      %v1432 = vpack.c.bf16 %v1385, %v1385
      %v1433 = vpack.c.bf16 %v1387, %v1387
      %v1434 = vpack.c.bf16 %v1389, %v1389
      %v1435 = vpack.c.bf16 %v1391, %v1391
      %v1436 = vpack.c.bf16 %v1393, %v1393
      %v1437 = vpack.c.bf16 %v1395, %v1395
      %v1438 = vpack.c.bf16 %v1397, %v1397
      %v1439 = vpack.c.bf16 %v1399, %v1399
      %1441 = vrot.lane.b32.xlu0 %v1408, 96
      %v1442 = vpop.permute.xlu0 %1441
      %vm1443 = vcmask 64512
      %v1445 = vsel %vm1443, %v1408, 0
      %v1448 = vsel %vm1443, %v1442, 0
      %1450 = vmatprep.subr.bf16.mxu0 0
      %1451 = vmatpush1.bf16.xpose.msra.mxu0 %v1448
      %1452 = vmatprep.subr.bf16.mxu0 0
      %1453 = vmatpush1.bf16.xpose.msra.mxu0 0
      %1454 = vmatprep.subr.bf16.mxu0 0
      %1455 = vmatpush1.bf16.xpose.msra.mxu0 0
      %1456 = vmatprep.subr.bf16.mxu0 0
      %1457 = vmatpush1.bf16.xpose.msra.mxu0 0
      %1458 = vmatprep.subr.bf16.mxu0 0
      %1459 = vmatpush1.bf16.xpose.msra.mxu0 0
      %1460 = vmatprep.subr.bf16.mxu0 0
      %1461 = vmatpush1.bf16.xpose.msra.mxu0 0
      %1462 = vmatprep.subr.bf16.mxu0 0
      %1463 = vmatpush1.bf16.xpose.msra.mxu0 0
      %1464 = vmatprep.subr.bf16.mxu0 0
      %1465 = vmatpush1.bf16.xpose.msra.mxu0 0
      %1466 = vmatprep.subr.bf16.mxu0 0
      %1467 = vmatpush1.bf16.xpose.msra.mxu0 0
      %1468 = vmatprep.subr.bf16.mxu0 0
      %1469 = vmatpush1.bf16.xpose.msra.mxu0 0
      %1470 = vmatprep.subr.bf16.mxu0 0
      %1471 = vmatpush1.bf16.xpose.msra.mxu0 0
      %1472 = vmatprep.subr.bf16.mxu0 0
      %1473 = vmatpush1.bf16.xpose.msra.mxu0 0
      %1474 = vmatprep.subr.bf16.mxu0 0
      %1475 = vmatpush1.bf16.xpose.msra.mxu0 0
      %1476 = vmatprep.subr.bf16.mxu0 0
      %1477 = vmatpush1.bf16.xpose.msra.mxu0 0
      %1478 = vmatprep.subr.bf16.mxu0 0
      %1479 = vmatpush1.bf16.xpose.msra.mxu0 0
      %1480 = vmatprep.subr.bf16.mxu0 0
      %1481 = vmatpush1.bf16.xpose.msra.mxu0 0
      %1482 = vmatprep.mubr.bf16.mxu0 0
      %1483 = vmatmul.mubr.bf16.gmra.mrb[0].mxu0 %v1445
      %v1484 = vpop.f32.mrb[0].mxu0
      %v1485 = vadd.f32 0.0, %v1484
      %v1486 = vpop.f32.mrb[0].mxu0
      %v1487 = vpop.f32.mrb[0].mxu0
      %v1488 = vpop.f32.mrb[0].mxu0
      %1489 = vdwg.mxu0
      %1491 = vrot.lane.b32.xlu0 %v1409, 96
      %v1492 = vpop.permute.xlu0 %1491
      %v1494 = vsel %vm1443, %v1409, 0
      %v1497 = vsel %vm1443, %v1492, 0
      %1499 = vmatprep.subr.bf16.mxu0 0
      %1500 = vmatpush1.bf16.xpose.msra.mxu0 %v1497
      %1501 = vmatprep.subr.bf16.mxu0 0
      %1502 = vmatpush1.bf16.xpose.msra.mxu0 0
      %1503 = vmatprep.subr.bf16.mxu0 0
      %1504 = vmatpush1.bf16.xpose.msra.mxu0 0
      %1505 = vmatprep.subr.bf16.mxu0 0
      %1506 = vmatpush1.bf16.xpose.msra.mxu0 0
      %1507 = vmatprep.subr.bf16.mxu0 0
      %1508 = vmatpush1.bf16.xpose.msra.mxu0 0
      %1509 = vmatprep.subr.bf16.mxu0 0
      %1510 = vmatpush1.bf16.xpose.msra.mxu0 0
      %1511 = vmatprep.subr.bf16.mxu0 0
      %1512 = vmatpush1.bf16.xpose.msra.mxu0 0
      %1513 = vmatprep.subr.bf16.mxu0 0
      %1514 = vmatpush1.bf16.xpose.msra.mxu0 0
      %1515 = vmatprep.subr.bf16.mxu0 0
      %1516 = vmatpush1.bf16.xpose.msra.mxu0 0
      %1517 = vmatprep.subr.bf16.mxu0 0
      %1518 = vmatpush1.bf16.xpose.msra.mxu0 0
      %1519 = vmatprep.subr.bf16.mxu0 0
      %1520 = vmatpush1.bf16.xpose.msra.mxu0 0
      %1521 = vmatprep.subr.bf16.mxu0 0
      %1522 = vmatpush1.bf16.xpose.msra.mxu0 0
      %1523 = vmatprep.subr.bf16.mxu0 0
      %1524 = vmatpush1.bf16.xpose.msra.mxu0 0
      %1525 = vmatprep.subr.bf16.mxu0 0
      %1526 = vmatpush1.bf16.xpose.msra.mxu0 0
      %1527 = vmatprep.subr.bf16.mxu0 0
      %1528 = vmatpush1.bf16.xpose.msra.mxu0 0
      %1529 = vmatprep.subr.bf16.mxu0 0
      %1530 = vmatpush1.bf16.xpose.msra.mxu0 0
      %1531 = vmatprep.mubr.bf16.mxu0 0
      %1532 = vmatmul.mubr.bf16.gmra.mrb[0].mxu0 %v1494
      %v1533 = vpop.f32.mrb[0].mxu0
      %v1534 = vadd.f32 0.0, %v1533
      %v1535 = vpop.f32.mrb[0].mxu0
      %v1536 = vpop.f32.mrb[0].mxu0
      %v1537 = vpop.f32.mrb[0].mxu0
      %1538 = vdwg.mxu0
      %1540 = vrot.lane.b32.xlu0 %v1410, 96
      %v1541 = vpop.permute.xlu0 %1540
      %v1543 = vsel %vm1443, %v1410, 0
      %v1546 = vsel %vm1443, %v1541, 0
      %1548 = vmatprep.subr.bf16.mxu0 0
      %1549 = vmatpush1.bf16.xpose.msra.mxu0 %v1546
      %1550 = vmatprep.subr.bf16.mxu0 0
      %1551 = vmatpush1.bf16.xpose.msra.mxu0 0
      %1552 = vmatprep.subr.bf16.mxu0 0
      %1553 = vmatpush1.bf16.xpose.msra.mxu0 0
      %1554 = vmatprep.subr.bf16.mxu0 0
      %1555 = vmatpush1.bf16.xpose.msra.mxu0 0
      %1556 = vmatprep.subr.bf16.mxu0 0
      %1557 = vmatpush1.bf16.xpose.msra.mxu0 0
      %1558 = vmatprep.subr.bf16.mxu0 0
      %1559 = vmatpush1.bf16.xpose.msra.mxu0 0
      %1560 = vmatprep.subr.bf16.mxu0 0
      %1561 = vmatpush1.bf16.xpose.msra.mxu0 0
      %1562 = vmatprep.subr.bf16.mxu0 0
      %1563 = vmatpush1.bf16.xpose.msra.mxu0 0
      %1564 = vmatprep.subr.bf16.mxu0 0
      %1565 = vmatpush1.bf16.xpose.msra.mxu0 0
      %1566 = vmatprep.subr.bf16.mxu0 0
      %1567 = vmatpush1.bf16.xpose.msra.mxu0 0
      %1568 = vmatprep.subr.bf16.mxu0 0
      %1569 = vmatpush1.bf16.xpose.msra.mxu0 0
      %1570 = vmatprep.subr.bf16.mxu0 0
      %1571 = vmatpush1.bf16.xpose.msra.mxu0 0
      %1572 = vmatprep.subr.bf16.mxu0 0
      %1573 = vmatpush1.bf16.xpose.msra.mxu0 0
      %1574 = vmatprep.subr.bf16.mxu0 0
      %1575 = vmatpush1.bf16.xpose.msra.mxu0 0
      %1576 = vmatprep.subr.bf16.mxu0 0
      %1577 = vmatpush1.bf16.xpose.msra.mxu0 0
      %1578 = vmatprep.subr.bf16.mxu0 0
      %1579 = vmatpush1.bf16.xpose.msra.mxu0 0
      %1580 = vmatprep.mubr.bf16.mxu0 0
      %1581 = vmatmul.mubr.bf16.gmra.mrb[0].mxu0 %v1543
      %v1582 = vpop.f32.mrb[0].mxu0
      %v1583 = vadd.f32 0.0, %v1582
      %v1584 = vpop.f32.mrb[0].mxu0
      %v1585 = vpop.f32.mrb[0].mxu0
      %v1586 = vpop.f32.mrb[0].mxu0
      %1587 = vdwg.mxu0
      %1589 = vrot.lane.b32.xlu0 %v1411, 96
      %v1590 = vpop.permute.xlu0 %1589
      %v1592 = vsel %vm1443, %v1411, 0
      %v1595 = vsel %vm1443, %v1590, 0
      %1597 = vmatprep.subr.bf16.mxu0 0
      %1598 = vmatpush1.bf16.xpose.msra.mxu0 %v1595
      %1599 = vmatprep.subr.bf16.mxu0 0
      %1600 = vmatpush1.bf16.xpose.msra.mxu0 0
      %1601 = vmatprep.subr.bf16.mxu0 0
      %1602 = vmatpush1.bf16.xpose.msra.mxu0 0
      %1603 = vmatprep.subr.bf16.mxu0 0
      %1604 = vmatpush1.bf16.xpose.msra.mxu0 0
      %1605 = vmatprep.subr.bf16.mxu0 0
      %1606 = vmatpush1.bf16.xpose.msra.mxu0 0
      %1607 = vmatprep.subr.bf16.mxu0 0
      %1608 = vmatpush1.bf16.xpose.msra.mxu0 0
      %1609 = vmatprep.subr.bf16.mxu0 0
      %1610 = vmatpush1.bf16.xpose.msra.mxu0 0
      %1611 = vmatprep.subr.bf16.mxu0 0
      %1612 = vmatpush1.bf16.xpose.msra.mxu0 0
      %1613 = vmatprep.subr.bf16.mxu0 0
      %1614 = vmatpush1.bf16.xpose.msra.mxu0 0
      %1615 = vmatprep.subr.bf16.mxu0 0
      %1616 = vmatpush1.bf16.xpose.msra.mxu0 0
      %1617 = vmatprep.subr.bf16.mxu0 0
      %1618 = vmatpush1.bf16.xpose.msra.mxu0 0
      %1619 = vmatprep.subr.bf16.mxu0 0
      %1620 = vmatpush1.bf16.xpose.msra.mxu0 0
      %1621 = vmatprep.subr.bf16.mxu0 0
      %1622 = vmatpush1.bf16.xpose.msra.mxu0 0
      %1623 = vmatprep.subr.bf16.mxu0 0
      %1624 = vmatpush1.bf16.xpose.msra.mxu0 0
      %1625 = vmatprep.subr.bf16.mxu0 0
      %1626 = vmatpush1.bf16.xpose.msra.mxu0 0
      %1627 = vmatprep.subr.bf16.mxu0 0
      %1628 = vmatpush1.bf16.xpose.msra.mxu0 0
      %1629 = vmatprep.mubr.bf16.mxu0 0
      %1630 = vmatmul.mubr.bf16.gmra.mrb[0].mxu0 %v1592
      %v1631 = vpop.f32.mrb[0].mxu0
      %v1632 = vadd.f32 0.0, %v1631
      %v1633 = vpop.f32.mrb[0].mxu0
      %v1634 = vpop.f32.mrb[0].mxu0
      %v1635 = vpop.f32.mrb[0].mxu0
      %1636 = vdwg.mxu0
      %1638 = vrot.lane.b32.xlu0 %v1412, 96
      %v1639 = vpop.permute.xlu0 %1638
      %v1641 = vsel %vm1443, %v1412, 0
      %v1644 = vsel %vm1443, %v1639, 0
      %1646 = vmatprep.subr.bf16.mxu0 0
      %1647 = vmatpush1.bf16.xpose.msra.mxu0 %v1644
      %1648 = vmatprep.subr.bf16.mxu0 0
      %1649 = vmatpush1.bf16.xpose.msra.mxu0 0
      %1650 = vmatprep.subr.bf16.mxu0 0
      %1651 = vmatpush1.bf16.xpose.msra.mxu0 0
      %1652 = vmatprep.subr.bf16.mxu0 0
      %1653 = vmatpush1.bf16.xpose.msra.mxu0 0
      %1654 = vmatprep.subr.bf16.mxu0 0
      %1655 = vmatpush1.bf16.xpose.msra.mxu0 0
      %1656 = vmatprep.subr.bf16.mxu0 0
      %1657 = vmatpush1.bf16.xpose.msra.mxu0 0
      %1658 = vmatprep.subr.bf16.mxu0 0
      %1659 = vmatpush1.bf16.xpose.msra.mxu0 0
      %1660 = vmatprep.subr.bf16.mxu0 0
      %1661 = vmatpush1.bf16.xpose.msra.mxu0 0
      %1662 = vmatprep.subr.bf16.mxu0 0
      %1663 = vmatpush1.bf16.xpose.msra.mxu0 0
      %1664 = vmatprep.subr.bf16.mxu0 0
      %1665 = vmatpush1.bf16.xpose.msra.mxu0 0
      %1666 = vmatprep.subr.bf16.mxu0 0
      %1667 = vmatpush1.bf16.xpose.msra.mxu0 0
      %1668 = vmatprep.subr.bf16.mxu0 0
      %1669 = vmatpush1.bf16.xpose.msra.mxu0 0
      %1670 = vmatprep.subr.bf16.mxu0 0
      %1671 = vmatpush1.bf16.xpose.msra.mxu0 0
      %1672 = vmatprep.subr.bf16.mxu0 0
      %1673 = vmatpush1.bf16.xpose.msra.mxu0 0
      %1674 = vmatprep.subr.bf16.mxu0 0
      %1675 = vmatpush1.bf16.xpose.msra.mxu0 0
      %1676 = vmatprep.subr.bf16.mxu0 0
      %1677 = vmatpush1.bf16.xpose.msra.mxu0 0
      %1678 = vmatprep.mubr.bf16.mxu0 0
      %1679 = vmatmul.mubr.bf16.gmra.mrb[0].mxu0 %v1641
      %v1680 = vpop.f32.mrb[0].mxu0
      %v1681 = vadd.f32 0.0, %v1680
      %v1682 = vpop.f32.mrb[0].mxu0
      %v1683 = vpop.f32.mrb[0].mxu0
      %v1684 = vpop.f32.mrb[0].mxu0
      %1685 = vdwg.mxu0
      %1687 = vrot.lane.b32.xlu0 %v1413, 96
      %v1688 = vpop.permute.xlu0 %1687
      %v1690 = vsel %vm1443, %v1413, 0
      %v1693 = vsel %vm1443, %v1688, 0
      %1695 = vmatprep.subr.bf16.mxu0 0
      %1696 = vmatpush1.bf16.xpose.msra.mxu0 %v1693
      %1697 = vmatprep.subr.bf16.mxu0 0
      %1698 = vmatpush1.bf16.xpose.msra.mxu0 0
      %1699 = vmatprep.subr.bf16.mxu0 0
      %1700 = vmatpush1.bf16.xpose.msra.mxu0 0
      %1701 = vmatprep.subr.bf16.mxu0 0
      %1702 = vmatpush1.bf16.xpose.msra.mxu0 0
      %1703 = vmatprep.subr.bf16.mxu0 0
      %1704 = vmatpush1.bf16.xpose.msra.mxu0 0
      %1705 = vmatprep.subr.bf16.mxu0 0
      %1706 = vmatpush1.bf16.xpose.msra.mxu0 0
      %1707 = vmatprep.subr.bf16.mxu0 0
      %1708 = vmatpush1.bf16.xpose.msra.mxu0 0
      %1709 = vmatprep.subr.bf16.mxu0 0
      %1710 = vmatpush1.bf16.xpose.msra.mxu0 0
      %1711 = vmatprep.subr.bf16.mxu0 0
      %1712 = vmatpush1.bf16.xpose.msra.mxu0 0
      %1713 = vmatprep.subr.bf16.mxu0 0
      %1714 = vmatpush1.bf16.xpose.msra.mxu0 0
      %1715 = vmatprep.subr.bf16.mxu0 0
      %1716 = vmatpush1.bf16.xpose.msra.mxu0 0
      %1717 = vmatprep.subr.bf16.mxu0 0
      %1718 = vmatpush1.bf16.xpose.msra.mxu0 0
      %1719 = vmatprep.subr.bf16.mxu0 0
      %1720 = vmatpush1.bf16.xpose.msra.mxu0 0
      %1721 = vmatprep.subr.bf16.mxu0 0
      %1722 = vmatpush1.bf16.xpose.msra.mxu0 0
      %1723 = vmatprep.subr.bf16.mxu0 0
      %1724 = vmatpush1.bf16.xpose.msra.mxu0 0
      %1725 = vmatprep.subr.bf16.mxu0 0
      %1726 = vmatpush1.bf16.xpose.msra.mxu0 0
      %1727 = vmatprep.mubr.bf16.mxu0 0
      %1728 = vmatmul.mubr.bf16.gmra.mrb[0].mxu0 %v1690
      %v1729 = vpop.f32.mrb[0].mxu0
      %v1730 = vadd.f32 0.0, %v1729
      %v1731 = vpop.f32.mrb[0].mxu0
      %v1732 = vpop.f32.mrb[0].mxu0
      %v1733 = vpop.f32.mrb[0].mxu0
      %1734 = vdwg.mxu0
      %1736 = vrot.lane.b32.xlu0 %v1414, 96
      %v1737 = vpop.permute.xlu0 %1736
      %v1739 = vsel %vm1443, %v1414, 0
      %v1742 = vsel %vm1443, %v1737, 0
      %1744 = vmatprep.subr.bf16.mxu0 0
      %1745 = vmatpush1.bf16.xpose.msra.mxu0 %v1742
      %1746 = vmatprep.subr.bf16.mxu0 0
      %1747 = vmatpush1.bf16.xpose.msra.mxu0 0
      %1748 = vmatprep.subr.bf16.mxu0 0
      %1749 = vmatpush1.bf16.xpose.msra.mxu0 0
      %1750 = vmatprep.subr.bf16.mxu0 0
      %1751 = vmatpush1.bf16.xpose.msra.mxu0 0
      %1752 = vmatprep.subr.bf16.mxu0 0
      %1753 = vmatpush1.bf16.xpose.msra.mxu0 0
      %1754 = vmatprep.subr.bf16.mxu0 0
      %1755 = vmatpush1.bf16.xpose.msra.mxu0 0
      %1756 = vmatprep.subr.bf16.mxu0 0
      %1757 = vmatpush1.bf16.xpose.msra.mxu0 0
      %1758 = vmatprep.subr.bf16.mxu0 0
      %1759 = vmatpush1.bf16.xpose.msra.mxu0 0
      %1760 = vmatprep.subr.bf16.mxu0 0
      %1761 = vmatpush1.bf16.xpose.msra.mxu0 0
      %1762 = vmatprep.subr.bf16.mxu0 0
      %1763 = vmatpush1.bf16.xpose.msra.mxu0 0
      %1764 = vmatprep.subr.bf16.mxu0 0
      %1765 = vmatpush1.bf16.xpose.msra.mxu0 0
      %1766 = vmatprep.subr.bf16.mxu0 0
      %1767 = vmatpush1.bf16.xpose.msra.mxu0 0
      %1768 = vmatprep.subr.bf16.mxu0 0
      %1769 = vmatpush1.bf16.xpose.msra.mxu0 0
      %1770 = vmatprep.subr.bf16.mxu0 0
      %1771 = vmatpush1.bf16.xpose.msra.mxu0 0
      %1772 = vmatprep.subr.bf16.mxu0 0
      %1773 = vmatpush1.bf16.xpose.msra.mxu0 0
      %1774 = vmatprep.subr.bf16.mxu0 0
      %1775 = vmatpush1.bf16.xpose.msra.mxu0 0
      %1776 = vmatprep.mubr.bf16.mxu0 0
      %1777 = vmatmul.mubr.bf16.gmra.mrb[0].mxu0 %v1739
      %v1778 = vpop.f32.mrb[0].mxu0
      %v1779 = vadd.f32 0.0, %v1778
      %v1780 = vpop.f32.mrb[0].mxu0
      %v1781 = vpop.f32.mrb[0].mxu0
      %v1782 = vpop.f32.mrb[0].mxu0
      %1783 = vdwg.mxu0
      %1785 = vrot.lane.b32.xlu0 %v1415, 96
      %v1786 = vpop.permute.xlu0 %1785
      %v1788 = vsel %vm1443, %v1415, 0
      %v1791 = vsel %vm1443, %v1786, 0
      %1793 = vmatprep.subr.bf16.mxu0 0
      %1794 = vmatpush1.bf16.xpose.msra.mxu0 %v1791
      %1795 = vmatprep.subr.bf16.mxu0 0
      %1796 = vmatpush1.bf16.xpose.msra.mxu0 0
      %1797 = vmatprep.subr.bf16.mxu0 0
      %1798 = vmatpush1.bf16.xpose.msra.mxu0 0
      %1799 = vmatprep.subr.bf16.mxu0 0
      %1800 = vmatpush1.bf16.xpose.msra.mxu0 0
      %1801 = vmatprep.subr.bf16.mxu0 0
      %1802 = vmatpush1.bf16.xpose.msra.mxu0 0
      %1803 = vmatprep.subr.bf16.mxu0 0
      %1804 = vmatpush1.bf16.xpose.msra.mxu0 0
      %1805 = vmatprep.subr.bf16.mxu0 0
      %1806 = vmatpush1.bf16.xpose.msra.mxu0 0
      %1807 = vmatprep.subr.bf16.mxu0 0
      %1808 = vmatpush1.bf16.xpose.msra.mxu0 0
      %1809 = vmatprep.subr.bf16.mxu0 0
      %1810 = vmatpush1.bf16.xpose.msra.mxu0 0
      %1811 = vmatprep.subr.bf16.mxu0 0
      %1812 = vmatpush1.bf16.xpose.msra.mxu0 0
      %1813 = vmatprep.subr.bf16.mxu0 0
      %1814 = vmatpush1.bf16.xpose.msra.mxu0 0
      %1815 = vmatprep.subr.bf16.mxu0 0
      %1816 = vmatpush1.bf16.xpose.msra.mxu0 0
      %1817 = vmatprep.subr.bf16.mxu0 0
      %1818 = vmatpush1.bf16.xpose.msra.mxu0 0
      %1819 = vmatprep.subr.bf16.mxu0 0
      %1820 = vmatpush1.bf16.xpose.msra.mxu0 0
      %1821 = vmatprep.subr.bf16.mxu0 0
      %1822 = vmatpush1.bf16.xpose.msra.mxu0 0
      %1823 = vmatprep.subr.bf16.mxu0 0
      %1824 = vmatpush1.bf16.xpose.msra.mxu0 0
      %1825 = vmatprep.mubr.bf16.mxu0 0
      %1826 = vmatmul.mubr.bf16.gmra.mrb[0].mxu0 %v1788
      %v1827 = vpop.f32.mrb[0].mxu0
      %v1828 = vadd.f32 0.0, %v1827
      %v1829 = vpop.f32.mrb[0].mxu0
      %v1830 = vpop.f32.mrb[0].mxu0
      %v1831 = vpop.f32.mrb[0].mxu0
      %1832 = vdwg.mxu0
      %1834 = vrot.lane.b32.xlu0 %v1416, 96
      %v1835 = vpop.permute.xlu0 %1834
      %v1837 = vsel %vm1443, %v1416, 0
      %v1840 = vsel %vm1443, %v1835, 0
      %1842 = vmatprep.subr.bf16.mxu0 0
      %1843 = vmatpush1.bf16.xpose.msra.mxu0 %v1840
      %1844 = vmatprep.subr.bf16.mxu0 0
      %1845 = vmatpush1.bf16.xpose.msra.mxu0 0
      %1846 = vmatprep.subr.bf16.mxu0 0
      %1847 = vmatpush1.bf16.xpose.msra.mxu0 0
      %1848 = vmatprep.subr.bf16.mxu0 0
      %1849 = vmatpush1.bf16.xpose.msra.mxu0 0
      %1850 = vmatprep.subr.bf16.mxu0 0
      %1851 = vmatpush1.bf16.xpose.msra.mxu0 0
      %1852 = vmatprep.subr.bf16.mxu0 0
      %1853 = vmatpush1.bf16.xpose.msra.mxu0 0
      %1854 = vmatprep.subr.bf16.mxu0 0
      %1855 = vmatpush1.bf16.xpose.msra.mxu0 0
      %1856 = vmatprep.subr.bf16.mxu0 0
      %1857 = vmatpush1.bf16.xpose.msra.mxu0 0
      %1858 = vmatprep.subr.bf16.mxu0 0
      %1859 = vmatpush1.bf16.xpose.msra.mxu0 0
      %1860 = vmatprep.subr.bf16.mxu0 0
      %1861 = vmatpush1.bf16.xpose.msra.mxu0 0
      %1862 = vmatprep.subr.bf16.mxu0 0
      %1863 = vmatpush1.bf16.xpose.msra.mxu0 0
      %1864 = vmatprep.subr.bf16.mxu0 0
      %1865 = vmatpush1.bf16.xpose.msra.mxu0 0
      %1866 = vmatprep.subr.bf16.mxu0 0
      %1867 = vmatpush1.bf16.xpose.msra.mxu0 0
      %1868 = vmatprep.subr.bf16.mxu0 0
      %1869 = vmatpush1.bf16.xpose.msra.mxu0 0
      %1870 = vmatprep.subr.bf16.mxu0 0
      %1871 = vmatpush1.bf16.xpose.msra.mxu0 0
      %1872 = vmatprep.subr.bf16.mxu0 0
      %1873 = vmatpush1.bf16.xpose.msra.mxu0 0
      %1874 = vmatprep.mubr.bf16.mxu0 0
      %1875 = vmatmul.mubr.bf16.gmra.mrb[0].mxu0 %v1837
      %v1876 = vpop.f32.mrb[0].mxu0
      %v1877 = vadd.f32 0.0, %v1876
      %v1878 = vpop.f32.mrb[0].mxu0
      %v1879 = vpop.f32.mrb[0].mxu0
      %v1880 = vpop.f32.mrb[0].mxu0
      %1881 = vdwg.mxu0
      %1883 = vrot.lane.b32.xlu0 %v1417, 96
      %v1884 = vpop.permute.xlu0 %1883
      %v1886 = vsel %vm1443, %v1417, 0
      %v1889 = vsel %vm1443, %v1884, 0
      %1891 = vmatprep.subr.bf16.mxu0 0
      %1892 = vmatpush1.bf16.xpose.msra.mxu0 %v1889
      %1893 = vmatprep.subr.bf16.mxu0 0
      %1894 = vmatpush1.bf16.xpose.msra.mxu0 0
      %1895 = vmatprep.subr.bf16.mxu0 0
      %1896 = vmatpush1.bf16.xpose.msra.mxu0 0
      %1897 = vmatprep.subr.bf16.mxu0 0
      %1898 = vmatpush1.bf16.xpose.msra.mxu0 0
      %1899 = vmatprep.subr.bf16.mxu0 0
      %1900 = vmatpush1.bf16.xpose.msra.mxu0 0
      %1901 = vmatprep.subr.bf16.mxu0 0
      %1902 = vmatpush1.bf16.xpose.msra.mxu0 0
      %1903 = vmatprep.subr.bf16.mxu0 0
      %1904 = vmatpush1.bf16.xpose.msra.mxu0 0
      %1905 = vmatprep.subr.bf16.mxu0 0
      %1906 = vmatpush1.bf16.xpose.msra.mxu0 0
      %1907 = vmatprep.subr.bf16.mxu0 0
      %1908 = vmatpush1.bf16.xpose.msra.mxu0 0
      %1909 = vmatprep.subr.bf16.mxu0 0
      %1910 = vmatpush1.bf16.xpose.msra.mxu0 0
      %1911 = vmatprep.subr.bf16.mxu0 0
      %1912 = vmatpush1.bf16.xpose.msra.mxu0 0
      %1913 = vmatprep.subr.bf16.mxu0 0
      %1914 = vmatpush1.bf16.xpose.msra.mxu0 0
      %1915 = vmatprep.subr.bf16.mxu0 0
      %1916 = vmatpush1.bf16.xpose.msra.mxu0 0
      %1917 = vmatprep.subr.bf16.mxu0 0
      %1918 = vmatpush1.bf16.xpose.msra.mxu0 0
      %1919 = vmatprep.subr.bf16.mxu0 0
      %1920 = vmatpush1.bf16.xpose.msra.mxu0 0
      %1921 = vmatprep.subr.bf16.mxu0 0
      %1922 = vmatpush1.bf16.xpose.msra.mxu0 0
      %1923 = vmatprep.mubr.bf16.mxu0 0
      %1924 = vmatmul.mubr.bf16.gmra.mrb[0].mxu0 %v1886
      %v1925 = vpop.f32.mrb[0].mxu0
      %v1926 = vadd.f32 0.0, %v1925
      %v1927 = vpop.f32.mrb[0].mxu0
      %v1928 = vpop.f32.mrb[0].mxu0
      %v1929 = vpop.f32.mrb[0].mxu0
      %1930 = vdwg.mxu0
      %1932 = vrot.lane.b32.xlu0 %v1418, 96
      %v1933 = vpop.permute.xlu0 %1932
      %v1935 = vsel %vm1443, %v1418, 0
      %v1938 = vsel %vm1443, %v1933, 0
      %1940 = vmatprep.subr.bf16.mxu0 0
      %1941 = vmatpush1.bf16.xpose.msra.mxu0 %v1938
      %1942 = vmatprep.subr.bf16.mxu0 0
      %1943 = vmatpush1.bf16.xpose.msra.mxu0 0
      %1944 = vmatprep.subr.bf16.mxu0 0
      %1945 = vmatpush1.bf16.xpose.msra.mxu0 0
      %1946 = vmatprep.subr.bf16.mxu0 0
      %1947 = vmatpush1.bf16.xpose.msra.mxu0 0
      %1948 = vmatprep.subr.bf16.mxu0 0
      %1949 = vmatpush1.bf16.xpose.msra.mxu0 0
      %1950 = vmatprep.subr.bf16.mxu0 0
      %1951 = vmatpush1.bf16.xpose.msra.mxu0 0
      %1952 = vmatprep.subr.bf16.mxu0 0
      %1953 = vmatpush1.bf16.xpose.msra.mxu0 0
      %1954 = vmatprep.subr.bf16.mxu0 0
      %1955 = vmatpush1.bf16.xpose.msra.mxu0 0
      %1956 = vmatprep.subr.bf16.mxu0 0
      %1957 = vmatpush1.bf16.xpose.msra.mxu0 0
      %1958 = vmatprep.subr.bf16.mxu0 0
      %1959 = vmatpush1.bf16.xpose.msra.mxu0 0
      %1960 = vmatprep.subr.bf16.mxu0 0
      %1961 = vmatpush1.bf16.xpose.msra.mxu0 0
      %1962 = vmatprep.subr.bf16.mxu0 0
      %1963 = vmatpush1.bf16.xpose.msra.mxu0 0
      %1964 = vmatprep.subr.bf16.mxu0 0
      %1965 = vmatpush1.bf16.xpose.msra.mxu0 0
      %1966 = vmatprep.subr.bf16.mxu0 0
      %1967 = vmatpush1.bf16.xpose.msra.mxu0 0
      %1968 = vmatprep.subr.bf16.mxu0 0
      %1969 = vmatpush1.bf16.xpose.msra.mxu0 0
      %1970 = vmatprep.subr.bf16.mxu0 0
      %1971 = vmatpush1.bf16.xpose.msra.mxu0 0
      %1972 = vmatprep.mubr.bf16.mxu0 0
      %1973 = vmatmul.mubr.bf16.gmra.mrb[0].mxu0 %v1935
      %v1974 = vpop.f32.mrb[0].mxu0
      %v1975 = vadd.f32 0.0, %v1974
      %v1976 = vpop.f32.mrb[0].mxu0
      %v1977 = vpop.f32.mrb[0].mxu0
      %v1978 = vpop.f32.mrb[0].mxu0
      %1979 = vdwg.mxu0
      %1981 = vrot.lane.b32.xlu0 %v1419, 96
      %v1982 = vpop.permute.xlu0 %1981
      %v1984 = vsel %vm1443, %v1419, 0
      %v1987 = vsel %vm1443, %v1982, 0
      %1989 = vmatprep.subr.bf16.mxu0 0
      %1990 = vmatpush1.bf16.xpose.msra.mxu0 %v1987
      %1991 = vmatprep.subr.bf16.mxu0 0
      %1992 = vmatpush1.bf16.xpose.msra.mxu0 0
      %1993 = vmatprep.subr.bf16.mxu0 0
      %1994 = vmatpush1.bf16.xpose.msra.mxu0 0
      %1995 = vmatprep.subr.bf16.mxu0 0
      %1996 = vmatpush1.bf16.xpose.msra.mxu0 0
      %1997 = vmatprep.subr.bf16.mxu0 0
      %1998 = vmatpush1.bf16.xpose.msra.mxu0 0
      %1999 = vmatprep.subr.bf16.mxu0 0
      %2000 = vmatpush1.bf16.xpose.msra.mxu0 0
      %2001 = vmatprep.subr.bf16.mxu0 0
      %2002 = vmatpush1.bf16.xpose.msra.mxu0 0
      %2003 = vmatprep.subr.bf16.mxu0 0
      %2004 = vmatpush1.bf16.xpose.msra.mxu0 0
      %2005 = vmatprep.subr.bf16.mxu0 0
      %2006 = vmatpush1.bf16.xpose.msra.mxu0 0
      %2007 = vmatprep.subr.bf16.mxu0 0
      %2008 = vmatpush1.bf16.xpose.msra.mxu0 0
      %2009 = vmatprep.subr.bf16.mxu0 0
      %2010 = vmatpush1.bf16.xpose.msra.mxu0 0
      %2011 = vmatprep.subr.bf16.mxu0 0
      %2012 = vmatpush1.bf16.xpose.msra.mxu0 0
      %2013 = vmatprep.subr.bf16.mxu0 0
      %2014 = vmatpush1.bf16.xpose.msra.mxu0 0
      %2015 = vmatprep.subr.bf16.mxu0 0
      %2016 = vmatpush1.bf16.xpose.msra.mxu0 0
      %2017 = vmatprep.subr.bf16.mxu0 0
      %2018 = vmatpush1.bf16.xpose.msra.mxu0 0
      %2019 = vmatprep.subr.bf16.mxu0 0
      %2020 = vmatpush1.bf16.xpose.msra.mxu0 0
      %2021 = vmatprep.mubr.bf16.mxu0 0
      %2022 = vmatmul.mubr.bf16.gmra.mrb[0].mxu0 %v1984
      %v2023 = vpop.f32.mrb[0].mxu0
      %v2024 = vadd.f32 0.0, %v2023
      %v2025 = vpop.f32.mrb[0].mxu0
      %v2026 = vpop.f32.mrb[0].mxu0
      %v2027 = vpop.f32.mrb[0].mxu0
      %2028 = vdwg.mxu0
      %2030 = vrot.lane.b32.xlu0 %v1420, 96
      %v2031 = vpop.permute.xlu0 %2030
      %v2033 = vsel %vm1443, %v1420, 0
      %v2036 = vsel %vm1443, %v2031, 0
      %2038 = vmatprep.subr.bf16.mxu0 0
      %2039 = vmatpush1.bf16.xpose.msra.mxu0 %v2036
      %2040 = vmatprep.subr.bf16.mxu0 0
      %2041 = vmatpush1.bf16.xpose.msra.mxu0 0
      %2042 = vmatprep.subr.bf16.mxu0 0
      %2043 = vmatpush1.bf16.xpose.msra.mxu0 0
      %2044 = vmatprep.subr.bf16.mxu0 0
      %2045 = vmatpush1.bf16.xpose.msra.mxu0 0
      %2046 = vmatprep.subr.bf16.mxu0 0
      %2047 = vmatpush1.bf16.xpose.msra.mxu0 0
      %2048 = vmatprep.subr.bf16.mxu0 0
      %2049 = vmatpush1.bf16.xpose.msra.mxu0 0
      %2050 = vmatprep.subr.bf16.mxu0 0
      %2051 = vmatpush1.bf16.xpose.msra.mxu0 0
      %2052 = vmatprep.subr.bf16.mxu0 0
      %2053 = vmatpush1.bf16.xpose.msra.mxu0 0
      %2054 = vmatprep.subr.bf16.mxu0 0
      %2055 = vmatpush1.bf16.xpose.msra.mxu0 0
      %2056 = vmatprep.subr.bf16.mxu0 0
      %2057 = vmatpush1.bf16.xpose.msra.mxu0 0
      %2058 = vmatprep.subr.bf16.mxu0 0
      %2059 = vmatpush1.bf16.xpose.msra.mxu0 0
      %2060 = vmatprep.subr.bf16.mxu0 0
      %2061 = vmatpush1.bf16.xpose.msra.mxu0 0
      %2062 = vmatprep.subr.bf16.mxu0 0
      %2063 = vmatpush1.bf16.xpose.msra.mxu0 0
      %2064 = vmatprep.subr.bf16.mxu0 0
      %2065 = vmatpush1.bf16.xpose.msra.mxu0 0
      %2066 = vmatprep.subr.bf16.mxu0 0
      %2067 = vmatpush1.bf16.xpose.msra.mxu0 0
      %2068 = vmatprep.subr.bf16.mxu0 0
      %2069 = vmatpush1.bf16.xpose.msra.mxu0 0
      %2070 = vmatprep.mubr.bf16.mxu0 0
      %2071 = vmatmul.mubr.bf16.gmra.mrb[0].mxu0 %v2033
      %v2072 = vpop.f32.mrb[0].mxu0
      %v2073 = vadd.f32 0.0, %v2072
      %v2074 = vpop.f32.mrb[0].mxu0
      %v2075 = vpop.f32.mrb[0].mxu0
      %v2076 = vpop.f32.mrb[0].mxu0
      %2077 = vdwg.mxu0
      %2079 = vrot.lane.b32.xlu0 %v1421, 96
      %v2080 = vpop.permute.xlu0 %2079
      %v2082 = vsel %vm1443, %v1421, 0
      %v2085 = vsel %vm1443, %v2080, 0
      %2087 = vmatprep.subr.bf16.mxu0 0
      %2088 = vmatpush1.bf16.xpose.msra.mxu0 %v2085
      %2089 = vmatprep.subr.bf16.mxu0 0
      %2090 = vmatpush1.bf16.xpose.msra.mxu0 0
      %2091 = vmatprep.subr.bf16.mxu0 0
      %2092 = vmatpush1.bf16.xpose.msra.mxu0 0
      %2093 = vmatprep.subr.bf16.mxu0 0
      %2094 = vmatpush1.bf16.xpose.msra.mxu0 0
      %2095 = vmatprep.subr.bf16.mxu0 0
      %2096 = vmatpush1.bf16.xpose.msra.mxu0 0
      %2097 = vmatprep.subr.bf16.mxu0 0
      %2098 = vmatpush1.bf16.xpose.msra.mxu0 0
      %2099 = vmatprep.subr.bf16.mxu0 0
      %2100 = vmatpush1.bf16.xpose.msra.mxu0 0
      %2101 = vmatprep.subr.bf16.mxu0 0
      %2102 = vmatpush1.bf16.xpose.msra.mxu0 0
      %2103 = vmatprep.subr.bf16.mxu0 0
      %2104 = vmatpush1.bf16.xpose.msra.mxu0 0
      %2105 = vmatprep.subr.bf16.mxu0 0
      %2106 = vmatpush1.bf16.xpose.msra.mxu0 0
      %2107 = vmatprep.subr.bf16.mxu0 0
      %2108 = vmatpush1.bf16.xpose.msra.mxu0 0
      %2109 = vmatprep.subr.bf16.mxu0 0
      %2110 = vmatpush1.bf16.xpose.msra.mxu0 0
      %2111 = vmatprep.subr.bf16.mxu0 0
      %2112 = vmatpush1.bf16.xpose.msra.mxu0 0
      %2113 = vmatprep.subr.bf16.mxu0 0
      %2114 = vmatpush1.bf16.xpose.msra.mxu0 0
      %2115 = vmatprep.subr.bf16.mxu0 0
      %2116 = vmatpush1.bf16.xpose.msra.mxu0 0
      %2117 = vmatprep.subr.bf16.mxu0 0
      %2118 = vmatpush1.bf16.xpose.msra.mxu0 0
      %2119 = vmatprep.mubr.bf16.mxu0 0
      %2120 = vmatmul.mubr.bf16.gmra.mrb[0].mxu0 %v2082
      %v2121 = vpop.f32.mrb[0].mxu0
      %v2122 = vadd.f32 0.0, %v2121
      %v2123 = vpop.f32.mrb[0].mxu0
      %v2124 = vpop.f32.mrb[0].mxu0
      %v2125 = vpop.f32.mrb[0].mxu0
      %2126 = vdwg.mxu0
      %2128 = vrot.lane.b32.xlu0 %v1422, 96
      %v2129 = vpop.permute.xlu0 %2128
      %v2131 = vsel %vm1443, %v1422, 0
      %v2134 = vsel %vm1443, %v2129, 0
      %2136 = vmatprep.subr.bf16.mxu0 0
      %2137 = vmatpush1.bf16.xpose.msra.mxu0 %v2134
      %2138 = vmatprep.subr.bf16.mxu0 0
      %2139 = vmatpush1.bf16.xpose.msra.mxu0 0
      %2140 = vmatprep.subr.bf16.mxu0 0
      %2141 = vmatpush1.bf16.xpose.msra.mxu0 0
      %2142 = vmatprep.subr.bf16.mxu0 0
      %2143 = vmatpush1.bf16.xpose.msra.mxu0 0
      %2144 = vmatprep.subr.bf16.mxu0 0
      %2145 = vmatpush1.bf16.xpose.msra.mxu0 0
      %2146 = vmatprep.subr.bf16.mxu0 0
      %2147 = vmatpush1.bf16.xpose.msra.mxu0 0
      %2148 = vmatprep.subr.bf16.mxu0 0
      %2149 = vmatpush1.bf16.xpose.msra.mxu0 0
      %2150 = vmatprep.subr.bf16.mxu0 0
      %2151 = vmatpush1.bf16.xpose.msra.mxu0 0
      %2152 = vmatprep.subr.bf16.mxu0 0
      %2153 = vmatpush1.bf16.xpose.msra.mxu0 0
      %2154 = vmatprep.subr.bf16.mxu0 0
      %2155 = vmatpush1.bf16.xpose.msra.mxu0 0
      %2156 = vmatprep.subr.bf16.mxu0 0
      %2157 = vmatpush1.bf16.xpose.msra.mxu0 0
      %2158 = vmatprep.subr.bf16.mxu0 0
      %2159 = vmatpush1.bf16.xpose.msra.mxu0 0
      %2160 = vmatprep.subr.bf16.mxu0 0
      %2161 = vmatpush1.bf16.xpose.msra.mxu0 0
      %2162 = vmatprep.subr.bf16.mxu0 0
      %2163 = vmatpush1.bf16.xpose.msra.mxu0 0
      %2164 = vmatprep.subr.bf16.mxu0 0
      %2165 = vmatpush1.bf16.xpose.msra.mxu0 0
      %2166 = vmatprep.subr.bf16.mxu0 0
      %2167 = vmatpush1.bf16.xpose.msra.mxu0 0
      %2168 = vmatprep.mubr.bf16.mxu0 0
      %2169 = vmatmul.mubr.bf16.gmra.mrb[0].mxu0 %v2131
      %v2170 = vpop.f32.mrb[0].mxu0
      %v2171 = vadd.f32 0.0, %v2170
      %v2172 = vpop.f32.mrb[0].mxu0
      %v2173 = vpop.f32.mrb[0].mxu0
      %v2174 = vpop.f32.mrb[0].mxu0
      %2175 = vdwg.mxu0
      %2177 = vrot.lane.b32.xlu0 %v1423, 96
      %v2178 = vpop.permute.xlu0 %2177
      %v2180 = vsel %vm1443, %v1423, 0
      %v2183 = vsel %vm1443, %v2178, 0
      %2185 = vmatprep.subr.bf16.mxu0 0
      %2186 = vmatpush1.bf16.xpose.msra.mxu0 %v2183
      %2187 = vmatprep.subr.bf16.mxu0 0
      %2188 = vmatpush1.bf16.xpose.msra.mxu0 0
      %2189 = vmatprep.subr.bf16.mxu0 0
      %2190 = vmatpush1.bf16.xpose.msra.mxu0 0
      %2191 = vmatprep.subr.bf16.mxu0 0
      %2192 = vmatpush1.bf16.xpose.msra.mxu0 0
      %2193 = vmatprep.subr.bf16.mxu0 0
      %2194 = vmatpush1.bf16.xpose.msra.mxu0 0
      %2195 = vmatprep.subr.bf16.mxu0 0
      %2196 = vmatpush1.bf16.xpose.msra.mxu0 0
      %2197 = vmatprep.subr.bf16.mxu0 0
      %2198 = vmatpush1.bf16.xpose.msra.mxu0 0
      %2199 = vmatprep.subr.bf16.mxu0 0
      %2200 = vmatpush1.bf16.xpose.msra.mxu0 0
      %2201 = vmatprep.subr.bf16.mxu0 0
      %2202 = vmatpush1.bf16.xpose.msra.mxu0 0
      %2203 = vmatprep.subr.bf16.mxu0 0
      %2204 = vmatpush1.bf16.xpose.msra.mxu0 0
      %2205 = vmatprep.subr.bf16.mxu0 0
      %2206 = vmatpush1.bf16.xpose.msra.mxu0 0
      %2207 = vmatprep.subr.bf16.mxu0 0
      %2208 = vmatpush1.bf16.xpose.msra.mxu0 0
      %2209 = vmatprep.subr.bf16.mxu0 0
      %2210 = vmatpush1.bf16.xpose.msra.mxu0 0
      %2211 = vmatprep.subr.bf16.mxu0 0
      %2212 = vmatpush1.bf16.xpose.msra.mxu0 0
      %2213 = vmatprep.subr.bf16.mxu0 0
      %2214 = vmatpush1.bf16.xpose.msra.mxu0 0
      %2215 = vmatprep.subr.bf16.mxu0 0
      %2216 = vmatpush1.bf16.xpose.msra.mxu0 0
      %2217 = vmatprep.mubr.bf16.mxu0 0
      %2218 = vmatmul.mubr.bf16.gmra.mrb[0].mxu0 %v2180
      %v2219 = vpop.f32.mrb[0].mxu0
      %v2220 = vadd.f32 0.0, %v2219
      %v2221 = vpop.f32.mrb[0].mxu0
      %v2222 = vpop.f32.mrb[0].mxu0
      %v2223 = vpop.f32.mrb[0].mxu0
      %2224 = vdwg.mxu0
      %2226 = vrot.lane.b32.xlu0 %v1424, 96
      %v2227 = vpop.permute.xlu0 %2226
      %v2229 = vsel %vm1443, %v1424, 0
      %v2232 = vsel %vm1443, %v2227, 0
      %2234 = vmatprep.subr.bf16.mxu0 0
      %2235 = vmatpush1.bf16.xpose.msra.mxu0 %v2232
      %2236 = vmatprep.subr.bf16.mxu0 0
      %2237 = vmatpush1.bf16.xpose.msra.mxu0 0
      %2238 = vmatprep.subr.bf16.mxu0 0
      %2239 = vmatpush1.bf16.xpose.msra.mxu0 0
      %2240 = vmatprep.subr.bf16.mxu0 0
      %2241 = vmatpush1.bf16.xpose.msra.mxu0 0
      %2242 = vmatprep.subr.bf16.mxu0 0
      %2243 = vmatpush1.bf16.xpose.msra.mxu0 0
      %2244 = vmatprep.subr.bf16.mxu0 0
      %2245 = vmatpush1.bf16.xpose.msra.mxu0 0
      %2246 = vmatprep.subr.bf16.mxu0 0
      %2247 = vmatpush1.bf16.xpose.msra.mxu0 0
      %2248 = vmatprep.subr.bf16.mxu0 0
      %2249 = vmatpush1.bf16.xpose.msra.mxu0 0
      %2250 = vmatprep.subr.bf16.mxu0 0
      %2251 = vmatpush1.bf16.xpose.msra.mxu0 0
      %2252 = vmatprep.subr.bf16.mxu0 0
      %2253 = vmatpush1.bf16.xpose.msra.mxu0 0
      %2254 = vmatprep.subr.bf16.mxu0 0
      %2255 = vmatpush1.bf16.xpose.msra.mxu0 0
      %2256 = vmatprep.subr.bf16.mxu0 0
      %2257 = vmatpush1.bf16.xpose.msra.mxu0 0
      %2258 = vmatprep.subr.bf16.mxu0 0
      %2259 = vmatpush1.bf16.xpose.msra.mxu0 0
      %2260 = vmatprep.subr.bf16.mxu0 0
      %2261 = vmatpush1.bf16.xpose.msra.mxu0 0
      %2262 = vmatprep.subr.bf16.mxu0 0
      %2263 = vmatpush1.bf16.xpose.msra.mxu0 0
      %2264 = vmatprep.subr.bf16.mxu0 0
      %2265 = vmatpush1.bf16.xpose.msra.mxu0 0
      %2266 = vmatprep.mubr.bf16.mxu0 0
      %2267 = vmatmul.mubr.bf16.gmra.mrb[0].mxu0 %v2229
      %v2268 = vpop.f32.mrb[0].mxu0
      %v2269 = vadd.f32 0.0, %v2268
      %v2270 = vpop.f32.mrb[0].mxu0
      %v2271 = vpop.f32.mrb[0].mxu0
      %v2272 = vpop.f32.mrb[0].mxu0
      %2273 = vdwg.mxu0
      %2275 = vrot.lane.b32.xlu0 %v1425, 96
      %v2276 = vpop.permute.xlu0 %2275
      %v2278 = vsel %vm1443, %v1425, 0
      %v2281 = vsel %vm1443, %v2276, 0
      %2283 = vmatprep.subr.bf16.mxu0 0
      %2284 = vmatpush1.bf16.xpose.msra.mxu0 %v2281
      %2285 = vmatprep.subr.bf16.mxu0 0
      %2286 = vmatpush1.bf16.xpose.msra.mxu0 0
      %2287 = vmatprep.subr.bf16.mxu0 0
      %2288 = vmatpush1.bf16.xpose.msra.mxu0 0
      %2289 = vmatprep.subr.bf16.mxu0 0
      %2290 = vmatpush1.bf16.xpose.msra.mxu0 0
      %2291 = vmatprep.subr.bf16.mxu0 0
      %2292 = vmatpush1.bf16.xpose.msra.mxu0 0
      %2293 = vmatprep.subr.bf16.mxu0 0
      %2294 = vmatpush1.bf16.xpose.msra.mxu0 0
      %2295 = vmatprep.subr.bf16.mxu0 0
      %2296 = vmatpush1.bf16.xpose.msra.mxu0 0
      %2297 = vmatprep.subr.bf16.mxu0 0
      %2298 = vmatpush1.bf16.xpose.msra.mxu0 0
      %2299 = vmatprep.subr.bf16.mxu0 0
      %2300 = vmatpush1.bf16.xpose.msra.mxu0 0
      %2301 = vmatprep.subr.bf16.mxu0 0
      %2302 = vmatpush1.bf16.xpose.msra.mxu0 0
      %2303 = vmatprep.subr.bf16.mxu0 0
      %2304 = vmatpush1.bf16.xpose.msra.mxu0 0
      %2305 = vmatprep.subr.bf16.mxu0 0
      %2306 = vmatpush1.bf16.xpose.msra.mxu0 0
      %2307 = vmatprep.subr.bf16.mxu0 0
      %2308 = vmatpush1.bf16.xpose.msra.mxu0 0
      %2309 = vmatprep.subr.bf16.mxu0 0
      %2310 = vmatpush1.bf16.xpose.msra.mxu0 0
      %2311 = vmatprep.subr.bf16.mxu0 0
      %2312 = vmatpush1.bf16.xpose.msra.mxu0 0
      %2313 = vmatprep.subr.bf16.mxu0 0
      %2314 = vmatpush1.bf16.xpose.msra.mxu0 0
      %2315 = vmatprep.mubr.bf16.mxu0 0
      %2316 = vmatmul.mubr.bf16.gmra.mrb[0].mxu0 %v2278
      %v2317 = vpop.f32.mrb[0].mxu0
      %v2318 = vadd.f32 0.0, %v2317
      %v2319 = vpop.f32.mrb[0].mxu0
      %v2320 = vpop.f32.mrb[0].mxu0
      %v2321 = vpop.f32.mrb[0].mxu0
      %2322 = vdwg.mxu0
      %2324 = vrot.lane.b32.xlu0 %v1426, 96
      %v2325 = vpop.permute.xlu0 %2324
      %v2327 = vsel %vm1443, %v1426, 0
      %v2330 = vsel %vm1443, %v2325, 0
      %2332 = vmatprep.subr.bf16.mxu0 0
      %2333 = vmatpush1.bf16.xpose.msra.mxu0 %v2330
      %2334 = vmatprep.subr.bf16.mxu0 0
      %2335 = vmatpush1.bf16.xpose.msra.mxu0 0
      %2336 = vmatprep.subr.bf16.mxu0 0
      %2337 = vmatpush1.bf16.xpose.msra.mxu0 0
      %2338 = vmatprep.subr.bf16.mxu0 0
      %2339 = vmatpush1.bf16.xpose.msra.mxu0 0
      %2340 = vmatprep.subr.bf16.mxu0 0
      %2341 = vmatpush1.bf16.xpose.msra.mxu0 0
      %2342 = vmatprep.subr.bf16.mxu0 0
      %2343 = vmatpush1.bf16.xpose.msra.mxu0 0
      %2344 = vmatprep.subr.bf16.mxu0 0
      %2345 = vmatpush1.bf16.xpose.msra.mxu0 0
      %2346 = vmatprep.subr.bf16.mxu0 0
      %2347 = vmatpush1.bf16.xpose.msra.mxu0 0
      %2348 = vmatprep.subr.bf16.mxu0 0
      %2349 = vmatpush1.bf16.xpose.msra.mxu0 0
      %2350 = vmatprep.subr.bf16.mxu0 0
      %2351 = vmatpush1.bf16.xpose.msra.mxu0 0
      %2352 = vmatprep.subr.bf16.mxu0 0
      %2353 = vmatpush1.bf16.xpose.msra.mxu0 0
      %2354 = vmatprep.subr.bf16.mxu0 0
      %2355 = vmatpush1.bf16.xpose.msra.mxu0 0
      %2356 = vmatprep.subr.bf16.mxu0 0
      %2357 = vmatpush1.bf16.xpose.msra.mxu0 0
      %2358 = vmatprep.subr.bf16.mxu0 0
      %2359 = vmatpush1.bf16.xpose.msra.mxu0 0
      %2360 = vmatprep.subr.bf16.mxu0 0
      %2361 = vmatpush1.bf16.xpose.msra.mxu0 0
      %2362 = vmatprep.subr.bf16.mxu0 0
      %2363 = vmatpush1.bf16.xpose.msra.mxu0 0
      %2364 = vmatprep.mubr.bf16.mxu0 0
      %2365 = vmatmul.mubr.bf16.gmra.mrb[0].mxu0 %v2327
      %v2366 = vpop.f32.mrb[0].mxu0
      %v2367 = vadd.f32 0.0, %v2366
      %v2368 = vpop.f32.mrb[0].mxu0
      %v2369 = vpop.f32.mrb[0].mxu0
      %v2370 = vpop.f32.mrb[0].mxu0
      %2371 = vdwg.mxu0
      %2373 = vrot.lane.b32.xlu0 %v1427, 96
      %v2374 = vpop.permute.xlu0 %2373
      %v2376 = vsel %vm1443, %v1427, 0
      %v2379 = vsel %vm1443, %v2374, 0
      %2381 = vmatprep.subr.bf16.mxu0 0
      %2382 = vmatpush1.bf16.xpose.msra.mxu0 %v2379
      %2383 = vmatprep.subr.bf16.mxu0 0
      %2384 = vmatpush1.bf16.xpose.msra.mxu0 0
      %2385 = vmatprep.subr.bf16.mxu0 0
      %2386 = vmatpush1.bf16.xpose.msra.mxu0 0
      %2387 = vmatprep.subr.bf16.mxu0 0
      %2388 = vmatpush1.bf16.xpose.msra.mxu0 0
      %2389 = vmatprep.subr.bf16.mxu0 0
      %2390 = vmatpush1.bf16.xpose.msra.mxu0 0
      %2391 = vmatprep.subr.bf16.mxu0 0
      %2392 = vmatpush1.bf16.xpose.msra.mxu0 0
      %2393 = vmatprep.subr.bf16.mxu0 0
      %2394 = vmatpush1.bf16.xpose.msra.mxu0 0
      %2395 = vmatprep.subr.bf16.mxu0 0
      %2396 = vmatpush1.bf16.xpose.msra.mxu0 0
      %2397 = vmatprep.subr.bf16.mxu0 0
      %2398 = vmatpush1.bf16.xpose.msra.mxu0 0
      %2399 = vmatprep.subr.bf16.mxu0 0
      %2400 = vmatpush1.bf16.xpose.msra.mxu0 0
      %2401 = vmatprep.subr.bf16.mxu0 0
      %2402 = vmatpush1.bf16.xpose.msra.mxu0 0
      %2403 = vmatprep.subr.bf16.mxu0 0
      %2404 = vmatpush1.bf16.xpose.msra.mxu0 0
      %2405 = vmatprep.subr.bf16.mxu0 0
      %2406 = vmatpush1.bf16.xpose.msra.mxu0 0
      %2407 = vmatprep.subr.bf16.mxu0 0
      %2408 = vmatpush1.bf16.xpose.msra.mxu0 0
      %2409 = vmatprep.subr.bf16.mxu0 0
      %2410 = vmatpush1.bf16.xpose.msra.mxu0 0
      %2411 = vmatprep.subr.bf16.mxu0 0
      %2412 = vmatpush1.bf16.xpose.msra.mxu0 0
      %2413 = vmatprep.mubr.bf16.mxu0 0
      %2414 = vmatmul.mubr.bf16.gmra.mrb[0].mxu0 %v2376
      %v2415 = vpop.f32.mrb[0].mxu0
      %v2416 = vadd.f32 0.0, %v2415
      %v2417 = vpop.f32.mrb[0].mxu0
      %v2418 = vpop.f32.mrb[0].mxu0
      %v2419 = vpop.f32.mrb[0].mxu0
      %2420 = vdwg.mxu0
      %2422 = vrot.lane.b32.xlu0 %v1428, 96
      %v2423 = vpop.permute.xlu0 %2422
      %v2425 = vsel %vm1443, %v1428, 0
      %v2428 = vsel %vm1443, %v2423, 0
      %2430 = vmatprep.subr.bf16.mxu0 0
      %2431 = vmatpush1.bf16.xpose.msra.mxu0 %v2428
      %2432 = vmatprep.subr.bf16.mxu0 0
      %2433 = vmatpush1.bf16.xpose.msra.mxu0 0
      %2434 = vmatprep.subr.bf16.mxu0 0
      %2435 = vmatpush1.bf16.xpose.msra.mxu0 0
      %2436 = vmatprep.subr.bf16.mxu0 0
      %2437 = vmatpush1.bf16.xpose.msra.mxu0 0
      %2438 = vmatprep.subr.bf16.mxu0 0
      %2439 = vmatpush1.bf16.xpose.msra.mxu0 0
      %2440 = vmatprep.subr.bf16.mxu0 0
      %2441 = vmatpush1.bf16.xpose.msra.mxu0 0
      %2442 = vmatprep.subr.bf16.mxu0 0
      %2443 = vmatpush1.bf16.xpose.msra.mxu0 0
      %2444 = vmatprep.subr.bf16.mxu0 0
      %2445 = vmatpush1.bf16.xpose.msra.mxu0 0
      %2446 = vmatprep.subr.bf16.mxu0 0
      %2447 = vmatpush1.bf16.xpose.msra.mxu0 0
      %2448 = vmatprep.subr.bf16.mxu0 0
      %2449 = vmatpush1.bf16.xpose.msra.mxu0 0
      %2450 = vmatprep.subr.bf16.mxu0 0
      %2451 = vmatpush1.bf16.xpose.msra.mxu0 0
      %2452 = vmatprep.subr.bf16.mxu0 0
      %2453 = vmatpush1.bf16.xpose.msra.mxu0 0
      %2454 = vmatprep.subr.bf16.mxu0 0
      %2455 = vmatpush1.bf16.xpose.msra.mxu0 0
      %2456 = vmatprep.subr.bf16.mxu0 0
      %2457 = vmatpush1.bf16.xpose.msra.mxu0 0
      %2458 = vmatprep.subr.bf16.mxu0 0
      %2459 = vmatpush1.bf16.xpose.msra.mxu0 0
      %2460 = vmatprep.subr.bf16.mxu0 0
      %2461 = vmatpush1.bf16.xpose.msra.mxu0 0
      %2462 = vmatprep.mubr.bf16.mxu0 0
      %2463 = vmatmul.mubr.bf16.gmra.mrb[0].mxu0 %v2425
      %v2464 = vpop.f32.mrb[0].mxu0
      %v2465 = vadd.f32 0.0, %v2464
      %v2466 = vpop.f32.mrb[0].mxu0
      %v2467 = vpop.f32.mrb[0].mxu0
      %v2468 = vpop.f32.mrb[0].mxu0
      %2469 = vdwg.mxu0
      %2471 = vrot.lane.b32.xlu0 %v1429, 96
      %v2472 = vpop.permute.xlu0 %2471
      %v2474 = vsel %vm1443, %v1429, 0
      %v2477 = vsel %vm1443, %v2472, 0
      %2479 = vmatprep.subr.bf16.mxu0 0
      %2480 = vmatpush1.bf16.xpose.msra.mxu0 %v2477
      %2481 = vmatprep.subr.bf16.mxu0 0
      %2482 = vmatpush1.bf16.xpose.msra.mxu0 0
      %2483 = vmatprep.subr.bf16.mxu0 0
      %2484 = vmatpush1.bf16.xpose.msra.mxu0 0
      %2485 = vmatprep.subr.bf16.mxu0 0
      %2486 = vmatpush1.bf16.xpose.msra.mxu0 0
      %2487 = vmatprep.subr.bf16.mxu0 0
      %2488 = vmatpush1.bf16.xpose.msra.mxu0 0
      %2489 = vmatprep.subr.bf16.mxu0 0
      %2490 = vmatpush1.bf16.xpose.msra.mxu0 0
      %2491 = vmatprep.subr.bf16.mxu0 0
      %2492 = vmatpush1.bf16.xpose.msra.mxu0 0
      %2493 = vmatprep.subr.bf16.mxu0 0
      %2494 = vmatpush1.bf16.xpose.msra.mxu0 0
      %2495 = vmatprep.subr.bf16.mxu0 0
      %2496 = vmatpush1.bf16.xpose.msra.mxu0 0
      %2497 = vmatprep.subr.bf16.mxu0 0
      %2498 = vmatpush1.bf16.xpose.msra.mxu0 0
      %2499 = vmatprep.subr.bf16.mxu0 0
      %2500 = vmatpush1.bf16.xpose.msra.mxu0 0
      %2501 = vmatprep.subr.bf16.mxu0 0
      %2502 = vmatpush1.bf16.xpose.msra.mxu0 0
      %2503 = vmatprep.subr.bf16.mxu0 0
      %2504 = vmatpush1.bf16.xpose.msra.mxu0 0
      %2505 = vmatprep.subr.bf16.mxu0 0
      %2506 = vmatpush1.bf16.xpose.msra.mxu0 0
      %2507 = vmatprep.subr.bf16.mxu0 0
      %2508 = vmatpush1.bf16.xpose.msra.mxu0 0
      %2509 = vmatprep.subr.bf16.mxu0 0
      %2510 = vmatpush1.bf16.xpose.msra.mxu0 0
      %2511 = vmatprep.mubr.bf16.mxu0 0
      %2512 = vmatmul.mubr.bf16.gmra.mrb[0].mxu0 %v2474
      %v2513 = vpop.f32.mrb[0].mxu0
      %v2514 = vadd.f32 0.0, %v2513
      %v2515 = vpop.f32.mrb[0].mxu0
      %v2516 = vpop.f32.mrb[0].mxu0
      %v2517 = vpop.f32.mrb[0].mxu0
      %2518 = vdwg.mxu0
      %2520 = vrot.lane.b32.xlu0 %v1430, 96
      %v2521 = vpop.permute.xlu0 %2520
      %v2523 = vsel %vm1443, %v1430, 0
      %v2526 = vsel %vm1443, %v2521, 0
      %2528 = vmatprep.subr.bf16.mxu0 0
      %2529 = vmatpush1.bf16.xpose.msra.mxu0 %v2526
      %2530 = vmatprep.subr.bf16.mxu0 0
      %2531 = vmatpush1.bf16.xpose.msra.mxu0 0
      %2532 = vmatprep.subr.bf16.mxu0 0
      %2533 = vmatpush1.bf16.xpose.msra.mxu0 0
      %2534 = vmatprep.subr.bf16.mxu0 0
      %2535 = vmatpush1.bf16.xpose.msra.mxu0 0
      %2536 = vmatprep.subr.bf16.mxu0 0
      %2537 = vmatpush1.bf16.xpose.msra.mxu0 0
      %2538 = vmatprep.subr.bf16.mxu0 0
      %2539 = vmatpush1.bf16.xpose.msra.mxu0 0
      %2540 = vmatprep.subr.bf16.mxu0 0
      %2541 = vmatpush1.bf16.xpose.msra.mxu0 0
      %2542 = vmatprep.subr.bf16.mxu0 0
      %2543 = vmatpush1.bf16.xpose.msra.mxu0 0
      %2544 = vmatprep.subr.bf16.mxu0 0
      %2545 = vmatpush1.bf16.xpose.msra.mxu0 0
      %2546 = vmatprep.subr.bf16.mxu0 0
      %2547 = vmatpush1.bf16.xpose.msra.mxu0 0
      %2548 = vmatprep.subr.bf16.mxu0 0
      %2549 = vmatpush1.bf16.xpose.msra.mxu0 0
      %2550 = vmatprep.subr.bf16.mxu0 0
      %2551 = vmatpush1.bf16.xpose.msra.mxu0 0
      %2552 = vmatprep.subr.bf16.mxu0 0
      %2553 = vmatpush1.bf16.xpose.msra.mxu0 0
      %2554 = vmatprep.subr.bf16.mxu0 0
      %2555 = vmatpush1.bf16.xpose.msra.mxu0 0
      %2556 = vmatprep.subr.bf16.mxu0 0
      %2557 = vmatpush1.bf16.xpose.msra.mxu0 0
      %2558 = vmatprep.subr.bf16.mxu0 0
      %2559 = vmatpush1.bf16.xpose.msra.mxu0 0
      %2560 = vmatprep.mubr.bf16.mxu0 0
      %2561 = vmatmul.mubr.bf16.gmra.mrb[0].mxu0 %v2523
      %v2562 = vpop.f32.mrb[0].mxu0
      %v2563 = vadd.f32 0.0, %v2562
      %v2564 = vpop.f32.mrb[0].mxu0
      %v2565 = vpop.f32.mrb[0].mxu0
      %v2566 = vpop.f32.mrb[0].mxu0
      %2567 = vdwg.mxu0
      %2569 = vrot.lane.b32.xlu0 %v1431, 96
      %v2570 = vpop.permute.xlu0 %2569
      %v2572 = vsel %vm1443, %v1431, 0
      %v2575 = vsel %vm1443, %v2570, 0
      %2577 = vmatprep.subr.bf16.mxu0 0
      %2578 = vmatpush1.bf16.xpose.msra.mxu0 %v2575
      %2579 = vmatprep.subr.bf16.mxu0 0
      %2580 = vmatpush1.bf16.xpose.msra.mxu0 0
      %2581 = vmatprep.subr.bf16.mxu0 0
      %2582 = vmatpush1.bf16.xpose.msra.mxu0 0
      %2583 = vmatprep.subr.bf16.mxu0 0
      %2584 = vmatpush1.bf16.xpose.msra.mxu0 0
      %2585 = vmatprep.subr.bf16.mxu0 0
      %2586 = vmatpush1.bf16.xpose.msra.mxu0 0
      %2587 = vmatprep.subr.bf16.mxu0 0
      %2588 = vmatpush1.bf16.xpose.msra.mxu0 0
      %2589 = vmatprep.subr.bf16.mxu0 0
      %2590 = vmatpush1.bf16.xpose.msra.mxu0 0
      %2591 = vmatprep.subr.bf16.mxu0 0
      %2592 = vmatpush1.bf16.xpose.msra.mxu0 0
      %2593 = vmatprep.subr.bf16.mxu0 0
      %2594 = vmatpush1.bf16.xpose.msra.mxu0 0
      %2595 = vmatprep.subr.bf16.mxu0 0
      %2596 = vmatpush1.bf16.xpose.msra.mxu0 0
      %2597 = vmatprep.subr.bf16.mxu0 0
      %2598 = vmatpush1.bf16.xpose.msra.mxu0 0
      %2599 = vmatprep.subr.bf16.mxu0 0
      %2600 = vmatpush1.bf16.xpose.msra.mxu0 0
      %2601 = vmatprep.subr.bf16.mxu0 0
      %2602 = vmatpush1.bf16.xpose.msra.mxu0 0
      %2603 = vmatprep.subr.bf16.mxu0 0
      %2604 = vmatpush1.bf16.xpose.msra.mxu0 0
      %2605 = vmatprep.subr.bf16.mxu0 0
      %2606 = vmatpush1.bf16.xpose.msra.mxu0 0
      %2607 = vmatprep.subr.bf16.mxu0 0
      %2608 = vmatpush1.bf16.xpose.msra.mxu0 0
      %2609 = vmatprep.mubr.bf16.mxu0 0
      %2610 = vmatmul.mubr.bf16.gmra.mrb[0].mxu0 %v2572
      %v2611 = vpop.f32.mrb[0].mxu0
      %v2612 = vadd.f32 0.0, %v2611
      %v2613 = vpop.f32.mrb[0].mxu0
      %v2614 = vpop.f32.mrb[0].mxu0
      %v2615 = vpop.f32.mrb[0].mxu0
      %2616 = vdwg.mxu0
      %2618 = vrot.lane.b32.xlu0 %v1432, 96
      %v2619 = vpop.permute.xlu0 %2618
      %v2621 = vsel %vm1443, %v1432, 0
      %v2624 = vsel %vm1443, %v2619, 0
      %2626 = vmatprep.subr.bf16.mxu0 0
      %2627 = vmatpush1.bf16.xpose.msra.mxu0 %v2624
      %2628 = vmatprep.subr.bf16.mxu0 0
      %2629 = vmatpush1.bf16.xpose.msra.mxu0 0
      %2630 = vmatprep.subr.bf16.mxu0 0
      %2631 = vmatpush1.bf16.xpose.msra.mxu0 0
      %2632 = vmatprep.subr.bf16.mxu0 0
      %2633 = vmatpush1.bf16.xpose.msra.mxu0 0
      %2634 = vmatprep.subr.bf16.mxu0 0
      %2635 = vmatpush1.bf16.xpose.msra.mxu0 0
      %2636 = vmatprep.subr.bf16.mxu0 0
      %2637 = vmatpush1.bf16.xpose.msra.mxu0 0
      %2638 = vmatprep.subr.bf16.mxu0 0
      %2639 = vmatpush1.bf16.xpose.msra.mxu0 0
      %2640 = vmatprep.subr.bf16.mxu0 0
      %2641 = vmatpush1.bf16.xpose.msra.mxu0 0
      %2642 = vmatprep.subr.bf16.mxu0 0
      %2643 = vmatpush1.bf16.xpose.msra.mxu0 0
      %2644 = vmatprep.subr.bf16.mxu0 0
      %2645 = vmatpush1.bf16.xpose.msra.mxu0 0
      %2646 = vmatprep.subr.bf16.mxu0 0
      %2647 = vmatpush1.bf16.xpose.msra.mxu0 0
      %2648 = vmatprep.subr.bf16.mxu0 0
      %2649 = vmatpush1.bf16.xpose.msra.mxu0 0
      %2650 = vmatprep.subr.bf16.mxu0 0
      %2651 = vmatpush1.bf16.xpose.msra.mxu0 0
      %2652 = vmatprep.subr.bf16.mxu0 0
      %2653 = vmatpush1.bf16.xpose.msra.mxu0 0
      %2654 = vmatprep.subr.bf16.mxu0 0
      %2655 = vmatpush1.bf16.xpose.msra.mxu0 0
      %2656 = vmatprep.subr.bf16.mxu0 0
      %2657 = vmatpush1.bf16.xpose.msra.mxu0 0
      %2658 = vmatprep.mubr.bf16.mxu0 0
      %2659 = vmatmul.mubr.bf16.gmra.mrb[0].mxu0 %v2621
      %v2660 = vpop.f32.mrb[0].mxu0
      %v2661 = vadd.f32 0.0, %v2660
      %v2662 = vpop.f32.mrb[0].mxu0
      %v2663 = vpop.f32.mrb[0].mxu0
      %v2664 = vpop.f32.mrb[0].mxu0
      %2665 = vdwg.mxu0
      %2667 = vrot.lane.b32.xlu0 %v1433, 96
      %v2668 = vpop.permute.xlu0 %2667
      %v2670 = vsel %vm1443, %v1433, 0
      %v2673 = vsel %vm1443, %v2668, 0
      %2675 = vmatprep.subr.bf16.mxu0 0
      %2676 = vmatpush1.bf16.xpose.msra.mxu0 %v2673
      %2677 = vmatprep.subr.bf16.mxu0 0
      %2678 = vmatpush1.bf16.xpose.msra.mxu0 0
      %2679 = vmatprep.subr.bf16.mxu0 0
      %2680 = vmatpush1.bf16.xpose.msra.mxu0 0
      %2681 = vmatprep.subr.bf16.mxu0 0
      %2682 = vmatpush1.bf16.xpose.msra.mxu0 0
      %2683 = vmatprep.subr.bf16.mxu0 0
      %2684 = vmatpush1.bf16.xpose.msra.mxu0 0
      %2685 = vmatprep.subr.bf16.mxu0 0
      %2686 = vmatpush1.bf16.xpose.msra.mxu0 0
      %2687 = vmatprep.subr.bf16.mxu0 0
      %2688 = vmatpush1.bf16.xpose.msra.mxu0 0
      %2689 = vmatprep.subr.bf16.mxu0 0
      %2690 = vmatpush1.bf16.xpose.msra.mxu0 0
      %2691 = vmatprep.subr.bf16.mxu0 0
      %2692 = vmatpush1.bf16.xpose.msra.mxu0 0
      %2693 = vmatprep.subr.bf16.mxu0 0
      %2694 = vmatpush1.bf16.xpose.msra.mxu0 0
      %2695 = vmatprep.subr.bf16.mxu0 0
      %2696 = vmatpush1.bf16.xpose.msra.mxu0 0
      %2697 = vmatprep.subr.bf16.mxu0 0
      %2698 = vmatpush1.bf16.xpose.msra.mxu0 0
      %2699 = vmatprep.subr.bf16.mxu0 0
      %2700 = vmatpush1.bf16.xpose.msra.mxu0 0
      %2701 = vmatprep.subr.bf16.mxu0 0
      %2702 = vmatpush1.bf16.xpose.msra.mxu0 0
      %2703 = vmatprep.subr.bf16.mxu0 0
      %2704 = vmatpush1.bf16.xpose.msra.mxu0 0
      %2705 = vmatprep.subr.bf16.mxu0 0
      %2706 = vmatpush1.bf16.xpose.msra.mxu0 0
      %2707 = vmatprep.mubr.bf16.mxu0 0
      %2708 = vmatmul.mubr.bf16.gmra.mrb[0].mxu0 %v2670
      %v2709 = vpop.f32.mrb[0].mxu0
      %v2710 = vadd.f32 0.0, %v2709
      %v2711 = vpop.f32.mrb[0].mxu0
      %v2712 = vpop.f32.mrb[0].mxu0
      %v2713 = vpop.f32.mrb[0].mxu0
      %2714 = vdwg.mxu0
      %2716 = vrot.lane.b32.xlu0 %v1434, 96
      %v2717 = vpop.permute.xlu0 %2716
      %v2719 = vsel %vm1443, %v1434, 0
      %v2722 = vsel %vm1443, %v2717, 0
      %2724 = vmatprep.subr.bf16.mxu0 0
      %2725 = vmatpush1.bf16.xpose.msra.mxu0 %v2722
      %2726 = vmatprep.subr.bf16.mxu0 0
      %2727 = vmatpush1.bf16.xpose.msra.mxu0 0
      %2728 = vmatprep.subr.bf16.mxu0 0
      %2729 = vmatpush1.bf16.xpose.msra.mxu0 0
      %2730 = vmatprep.subr.bf16.mxu0 0
      %2731 = vmatpush1.bf16.xpose.msra.mxu0 0
      %2732 = vmatprep.subr.bf16.mxu0 0
      %2733 = vmatpush1.bf16.xpose.msra.mxu0 0
      %2734 = vmatprep.subr.bf16.mxu0 0
      %2735 = vmatpush1.bf16.xpose.msra.mxu0 0
      %2736 = vmatprep.subr.bf16.mxu0 0
      %2737 = vmatpush1.bf16.xpose.msra.mxu0 0
      %2738 = vmatprep.subr.bf16.mxu0 0
      %2739 = vmatpush1.bf16.xpose.msra.mxu0 0
      %2740 = vmatprep.subr.bf16.mxu0 0
      %2741 = vmatpush1.bf16.xpose.msra.mxu0 0
      %2742 = vmatprep.subr.bf16.mxu0 0
      %2743 = vmatpush1.bf16.xpose.msra.mxu0 0
      %2744 = vmatprep.subr.bf16.mxu0 0
      %2745 = vmatpush1.bf16.xpose.msra.mxu0 0
      %2746 = vmatprep.subr.bf16.mxu0 0
      %2747 = vmatpush1.bf16.xpose.msra.mxu0 0
      %2748 = vmatprep.subr.bf16.mxu0 0
      %2749 = vmatpush1.bf16.xpose.msra.mxu0 0
      %2750 = vmatprep.subr.bf16.mxu0 0
      %2751 = vmatpush1.bf16.xpose.msra.mxu0 0
      %2752 = vmatprep.subr.bf16.mxu0 0
      %2753 = vmatpush1.bf16.xpose.msra.mxu0 0
      %2754 = vmatprep.subr.bf16.mxu0 0
      %2755 = vmatpush1.bf16.xpose.msra.mxu0 0
      %2756 = vmatprep.mubr.bf16.mxu0 0
      %2757 = vmatmul.mubr.bf16.gmra.mrb[0].mxu0 %v2719
      %v2758 = vpop.f32.mrb[0].mxu0
      %v2759 = vadd.f32 0.0, %v2758
      %v2760 = vpop.f32.mrb[0].mxu0
      %v2761 = vpop.f32.mrb[0].mxu0
      %v2762 = vpop.f32.mrb[0].mxu0
      %2763 = vdwg.mxu0
      %2765 = vrot.lane.b32.xlu0 %v1435, 96
      %v2766 = vpop.permute.xlu0 %2765
      %v2768 = vsel %vm1443, %v1435, 0
      %v2771 = vsel %vm1443, %v2766, 0
      %2773 = vmatprep.subr.bf16.mxu0 0
      %2774 = vmatpush1.bf16.xpose.msra.mxu0 %v2771
      %2775 = vmatprep.subr.bf16.mxu0 0
      %2776 = vmatpush1.bf16.xpose.msra.mxu0 0
      %2777 = vmatprep.subr.bf16.mxu0 0
      %2778 = vmatpush1.bf16.xpose.msra.mxu0 0
      %2779 = vmatprep.subr.bf16.mxu0 0
      %2780 = vmatpush1.bf16.xpose.msra.mxu0 0
      %2781 = vmatprep.subr.bf16.mxu0 0
      %2782 = vmatpush1.bf16.xpose.msra.mxu0 0
      %2783 = vmatprep.subr.bf16.mxu0 0
      %2784 = vmatpush1.bf16.xpose.msra.mxu0 0
      %2785 = vmatprep.subr.bf16.mxu0 0
      %2786 = vmatpush1.bf16.xpose.msra.mxu0 0
      %2787 = vmatprep.subr.bf16.mxu0 0
      %2788 = vmatpush1.bf16.xpose.msra.mxu0 0
      %2789 = vmatprep.subr.bf16.mxu0 0
      %2790 = vmatpush1.bf16.xpose.msra.mxu0 0
      %2791 = vmatprep.subr.bf16.mxu0 0
      %2792 = vmatpush1.bf16.xpose.msra.mxu0 0
      %2793 = vmatprep.subr.bf16.mxu0 0
      %2794 = vmatpush1.bf16.xpose.msra.mxu0 0
      %2795 = vmatprep.subr.bf16.mxu0 0
      %2796 = vmatpush1.bf16.xpose.msra.mxu0 0
      %2797 = vmatprep.subr.bf16.mxu0 0
      %2798 = vmatpush1.bf16.xpose.msra.mxu0 0
      %2799 = vmatprep.subr.bf16.mxu0 0
      %2800 = vmatpush1.bf16.xpose.msra.mxu0 0
      %2801 = vmatprep.subr.bf16.mxu0 0
      %2802 = vmatpush1.bf16.xpose.msra.mxu0 0
      %2803 = vmatprep.subr.bf16.mxu0 0
      %2804 = vmatpush1.bf16.xpose.msra.mxu0 0
      %2805 = vmatprep.mubr.bf16.mxu0 0
      %2806 = vmatmul.mubr.bf16.gmra.mrb[0].mxu0 %v2768
      %v2807 = vpop.f32.mrb[0].mxu0
      %v2808 = vadd.f32 0.0, %v2807
      %v2809 = vpop.f32.mrb[0].mxu0
      %v2810 = vpop.f32.mrb[0].mxu0
      %v2811 = vpop.f32.mrb[0].mxu0
      %2812 = vdwg.mxu0
      %2814 = vrot.lane.b32.xlu0 %v1436, 96
      %v2815 = vpop.permute.xlu0 %2814
      %v2817 = vsel %vm1443, %v1436, 0
      %v2820 = vsel %vm1443, %v2815, 0
      %2822 = vmatprep.subr.bf16.mxu0 0
      %2823 = vmatpush1.bf16.xpose.msra.mxu0 %v2820
      %2824 = vmatprep.subr.bf16.mxu0 0
      %2825 = vmatpush1.bf16.xpose.msra.mxu0 0
      %2826 = vmatprep.subr.bf16.mxu0 0
      %2827 = vmatpush1.bf16.xpose.msra.mxu0 0
      %2828 = vmatprep.subr.bf16.mxu0 0
      %2829 = vmatpush1.bf16.xpose.msra.mxu0 0
      %2830 = vmatprep.subr.bf16.mxu0 0
      %2831 = vmatpush1.bf16.xpose.msra.mxu0 0
      %2832 = vmatprep.subr.bf16.mxu0 0
      %2833 = vmatpush1.bf16.xpose.msra.mxu0 0
      %2834 = vmatprep.subr.bf16.mxu0 0
      %2835 = vmatpush1.bf16.xpose.msra.mxu0 0
      %2836 = vmatprep.subr.bf16.mxu0 0
      %2837 = vmatpush1.bf16.xpose.msra.mxu0 0
      %2838 = vmatprep.subr.bf16.mxu0 0
      %2839 = vmatpush1.bf16.xpose.msra.mxu0 0
      %2840 = vmatprep.subr.bf16.mxu0 0
      %2841 = vmatpush1.bf16.xpose.msra.mxu0 0
      %2842 = vmatprep.subr.bf16.mxu0 0
      %2843 = vmatpush1.bf16.xpose.msra.mxu0 0
      %2844 = vmatprep.subr.bf16.mxu0 0
      %2845 = vmatpush1.bf16.xpose.msra.mxu0 0
      %2846 = vmatprep.subr.bf16.mxu0 0
      %2847 = vmatpush1.bf16.xpose.msra.mxu0 0
      %2848 = vmatprep.subr.bf16.mxu0 0
      %2849 = vmatpush1.bf16.xpose.msra.mxu0 0
      %2850 = vmatprep.subr.bf16.mxu0 0
      %2851 = vmatpush1.bf16.xpose.msra.mxu0 0
      %2852 = vmatprep.subr.bf16.mxu0 0
      %2853 = vmatpush1.bf16.xpose.msra.mxu0 0
      %2854 = vmatprep.mubr.bf16.mxu0 0
      %2855 = vmatmul.mubr.bf16.gmra.mrb[0].mxu0 %v2817
      %v2856 = vpop.f32.mrb[0].mxu0
      %v2857 = vadd.f32 0.0, %v2856
      %v2858 = vpop.f32.mrb[0].mxu0
      %v2859 = vpop.f32.mrb[0].mxu0
      %v2860 = vpop.f32.mrb[0].mxu0
      %2861 = vdwg.mxu0
      %2863 = vrot.lane.b32.xlu0 %v1437, 96
      %v2864 = vpop.permute.xlu0 %2863
      %v2866 = vsel %vm1443, %v1437, 0
      %v2869 = vsel %vm1443, %v2864, 0
      %2871 = vmatprep.subr.bf16.mxu0 0
      %2872 = vmatpush1.bf16.xpose.msra.mxu0 %v2869
      %2873 = vmatprep.subr.bf16.mxu0 0
      %2874 = vmatpush1.bf16.xpose.msra.mxu0 0
      %2875 = vmatprep.subr.bf16.mxu0 0
      %2876 = vmatpush1.bf16.xpose.msra.mxu0 0
      %2877 = vmatprep.subr.bf16.mxu0 0
      %2878 = vmatpush1.bf16.xpose.msra.mxu0 0
      %2879 = vmatprep.subr.bf16.mxu0 0
      %2880 = vmatpush1.bf16.xpose.msra.mxu0 0
      %2881 = vmatprep.subr.bf16.mxu0 0
      %2882 = vmatpush1.bf16.xpose.msra.mxu0 0
      %2883 = vmatprep.subr.bf16.mxu0 0
      %2884 = vmatpush1.bf16.xpose.msra.mxu0 0
      %2885 = vmatprep.subr.bf16.mxu0 0
      %2886 = vmatpush1.bf16.xpose.msra.mxu0 0
      %2887 = vmatprep.subr.bf16.mxu0 0
      %2888 = vmatpush1.bf16.xpose.msra.mxu0 0
      %2889 = vmatprep.subr.bf16.mxu0 0
      %2890 = vmatpush1.bf16.xpose.msra.mxu0 0
      %2891 = vmatprep.subr.bf16.mxu0 0
      %2892 = vmatpush1.bf16.xpose.msra.mxu0 0
      %2893 = vmatprep.subr.bf16.mxu0 0
      %2894 = vmatpush1.bf16.xpose.msra.mxu0 0
      %2895 = vmatprep.subr.bf16.mxu0 0
      %2896 = vmatpush1.bf16.xpose.msra.mxu0 0
      %2897 = vmatprep.subr.bf16.mxu0 0
      %2898 = vmatpush1.bf16.xpose.msra.mxu0 0
      %2899 = vmatprep.subr.bf16.mxu0 0
      %2900 = vmatpush1.bf16.xpose.msra.mxu0 0
      %2901 = vmatprep.subr.bf16.mxu0 0
      %2902 = vmatpush1.bf16.xpose.msra.mxu0 0
      %2903 = vmatprep.mubr.bf16.mxu0 0
      %2904 = vmatmul.mubr.bf16.gmra.mrb[0].mxu0 %v2866
      %v2905 = vpop.f32.mrb[0].mxu0
      %v2906 = vadd.f32 0.0, %v2905
      %v2907 = vpop.f32.mrb[0].mxu0
      %v2908 = vpop.f32.mrb[0].mxu0
      %v2909 = vpop.f32.mrb[0].mxu0
      %2910 = vdwg.mxu0
      %2912 = vrot.lane.b32.xlu0 %v1438, 96
      %v2913 = vpop.permute.xlu0 %2912
      %v2915 = vsel %vm1443, %v1438, 0
      %v2918 = vsel %vm1443, %v2913, 0
      %2920 = vmatprep.subr.bf16.mxu0 0
      %2921 = vmatpush1.bf16.xpose.msra.mxu0 %v2918
      %2922 = vmatprep.subr.bf16.mxu0 0
      %2923 = vmatpush1.bf16.xpose.msra.mxu0 0
      %2924 = vmatprep.subr.bf16.mxu0 0
      %2925 = vmatpush1.bf16.xpose.msra.mxu0 0
      %2926 = vmatprep.subr.bf16.mxu0 0
      %2927 = vmatpush1.bf16.xpose.msra.mxu0 0
      %2928 = vmatprep.subr.bf16.mxu0 0
      %2929 = vmatpush1.bf16.xpose.msra.mxu0 0
      %2930 = vmatprep.subr.bf16.mxu0 0
      %2931 = vmatpush1.bf16.xpose.msra.mxu0 0
      %2932 = vmatprep.subr.bf16.mxu0 0
      %2933 = vmatpush1.bf16.xpose.msra.mxu0 0
      %2934 = vmatprep.subr.bf16.mxu0 0
      %2935 = vmatpush1.bf16.xpose.msra.mxu0 0
      %2936 = vmatprep.subr.bf16.mxu0 0
      %2937 = vmatpush1.bf16.xpose.msra.mxu0 0
      %2938 = vmatprep.subr.bf16.mxu0 0
      %2939 = vmatpush1.bf16.xpose.msra.mxu0 0
      %2940 = vmatprep.subr.bf16.mxu0 0
      %2941 = vmatpush1.bf16.xpose.msra.mxu0 0
      %2942 = vmatprep.subr.bf16.mxu0 0
      %2943 = vmatpush1.bf16.xpose.msra.mxu0 0
      %2944 = vmatprep.subr.bf16.mxu0 0
      %2945 = vmatpush1.bf16.xpose.msra.mxu0 0
      %2946 = vmatprep.subr.bf16.mxu0 0
      %2947 = vmatpush1.bf16.xpose.msra.mxu0 0
      %2948 = vmatprep.subr.bf16.mxu0 0
      %2949 = vmatpush1.bf16.xpose.msra.mxu0 0
      %2950 = vmatprep.subr.bf16.mxu0 0
      %2951 = vmatpush1.bf16.xpose.msra.mxu0 0
      %2952 = vmatprep.mubr.bf16.mxu0 0
      %2953 = vmatmul.mubr.bf16.gmra.mrb[0].mxu0 %v2915
      %v2954 = vpop.f32.mrb[0].mxu0
      %v2955 = vadd.f32 0.0, %v2954
      %v2956 = vpop.f32.mrb[0].mxu0
      %v2957 = vpop.f32.mrb[0].mxu0
      %v2958 = vpop.f32.mrb[0].mxu0
      %2959 = vdwg.mxu0
      %2961 = vrot.lane.b32.xlu0 %v1439, 96
      %v2962 = vpop.permute.xlu0 %2961
      %v2964 = vsel %vm1443, %v1439, 0
      %v2967 = vsel %vm1443, %v2962, 0
      %2969 = vmatprep.subr.bf16.mxu0 0
      %2970 = vmatpush1.bf16.xpose.msra.mxu0 %v2967
      %2971 = vmatprep.subr.bf16.mxu0 0
      %2972 = vmatpush1.bf16.xpose.msra.mxu0 0
      %2973 = vmatprep.subr.bf16.mxu0 0
      %2974 = vmatpush1.bf16.xpose.msra.mxu0 0
      %2975 = vmatprep.subr.bf16.mxu0 0
      %2976 = vmatpush1.bf16.xpose.msra.mxu0 0
      %2977 = vmatprep.subr.bf16.mxu0 0
      %2978 = vmatpush1.bf16.xpose.msra.mxu0 0
      %2979 = vmatprep.subr.bf16.mxu0 0
      %2980 = vmatpush1.bf16.xpose.msra.mxu0 0
      %2981 = vmatprep.subr.bf16.mxu0 0
      %2982 = vmatpush1.bf16.xpose.msra.mxu0 0
      %2983 = vmatprep.subr.bf16.mxu0 0
      %2984 = vmatpush1.bf16.xpose.msra.mxu0 0
      %2985 = vmatprep.subr.bf16.mxu0 0
      %2986 = vmatpush1.bf16.xpose.msra.mxu0 0
      %2987 = vmatprep.subr.bf16.mxu0 0
      %2988 = vmatpush1.bf16.xpose.msra.mxu0 0
      %2989 = vmatprep.subr.bf16.mxu0 0
      %2990 = vmatpush1.bf16.xpose.msra.mxu0 0
      %2991 = vmatprep.subr.bf16.mxu0 0
      %2992 = vmatpush1.bf16.xpose.msra.mxu0 0
      %2993 = vmatprep.subr.bf16.mxu0 0
      %2994 = vmatpush1.bf16.xpose.msra.mxu0 0
      %2995 = vmatprep.subr.bf16.mxu0 0
      %2996 = vmatpush1.bf16.xpose.msra.mxu0 0
      %2997 = vmatprep.subr.bf16.mxu0 0
      %2998 = vmatpush1.bf16.xpose.msra.mxu0 0
      %2999 = vmatprep.subr.bf16.mxu0 0
      %3000 = vmatpush1.bf16.xpose.msra.mxu0 0
      %3001 = vmatprep.mubr.bf16.mxu0 0
      %3002 = vmatmul.mubr.bf16.gmra.mrb[0].mxu0 %v2964
      %v3003 = vpop.f32.mrb[0].mxu0
      %v3004 = vadd.f32 0.0, %v3003
      %v3005 = vpop.f32.mrb[0].mxu0
      %v3006 = vpop.f32.mrb[0].mxu0
      %v3007 = vpop.f32.mrb[0].mxu0
      %3008 = vdwg.mxu0
      %v3009 = vsel %vm1443, %v1485, -inf
      %3010 = vmax.xlane.f32.xlu0 %v3009
      %v3011 = vpop.xlane.xlu0 %3010
      %v3012 = vsel %vm1443, %v1534, -inf
      %3013 = vmax.xlane.f32.xlu0 %v3012
      %v3014 = vpop.xlane.xlu0 %3013
      %v3015 = vsel %vm1443, %v1583, -inf
      %3016 = vmax.xlane.f32.xlu0 %v3015
      %v3017 = vpop.xlane.xlu0 %3016
      %v3018 = vsel %vm1443, %v1632, -inf
      %3019 = vmax.xlane.f32.xlu0 %v3018
      %v3020 = vpop.xlane.xlu0 %3019
      %v3021 = vsel %vm1443, %v1681, -inf
      %3022 = vmax.xlane.f32.xlu0 %v3021
      %v3023 = vpop.xlane.xlu0 %3022
      %v3024 = vsel %vm1443, %v1730, -inf
      %3025 = vmax.xlane.f32.xlu0 %v3024
      %v3026 = vpop.xlane.xlu0 %3025
      %v3027 = vsel %vm1443, %v1779, -inf
      %3028 = vmax.xlane.f32.xlu0 %v3027
      %v3029 = vpop.xlane.xlu0 %3028
      %v3030 = vsel %vm1443, %v1828, -inf
      %3031 = vmax.xlane.f32.xlu0 %v3030
      %v3032 = vpop.xlane.xlu0 %3031
      %v3033 = vsel %vm1443, %v1877, -inf
      %3034 = vmax.xlane.f32.xlu0 %v3033
      %v3035 = vpop.xlane.xlu0 %3034
      %v3036 = vsel %vm1443, %v1926, -inf
      %3037 = vmax.xlane.f32.xlu0 %v3036
      %v3038 = vpop.xlane.xlu0 %3037
      %v3039 = vsel %vm1443, %v1975, -inf
      %3040 = vmax.xlane.f32.xlu0 %v3039
      %v3041 = vpop.xlane.xlu0 %3040
      %v3042 = vsel %vm1443, %v2024, -inf
      %3043 = vmax.xlane.f32.xlu0 %v3042
      %v3044 = vpop.xlane.xlu0 %3043
      %v3045 = vsel %vm1443, %v2073, -inf
      %3046 = vmax.xlane.f32.xlu0 %v3045
      %v3047 = vpop.xlane.xlu0 %3046
      %v3048 = vsel %vm1443, %v2122, -inf
      %3049 = vmax.xlane.f32.xlu0 %v3048
      %v3050 = vpop.xlane.xlu0 %3049
      %v3051 = vsel %vm1443, %v2171, -inf
      %3052 = vmax.xlane.f32.xlu0 %v3051
      %v3053 = vpop.xlane.xlu0 %3052
      %v3054 = vsel %vm1443, %v2220, -inf
      %3055 = vmax.xlane.f32.xlu0 %v3054
      %v3056 = vpop.xlane.xlu0 %3055
      %v3057 = vsel %vm1443, %v2269, -inf
      %3058 = vmax.xlane.f32.xlu0 %v3057
      %v3059 = vpop.xlane.xlu0 %3058
      %v3060 = vsel %vm1443, %v2318, -inf
      %3061 = vmax.xlane.f32.xlu0 %v3060
      %v3062 = vpop.xlane.xlu0 %3061
      %v3063 = vsel %vm1443, %v2367, -inf
      %3064 = vmax.xlane.f32.xlu0 %v3063
      %v3065 = vpop.xlane.xlu0 %3064
      %v3066 = vsel %vm1443, %v2416, -inf
      %3067 = vmax.xlane.f32.xlu0 %v3066
      %v3068 = vpop.xlane.xlu0 %3067
      %v3069 = vsel %vm1443, %v2465, -inf
      %3070 = vmax.xlane.f32.xlu0 %v3069
      %v3071 = vpop.xlane.xlu0 %3070
      %v3072 = vsel %vm1443, %v2514, -inf
      %3073 = vmax.xlane.f32.xlu0 %v3072
      %v3074 = vpop.xlane.xlu0 %3073
      %v3075 = vsel %vm1443, %v2563, -inf
      %3076 = vmax.xlane.f32.xlu0 %v3075
      %v3077 = vpop.xlane.xlu0 %3076
      %v3078 = vsel %vm1443, %v2612, -inf
      %3079 = vmax.xlane.f32.xlu0 %v3078
      %v3080 = vpop.xlane.xlu0 %3079
      %v3081 = vsel %vm1443, %v2661, -inf
      %3082 = vmax.xlane.f32.xlu0 %v3081
      %v3083 = vpop.xlane.xlu0 %3082
      %v3084 = vsel %vm1443, %v2710, -inf
      %3085 = vmax.xlane.f32.xlu0 %v3084
      %v3086 = vpop.xlane.xlu0 %3085
      %v3087 = vsel %vm1443, %v2759, -inf
      %3088 = vmax.xlane.f32.xlu0 %v3087
      %v3089 = vpop.xlane.xlu0 %3088
      %v3090 = vsel %vm1443, %v2808, -inf
      %3091 = vmax.xlane.f32.xlu0 %v3090
      %v3092 = vpop.xlane.xlu0 %3091
      %v3093 = vsel %vm1443, %v2857, -inf
      %3094 = vmax.xlane.f32.xlu0 %v3093
      %v3095 = vpop.xlane.xlu0 %3094
      %v3096 = vsel %vm1443, %v2906, -inf
      %3097 = vmax.xlane.f32.xlu0 %v3096
      %v3098 = vpop.xlane.xlu0 %3097
      %v3099 = vsel %vm1443, %v2955, -inf
      %3100 = vmax.xlane.f32.xlu0 %v3099
      %v3101 = vpop.xlane.xlu0 %3100
      %v3102 = vsel %vm1443, %v3004, -inf
      %3103 = vmax.xlane.f32.xlu0 %v3102
      %v3104 = vpop.xlane.xlu0 %3103
      %v3105 = vsub.f32 %v1485, %v3011
      %v3106 = vsub.f32 %v1534, %v3014
      %v3107 = vsub.f32 %v1583, %v3017
      %v3108 = vsub.f32 %v1632, %v3020
      %v3109 = vsub.f32 %v1681, %v3023
      %v3110 = vsub.f32 %v1730, %v3026
      %v3111 = vsub.f32 %v1779, %v3029
      %v3112 = vsub.f32 %v1828, %v3032
      %v3113 = vsub.f32 %v1877, %v3035
      %v3114 = vsub.f32 %v1926, %v3038
      %v3115 = vsub.f32 %v1975, %v3041
      %v3116 = vsub.f32 %v2024, %v3044
      %v3117 = vsub.f32 %v2073, %v3047
      %v3118 = vsub.f32 %v2122, %v3050
      %v3119 = vsub.f32 %v2171, %v3053
      %v3120 = vsub.f32 %v2220, %v3056
      %v3121 = vsub.f32 %v2269, %v3059
      %v3122 = vsub.f32 %v2318, %v3062
      %v3123 = vsub.f32 %v2367, %v3065
      %v3124 = vsub.f32 %v2416, %v3068
      %v3125 = vsub.f32 %v2465, %v3071
      %v3126 = vsub.f32 %v2514, %v3074
      %v3127 = vsub.f32 %v2563, %v3077
      %v3128 = vsub.f32 %v2612, %v3080
      %v3129 = vsub.f32 %v2661, %v3083
      %v3130 = vsub.f32 %v2710, %v3086
      %v3131 = vsub.f32 %v2759, %v3089
      %v3132 = vsub.f32 %v2808, %v3092
      %v3133 = vsub.f32 %v2857, %v3095
      %v3134 = vsub.f32 %v2906, %v3098
      %v3135 = vsub.f32 %v2955, %v3101
      %v3136 = vsub.f32 %v3004, %v3104
      %v3137 = vmul.f32 %v3105, 1.442695
      %v3138 = vpow.pop %v3137
      %v3139 = vmul.f32 %v3106, 1.442695
      %v3140 = vpow.pop %v3139
      %v3141 = vmul.f32 %v3107, 1.442695
      %v3142 = vpow.pop %v3141
      %v3143 = vmul.f32 %v3108, 1.442695
      %v3144 = vpow.pop %v3143
      %v3145 = vmul.f32 %v3109, 1.442695
      %v3146 = vpow.pop %v3145
      %v3147 = vmul.f32 %v3110, 1.442695
      %v3148 = vpow.pop %v3147
      %v3149 = vmul.f32 %v3111, 1.442695
      %v3150 = vpow.pop %v3149
      %v3151 = vmul.f32 %v3112, 1.442695
      %v3152 = vpow.pop %v3151
      %v3153 = vmul.f32 %v3113, 1.442695
      %v3154 = vpow.pop %v3153
      %v3155 = vmul.f32 %v3114, 1.442695
      %v3156 = vpow.pop %v3155
      %v3157 = vmul.f32 %v3115, 1.442695
      %v3158 = vpow.pop %v3157
      %v3159 = vmul.f32 %v3116, 1.442695
      %v3160 = vpow.pop %v3159
      %v3161 = vmul.f32 %v3117, 1.442695
      %v3162 = vpow.pop %v3161
      %v3163 = vmul.f32 %v3118, 1.442695
      %v3164 = vpow.pop %v3163
      %v3165 = vmul.f32 %v3119, 1.442695
      %v3166 = vpow.pop %v3165
      %v3167 = vmul.f32 %v3120, 1.442695
      %v3168 = vpow.pop %v3167
      %v3169 = vmul.f32 %v3121, 1.442695
      %v3170 = vpow.pop %v3169
      %v3171 = vmul.f32 %v3122, 1.442695
      %v3172 = vpow.pop %v3171
      %v3173 = vmul.f32 %v3123, 1.442695
      %v3174 = vpow.pop %v3173
      %v3175 = vmul.f32 %v3124, 1.442695
      %v3176 = vpow.pop %v3175
      %v3177 = vmul.f32 %v3125, 1.442695
      %v3178 = vpow.pop %v3177
      %v3179 = vmul.f32 %v3126, 1.442695
      %v3180 = vpow.pop %v3179
      %v3181 = vmul.f32 %v3127, 1.442695
      %v3182 = vpow.pop %v3181
      %v3183 = vmul.f32 %v3128, 1.442695
      %v3184 = vpow.pop %v3183
      %v3185 = vmul.f32 %v3129, 1.442695
      %v3186 = vpow.pop %v3185
      %v3187 = vmul.f32 %v3130, 1.442695
      %v3188 = vpow.pop %v3187
      %v3189 = vmul.f32 %v3131, 1.442695
      %v3190 = vpow.pop %v3189
      %v3191 = vmul.f32 %v3132, 1.442695
      %v3192 = vpow.pop %v3191
      %v3193 = vmul.f32 %v3133, 1.442695
      %v3194 = vpow.pop %v3193
      %v3195 = vmul.f32 %v3134, 1.442695
      %v3196 = vpow.pop %v3195
      %v3197 = vmul.f32 %v3135, 1.442695
      %v3198 = vpow.pop %v3197
      %v3199 = vmul.f32 %v3136, 1.442695
      %v3200 = vpow.pop %v3199
      %v3201 = vsel %vm1443, %v3138, 0.0
      %3202 = vadd.xlane.f32.xlu0 %v3201
      %v3203 = vpop.xlane.xlu0 %3202
      %v3204 = vsel %vm1443, %v3140, 0.0
      %3205 = vadd.xlane.f32.xlu0 %v3204
      %v3206 = vpop.xlane.xlu0 %3205
      %v3207 = vsel %vm1443, %v3142, 0.0
      %3208 = vadd.xlane.f32.xlu0 %v3207
      %v3209 = vpop.xlane.xlu0 %3208
      %v3210 = vsel %vm1443, %v3144, 0.0
      %3211 = vadd.xlane.f32.xlu0 %v3210
      %v3212 = vpop.xlane.xlu0 %3211
      %v3213 = vsel %vm1443, %v3146, 0.0
      %3214 = vadd.xlane.f32.xlu0 %v3213
      %v3215 = vpop.xlane.xlu0 %3214
      %v3216 = vsel %vm1443, %v3148, 0.0
      %3217 = vadd.xlane.f32.xlu0 %v3216
      %v3218 = vpop.xlane.xlu0 %3217
      %v3219 = vsel %vm1443, %v3150, 0.0
      %3220 = vadd.xlane.f32.xlu0 %v3219
      %v3221 = vpop.xlane.xlu0 %3220
      %v3222 = vsel %vm1443, %v3152, 0.0
      %3223 = vadd.xlane.f32.xlu0 %v3222
      %v3224 = vpop.xlane.xlu0 %3223
      %v3225 = vsel %vm1443, %v3154, 0.0
      %3226 = vadd.xlane.f32.xlu0 %v3225
      %v3227 = vpop.xlane.xlu0 %3226
      %v3228 = vsel %vm1443, %v3156, 0.0
      %3229 = vadd.xlane.f32.xlu0 %v3228
      %v3230 = vpop.xlane.xlu0 %3229
      %v3231 = vsel %vm1443, %v3158, 0.0
      %3232 = vadd.xlane.f32.xlu0 %v3231
      %v3233 = vpop.xlane.xlu0 %3232
      %v3234 = vsel %vm1443, %v3160, 0.0
      %3235 = vadd.xlane.f32.xlu0 %v3234
      %v3236 = vpop.xlane.xlu0 %3235
      %v3237 = vsel %vm1443, %v3162, 0.0
      %3238 = vadd.xlane.f32.xlu0 %v3237
      %v3239 = vpop.xlane.xlu0 %3238
      %v3240 = vsel %vm1443, %v3164, 0.0
      %3241 = vadd.xlane.f32.xlu0 %v3240
      %v3242 = vpop.xlane.xlu0 %3241
      %v3243 = vsel %vm1443, %v3166, 0.0
      %3244 = vadd.xlane.f32.xlu0 %v3243
      %v3245 = vpop.xlane.xlu0 %3244
      %v3246 = vsel %vm1443, %v3168, 0.0
      %3247 = vadd.xlane.f32.xlu0 %v3246
      %v3248 = vpop.xlane.xlu0 %3247
      %v3249 = vsel %vm1443, %v3170, 0.0
      %3250 = vadd.xlane.f32.xlu0 %v3249
      %v3251 = vpop.xlane.xlu0 %3250
      %v3252 = vsel %vm1443, %v3172, 0.0
      %3253 = vadd.xlane.f32.xlu0 %v3252
      %v3254 = vpop.xlane.xlu0 %3253
      %v3255 = vsel %vm1443, %v3174, 0.0
      %3256 = vadd.xlane.f32.xlu0 %v3255
      %v3257 = vpop.xlane.xlu0 %3256
      %v3258 = vsel %vm1443, %v3176, 0.0
      %3259 = vadd.xlane.f32.xlu0 %v3258
      %v3260 = vpop.xlane.xlu0 %3259
      %v3261 = vsel %vm1443, %v3178, 0.0
      %3262 = vadd.xlane.f32.xlu0 %v3261
      %v3263 = vpop.xlane.xlu0 %3262
      %v3264 = vsel %vm1443, %v3180, 0.0
      %3265 = vadd.xlane.f32.xlu0 %v3264
      %v3266 = vpop.xlane.xlu0 %3265
      %v3267 = vsel %vm1443, %v3182, 0.0
      %3268 = vadd.xlane.f32.xlu0 %v3267
      %v3269 = vpop.xlane.xlu0 %3268
      %v3270 = vsel %vm1443, %v3184, 0.0
      %3271 = vadd.xlane.f32.xlu0 %v3270
      %v3272 = vpop.xlane.xlu0 %3271
      %v3273 = vsel %vm1443, %v3186, 0.0
      %3274 = vadd.xlane.f32.xlu0 %v3273
      %v3275 = vpop.xlane.xlu0 %3274
      %v3276 = vsel %vm1443, %v3188, 0.0
      %3277 = vadd.xlane.f32.xlu0 %v3276
      %v3278 = vpop.xlane.xlu0 %3277
      %v3279 = vsel %vm1443, %v3190, 0.0
      %3280 = vadd.xlane.f32.xlu0 %v3279
      %v3281 = vpop.xlane.xlu0 %3280
      %v3282 = vsel %vm1443, %v3192, 0.0
      %3283 = vadd.xlane.f32.xlu0 %v3282
      %v3284 = vpop.xlane.xlu0 %3283
      %v3285 = vsel %vm1443, %v3194, 0.0
      %3286 = vadd.xlane.f32.xlu0 %v3285
      %v3287 = vpop.xlane.xlu0 %3286
      %v3288 = vsel %vm1443, %v3196, 0.0
      %3289 = vadd.xlane.f32.xlu0 %v3288
      %v3290 = vpop.xlane.xlu0 %3289
      %v3291 = vsel %vm1443, %v3198, 0.0
      %3292 = vadd.xlane.f32.xlu0 %v3291
      %v3293 = vpop.xlane.xlu0 %3292
      %v3294 = vsel %vm1443, %v3200, 0.0
      %3295 = vadd.xlane.f32.xlu0 %v3294
      %v3296 = vpop.xlane.xlu0 %3295
      %v3297 = vrcp.pop %v3203
      %v3298 = vrcp.pop %v3206
      %v3299 = vrcp.pop %v3209
      %v3300 = vrcp.pop %v3212
      %v3301 = vrcp.pop %v3215
      %v3302 = vrcp.pop %v3218
      %v3303 = vrcp.pop %v3221
      %v3304 = vrcp.pop %v3224
      %v3305 = vrcp.pop %v3227
      %v3306 = vrcp.pop %v3230
      %v3307 = vrcp.pop %v3233
      %v3308 = vrcp.pop %v3236
      %v3309 = vrcp.pop %v3239
      %v3310 = vrcp.pop %v3242
      %v3311 = vrcp.pop %v3245
      %v3312 = vrcp.pop %v3248
      %v3313 = vrcp.pop %v3251
      %v3314 = vrcp.pop %v3254
      %v3315 = vrcp.pop %v3257
      %v3316 = vrcp.pop %v3260
      %v3317 = vrcp.pop %v3263
      %v3318 = vrcp.pop %v3266
      %v3319 = vrcp.pop %v3269
      %v3320 = vrcp.pop %v3272
      %v3321 = vrcp.pop %v3275
      %v3322 = vrcp.pop %v3278
      %v3323 = vrcp.pop %v3281
      %v3324 = vrcp.pop %v3284
      %v3325 = vrcp.pop %v3287
      %v3326 = vrcp.pop %v3290
      %v3327 = vrcp.pop %v3293
      %v3328 = vrcp.pop %v3296
      %v3329 = vmul.f32 %v3138, %v3297
      %v3330 = vmul.f32 %v3140, %v3298
      %v3331 = vmul.f32 %v3142, %v3299
      %v3332 = vmul.f32 %v3144, %v3300
      %v3333 = vmul.f32 %v3146, %v3301
      %v3334 = vmul.f32 %v3148, %v3302
      %v3335 = vmul.f32 %v3150, %v3303
      %v3336 = vmul.f32 %v3152, %v3304
      %v3337 = vmul.f32 %v3154, %v3305
      %v3338 = vmul.f32 %v3156, %v3306
      %v3339 = vmul.f32 %v3158, %v3307
      %v3340 = vmul.f32 %v3160, %v3308
      %v3341 = vmul.f32 %v3162, %v3309
      %v3342 = vmul.f32 %v3164, %v3310
      %v3343 = vmul.f32 %v3166, %v3311
      %v3344 = vmul.f32 %v3168, %v3312
      %v3345 = vmul.f32 %v3170, %v3313
      %v3346 = vmul.f32 %v3172, %v3314
      %v3347 = vmul.f32 %v3174, %v3315
      %v3348 = vmul.f32 %v3176, %v3316
      %v3349 = vmul.f32 %v3178, %v3317
      %v3350 = vmul.f32 %v3180, %v3318
      %v3351 = vmul.f32 %v3182, %v3319
      %v3352 = vmul.f32 %v3184, %v3320
      %v3353 = vmul.f32 %v3186, %v3321
      %v3354 = vmul.f32 %v3188, %v3322
      %v3355 = vmul.f32 %v3190, %v3323
      %v3356 = vmul.f32 %v3192, %v3324
      %v3357 = vmul.f32 %v3194, %v3325
      %v3358 = vmul.f32 %v3196, %v3326
      %v3359 = vmul.f32 %v3198, %v3327
      %v3360 = vmul.f32 %v3200, %v3328
      %v3361 = vpack.c.bf16 %v3329, %v3329
      %v3362 = vpack.c.bf16 %v3330, %v3330
      %v3363 = vpack.c.bf16 %v3331, %v3331
      %v3364 = vpack.c.bf16 %v3332, %v3332
      %v3365 = vpack.c.bf16 %v3333, %v3333
      %v3366 = vpack.c.bf16 %v3334, %v3334
      %v3367 = vpack.c.bf16 %v3335, %v3335
      %v3368 = vpack.c.bf16 %v3336, %v3336
      %v3369 = vpack.c.bf16 %v3337, %v3337
      %v3370 = vpack.c.bf16 %v3338, %v3338
      %v3371 = vpack.c.bf16 %v3339, %v3339
      %v3372 = vpack.c.bf16 %v3340, %v3340
      %v3373 = vpack.c.bf16 %v3341, %v3341
      %v3374 = vpack.c.bf16 %v3342, %v3342
      %v3375 = vpack.c.bf16 %v3343, %v3343
      %v3376 = vpack.c.bf16 %v3344, %v3344
      %v3377 = vpack.c.bf16 %v3345, %v3345
      %v3378 = vpack.c.bf16 %v3346, %v3346
      %v3379 = vpack.c.bf16 %v3347, %v3347
      %v3380 = vpack.c.bf16 %v3348, %v3348
      %v3381 = vpack.c.bf16 %v3349, %v3349
      %v3382 = vpack.c.bf16 %v3350, %v3350
      %v3383 = vpack.c.bf16 %v3351, %v3351
      %v3384 = vpack.c.bf16 %v3352, %v3352
      %v3385 = vpack.c.bf16 %v3353, %v3353
      %v3386 = vpack.c.bf16 %v3354, %v3354
      %v3387 = vpack.c.bf16 %v3355, %v3355
      %v3388 = vpack.c.bf16 %v3356, %v3356
      %v3389 = vpack.c.bf16 %v3357, %v3357
      %v3390 = vpack.c.bf16 %v3358, %v3358
      %v3391 = vpack.c.bf16 %v3359, %v3359
      %v3392 = vpack.c.bf16 %v3360, %v3360
      %3393 = vrot.lane.b32.xlu0 %v1408, 64
      %v3394 = vpop.permute.xlu0 %3393
      %v3396 = vsel %vm1443, %v3361, 0
      %v3399 = vsel %vm1058, %v3394, 0
      %3401 = vmatprep.subr.bf16.mxu0 0
      %3402 = vmatpush1.bf16.msra.mxu0 %v3399
      %3403 = vmatprep.subr.bf16.mxu0 0
      %3404 = vmatpush1.bf16.msra.mxu0 0
      %3405 = vmatprep.subr.bf16.mxu0 0
      %3406 = vmatpush1.bf16.msra.mxu0 0
      %3407 = vmatprep.subr.bf16.mxu0 0
      %3408 = vmatpush1.bf16.msra.mxu0 0
      %3409 = vmatprep.subr.bf16.mxu0 0
      %3410 = vmatpush1.bf16.msra.mxu0 0
      %3411 = vmatprep.subr.bf16.mxu0 0
      %3412 = vmatpush1.bf16.msra.mxu0 0
      %3413 = vmatprep.subr.bf16.mxu0 0
      %3414 = vmatpush1.bf16.msra.mxu0 0
      %3415 = vmatprep.subr.bf16.mxu0 0
      %3416 = vmatpush1.bf16.msra.mxu0 0
      %3417 = vmatprep.subr.bf16.mxu0 0
      %3418 = vmatpush1.bf16.msra.mxu0 0
      %3419 = vmatprep.subr.bf16.mxu0 0
      %3420 = vmatpush1.bf16.msra.mxu0 0
      %3421 = vmatprep.subr.bf16.mxu0 0
      %3422 = vmatpush1.bf16.msra.mxu0 0
      %3423 = vmatprep.subr.bf16.mxu0 0
      %3424 = vmatpush1.bf16.msra.mxu0 0
      %3425 = vmatprep.subr.bf16.mxu0 0
      %3426 = vmatpush1.bf16.msra.mxu0 0
      %3427 = vmatprep.subr.bf16.mxu0 0
      %3428 = vmatpush1.bf16.msra.mxu0 0
      %3429 = vmatprep.subr.bf16.mxu0 0
      %3430 = vmatpush1.bf16.msra.mxu0 0
      %3431 = vmatprep.subr.bf16.mxu0 0
      %3432 = vmatpush1.bf16.msra.mxu0 0
      %3433 = vmatprep.mubr.bf16.mxu0 0
      %3434 = vmatmul.mubr.bf16.gmra.mrb[0].mxu0 %v3396
      %v3435 = vpop.f32.mrb[0].mxu0
      %v3436 = vadd.f32 0.0, %v3435
      %v3437 = vpop.f32.mrb[0].mxu0
      %v3438 = vpop.f32.mrb[0].mxu0
      %v3439 = vpop.f32.mrb[0].mxu0
      %3440 = vdwg.mxu0
      %3441 = vrot.lane.b32.xlu0 %v1409, 64
      %v3442 = vpop.permute.xlu0 %3441
      %v3444 = vsel %vm1443, %v3362, 0
      %v3447 = vsel %vm1058, %v3442, 0
      %3449 = vmatprep.subr.bf16.mxu0 0
      %3450 = vmatpush1.bf16.msra.mxu0 %v3447
      %3451 = vmatprep.subr.bf16.mxu0 0
      %3452 = vmatpush1.bf16.msra.mxu0 0
      %3453 = vmatprep.subr.bf16.mxu0 0
      %3454 = vmatpush1.bf16.msra.mxu0 0
      %3455 = vmatprep.subr.bf16.mxu0 0
      %3456 = vmatpush1.bf16.msra.mxu0 0
      %3457 = vmatprep.subr.bf16.mxu0 0
      %3458 = vmatpush1.bf16.msra.mxu0 0
      %3459 = vmatprep.subr.bf16.mxu0 0
      %3460 = vmatpush1.bf16.msra.mxu0 0
      %3461 = vmatprep.subr.bf16.mxu0 0
      %3462 = vmatpush1.bf16.msra.mxu0 0
      %3463 = vmatprep.subr.bf16.mxu0 0
      %3464 = vmatpush1.bf16.msra.mxu0 0
      %3465 = vmatprep.subr.bf16.mxu0 0
      %3466 = vmatpush1.bf16.msra.mxu0 0
      %3467 = vmatprep.subr.bf16.mxu0 0
      %3468 = vmatpush1.bf16.msra.mxu0 0
      %3469 = vmatprep.subr.bf16.mxu0 0
      %3470 = vmatpush1.bf16.msra.mxu0 0
      %3471 = vmatprep.subr.bf16.mxu0 0
      %3472 = vmatpush1.bf16.msra.mxu0 0
      %3473 = vmatprep.subr.bf16.mxu0 0
      %3474 = vmatpush1.bf16.msra.mxu0 0
      %3475 = vmatprep.subr.bf16.mxu0 0
      %3476 = vmatpush1.bf16.msra.mxu0 0
      %3477 = vmatprep.subr.bf16.mxu0 0
      %3478 = vmatpush1.bf16.msra.mxu0 0
      %3479 = vmatprep.subr.bf16.mxu0 0
      %3480 = vmatpush1.bf16.msra.mxu0 0
      %3481 = vmatprep.mubr.bf16.mxu0 0
      %3482 = vmatmul.mubr.bf16.gmra.mrb[0].mxu0 %v3444
      %v3483 = vpop.f32.mrb[0].mxu0
      %v3484 = vadd.f32 0.0, %v3483
      %v3485 = vpop.f32.mrb[0].mxu0
      %v3486 = vpop.f32.mrb[0].mxu0
      %v3487 = vpop.f32.mrb[0].mxu0
      %3488 = vdwg.mxu0
      %3489 = vrot.lane.b32.xlu0 %v1410, 64
      %v3490 = vpop.permute.xlu0 %3489
      %v3492 = vsel %vm1443, %v3363, 0
      %v3495 = vsel %vm1058, %v3490, 0
      %3497 = vmatprep.subr.bf16.mxu0 0
      %3498 = vmatpush1.bf16.msra.mxu0 %v3495
      %3499 = vmatprep.subr.bf16.mxu0 0
      %3500 = vmatpush1.bf16.msra.mxu0 0
      %3501 = vmatprep.subr.bf16.mxu0 0
      %3502 = vmatpush1.bf16.msra.mxu0 0
      %3503 = vmatprep.subr.bf16.mxu0 0
      %3504 = vmatpush1.bf16.msra.mxu0 0
      %3505 = vmatprep.subr.bf16.mxu0 0
      %3506 = vmatpush1.bf16.msra.mxu0 0
      %3507 = vmatprep.subr.bf16.mxu0 0
      %3508 = vmatpush1.bf16.msra.mxu0 0
      %3509 = vmatprep.subr.bf16.mxu0 0
      %3510 = vmatpush1.bf16.msra.mxu0 0
      %3511 = vmatprep.subr.bf16.mxu0 0
      %3512 = vmatpush1.bf16.msra.mxu0 0
      %3513 = vmatprep.subr.bf16.mxu0 0
      %3514 = vmatpush1.bf16.msra.mxu0 0
      %3515 = vmatprep.subr.bf16.mxu0 0
      %3516 = vmatpush1.bf16.msra.mxu0 0
      %3517 = vmatprep.subr.bf16.mxu0 0
      %3518 = vmatpush1.bf16.msra.mxu0 0
      %3519 = vmatprep.subr.bf16.mxu0 0
      %3520 = vmatpush1.bf16.msra.mxu0 0
      %3521 = vmatprep.subr.bf16.mxu0 0
      %3522 = vmatpush1.bf16.msra.mxu0 0
      %3523 = vmatprep.subr.bf16.mxu0 0
      %3524 = vmatpush1.bf16.msra.mxu0 0
      %3525 = vmatprep.subr.bf16.mxu0 0
      %3526 = vmatpush1.bf16.msra.mxu0 0
      %3527 = vmatprep.subr.bf16.mxu0 0
      %3528 = vmatpush1.bf16.msra.mxu0 0
      %3529 = vmatprep.mubr.bf16.mxu0 0
      %3530 = vmatmul.mubr.bf16.gmra.mrb[0].mxu0 %v3492
      %v3531 = vpop.f32.mrb[0].mxu0
      %v3532 = vadd.f32 0.0, %v3531
      %v3533 = vpop.f32.mrb[0].mxu0
      %v3534 = vpop.f32.mrb[0].mxu0
      %v3535 = vpop.f32.mrb[0].mxu0
      %3536 = vdwg.mxu0
      %3537 = vrot.lane.b32.xlu0 %v1411, 64
      %v3538 = vpop.permute.xlu0 %3537
      %v3540 = vsel %vm1443, %v3364, 0
      %v3543 = vsel %vm1058, %v3538, 0
      %3545 = vmatprep.subr.bf16.mxu0 0
      %3546 = vmatpush1.bf16.msra.mxu0 %v3543
      %3547 = vmatprep.subr.bf16.mxu0 0
      %3548 = vmatpush1.bf16.msra.mxu0 0
      %3549 = vmatprep.subr.bf16.mxu0 0
      %3550 = vmatpush1.bf16.msra.mxu0 0
      %3551 = vmatprep.subr.bf16.mxu0 0
      %3552 = vmatpush1.bf16.msra.mxu0 0
      %3553 = vmatprep.subr.bf16.mxu0 0
      %3554 = vmatpush1.bf16.msra.mxu0 0
      %3555 = vmatprep.subr.bf16.mxu0 0
      %3556 = vmatpush1.bf16.msra.mxu0 0
      %3557 = vmatprep.subr.bf16.mxu0 0
      %3558 = vmatpush1.bf16.msra.mxu0 0
      %3559 = vmatprep.subr.bf16.mxu0 0
      %3560 = vmatpush1.bf16.msra.mxu0 0
      %3561 = vmatprep.subr.bf16.mxu0 0
      %3562 = vmatpush1.bf16.msra.mxu0 0
      %3563 = vmatprep.subr.bf16.mxu0 0
      %3564 = vmatpush1.bf16.msra.mxu0 0
      %3565 = vmatprep.subr.bf16.mxu0 0
      %3566 = vmatpush1.bf16.msra.mxu0 0
      %3567 = vmatprep.subr.bf16.mxu0 0
      %3568 = vmatpush1.bf16.msra.mxu0 0
      %3569 = vmatprep.subr.bf16.mxu0 0
      %3570 = vmatpush1.bf16.msra.mxu0 0
      %3571 = vmatprep.subr.bf16.mxu0 0
      %3572 = vmatpush1.bf16.msra.mxu0 0
      %3573 = vmatprep.subr.bf16.mxu0 0
      %3574 = vmatpush1.bf16.msra.mxu0 0
      %3575 = vmatprep.subr.bf16.mxu0 0
      %3576 = vmatpush1.bf16.msra.mxu0 0
      %3577 = vmatprep.mubr.bf16.mxu0 0
      %3578 = vmatmul.mubr.bf16.gmra.mrb[0].mxu0 %v3540
      %v3579 = vpop.f32.mrb[0].mxu0
      %v3580 = vadd.f32 0.0, %v3579
      %v3581 = vpop.f32.mrb[0].mxu0
      %v3582 = vpop.f32.mrb[0].mxu0
      %v3583 = vpop.f32.mrb[0].mxu0
      %3584 = vdwg.mxu0
      %3585 = vrot.lane.b32.xlu0 %v1412, 64
      %v3586 = vpop.permute.xlu0 %3585
      %v3588 = vsel %vm1443, %v3365, 0
      %v3591 = vsel %vm1058, %v3586, 0
      %3593 = vmatprep.subr.bf16.mxu0 0
      %3594 = vmatpush1.bf16.msra.mxu0 %v3591
      %3595 = vmatprep.subr.bf16.mxu0 0
      %3596 = vmatpush1.bf16.msra.mxu0 0
      %3597 = vmatprep.subr.bf16.mxu0 0
      %3598 = vmatpush1.bf16.msra.mxu0 0
      %3599 = vmatprep.subr.bf16.mxu0 0
      %3600 = vmatpush1.bf16.msra.mxu0 0
      %3601 = vmatprep.subr.bf16.mxu0 0
      %3602 = vmatpush1.bf16.msra.mxu0 0
      %3603 = vmatprep.subr.bf16.mxu0 0
      %3604 = vmatpush1.bf16.msra.mxu0 0
      %3605 = vmatprep.subr.bf16.mxu0 0
      %3606 = vmatpush1.bf16.msra.mxu0 0
      %3607 = vmatprep.subr.bf16.mxu0 0
      %3608 = vmatpush1.bf16.msra.mxu0 0
      %3609 = vmatprep.subr.bf16.mxu0 0
      %3610 = vmatpush1.bf16.msra.mxu0 0
      %3611 = vmatprep.subr.bf16.mxu0 0
      %3612 = vmatpush1.bf16.msra.mxu0 0
      %3613 = vmatprep.subr.bf16.mxu0 0
      %3614 = vmatpush1.bf16.msra.mxu0 0
      %3615 = vmatprep.subr.bf16.mxu0 0
      %3616 = vmatpush1.bf16.msra.mxu0 0
      %3617 = vmatprep.subr.bf16.mxu0 0
      %3618 = vmatpush1.bf16.msra.mxu0 0
      %3619 = vmatprep.subr.bf16.mxu0 0
      %3620 = vmatpush1.bf16.msra.mxu0 0
      %3621 = vmatprep.subr.bf16.mxu0 0
      %3622 = vmatpush1.bf16.msra.mxu0 0
      %3623 = vmatprep.subr.bf16.mxu0 0
      %3624 = vmatpush1.bf16.msra.mxu0 0
      %3625 = vmatprep.mubr.bf16.mxu0 0
      %3626 = vmatmul.mubr.bf16.gmra.mrb[0].mxu0 %v3588
      %v3627 = vpop.f32.mrb[0].mxu0
      %v3628 = vadd.f32 0.0, %v3627
      %v3629 = vpop.f32.mrb[0].mxu0
      %v3630 = vpop.f32.mrb[0].mxu0
      %v3631 = vpop.f32.mrb[0].mxu0
      %3632 = vdwg.mxu0
      %3633 = vrot.lane.b32.xlu0 %v1413, 64
      %v3634 = vpop.permute.xlu0 %3633
      %v3636 = vsel %vm1443, %v3366, 0
      %v3639 = vsel %vm1058, %v3634, 0
      %3641 = vmatprep.subr.bf16.mxu0 0
      %3642 = vmatpush1.bf16.msra.mxu0 %v3639
      %3643 = vmatprep.subr.bf16.mxu0 0
      %3644 = vmatpush1.bf16.msra.mxu0 0
      %3645 = vmatprep.subr.bf16.mxu0 0
      %3646 = vmatpush1.bf16.msra.mxu0 0
      %3647 = vmatprep.subr.bf16.mxu0 0
      %3648 = vmatpush1.bf16.msra.mxu0 0
      %3649 = vmatprep.subr.bf16.mxu0 0
      %3650 = vmatpush1.bf16.msra.mxu0 0
      %3651 = vmatprep.subr.bf16.mxu0 0
      %3652 = vmatpush1.bf16.msra.mxu0 0
      %3653 = vmatprep.subr.bf16.mxu0 0
      %3654 = vmatpush1.bf16.msra.mxu0 0
      %3655 = vmatprep.subr.bf16.mxu0 0
      %3656 = vmatpush1.bf16.msra.mxu0 0
      %3657 = vmatprep.subr.bf16.mxu0 0
      %3658 = vmatpush1.bf16.msra.mxu0 0
      %3659 = vmatprep.subr.bf16.mxu0 0
      %3660 = vmatpush1.bf16.msra.mxu0 0
      %3661 = vmatprep.subr.bf16.mxu0 0
      %3662 = vmatpush1.bf16.msra.mxu0 0
      %3663 = vmatprep.subr.bf16.mxu0 0
      %3664 = vmatpush1.bf16.msra.mxu0 0
      %3665 = vmatprep.subr.bf16.mxu0 0
      %3666 = vmatpush1.bf16.msra.mxu0 0
      %3667 = vmatprep.subr.bf16.mxu0 0
      %3668 = vmatpush1.bf16.msra.mxu0 0
      %3669 = vmatprep.subr.bf16.mxu0 0
      %3670 = vmatpush1.bf16.msra.mxu0 0
      %3671 = vmatprep.subr.bf16.mxu0 0
      %3672 = vmatpush1.bf16.msra.mxu0 0
      %3673 = vmatprep.mubr.bf16.mxu0 0
      %3674 = vmatmul.mubr.bf16.gmra.mrb[0].mxu0 %v3636
      %v3675 = vpop.f32.mrb[0].mxu0
      %v3676 = vadd.f32 0.0, %v3675
      %v3677 = vpop.f32.mrb[0].mxu0
      %v3678 = vpop.f32.mrb[0].mxu0
      %v3679 = vpop.f32.mrb[0].mxu0
      %3680 = vdwg.mxu0
      %3681 = vrot.lane.b32.xlu0 %v1414, 64
      %v3682 = vpop.permute.xlu0 %3681
      %v3684 = vsel %vm1443, %v3367, 0
      %v3687 = vsel %vm1058, %v3682, 0
      %3689 = vmatprep.subr.bf16.mxu0 0
      %3690 = vmatpush1.bf16.msra.mxu0 %v3687
      %3691 = vmatprep.subr.bf16.mxu0 0
      %3692 = vmatpush1.bf16.msra.mxu0 0
      %3693 = vmatprep.subr.bf16.mxu0 0
      %3694 = vmatpush1.bf16.msra.mxu0 0
      %3695 = vmatprep.subr.bf16.mxu0 0
      %3696 = vmatpush1.bf16.msra.mxu0 0
      %3697 = vmatprep.subr.bf16.mxu0 0
      %3698 = vmatpush1.bf16.msra.mxu0 0
      %3699 = vmatprep.subr.bf16.mxu0 0
      %3700 = vmatpush1.bf16.msra.mxu0 0
      %3701 = vmatprep.subr.bf16.mxu0 0
      %3702 = vmatpush1.bf16.msra.mxu0 0
      %3703 = vmatprep.subr.bf16.mxu0 0
      %3704 = vmatpush1.bf16.msra.mxu0 0
      %3705 = vmatprep.subr.bf16.mxu0 0
      %3706 = vmatpush1.bf16.msra.mxu0 0
      %3707 = vmatprep.subr.bf16.mxu0 0
      %3708 = vmatpush1.bf16.msra.mxu0 0
      %3709 = vmatprep.subr.bf16.mxu0 0
      %3710 = vmatpush1.bf16.msra.mxu0 0
      %3711 = vmatprep.subr.bf16.mxu0 0
      %3712 = vmatpush1.bf16.msra.mxu0 0
      %3713 = vmatprep.subr.bf16.mxu0 0
      %3714 = vmatpush1.bf16.msra.mxu0 0
      %3715 = vmatprep.subr.bf16.mxu0 0
      %3716 = vmatpush1.bf16.msra.mxu0 0
      %3717 = vmatprep.subr.bf16.mxu0 0
      %3718 = vmatpush1.bf16.msra.mxu0 0
      %3719 = vmatprep.subr.bf16.mxu0 0
      %3720 = vmatpush1.bf16.msra.mxu0 0
      %3721 = vmatprep.mubr.bf16.mxu0 0
      %3722 = vmatmul.mubr.bf16.gmra.mrb[0].mxu0 %v3684
      %v3723 = vpop.f32.mrb[0].mxu0
      %v3724 = vadd.f32 0.0, %v3723
      %v3725 = vpop.f32.mrb[0].mxu0
      %v3726 = vpop.f32.mrb[0].mxu0
      %v3727 = vpop.f32.mrb[0].mxu0
      %3728 = vdwg.mxu0
      %3729 = vrot.lane.b32.xlu0 %v1415, 64
      %v3730 = vpop.permute.xlu0 %3729
      %v3732 = vsel %vm1443, %v3368, 0
      %v3735 = vsel %vm1058, %v3730, 0
      %3737 = vmatprep.subr.bf16.mxu0 0
      %3738 = vmatpush1.bf16.msra.mxu0 %v3735
      %3739 = vmatprep.subr.bf16.mxu0 0
      %3740 = vmatpush1.bf16.msra.mxu0 0
      %3741 = vmatprep.subr.bf16.mxu0 0
      %3742 = vmatpush1.bf16.msra.mxu0 0
      %3743 = vmatprep.subr.bf16.mxu0 0
      %3744 = vmatpush1.bf16.msra.mxu0 0
      %3745 = vmatprep.subr.bf16.mxu0 0
      %3746 = vmatpush1.bf16.msra.mxu0 0
      %3747 = vmatprep.subr.bf16.mxu0 0
      %3748 = vmatpush1.bf16.msra.mxu0 0
      %3749 = vmatprep.subr.bf16.mxu0 0
      %3750 = vmatpush1.bf16.msra.mxu0 0
      %3751 = vmatprep.subr.bf16.mxu0 0
      %3752 = vmatpush1.bf16.msra.mxu0 0
      %3753 = vmatprep.subr.bf16.mxu0 0
      %3754 = vmatpush1.bf16.msra.mxu0 0
      %3755 = vmatprep.subr.bf16.mxu0 0
      %3756 = vmatpush1.bf16.msra.mxu0 0
      %3757 = vmatprep.subr.bf16.mxu0 0
      %3758 = vmatpush1.bf16.msra.mxu0 0
      %3759 = vmatprep.subr.bf16.mxu0 0
      %3760 = vmatpush1.bf16.msra.mxu0 0
      %3761 = vmatprep.subr.bf16.mxu0 0
      %3762 = vmatpush1.bf16.msra.mxu0 0
      %3763 = vmatprep.subr.bf16.mxu0 0
      %3764 = vmatpush1.bf16.msra.mxu0 0
      %3765 = vmatprep.subr.bf16.mxu0 0
      %3766 = vmatpush1.bf16.msra.mxu0 0
      %3767 = vmatprep.subr.bf16.mxu0 0
      %3768 = vmatpush1.bf16.msra.mxu0 0
      %3769 = vmatprep.mubr.bf16.mxu0 0
      %3770 = vmatmul.mubr.bf16.gmra.mrb[0].mxu0 %v3732
      %v3771 = vpop.f32.mrb[0].mxu0
      %v3772 = vadd.f32 0.0, %v3771
      %v3773 = vpop.f32.mrb[0].mxu0
      %v3774 = vpop.f32.mrb[0].mxu0
      %v3775 = vpop.f32.mrb[0].mxu0
      %3776 = vdwg.mxu0
      %3777 = vrot.lane.b32.xlu0 %v1416, 64
      %v3778 = vpop.permute.xlu0 %3777
      %v3780 = vsel %vm1443, %v3369, 0
      %v3783 = vsel %vm1058, %v3778, 0
      %3785 = vmatprep.subr.bf16.mxu0 0
      %3786 = vmatpush1.bf16.msra.mxu0 %v3783
      %3787 = vmatprep.subr.bf16.mxu0 0
      %3788 = vmatpush1.bf16.msra.mxu0 0
      %3789 = vmatprep.subr.bf16.mxu0 0
      %3790 = vmatpush1.bf16.msra.mxu0 0
      %3791 = vmatprep.subr.bf16.mxu0 0
      %3792 = vmatpush1.bf16.msra.mxu0 0
      %3793 = vmatprep.subr.bf16.mxu0 0
      %3794 = vmatpush1.bf16.msra.mxu0 0
      %3795 = vmatprep.subr.bf16.mxu0 0
      %3796 = vmatpush1.bf16.msra.mxu0 0
      %3797 = vmatprep.subr.bf16.mxu0 0
      %3798 = vmatpush1.bf16.msra.mxu0 0
      %3799 = vmatprep.subr.bf16.mxu0 0
      %3800 = vmatpush1.bf16.msra.mxu0 0
      %3801 = vmatprep.subr.bf16.mxu0 0
      %3802 = vmatpush1.bf16.msra.mxu0 0
      %3803 = vmatprep.subr.bf16.mxu0 0
      %3804 = vmatpush1.bf16.msra.mxu0 0
      %3805 = vmatprep.subr.bf16.mxu0 0
      %3806 = vmatpush1.bf16.msra.mxu0 0
      %3807 = vmatprep.subr.bf16.mxu0 0
      %3808 = vmatpush1.bf16.msra.mxu0 0
      %3809 = vmatprep.subr.bf16.mxu0 0
      %3810 = vmatpush1.bf16.msra.mxu0 0
      %3811 = vmatprep.subr.bf16.mxu0 0
      %3812 = vmatpush1.bf16.msra.mxu0 0
      %3813 = vmatprep.subr.bf16.mxu0 0
      %3814 = vmatpush1.bf16.msra.mxu0 0
      %3815 = vmatprep.subr.bf16.mxu0 0
      %3816 = vmatpush1.bf16.msra.mxu0 0
      %3817 = vmatprep.mubr.bf16.mxu0 0
      %3818 = vmatmul.mubr.bf16.gmra.mrb[0].mxu0 %v3780
      %v3819 = vpop.f32.mrb[0].mxu0
      %v3820 = vadd.f32 0.0, %v3819
      %v3821 = vpop.f32.mrb[0].mxu0
      %v3822 = vpop.f32.mrb[0].mxu0
      %v3823 = vpop.f32.mrb[0].mxu0
      %3824 = vdwg.mxu0
      %3825 = vrot.lane.b32.xlu0 %v1417, 64
      %v3826 = vpop.permute.xlu0 %3825
      %v3828 = vsel %vm1443, %v3370, 0
      %v3831 = vsel %vm1058, %v3826, 0
      %3833 = vmatprep.subr.bf16.mxu0 0
      %3834 = vmatpush1.bf16.msra.mxu0 %v3831
      %3835 = vmatprep.subr.bf16.mxu0 0
      %3836 = vmatpush1.bf16.msra.mxu0 0
      %3837 = vmatprep.subr.bf16.mxu0 0
      %3838 = vmatpush1.bf16.msra.mxu0 0
      %3839 = vmatprep.subr.bf16.mxu0 0
      %3840 = vmatpush1.bf16.msra.mxu0 0
      %3841 = vmatprep.subr.bf16.mxu0 0
      %3842 = vmatpush1.bf16.msra.mxu0 0
      %3843 = vmatprep.subr.bf16.mxu0 0
      %3844 = vmatpush1.bf16.msra.mxu0 0
      %3845 = vmatprep.subr.bf16.mxu0 0
      %3846 = vmatpush1.bf16.msra.mxu0 0
      %3847 = vmatprep.subr.bf16.mxu0 0
      %3848 = vmatpush1.bf16.msra.mxu0 0
      %3849 = vmatprep.subr.bf16.mxu0 0
      %3850 = vmatpush1.bf16.msra.mxu0 0
      %3851 = vmatprep.subr.bf16.mxu0 0
      %3852 = vmatpush1.bf16.msra.mxu0 0
      %3853 = vmatprep.subr.bf16.mxu0 0
      %3854 = vmatpush1.bf16.msra.mxu0 0
      %3855 = vmatprep.subr.bf16.mxu0 0
      %3856 = vmatpush1.bf16.msra.mxu0 0
      %3857 = vmatprep.subr.bf16.mxu0 0
      %3858 = vmatpush1.bf16.msra.mxu0 0
      %3859 = vmatprep.subr.bf16.mxu0 0
      %3860 = vmatpush1.bf16.msra.mxu0 0
      %3861 = vmatprep.subr.bf16.mxu0 0
      %3862 = vmatpush1.bf16.msra.mxu0 0
      %3863 = vmatprep.subr.bf16.mxu0 0
      %3864 = vmatpush1.bf16.msra.mxu0 0
      %3865 = vmatprep.mubr.bf16.mxu0 0
      %3866 = vmatmul.mubr.bf16.gmra.mrb[0].mxu0 %v3828
      %v3867 = vpop.f32.mrb[0].mxu0
      %v3868 = vadd.f32 0.0, %v3867
      %v3869 = vpop.f32.mrb[0].mxu0
      %v3870 = vpop.f32.mrb[0].mxu0
      %v3871 = vpop.f32.mrb[0].mxu0
      %3872 = vdwg.mxu0
      %3873 = vrot.lane.b32.xlu0 %v1418, 64
      %v3874 = vpop.permute.xlu0 %3873
      %v3876 = vsel %vm1443, %v3371, 0
      %v3879 = vsel %vm1058, %v3874, 0
      %3881 = vmatprep.subr.bf16.mxu0 0
      %3882 = vmatpush1.bf16.msra.mxu0 %v3879
      %3883 = vmatprep.subr.bf16.mxu0 0
      %3884 = vmatpush1.bf16.msra.mxu0 0
      %3885 = vmatprep.subr.bf16.mxu0 0
      %3886 = vmatpush1.bf16.msra.mxu0 0
      %3887 = vmatprep.subr.bf16.mxu0 0
      %3888 = vmatpush1.bf16.msra.mxu0 0
      %3889 = vmatprep.subr.bf16.mxu0 0
      %3890 = vmatpush1.bf16.msra.mxu0 0
      %3891 = vmatprep.subr.bf16.mxu0 0
      %3892 = vmatpush1.bf16.msra.mxu0 0
      %3893 = vmatprep.subr.bf16.mxu0 0
      %3894 = vmatpush1.bf16.msra.mxu0 0
      %3895 = vmatprep.subr.bf16.mxu0 0
      %3896 = vmatpush1.bf16.msra.mxu0 0
      %3897 = vmatprep.subr.bf16.mxu0 0
      %3898 = vmatpush1.bf16.msra.mxu0 0
      %3899 = vmatprep.subr.bf16.mxu0 0
      %3900 = vmatpush1.bf16.msra.mxu0 0
      %3901 = vmatprep.subr.bf16.mxu0 0
      %3902 = vmatpush1.bf16.msra.mxu0 0
      %3903 = vmatprep.subr.bf16.mxu0 0
      %3904 = vmatpush1.bf16.msra.mxu0 0
      %3905 = vmatprep.subr.bf16.mxu0 0
      %3906 = vmatpush1.bf16.msra.mxu0 0
      %3907 = vmatprep.subr.bf16.mxu0 0
      %3908 = vmatpush1.bf16.msra.mxu0 0
      %3909 = vmatprep.subr.bf16.mxu0 0
      %3910 = vmatpush1.bf16.msra.mxu0 0
      %3911 = vmatprep.subr.bf16.mxu0 0
      %3912 = vmatpush1.bf16.msra.mxu0 0
      %3913 = vmatprep.mubr.bf16.mxu0 0
      %3914 = vmatmul.mubr.bf16.gmra.mrb[0].mxu0 %v3876
      %v3915 = vpop.f32.mrb[0].mxu0
      %v3916 = vadd.f32 0.0, %v3915
      %v3917 = vpop.f32.mrb[0].mxu0
      %v3918 = vpop.f32.mrb[0].mxu0
      %v3919 = vpop.f32.mrb[0].mxu0
      %3920 = vdwg.mxu0
      %3921 = vrot.lane.b32.xlu0 %v1419, 64
      %v3922 = vpop.permute.xlu0 %3921
      %v3924 = vsel %vm1443, %v3372, 0
      %v3927 = vsel %vm1058, %v3922, 0
      %3929 = vmatprep.subr.bf16.mxu0 0
      %3930 = vmatpush1.bf16.msra.mxu0 %v3927
      %3931 = vmatprep.subr.bf16.mxu0 0
      %3932 = vmatpush1.bf16.msra.mxu0 0
      %3933 = vmatprep.subr.bf16.mxu0 0
      %3934 = vmatpush1.bf16.msra.mxu0 0
      %3935 = vmatprep.subr.bf16.mxu0 0
      %3936 = vmatpush1.bf16.msra.mxu0 0
      %3937 = vmatprep.subr.bf16.mxu0 0
      %3938 = vmatpush1.bf16.msra.mxu0 0
      %3939 = vmatprep.subr.bf16.mxu0 0
      %3940 = vmatpush1.bf16.msra.mxu0 0
      %3941 = vmatprep.subr.bf16.mxu0 0
      %3942 = vmatpush1.bf16.msra.mxu0 0
      %3943 = vmatprep.subr.bf16.mxu0 0
      %3944 = vmatpush1.bf16.msra.mxu0 0
      %3945 = vmatprep.subr.bf16.mxu0 0
      %3946 = vmatpush1.bf16.msra.mxu0 0
      %3947 = vmatprep.subr.bf16.mxu0 0
      %3948 = vmatpush1.bf16.msra.mxu0 0
      %3949 = vmatprep.subr.bf16.mxu0 0
      %3950 = vmatpush1.bf16.msra.mxu0 0
      %3951 = vmatprep.subr.bf16.mxu0 0
      %3952 = vmatpush1.bf16.msra.mxu0 0
      %3953 = vmatprep.subr.bf16.mxu0 0
      %3954 = vmatpush1.bf16.msra.mxu0 0
      %3955 = vmatprep.subr.bf16.mxu0 0
      %3956 = vmatpush1.bf16.msra.mxu0 0
      %3957 = vmatprep.subr.bf16.mxu0 0
      %3958 = vmatpush1.bf16.msra.mxu0 0
      %3959 = vmatprep.subr.bf16.mxu0 0
      %3960 = vmatpush1.bf16.msra.mxu0 0
      %3961 = vmatprep.mubr.bf16.mxu0 0
      %3962 = vmatmul.mubr.bf16.gmra.mrb[0].mxu0 %v3924
      %v3963 = vpop.f32.mrb[0].mxu0
      %v3964 = vadd.f32 0.0, %v3963
      %v3965 = vpop.f32.mrb[0].mxu0
      %v3966 = vpop.f32.mrb[0].mxu0
      %v3967 = vpop.f32.mrb[0].mxu0
      %3968 = vdwg.mxu0
      %3969 = vrot.lane.b32.xlu0 %v1420, 64
      %v3970 = vpop.permute.xlu0 %3969
      %v3972 = vsel %vm1443, %v3373, 0
      %v3975 = vsel %vm1058, %v3970, 0
      %3977 = vmatprep.subr.bf16.mxu0 0
      %3978 = vmatpush1.bf16.msra.mxu0 %v3975
      %3979 = vmatprep.subr.bf16.mxu0 0
      %3980 = vmatpush1.bf16.msra.mxu0 0
      %3981 = vmatprep.subr.bf16.mxu0 0
      %3982 = vmatpush1.bf16.msra.mxu0 0
      %3983 = vmatprep.subr.bf16.mxu0 0
      %3984 = vmatpush1.bf16.msra.mxu0 0
      %3985 = vmatprep.subr.bf16.mxu0 0
      %3986 = vmatpush1.bf16.msra.mxu0 0
      %3987 = vmatprep.subr.bf16.mxu0 0
      %3988 = vmatpush1.bf16.msra.mxu0 0
      %3989 = vmatprep.subr.bf16.mxu0 0
      %3990 = vmatpush1.bf16.msra.mxu0 0
      %3991 = vmatprep.subr.bf16.mxu0 0
      %3992 = vmatpush1.bf16.msra.mxu0 0
      %3993 = vmatprep.subr.bf16.mxu0 0
      %3994 = vmatpush1.bf16.msra.mxu0 0
      %3995 = vmatprep.subr.bf16.mxu0 0
      %3996 = vmatpush1.bf16.msra.mxu0 0
      %3997 = vmatprep.subr.bf16.mxu0 0
      %3998 = vmatpush1.bf16.msra.mxu0 0
      %3999 = vmatprep.subr.bf16.mxu0 0
      %4000 = vmatpush1.bf16.msra.mxu0 0
      %4001 = vmatprep.subr.bf16.mxu0 0
      %4002 = vmatpush1.bf16.msra.mxu0 0
      %4003 = vmatprep.subr.bf16.mxu0 0
      %4004 = vmatpush1.bf16.msra.mxu0 0
      %4005 = vmatprep.subr.bf16.mxu0 0
      %4006 = vmatpush1.bf16.msra.mxu0 0
      %4007 = vmatprep.subr.bf16.mxu0 0
      %4008 = vmatpush1.bf16.msra.mxu0 0
      %4009 = vmatprep.mubr.bf16.mxu0 0
      %4010 = vmatmul.mubr.bf16.gmra.mrb[0].mxu0 %v3972
      %v4011 = vpop.f32.mrb[0].mxu0
      %v4012 = vadd.f32 0.0, %v4011
      %v4013 = vpop.f32.mrb[0].mxu0
      %v4014 = vpop.f32.mrb[0].mxu0
      %v4015 = vpop.f32.mrb[0].mxu0
      %4016 = vdwg.mxu0
      %4017 = vrot.lane.b32.xlu0 %v1421, 64
      %v4018 = vpop.permute.xlu0 %4017
      %v4020 = vsel %vm1443, %v3374, 0
      %v4023 = vsel %vm1058, %v4018, 0
      %4025 = vmatprep.subr.bf16.mxu0 0
      %4026 = vmatpush1.bf16.msra.mxu0 %v4023
      %4027 = vmatprep.subr.bf16.mxu0 0
      %4028 = vmatpush1.bf16.msra.mxu0 0
      %4029 = vmatprep.subr.bf16.mxu0 0
      %4030 = vmatpush1.bf16.msra.mxu0 0
      %4031 = vmatprep.subr.bf16.mxu0 0
      %4032 = vmatpush1.bf16.msra.mxu0 0
      %4033 = vmatprep.subr.bf16.mxu0 0
      %4034 = vmatpush1.bf16.msra.mxu0 0
      %4035 = vmatprep.subr.bf16.mxu0 0
      %4036 = vmatpush1.bf16.msra.mxu0 0
      %4037 = vmatprep.subr.bf16.mxu0 0
      %4038 = vmatpush1.bf16.msra.mxu0 0
      %4039 = vmatprep.subr.bf16.mxu0 0
      %4040 = vmatpush1.bf16.msra.mxu0 0
      %4041 = vmatprep.subr.bf16.mxu0 0
      %4042 = vmatpush1.bf16.msra.mxu0 0
      %4043 = vmatprep.subr.bf16.mxu0 0
      %4044 = vmatpush1.bf16.msra.mxu0 0
      %4045 = vmatprep.subr.bf16.mxu0 0
      %4046 = vmatpush1.bf16.msra.mxu0 0
      %4047 = vmatprep.subr.bf16.mxu0 0
      %4048 = vmatpush1.bf16.msra.mxu0 0
      %4049 = vmatprep.subr.bf16.mxu0 0
      %4050 = vmatpush1.bf16.msra.mxu0 0
      %4051 = vmatprep.subr.bf16.mxu0 0
      %4052 = vmatpush1.bf16.msra.mxu0 0
      %4053 = vmatprep.subr.bf16.mxu0 0
      %4054 = vmatpush1.bf16.msra.mxu0 0
      %4055 = vmatprep.subr.bf16.mxu0 0
      %4056 = vmatpush1.bf16.msra.mxu0 0
      %4057 = vmatprep.mubr.bf16.mxu0 0
      %4058 = vmatmul.mubr.bf16.gmra.mrb[0].mxu0 %v4020
      %v4059 = vpop.f32.mrb[0].mxu0
      %v4060 = vadd.f32 0.0, %v4059
      %v4061 = vpop.f32.mrb[0].mxu0
      %v4062 = vpop.f32.mrb[0].mxu0
      %v4063 = vpop.f32.mrb[0].mxu0
      %4064 = vdwg.mxu0
      %4065 = vrot.lane.b32.xlu0 %v1422, 64
      %v4066 = vpop.permute.xlu0 %4065
      %v4068 = vsel %vm1443, %v3375, 0
      %v4071 = vsel %vm1058, %v4066, 0
      %4073 = vmatprep.subr.bf16.mxu0 0
      %4074 = vmatpush1.bf16.msra.mxu0 %v4071
      %4075 = vmatprep.subr.bf16.mxu0 0
      %4076 = vmatpush1.bf16.msra.mxu0 0
      %4077 = vmatprep.subr.bf16.mxu0 0
      %4078 = vmatpush1.bf16.msra.mxu0 0
      %4079 = vmatprep.subr.bf16.mxu0 0
      %4080 = vmatpush1.bf16.msra.mxu0 0
      %4081 = vmatprep.subr.bf16.mxu0 0
      %4082 = vmatpush1.bf16.msra.mxu0 0
      %4083 = vmatprep.subr.bf16.mxu0 0
      %4084 = vmatpush1.bf16.msra.mxu0 0
      %4085 = vmatprep.subr.bf16.mxu0 0
      %4086 = vmatpush1.bf16.msra.mxu0 0
      %4087 = vmatprep.subr.bf16.mxu0 0
      %4088 = vmatpush1.bf16.msra.mxu0 0
      %4089 = vmatprep.subr.bf16.mxu0 0
      %4090 = vmatpush1.bf16.msra.mxu0 0
      %4091 = vmatprep.subr.bf16.mxu0 0
      %4092 = vmatpush1.bf16.msra.mxu0 0
      %4093 = vmatprep.subr.bf16.mxu0 0
      %4094 = vmatpush1.bf16.msra.mxu0 0
      %4095 = vmatprep.subr.bf16.mxu0 0
      %4096 = vmatpush1.bf16.msra.mxu0 0
      %4097 = vmatprep.subr.bf16.mxu0 0
      %4098 = vmatpush1.bf16.msra.mxu0 0
      %4099 = vmatprep.subr.bf16.mxu0 0
      %4100 = vmatpush1.bf16.msra.mxu0 0
      %4101 = vmatprep.subr.bf16.mxu0 0
      %4102 = vmatpush1.bf16.msra.mxu0 0
      %4103 = vmatprep.subr.bf16.mxu0 0
      %4104 = vmatpush1.bf16.msra.mxu0 0
      %4105 = vmatprep.mubr.bf16.mxu0 0
      %4106 = vmatmul.mubr.bf16.gmra.mrb[0].mxu0 %v4068
      %v4107 = vpop.f32.mrb[0].mxu0
      %v4108 = vadd.f32 0.0, %v4107
      %v4109 = vpop.f32.mrb[0].mxu0
      %v4110 = vpop.f32.mrb[0].mxu0
      %v4111 = vpop.f32.mrb[0].mxu0
      %4112 = vdwg.mxu0
      %4113 = vrot.lane.b32.xlu0 %v1423, 64
      %v4114 = vpop.permute.xlu0 %4113
      %v4116 = vsel %vm1443, %v3376, 0
      %v4119 = vsel %vm1058, %v4114, 0
      %4121 = vmatprep.subr.bf16.mxu0 0
      %4122 = vmatpush1.bf16.msra.mxu0 %v4119
      %4123 = vmatprep.subr.bf16.mxu0 0
      %4124 = vmatpush1.bf16.msra.mxu0 0
      %4125 = vmatprep.subr.bf16.mxu0 0
      %4126 = vmatpush1.bf16.msra.mxu0 0
      %4127 = vmatprep.subr.bf16.mxu0 0
      %4128 = vmatpush1.bf16.msra.mxu0 0
      %4129 = vmatprep.subr.bf16.mxu0 0
      %4130 = vmatpush1.bf16.msra.mxu0 0
      %4131 = vmatprep.subr.bf16.mxu0 0
      %4132 = vmatpush1.bf16.msra.mxu0 0
      %4133 = vmatprep.subr.bf16.mxu0 0
      %4134 = vmatpush1.bf16.msra.mxu0 0
      %4135 = vmatprep.subr.bf16.mxu0 0
      %4136 = vmatpush1.bf16.msra.mxu0 0
      %4137 = vmatprep.subr.bf16.mxu0 0
      %4138 = vmatpush1.bf16.msra.mxu0 0
      %4139 = vmatprep.subr.bf16.mxu0 0
      %4140 = vmatpush1.bf16.msra.mxu0 0
      %4141 = vmatprep.subr.bf16.mxu0 0
      %4142 = vmatpush1.bf16.msra.mxu0 0
      %4143 = vmatprep.subr.bf16.mxu0 0
      %4144 = vmatpush1.bf16.msra.mxu0 0
      %4145 = vmatprep.subr.bf16.mxu0 0
      %4146 = vmatpush1.bf16.msra.mxu0 0
      %4147 = vmatprep.subr.bf16.mxu0 0
      %4148 = vmatpush1.bf16.msra.mxu0 0
      %4149 = vmatprep.subr.bf16.mxu0 0
      %4150 = vmatpush1.bf16.msra.mxu0 0
      %4151 = vmatprep.subr.bf16.mxu0 0
      %4152 = vmatpush1.bf16.msra.mxu0 0
      %4153 = vmatprep.mubr.bf16.mxu0 0
      %4154 = vmatmul.mubr.bf16.gmra.mrb[0].mxu0 %v4116
      %v4155 = vpop.f32.mrb[0].mxu0
      %v4156 = vadd.f32 0.0, %v4155
      %v4157 = vpop.f32.mrb[0].mxu0
      %v4158 = vpop.f32.mrb[0].mxu0
      %v4159 = vpop.f32.mrb[0].mxu0
      %4160 = vdwg.mxu0
      %4161 = vrot.lane.b32.xlu0 %v1424, 64
      %v4162 = vpop.permute.xlu0 %4161
      %v4164 = vsel %vm1443, %v3377, 0
      %v4167 = vsel %vm1058, %v4162, 0
      %4169 = vmatprep.subr.bf16.mxu0 0
      %4170 = vmatpush1.bf16.msra.mxu0 %v4167
      %4171 = vmatprep.subr.bf16.mxu0 0
      %4172 = vmatpush1.bf16.msra.mxu0 0
      %4173 = vmatprep.subr.bf16.mxu0 0
      %4174 = vmatpush1.bf16.msra.mxu0 0
      %4175 = vmatprep.subr.bf16.mxu0 0
      %4176 = vmatpush1.bf16.msra.mxu0 0
      %4177 = vmatprep.subr.bf16.mxu0 0
      %4178 = vmatpush1.bf16.msra.mxu0 0
      %4179 = vmatprep.subr.bf16.mxu0 0
      %4180 = vmatpush1.bf16.msra.mxu0 0
      %4181 = vmatprep.subr.bf16.mxu0 0
      %4182 = vmatpush1.bf16.msra.mxu0 0
      %4183 = vmatprep.subr.bf16.mxu0 0
      %4184 = vmatpush1.bf16.msra.mxu0 0
      %4185 = vmatprep.subr.bf16.mxu0 0
      %4186 = vmatpush1.bf16.msra.mxu0 0
      %4187 = vmatprep.subr.bf16.mxu0 0
      %4188 = vmatpush1.bf16.msra.mxu0 0
      %4189 = vmatprep.subr.bf16.mxu0 0
      %4190 = vmatpush1.bf16.msra.mxu0 0
      %4191 = vmatprep.subr.bf16.mxu0 0
      %4192 = vmatpush1.bf16.msra.mxu0 0
      %4193 = vmatprep.subr.bf16.mxu0 0
      %4194 = vmatpush1.bf16.msra.mxu0 0
      %4195 = vmatprep.subr.bf16.mxu0 0
      %4196 = vmatpush1.bf16.msra.mxu0 0
      %4197 = vmatprep.subr.bf16.mxu0 0
      %4198 = vmatpush1.bf16.msra.mxu0 0
      %4199 = vmatprep.subr.bf16.mxu0 0
      %4200 = vmatpush1.bf16.msra.mxu0 0
      %4201 = vmatprep.mubr.bf16.mxu0 0
      %4202 = vmatmul.mubr.bf16.gmra.mrb[0].mxu0 %v4164
      %v4203 = vpop.f32.mrb[0].mxu0
      %v4204 = vadd.f32 0.0, %v4203
      %v4205 = vpop.f32.mrb[0].mxu0
      %v4206 = vpop.f32.mrb[0].mxu0
      %v4207 = vpop.f32.mrb[0].mxu0
      %4208 = vdwg.mxu0
      %4209 = vrot.lane.b32.xlu0 %v1425, 64
      %v4210 = vpop.permute.xlu0 %4209
      %v4212 = vsel %vm1443, %v3378, 0
      %v4215 = vsel %vm1058, %v4210, 0
      %4217 = vmatprep.subr.bf16.mxu0 0
      %4218 = vmatpush1.bf16.msra.mxu0 %v4215
      %4219 = vmatprep.subr.bf16.mxu0 0
      %4220 = vmatpush1.bf16.msra.mxu0 0
      %4221 = vmatprep.subr.bf16.mxu0 0
      %4222 = vmatpush1.bf16.msra.mxu0 0
      %4223 = vmatprep.subr.bf16.mxu0 0
      %4224 = vmatpush1.bf16.msra.mxu0 0
      %4225 = vmatprep.subr.bf16.mxu0 0
      %4226 = vmatpush1.bf16.msra.mxu0 0
      %4227 = vmatprep.subr.bf16.mxu0 0
      %4228 = vmatpush1.bf16.msra.mxu0 0
      %4229 = vmatprep.subr.bf16.mxu0 0
      %4230 = vmatpush1.bf16.msra.mxu0 0
      %4231 = vmatprep.subr.bf16.mxu0 0
      %4232 = vmatpush1.bf16.msra.mxu0 0
      %4233 = vmatprep.subr.bf16.mxu0 0
      %4234 = vmatpush1.bf16.msra.mxu0 0
      %4235 = vmatprep.subr.bf16.mxu0 0
      %4236 = vmatpush1.bf16.msra.mxu0 0
      %4237 = vmatprep.subr.bf16.mxu0 0
      %4238 = vmatpush1.bf16.msra.mxu0 0
      %4239 = vmatprep.subr.bf16.mxu0 0
      %4240 = vmatpush1.bf16.msra.mxu0 0
      %4241 = vmatprep.subr.bf16.mxu0 0
      %4242 = vmatpush1.bf16.msra.mxu0 0
      %4243 = vmatprep.subr.bf16.mxu0 0
      %4244 = vmatpush1.bf16.msra.mxu0 0
      %4245 = vmatprep.subr.bf16.mxu0 0
      %4246 = vmatpush1.bf16.msra.mxu0 0
      %4247 = vmatprep.subr.bf16.mxu0 0
      %4248 = vmatpush1.bf16.msra.mxu0 0
      %4249 = vmatprep.mubr.bf16.mxu0 0
      %4250 = vmatmul.mubr.bf16.gmra.mrb[0].mxu0 %v4212
      %v4251 = vpop.f32.mrb[0].mxu0
      %v4252 = vadd.f32 0.0, %v4251
      %v4253 = vpop.f32.mrb[0].mxu0
      %v4254 = vpop.f32.mrb[0].mxu0
      %v4255 = vpop.f32.mrb[0].mxu0
      %4256 = vdwg.mxu0
      %4257 = vrot.lane.b32.xlu0 %v1426, 64
      %v4258 = vpop.permute.xlu0 %4257
      %v4260 = vsel %vm1443, %v3379, 0
      %v4263 = vsel %vm1058, %v4258, 0
      %4265 = vmatprep.subr.bf16.mxu0 0
      %4266 = vmatpush1.bf16.msra.mxu0 %v4263
      %4267 = vmatprep.subr.bf16.mxu0 0
      %4268 = vmatpush1.bf16.msra.mxu0 0
      %4269 = vmatprep.subr.bf16.mxu0 0
      %4270 = vmatpush1.bf16.msra.mxu0 0
      %4271 = vmatprep.subr.bf16.mxu0 0
      %4272 = vmatpush1.bf16.msra.mxu0 0
      %4273 = vmatprep.subr.bf16.mxu0 0
      %4274 = vmatpush1.bf16.msra.mxu0 0
      %4275 = vmatprep.subr.bf16.mxu0 0
      %4276 = vmatpush1.bf16.msra.mxu0 0
      %4277 = vmatprep.subr.bf16.mxu0 0
      %4278 = vmatpush1.bf16.msra.mxu0 0
      %4279 = vmatprep.subr.bf16.mxu0 0
      %4280 = vmatpush1.bf16.msra.mxu0 0
      %4281 = vmatprep.subr.bf16.mxu0 0
      %4282 = vmatpush1.bf16.msra.mxu0 0
      %4283 = vmatprep.subr.bf16.mxu0 0
      %4284 = vmatpush1.bf16.msra.mxu0 0
      %4285 = vmatprep.subr.bf16.mxu0 0
      %4286 = vmatpush1.bf16.msra.mxu0 0
      %4287 = vmatprep.subr.bf16.mxu0 0
      %4288 = vmatpush1.bf16.msra.mxu0 0
      %4289 = vmatprep.subr.bf16.mxu0 0
      %4290 = vmatpush1.bf16.msra.mxu0 0
      %4291 = vmatprep.subr.bf16.mxu0 0
      %4292 = vmatpush1.bf16.msra.mxu0 0
      %4293 = vmatprep.subr.bf16.mxu0 0
      %4294 = vmatpush1.bf16.msra.mxu0 0
      %4295 = vmatprep.subr.bf16.mxu0 0
      %4296 = vmatpush1.bf16.msra.mxu0 0
      %4297 = vmatprep.mubr.bf16.mxu0 0
      %4298 = vmatmul.mubr.bf16.gmra.mrb[0].mxu0 %v4260
      %v4299 = vpop.f32.mrb[0].mxu0
      %v4300 = vadd.f32 0.0, %v4299
      %v4301 = vpop.f32.mrb[0].mxu0
      %v4302 = vpop.f32.mrb[0].mxu0
      %v4303 = vpop.f32.mrb[0].mxu0
      %4304 = vdwg.mxu0
      %4305 = vrot.lane.b32.xlu0 %v1427, 64
      %v4306 = vpop.permute.xlu0 %4305
      %v4308 = vsel %vm1443, %v3380, 0
      %v4311 = vsel %vm1058, %v4306, 0
      %4313 = vmatprep.subr.bf16.mxu0 0
      %4314 = vmatpush1.bf16.msra.mxu0 %v4311
      %4315 = vmatprep.subr.bf16.mxu0 0
      %4316 = vmatpush1.bf16.msra.mxu0 0
      %4317 = vmatprep.subr.bf16.mxu0 0
      %4318 = vmatpush1.bf16.msra.mxu0 0
      %4319 = vmatprep.subr.bf16.mxu0 0
      %4320 = vmatpush1.bf16.msra.mxu0 0
      %4321 = vmatprep.subr.bf16.mxu0 0
      %4322 = vmatpush1.bf16.msra.mxu0 0
      %4323 = vmatprep.subr.bf16.mxu0 0
      %4324 = vmatpush1.bf16.msra.mxu0 0
      %4325 = vmatprep.subr.bf16.mxu0 0
      %4326 = vmatpush1.bf16.msra.mxu0 0
      %4327 = vmatprep.subr.bf16.mxu0 0
      %4328 = vmatpush1.bf16.msra.mxu0 0
      %4329 = vmatprep.subr.bf16.mxu0 0
      %4330 = vmatpush1.bf16.msra.mxu0 0
      %4331 = vmatprep.subr.bf16.mxu0 0
      %4332 = vmatpush1.bf16.msra.mxu0 0
      %4333 = vmatprep.subr.bf16.mxu0 0
      %4334 = vmatpush1.bf16.msra.mxu0 0
      %4335 = vmatprep.subr.bf16.mxu0 0
      %4336 = vmatpush1.bf16.msra.mxu0 0
      %4337 = vmatprep.subr.bf16.mxu0 0
      %4338 = vmatpush1.bf16.msra.mxu0 0
      %4339 = vmatprep.subr.bf16.mxu0 0
      %4340 = vmatpush1.bf16.msra.mxu0 0
      %4341 = vmatprep.subr.bf16.mxu0 0
      %4342 = vmatpush1.bf16.msra.mxu0 0
      %4343 = vmatprep.subr.bf16.mxu0 0
      %4344 = vmatpush1.bf16.msra.mxu0 0
      %4345 = vmatprep.mubr.bf16.mxu0 0
      %4346 = vmatmul.mubr.bf16.gmra.mrb[0].mxu0 %v4308
      %v4347 = vpop.f32.mrb[0].mxu0
      %v4348 = vadd.f32 0.0, %v4347
      %v4349 = vpop.f32.mrb[0].mxu0
      %v4350 = vpop.f32.mrb[0].mxu0
      %v4351 = vpop.f32.mrb[0].mxu0
      %4352 = vdwg.mxu0
      %4353 = vrot.lane.b32.xlu0 %v1428, 64
      %v4354 = vpop.permute.xlu0 %4353
      %v4356 = vsel %vm1443, %v3381, 0
      %v4359 = vsel %vm1058, %v4354, 0
      %4361 = vmatprep.subr.bf16.mxu0 0
      %4362 = vmatpush1.bf16.msra.mxu0 %v4359
      %4363 = vmatprep.subr.bf16.mxu0 0
      %4364 = vmatpush1.bf16.msra.mxu0 0
      %4365 = vmatprep.subr.bf16.mxu0 0
      %4366 = vmatpush1.bf16.msra.mxu0 0
      %4367 = vmatprep.subr.bf16.mxu0 0
      %4368 = vmatpush1.bf16.msra.mxu0 0
      %4369 = vmatprep.subr.bf16.mxu0 0
      %4370 = vmatpush1.bf16.msra.mxu0 0
      %4371 = vmatprep.subr.bf16.mxu0 0
      %4372 = vmatpush1.bf16.msra.mxu0 0
      %4373 = vmatprep.subr.bf16.mxu0 0
      %4374 = vmatpush1.bf16.msra.mxu0 0
      %4375 = vmatprep.subr.bf16.mxu0 0
      %4376 = vmatpush1.bf16.msra.mxu0 0
      %4377 = vmatprep.subr.bf16.mxu0 0
      %4378 = vmatpush1.bf16.msra.mxu0 0
      %4379 = vmatprep.subr.bf16.mxu0 0
      %4380 = vmatpush1.bf16.msra.mxu0 0
      %4381 = vmatprep.subr.bf16.mxu0 0
      %4382 = vmatpush1.bf16.msra.mxu0 0
      %4383 = vmatprep.subr.bf16.mxu0 0
      %4384 = vmatpush1.bf16.msra.mxu0 0
      %4385 = vmatprep.subr.bf16.mxu0 0
      %4386 = vmatpush1.bf16.msra.mxu0 0
      %4387 = vmatprep.subr.bf16.mxu0 0
      %4388 = vmatpush1.bf16.msra.mxu0 0
      %4389 = vmatprep.subr.bf16.mxu0 0
      %4390 = vmatpush1.bf16.msra.mxu0 0
      %4391 = vmatprep.subr.bf16.mxu0 0
      %4392 = vmatpush1.bf16.msra.mxu0 0
      %4393 = vmatprep.mubr.bf16.mxu0 0
      %4394 = vmatmul.mubr.bf16.gmra.mrb[0].mxu0 %v4356
      %v4395 = vpop.f32.mrb[0].mxu0
      %v4396 = vadd.f32 0.0, %v4395
      %v4397 = vpop.f32.mrb[0].mxu0
      %v4398 = vpop.f32.mrb[0].mxu0
      %v4399 = vpop.f32.mrb[0].mxu0
      %4400 = vdwg.mxu0
      %4401 = vrot.lane.b32.xlu0 %v1429, 64
      %v4402 = vpop.permute.xlu0 %4401
      %v4404 = vsel %vm1443, %v3382, 0
      %v4407 = vsel %vm1058, %v4402, 0
      %4409 = vmatprep.subr.bf16.mxu0 0
      %4410 = vmatpush1.bf16.msra.mxu0 %v4407
      %4411 = vmatprep.subr.bf16.mxu0 0
      %4412 = vmatpush1.bf16.msra.mxu0 0
      %4413 = vmatprep.subr.bf16.mxu0 0
      %4414 = vmatpush1.bf16.msra.mxu0 0
      %4415 = vmatprep.subr.bf16.mxu0 0
      %4416 = vmatpush1.bf16.msra.mxu0 0
      %4417 = vmatprep.subr.bf16.mxu0 0
      %4418 = vmatpush1.bf16.msra.mxu0 0
      %4419 = vmatprep.subr.bf16.mxu0 0
      %4420 = vmatpush1.bf16.msra.mxu0 0
      %4421 = vmatprep.subr.bf16.mxu0 0
      %4422 = vmatpush1.bf16.msra.mxu0 0
      %4423 = vmatprep.subr.bf16.mxu0 0
      %4424 = vmatpush1.bf16.msra.mxu0 0
      %4425 = vmatprep.subr.bf16.mxu0 0
      %4426 = vmatpush1.bf16.msra.mxu0 0
      %4427 = vmatprep.subr.bf16.mxu0 0
      %4428 = vmatpush1.bf16.msra.mxu0 0
      %4429 = vmatprep.subr.bf16.mxu0 0
      %4430 = vmatpush1.bf16.msra.mxu0 0
      %4431 = vmatprep.subr.bf16.mxu0 0
      %4432 = vmatpush1.bf16.msra.mxu0 0
      %4433 = vmatprep.subr.bf16.mxu0 0
      %4434 = vmatpush1.bf16.msra.mxu0 0
      %4435 = vmatprep.subr.bf16.mxu0 0
      %4436 = vmatpush1.bf16.msra.mxu0 0
      %4437 = vmatprep.subr.bf16.mxu0 0
      %4438 = vmatpush1.bf16.msra.mxu0 0
      %4439 = vmatprep.subr.bf16.mxu0 0
      %4440 = vmatpush1.bf16.msra.mxu0 0
      %4441 = vmatprep.mubr.bf16.mxu0 0
      %4442 = vmatmul.mubr.bf16.gmra.mrb[0].mxu0 %v4404
      %v4443 = vpop.f32.mrb[0].mxu0
      %v4444 = vadd.f32 0.0, %v4443
      %v4445 = vpop.f32.mrb[0].mxu0
      %v4446 = vpop.f32.mrb[0].mxu0
      %v4447 = vpop.f32.mrb[0].mxu0
      %4448 = vdwg.mxu0
      %4449 = vrot.lane.b32.xlu0 %v1430, 64
      %v4450 = vpop.permute.xlu0 %4449
      %v4452 = vsel %vm1443, %v3383, 0
      %v4455 = vsel %vm1058, %v4450, 0
      %4457 = vmatprep.subr.bf16.mxu0 0
      %4458 = vmatpush1.bf16.msra.mxu0 %v4455
      %4459 = vmatprep.subr.bf16.mxu0 0
      %4460 = vmatpush1.bf16.msra.mxu0 0
      %4461 = vmatprep.subr.bf16.mxu0 0
      %4462 = vmatpush1.bf16.msra.mxu0 0
      %4463 = vmatprep.subr.bf16.mxu0 0
      %4464 = vmatpush1.bf16.msra.mxu0 0
      %4465 = vmatprep.subr.bf16.mxu0 0
      %4466 = vmatpush1.bf16.msra.mxu0 0
      %4467 = vmatprep.subr.bf16.mxu0 0
      %4468 = vmatpush1.bf16.msra.mxu0 0
      %4469 = vmatprep.subr.bf16.mxu0 0
      %4470 = vmatpush1.bf16.msra.mxu0 0
      %4471 = vmatprep.subr.bf16.mxu0 0
      %4472 = vmatpush1.bf16.msra.mxu0 0
      %4473 = vmatprep.subr.bf16.mxu0 0
      %4474 = vmatpush1.bf16.msra.mxu0 0
      %4475 = vmatprep.subr.bf16.mxu0 0
      %4476 = vmatpush1.bf16.msra.mxu0 0
      %4477 = vmatprep.subr.bf16.mxu0 0
      %4478 = vmatpush1.bf16.msra.mxu0 0
      %4479 = vmatprep.subr.bf16.mxu0 0
      %4480 = vmatpush1.bf16.msra.mxu0 0
      %4481 = vmatprep.subr.bf16.mxu0 0
      %4482 = vmatpush1.bf16.msra.mxu0 0
      %4483 = vmatprep.subr.bf16.mxu0 0
      %4484 = vmatpush1.bf16.msra.mxu0 0
      %4485 = vmatprep.subr.bf16.mxu0 0
      %4486 = vmatpush1.bf16.msra.mxu0 0
      %4487 = vmatprep.subr.bf16.mxu0 0
      %4488 = vmatpush1.bf16.msra.mxu0 0
      %4489 = vmatprep.mubr.bf16.mxu0 0
      %4490 = vmatmul.mubr.bf16.gmra.mrb[0].mxu0 %v4452
      %v4491 = vpop.f32.mrb[0].mxu0
      %v4492 = vadd.f32 0.0, %v4491
      %v4493 = vpop.f32.mrb[0].mxu0
      %v4494 = vpop.f32.mrb[0].mxu0
      %v4495 = vpop.f32.mrb[0].mxu0
      %4496 = vdwg.mxu0
      %4497 = vrot.lane.b32.xlu0 %v1431, 64
      %v4498 = vpop.permute.xlu0 %4497
      %v4500 = vsel %vm1443, %v3384, 0
      %v4503 = vsel %vm1058, %v4498, 0
      %4505 = vmatprep.subr.bf16.mxu0 0
      %4506 = vmatpush1.bf16.msra.mxu0 %v4503
      %4507 = vmatprep.subr.bf16.mxu0 0
      %4508 = vmatpush1.bf16.msra.mxu0 0
      %4509 = vmatprep.subr.bf16.mxu0 0
      %4510 = vmatpush1.bf16.msra.mxu0 0
      %4511 = vmatprep.subr.bf16.mxu0 0
      %4512 = vmatpush1.bf16.msra.mxu0 0
      %4513 = vmatprep.subr.bf16.mxu0 0
      %4514 = vmatpush1.bf16.msra.mxu0 0
      %4515 = vmatprep.subr.bf16.mxu0 0
      %4516 = vmatpush1.bf16.msra.mxu0 0
      %4517 = vmatprep.subr.bf16.mxu0 0
      %4518 = vmatpush1.bf16.msra.mxu0 0
      %4519 = vmatprep.subr.bf16.mxu0 0
      %4520 = vmatpush1.bf16.msra.mxu0 0
      %4521 = vmatprep.subr.bf16.mxu0 0
      %4522 = vmatpush1.bf16.msra.mxu0 0
      %4523 = vmatprep.subr.bf16.mxu0 0
      %4524 = vmatpush1.bf16.msra.mxu0 0
      %4525 = vmatprep.subr.bf16.mxu0 0
      %4526 = vmatpush1.bf16.msra.mxu0 0
      %4527 = vmatprep.subr.bf16.mxu0 0
      %4528 = vmatpush1.bf16.msra.mxu0 0
      %4529 = vmatprep.subr.bf16.mxu0 0
      %4530 = vmatpush1.bf16.msra.mxu0 0
      %4531 = vmatprep.subr.bf16.mxu0 0
      %4532 = vmatpush1.bf16.msra.mxu0 0
      %4533 = vmatprep.subr.bf16.mxu0 0
      %4534 = vmatpush1.bf16.msra.mxu0 0
      %4535 = vmatprep.subr.bf16.mxu0 0
      %4536 = vmatpush1.bf16.msra.mxu0 0
      %4537 = vmatprep.mubr.bf16.mxu0 0
      %4538 = vmatmul.mubr.bf16.gmra.mrb[0].mxu0 %v4500
      %v4539 = vpop.f32.mrb[0].mxu0
      %v4540 = vadd.f32 0.0, %v4539
      %v4541 = vpop.f32.mrb[0].mxu0
      %v4542 = vpop.f32.mrb[0].mxu0
      %v4543 = vpop.f32.mrb[0].mxu0
      %4544 = vdwg.mxu0
      %4545 = vrot.lane.b32.xlu0 %v1432, 64
      %v4546 = vpop.permute.xlu0 %4545
      %v4548 = vsel %vm1443, %v3385, 0
      %v4551 = vsel %vm1058, %v4546, 0
      %4553 = vmatprep.subr.bf16.mxu0 0
      %4554 = vmatpush1.bf16.msra.mxu0 %v4551
      %4555 = vmatprep.subr.bf16.mxu0 0
      %4556 = vmatpush1.bf16.msra.mxu0 0
      %4557 = vmatprep.subr.bf16.mxu0 0
      %4558 = vmatpush1.bf16.msra.mxu0 0
      %4559 = vmatprep.subr.bf16.mxu0 0
      %4560 = vmatpush1.bf16.msra.mxu0 0
      %4561 = vmatprep.subr.bf16.mxu0 0
      %4562 = vmatpush1.bf16.msra.mxu0 0
      %4563 = vmatprep.subr.bf16.mxu0 0
      %4564 = vmatpush1.bf16.msra.mxu0 0
      %4565 = vmatprep.subr.bf16.mxu0 0
      %4566 = vmatpush1.bf16.msra.mxu0 0
      %4567 = vmatprep.subr.bf16.mxu0 0
      %4568 = vmatpush1.bf16.msra.mxu0 0
      %4569 = vmatprep.subr.bf16.mxu0 0
      %4570 = vmatpush1.bf16.msra.mxu0 0
      %4571 = vmatprep.subr.bf16.mxu0 0
      %4572 = vmatpush1.bf16.msra.mxu0 0
      %4573 = vmatprep.subr.bf16.mxu0 0
      %4574 = vmatpush1.bf16.msra.mxu0 0
      %4575 = vmatprep.subr.bf16.mxu0 0
      %4576 = vmatpush1.bf16.msra.mxu0 0
      %4577 = vmatprep.subr.bf16.mxu0 0
      %4578 = vmatpush1.bf16.msra.mxu0 0
      %4579 = vmatprep.subr.bf16.mxu0 0
      %4580 = vmatpush1.bf16.msra.mxu0 0
      %4581 = vmatprep.subr.bf16.mxu0 0
      %4582 = vmatpush1.bf16.msra.mxu0 0
      %4583 = vmatprep.subr.bf16.mxu0 0
      %4584 = vmatpush1.bf16.msra.mxu0 0
      %4585 = vmatprep.mubr.bf16.mxu0 0
      %4586 = vmatmul.mubr.bf16.gmra.mrb[0].mxu0 %v4548
      %v4587 = vpop.f32.mrb[0].mxu0
      %v4588 = vadd.f32 0.0, %v4587
      %v4589 = vpop.f32.mrb[0].mxu0
      %v4590 = vpop.f32.mrb[0].mxu0
      %v4591 = vpop.f32.mrb[0].mxu0
      %4592 = vdwg.mxu0
      %4593 = vrot.lane.b32.xlu0 %v1433, 64
      %v4594 = vpop.permute.xlu0 %4593
      %v4596 = vsel %vm1443, %v3386, 0
      %v4599 = vsel %vm1058, %v4594, 0
      %4601 = vmatprep.subr.bf16.mxu0 0
      %4602 = vmatpush1.bf16.msra.mxu0 %v4599
      %4603 = vmatprep.subr.bf16.mxu0 0
      %4604 = vmatpush1.bf16.msra.mxu0 0
      %4605 = vmatprep.subr.bf16.mxu0 0
      %4606 = vmatpush1.bf16.msra.mxu0 0
      %4607 = vmatprep.subr.bf16.mxu0 0
      %4608 = vmatpush1.bf16.msra.mxu0 0
      %4609 = vmatprep.subr.bf16.mxu0 0
      %4610 = vmatpush1.bf16.msra.mxu0 0
      %4611 = vmatprep.subr.bf16.mxu0 0
      %4612 = vmatpush1.bf16.msra.mxu0 0
      %4613 = vmatprep.subr.bf16.mxu0 0
      %4614 = vmatpush1.bf16.msra.mxu0 0
      %4615 = vmatprep.subr.bf16.mxu0 0
      %4616 = vmatpush1.bf16.msra.mxu0 0
      %4617 = vmatprep.subr.bf16.mxu0 0
      %4618 = vmatpush1.bf16.msra.mxu0 0
      %4619 = vmatprep.subr.bf16.mxu0 0
      %4620 = vmatpush1.bf16.msra.mxu0 0
      %4621 = vmatprep.subr.bf16.mxu0 0
      %4622 = vmatpush1.bf16.msra.mxu0 0
      %4623 = vmatprep.subr.bf16.mxu0 0
      %4624 = vmatpush1.bf16.msra.mxu0 0
      %4625 = vmatprep.subr.bf16.mxu0 0
      %4626 = vmatpush1.bf16.msra.mxu0 0
      %4627 = vmatprep.subr.bf16.mxu0 0
      %4628 = vmatpush1.bf16.msra.mxu0 0
      %4629 = vmatprep.subr.bf16.mxu0 0
      %4630 = vmatpush1.bf16.msra.mxu0 0
      %4631 = vmatprep.subr.bf16.mxu0 0
      %4632 = vmatpush1.bf16.msra.mxu0 0
      %4633 = vmatprep.mubr.bf16.mxu0 0
      %4634 = vmatmul.mubr.bf16.gmra.mrb[0].mxu0 %v4596
      %v4635 = vpop.f32.mrb[0].mxu0
      %v4636 = vadd.f32 0.0, %v4635
      %v4637 = vpop.f32.mrb[0].mxu0
      %v4638 = vpop.f32.mrb[0].mxu0
      %v4639 = vpop.f32.mrb[0].mxu0
      %4640 = vdwg.mxu0
      %4641 = vrot.lane.b32.xlu0 %v1434, 64
      %v4642 = vpop.permute.xlu0 %4641
      %v4644 = vsel %vm1443, %v3387, 0
      %v4647 = vsel %vm1058, %v4642, 0
      %4649 = vmatprep.subr.bf16.mxu0 0
      %4650 = vmatpush1.bf16.msra.mxu0 %v4647
      %4651 = vmatprep.subr.bf16.mxu0 0
      %4652 = vmatpush1.bf16.msra.mxu0 0
      %4653 = vmatprep.subr.bf16.mxu0 0
      %4654 = vmatpush1.bf16.msra.mxu0 0
      %4655 = vmatprep.subr.bf16.mxu0 0
      %4656 = vmatpush1.bf16.msra.mxu0 0
      %4657 = vmatprep.subr.bf16.mxu0 0
      %4658 = vmatpush1.bf16.msra.mxu0 0
      %4659 = vmatprep.subr.bf16.mxu0 0
      %4660 = vmatpush1.bf16.msra.mxu0 0
      %4661 = vmatprep.subr.bf16.mxu0 0
      %4662 = vmatpush1.bf16.msra.mxu0 0
      %4663 = vmatprep.subr.bf16.mxu0 0
      %4664 = vmatpush1.bf16.msra.mxu0 0
      %4665 = vmatprep.subr.bf16.mxu0 0
      %4666 = vmatpush1.bf16.msra.mxu0 0
      %4667 = vmatprep.subr.bf16.mxu0 0
      %4668 = vmatpush1.bf16.msra.mxu0 0
      %4669 = vmatprep.subr.bf16.mxu0 0
      %4670 = vmatpush1.bf16.msra.mxu0 0
      %4671 = vmatprep.subr.bf16.mxu0 0
      %4672 = vmatpush1.bf16.msra.mxu0 0
      %4673 = vmatprep.subr.bf16.mxu0 0
      %4674 = vmatpush1.bf16.msra.mxu0 0
      %4675 = vmatprep.subr.bf16.mxu0 0
      %4676 = vmatpush1.bf16.msra.mxu0 0
      %4677 = vmatprep.subr.bf16.mxu0 0
      %4678 = vmatpush1.bf16.msra.mxu0 0
      %4679 = vmatprep.subr.bf16.mxu0 0
      %4680 = vmatpush1.bf16.msra.mxu0 0
      %4681 = vmatprep.mubr.bf16.mxu0 0
      %4682 = vmatmul.mubr.bf16.gmra.mrb[0].mxu0 %v4644
      %v4683 = vpop.f32.mrb[0].mxu0
      %v4684 = vadd.f32 0.0, %v4683
      %v4685 = vpop.f32.mrb[0].mxu0
      %v4686 = vpop.f32.mrb[0].mxu0
      %v4687 = vpop.f32.mrb[0].mxu0
      %4688 = vdwg.mxu0
      %4689 = vrot.lane.b32.xlu0 %v1435, 64
      %v4690 = vpop.permute.xlu0 %4689
      %v4692 = vsel %vm1443, %v3388, 0
      %v4695 = vsel %vm1058, %v4690, 0
      %4697 = vmatprep.subr.bf16.mxu0 0
      %4698 = vmatpush1.bf16.msra.mxu0 %v4695
      %4699 = vmatprep.subr.bf16.mxu0 0
      %4700 = vmatpush1.bf16.msra.mxu0 0
      %4701 = vmatprep.subr.bf16.mxu0 0
      %4702 = vmatpush1.bf16.msra.mxu0 0
      %4703 = vmatprep.subr.bf16.mxu0 0
      %4704 = vmatpush1.bf16.msra.mxu0 0
      %4705 = vmatprep.subr.bf16.mxu0 0
      %4706 = vmatpush1.bf16.msra.mxu0 0
      %4707 = vmatprep.subr.bf16.mxu0 0
      %4708 = vmatpush1.bf16.msra.mxu0 0
      %4709 = vmatprep.subr.bf16.mxu0 0
      %4710 = vmatpush1.bf16.msra.mxu0 0
      %4711 = vmatprep.subr.bf16.mxu0 0
      %4712 = vmatpush1.bf16.msra.mxu0 0
      %4713 = vmatprep.subr.bf16.mxu0 0
      %4714 = vmatpush1.bf16.msra.mxu0 0
      %4715 = vmatprep.subr.bf16.mxu0 0
      %4716 = vmatpush1.bf16.msra.mxu0 0
      %4717 = vmatprep.subr.bf16.mxu0 0
      %4718 = vmatpush1.bf16.msra.mxu0 0
      %4719 = vmatprep.subr.bf16.mxu0 0
      %4720 = vmatpush1.bf16.msra.mxu0 0
      %4721 = vmatprep.subr.bf16.mxu0 0
      %4722 = vmatpush1.bf16.msra.mxu0 0
      %4723 = vmatprep.subr.bf16.mxu0 0
      %4724 = vmatpush1.bf16.msra.mxu0 0
      %4725 = vmatprep.subr.bf16.mxu0 0
      %4726 = vmatpush1.bf16.msra.mxu0 0
      %4727 = vmatprep.subr.bf16.mxu0 0
      %4728 = vmatpush1.bf16.msra.mxu0 0
      %4729 = vmatprep.mubr.bf16.mxu0 0
      %4730 = vmatmul.mubr.bf16.gmra.mrb[0].mxu0 %v4692
      %v4731 = vpop.f32.mrb[0].mxu0
      %v4732 = vadd.f32 0.0, %v4731
      %v4733 = vpop.f32.mrb[0].mxu0
      %v4734 = vpop.f32.mrb[0].mxu0
      %v4735 = vpop.f32.mrb[0].mxu0
      %4736 = vdwg.mxu0
      %4737 = vrot.lane.b32.xlu0 %v1436, 64
      %v4738 = vpop.permute.xlu0 %4737
      %v4740 = vsel %vm1443, %v3389, 0
      %v4743 = vsel %vm1058, %v4738, 0
      %4745 = vmatprep.subr.bf16.mxu0 0
      %4746 = vmatpush1.bf16.msra.mxu0 %v4743
      %4747 = vmatprep.subr.bf16.mxu0 0
      %4748 = vmatpush1.bf16.msra.mxu0 0
      %4749 = vmatprep.subr.bf16.mxu0 0
      %4750 = vmatpush1.bf16.msra.mxu0 0
      %4751 = vmatprep.subr.bf16.mxu0 0
      %4752 = vmatpush1.bf16.msra.mxu0 0
      %4753 = vmatprep.subr.bf16.mxu0 0
      %4754 = vmatpush1.bf16.msra.mxu0 0
      %4755 = vmatprep.subr.bf16.mxu0 0
      %4756 = vmatpush1.bf16.msra.mxu0 0
      %4757 = vmatprep.subr.bf16.mxu0 0
      %4758 = vmatpush1.bf16.msra.mxu0 0
      %4759 = vmatprep.subr.bf16.mxu0 0
      %4760 = vmatpush1.bf16.msra.mxu0 0
      %4761 = vmatprep.subr.bf16.mxu0 0
      %4762 = vmatpush1.bf16.msra.mxu0 0
      %4763 = vmatprep.subr.bf16.mxu0 0
      %4764 = vmatpush1.bf16.msra.mxu0 0
      %4765 = vmatprep.subr.bf16.mxu0 0
      %4766 = vmatpush1.bf16.msra.mxu0 0
      %4767 = vmatprep.subr.bf16.mxu0 0
      %4768 = vmatpush1.bf16.msra.mxu0 0
      %4769 = vmatprep.subr.bf16.mxu0 0
      %4770 = vmatpush1.bf16.msra.mxu0 0
      %4771 = vmatprep.subr.bf16.mxu0 0
      %4772 = vmatpush1.bf16.msra.mxu0 0
      %4773 = vmatprep.subr.bf16.mxu0 0
      %4774 = vmatpush1.bf16.msra.mxu0 0
      %4775 = vmatprep.subr.bf16.mxu0 0
      %4776 = vmatpush1.bf16.msra.mxu0 0
      %4777 = vmatprep.mubr.bf16.mxu0 0
      %4778 = vmatmul.mubr.bf16.gmra.mrb[0].mxu0 %v4740
      %v4779 = vpop.f32.mrb[0].mxu0
      %v4780 = vadd.f32 0.0, %v4779
      %v4781 = vpop.f32.mrb[0].mxu0
      %v4782 = vpop.f32.mrb[0].mxu0
      %v4783 = vpop.f32.mrb[0].mxu0
      %4784 = vdwg.mxu0
      %4785 = vrot.lane.b32.xlu0 %v1437, 64
      %v4786 = vpop.permute.xlu0 %4785
      %v4788 = vsel %vm1443, %v3390, 0
      %v4791 = vsel %vm1058, %v4786, 0
      %4793 = vmatprep.subr.bf16.mxu0 0
      %4794 = vmatpush1.bf16.msra.mxu0 %v4791
      %4795 = vmatprep.subr.bf16.mxu0 0
      %4796 = vmatpush1.bf16.msra.mxu0 0
      %4797 = vmatprep.subr.bf16.mxu0 0
      %4798 = vmatpush1.bf16.msra.mxu0 0
      %4799 = vmatprep.subr.bf16.mxu0 0
      %4800 = vmatpush1.bf16.msra.mxu0 0
      %4801 = vmatprep.subr.bf16.mxu0 0
      %4802 = vmatpush1.bf16.msra.mxu0 0
      %4803 = vmatprep.subr.bf16.mxu0 0
      %4804 = vmatpush1.bf16.msra.mxu0 0
      %4805 = vmatprep.subr.bf16.mxu0 0
      %4806 = vmatpush1.bf16.msra.mxu0 0
      %4807 = vmatprep.subr.bf16.mxu0 0
      %4808 = vmatpush1.bf16.msra.mxu0 0
      %4809 = vmatprep.subr.bf16.mxu0 0
      %4810 = vmatpush1.bf16.msra.mxu0 0
      %4811 = vmatprep.subr.bf16.mxu0 0
      %4812 = vmatpush1.bf16.msra.mxu0 0
      %4813 = vmatprep.subr.bf16.mxu0 0
      %4814 = vmatpush1.bf16.msra.mxu0 0
      %4815 = vmatprep.subr.bf16.mxu0 0
      %4816 = vmatpush1.bf16.msra.mxu0 0
      %4817 = vmatprep.subr.bf16.mxu0 0
      %4818 = vmatpush1.bf16.msra.mxu0 0
      %4819 = vmatprep.subr.bf16.mxu0 0
      %4820 = vmatpush1.bf16.msra.mxu0 0
      %4821 = vmatprep.subr.bf16.mxu0 0
      %4822 = vmatpush1.bf16.msra.mxu0 0
      %4823 = vmatprep.subr.bf16.mxu0 0
      %4824 = vmatpush1.bf16.msra.mxu0 0
      %4825 = vmatprep.mubr.bf16.mxu0 0
      %4826 = vmatmul.mubr.bf16.gmra.mrb[0].mxu0 %v4788
      %v4827 = vpop.f32.mrb[0].mxu0
      %v4828 = vadd.f32 0.0, %v4827
      %v4829 = vpop.f32.mrb[0].mxu0
      %v4830 = vpop.f32.mrb[0].mxu0
      %v4831 = vpop.f32.mrb[0].mxu0
      %4832 = vdwg.mxu0
      %4833 = vrot.lane.b32.xlu0 %v1438, 64
      %v4834 = vpop.permute.xlu0 %4833
      %v4836 = vsel %vm1443, %v3391, 0
      %v4839 = vsel %vm1058, %v4834, 0
      %4841 = vmatprep.subr.bf16.mxu0 0
      %4842 = vmatpush1.bf16.msra.mxu0 %v4839
      %4843 = vmatprep.subr.bf16.mxu0 0
      %4844 = vmatpush1.bf16.msra.mxu0 0
      %4845 = vmatprep.subr.bf16.mxu0 0
      %4846 = vmatpush1.bf16.msra.mxu0 0
      %4847 = vmatprep.subr.bf16.mxu0 0
      %4848 = vmatpush1.bf16.msra.mxu0 0
      %4849 = vmatprep.subr.bf16.mxu0 0
      %4850 = vmatpush1.bf16.msra.mxu0 0
      %4851 = vmatprep.subr.bf16.mxu0 0
      %4852 = vmatpush1.bf16.msra.mxu0 0
      %4853 = vmatprep.subr.bf16.mxu0 0
      %4854 = vmatpush1.bf16.msra.mxu0 0
      %4855 = vmatprep.subr.bf16.mxu0 0
      %4856 = vmatpush1.bf16.msra.mxu0 0
      %4857 = vmatprep.subr.bf16.mxu0 0
      %4858 = vmatpush1.bf16.msra.mxu0 0
      %4859 = vmatprep.subr.bf16.mxu0 0
      %4860 = vmatpush1.bf16.msra.mxu0 0
      %4861 = vmatprep.subr.bf16.mxu0 0
      %4862 = vmatpush1.bf16.msra.mxu0 0
      %4863 = vmatprep.subr.bf16.mxu0 0
      %4864 = vmatpush1.bf16.msra.mxu0 0
      %4865 = vmatprep.subr.bf16.mxu0 0
      %4866 = vmatpush1.bf16.msra.mxu0 0
      %4867 = vmatprep.subr.bf16.mxu0 0
      %4868 = vmatpush1.bf16.msra.mxu0 0
      %4869 = vmatprep.subr.bf16.mxu0 0
      %4870 = vmatpush1.bf16.msra.mxu0 0
      %4871 = vmatprep.subr.bf16.mxu0 0
      %4872 = vmatpush1.bf16.msra.mxu0 0
      %4873 = vmatprep.mubr.bf16.mxu0 0
      %4874 = vmatmul.mubr.bf16.gmra.mrb[0].mxu0 %v4836
      %v4875 = vpop.f32.mrb[0].mxu0
      %v4876 = vadd.f32 0.0, %v4875
      %v4877 = vpop.f32.mrb[0].mxu0
      %v4878 = vpop.f32.mrb[0].mxu0
      %v4879 = vpop.f32.mrb[0].mxu0
      %4880 = vdwg.mxu0
      %4881 = vrot.lane.b32.xlu0 %v1439, 64
      %v4882 = vpop.permute.xlu0 %4881
      %v4884 = vsel %vm1443, %v3392, 0
      %v4887 = vsel %vm1058, %v4882, 0
      %4889 = vmatprep.subr.bf16.mxu0 0
      %4890 = vmatpush1.bf16.msra.mxu0 %v4887
      %4891 = vmatprep.subr.bf16.mxu0 0
      %4892 = vmatpush1.bf16.msra.mxu0 0
      %4893 = vmatprep.subr.bf16.mxu0 0
      %4894 = vmatpush1.bf16.msra.mxu0 0
      %4895 = vmatprep.subr.bf16.mxu0 0
      %4896 = vmatpush1.bf16.msra.mxu0 0
      %4897 = vmatprep.subr.bf16.mxu0 0
      %4898 = vmatpush1.bf16.msra.mxu0 0
      %4899 = vmatprep.subr.bf16.mxu0 0
      %4900 = vmatpush1.bf16.msra.mxu0 0
      %4901 = vmatprep.subr.bf16.mxu0 0
      %4902 = vmatpush1.bf16.msra.mxu0 0
      %4903 = vmatprep.subr.bf16.mxu0 0
      %4904 = vmatpush1.bf16.msra.mxu0 0
      %4905 = vmatprep.subr.bf16.mxu0 0
      %4906 = vmatpush1.bf16.msra.mxu0 0
      %4907 = vmatprep.subr.bf16.mxu0 0
      %4908 = vmatpush1.bf16.msra.mxu0 0
      %4909 = vmatprep.subr.bf16.mxu0 0
      %4910 = vmatpush1.bf16.msra.mxu0 0
      %4911 = vmatprep.subr.bf16.mxu0 0
      %4912 = vmatpush1.bf16.msra.mxu0 0
      %4913 = vmatprep.subr.bf16.mxu0 0
      %4914 = vmatpush1.bf16.msra.mxu0 0
      %4915 = vmatprep.subr.bf16.mxu0 0
      %4916 = vmatpush1.bf16.msra.mxu0 0
      %4917 = vmatprep.subr.bf16.mxu0 0
      %4918 = vmatpush1.bf16.msra.mxu0 0
      %4919 = vmatprep.subr.bf16.mxu0 0
      %4920 = vmatpush1.bf16.msra.mxu0 0
      %4921 = vmatprep.mubr.bf16.mxu0 0
      %4922 = vmatmul.mubr.bf16.gmra.mrb[0].mxu0 %v4884
      %v4923 = vpop.f32.mrb[0].mxu0
      %v4924 = vadd.f32 0.0, %v4923
      %v4925 = vpop.f32.mrb[0].mxu0
      %v4926 = vpop.f32.mrb[0].mxu0
      %v4927 = vpop.f32.mrb[0].mxu0
      %4928 = vdwg.mxu0
      %4937 = vrot.lane.b32.xlu0 %v3820, 8
      %v4938 = vpop.permute.xlu0 %4937
      %4939 = vrot.lane.b32.xlu0 %v3868, 8
      %v4940 = vpop.permute.xlu0 %4939
      %4941 = vrot.lane.b32.xlu0 %v3916, 8
      %v4942 = vpop.permute.xlu0 %4941
      %4943 = vrot.lane.b32.xlu0 %v3964, 8
      %v4944 = vpop.permute.xlu0 %4943
      %4945 = vrot.lane.b32.xlu0 %v4012, 8
      %v4946 = vpop.permute.xlu0 %4945
      %4947 = vrot.lane.b32.xlu0 %v4060, 8
      %v4948 = vpop.permute.xlu0 %4947
      %4949 = vrot.lane.b32.xlu0 %v4108, 8
      %v4950 = vpop.permute.xlu0 %4949
      %4951 = vrot.lane.b32.xlu0 %v4156, 8
      %v4952 = vpop.permute.xlu0 %4951
      %4969 = vrot.lane.b32.xlu0 %v4204, 16
      %v4970 = vpop.permute.xlu0 %4969
      %4971 = vrot.lane.b32.xlu0 %v4252, 16
      %v4972 = vpop.permute.xlu0 %4971
      %4973 = vrot.lane.b32.xlu0 %v4300, 16
      %v4974 = vpop.permute.xlu0 %4973
      %4975 = vrot.lane.b32.xlu0 %v4348, 16
      %v4976 = vpop.permute.xlu0 %4975
      %4977 = vrot.lane.b32.xlu0 %v4396, 16
      %v4978 = vpop.permute.xlu0 %4977
      %4979 = vrot.lane.b32.xlu0 %v4444, 16
      %v4980 = vpop.permute.xlu0 %4979
      %4981 = vrot.lane.b32.xlu0 %v4492, 16
      %v4982 = vpop.permute.xlu0 %4981
      %4983 = vrot.lane.b32.xlu0 %v4540, 16
      %v4984 = vpop.permute.xlu0 %4983
      %5001 = vrot.lane.b32.xlu0 %v4588, 24
      %v5002 = vpop.permute.xlu0 %5001
      %5003 = vrot.lane.b32.xlu0 %v4636, 24
      %v5004 = vpop.permute.xlu0 %5003
      %5005 = vrot.lane.b32.xlu0 %v4684, 24
      %v5006 = vpop.permute.xlu0 %5005
      %5007 = vrot.lane.b32.xlu0 %v4732, 24
      %v5008 = vpop.permute.xlu0 %5007
      %5009 = vrot.lane.b32.xlu0 %v4780, 24
      %v5010 = vpop.permute.xlu0 %5009
      %5011 = vrot.lane.b32.xlu0 %v4828, 24
      %v5012 = vpop.permute.xlu0 %5011
      %5013 = vrot.lane.b32.xlu0 %v4876, 24
      %v5014 = vpop.permute.xlu0 %5013
      %5015 = vrot.lane.b32.xlu0 %v4924, 24
      %v5016 = vpop.permute.xlu0 %5015
      %v5025 = vsel %vm1443, %v3436, %v4938
      %v5026 = vsel %vm1443, %v3484, %v4940
      %v5027 = vsel %vm1443, %v3532, %v4942
      %v5028 = vsel %vm1443, %v3580, %v4944
      %v5029 = vsel %vm1443, %v3628, %v4946
      %v5030 = vsel %vm1443, %v3676, %v4948
      %v5031 = vsel %vm1443, %v3724, %v4950
      %v5032 = vsel %vm1443, %v3772, %v4952
      %vm5033 = vcmask 130048
      %v5034 = vsel %vm5033, %v5025, %v4970
      %v5035 = vsel %vm5033, %v5026, %v4972
      %v5036 = vsel %vm5033, %v5027, %v4974
      %v5037 = vsel %vm5033, %v5028, %v4976
      %v5038 = vsel %vm5033, %v5029, %v4978
      %v5039 = vsel %vm5033, %v5030, %v4980
      %v5040 = vsel %vm5033, %v5031, %v4982
      %v5041 = vsel %vm5033, %v5032, %v4984
      %vm5042 = vcmask 195584
      %v5043 = vsel %vm5042, %v5034, %v5002
      %v5044 = vsel %vm5042, %v5035, %v5004
      %v5045 = vsel %vm5042, %v5036, %v5006
      %v5046 = vsel %vm5042, %v5037, %v5008
      %v5047 = vsel %vm5042, %v5038, %v5010
      %v5048 = vsel %vm5042, %v5039, %v5012
      %v5049 = vsel %vm5042, %v5040, %v5014
      %v5050 = vsel %vm5042, %v5041, %v5016
      %v5051 = vpack.c.bf16 %v5044, %v5043
      %v5052 = vpack.c.bf16 %v5046, %v5045
      %v5053 = vpack.c.bf16 %v5048, %v5047
      %v5054 = vpack.c.bf16 %v5050, %v5049
      %v5056 = vlaneseq
      %v5057 = vshrl.u32 %v5056, 7
      %v5058 = vsub.s32 0, %v5057
      %v5059 = vrot.slane %v1092, %v5058
      %v5065 = vunpack.c.l.b16 %v1071
      %v5066 = vunpack.c.l.b16 %v1072
      %v5067 = vunpack.c.l.b16 %v1073
      %v5068 = vunpack.c.l.b16 %v1074
      %v5069 = vpack.c.b16 %v5066, %v5065
      %v5070 = vpack.c.b16 %v5068, %v5067
      %v5074 = vsel %vm1095, %v5051, 0
      %v5077 = vsel %vm1095, %v5052, 0
      %v5080 = vsel %vm1095, %v5053, 0
      %v5083 = vsel %vm1095, %v5054, 0
      %5085 = vmatprep.subr.bf16.mxu0 0
      %5086 = vmatpush1.bf16.msra.mxu0 %v5069
      %5087 = vmatprep.subr.bf16.mxu0 0
      %5088 = vmatpush1.bf16.msra.mxu0 %v5070
      %5089 = vmatprep.subr.bf16.mxu0 0
      %5090 = vmatpush1.bf16.msra.mxu0 0
      %5091 = vmatprep.subr.bf16.mxu0 0
      %5092 = vmatpush1.bf16.msra.mxu0 0
      %5093 = vmatprep.subr.bf16.mxu0 0
      %5094 = vmatpush1.bf16.msra.mxu0 0
      %5095 = vmatprep.subr.bf16.mxu0 0
      %5096 = vmatpush1.bf16.msra.mxu0 0
      %5097 = vmatprep.subr.bf16.mxu0 0
      %5098 = vmatpush1.bf16.msra.mxu0 0
      %5099 = vmatprep.subr.bf16.mxu0 0
      %5100 = vmatpush1.bf16.msra.mxu0 0
      %5101 = vmatprep.subr.bf16.mxu0 0
      %5102 = vmatpush1.bf16.msra.mxu0 0
      %5103 = vmatprep.subr.bf16.mxu0 0
      %5104 = vmatpush1.bf16.msra.mxu0 0
      %5105 = vmatprep.subr.bf16.mxu0 0
      %5106 = vmatpush1.bf16.msra.mxu0 0
      %5107 = vmatprep.subr.bf16.mxu0 0
      %5108 = vmatpush1.bf16.msra.mxu0 0
      %5109 = vmatprep.subr.bf16.mxu0 0
      %5110 = vmatpush1.bf16.msra.mxu0 0
      %5111 = vmatprep.subr.bf16.mxu0 0
      %5112 = vmatpush1.bf16.msra.mxu0 0
      %5113 = vmatprep.subr.bf16.mxu0 0
      %5114 = vmatpush1.bf16.msra.mxu0 0
      %5115 = vmatprep.subr.bf16.mxu0 0
      %5116 = vmatpush1.bf16.msra.mxu0 0
      %5117 = vmatprep.mubr.bf16.mxu0 0
      %5118 = vmatmul.mubr.bf16.gmra.mrb[0].mxu0 %v5074
      %v5119 = vpop.f32.mrb[0].mxu0
      %v5120 = vadd.f32 %v5059, %v5119
      %v5121 = vpop.f32.mrb[0].mxu0
      %v5122 = vpop.f32.mrb[0].mxu0
      %v5123 = vadd.f32 %v5059, %v5122
      %v5124 = vpop.f32.mrb[0].mxu0
      %5125 = vmatprep.mubr.bf16.mxu0 0
      %5126 = vmatmul.mubr.bf16.gmra.mrb[0].mxu0 %v5077
      %v5127 = vpop.f32.mrb[0].mxu0
      %v5128 = vadd.f32 %v5059, %v5127
      %v5129 = vpop.f32.mrb[0].mxu0
      %v5130 = vpop.f32.mrb[0].mxu0
      %v5131 = vadd.f32 %v5059, %v5130
      %v5132 = vpop.f32.mrb[0].mxu0
      %5133 = vmatprep.mubr.bf16.mxu0 0
      %5134 = vmatmul.mubr.bf16.gmra.mrb[0].mxu0 %v5080
      %v5135 = vpop.f32.mrb[0].mxu0
      %v5136 = vadd.f32 %v5059, %v5135
      %v5137 = vpop.f32.mrb[0].mxu0
      %v5138 = vpop.f32.mrb[0].mxu0
      %v5139 = vadd.f32 %v5059, %v5138
      %v5140 = vpop.f32.mrb[0].mxu0
      %5141 = vmatprep.mubr.bf16.mxu0 0
      %5142 = vmatmul.mubr.bf16.gmra.mrb[0].mxu0 %v5083
      %v5143 = vpop.f32.mrb[0].mxu0
      %v5144 = vadd.f32 %v5059, %v5143
      %v5145 = vpop.f32.mrb[0].mxu0
      %v5146 = vpop.f32.mrb[0].mxu0
      %v5147 = vadd.f32 %v5059, %v5146
      %v5148 = vpop.f32.mrb[0].mxu0
      %5149 = vdwg.mxu0
      %v5150 = vadd.f32 %v1059, %v5120
      %v5151 = vadd.f32 %v1060, %v5123
      %v5152 = vadd.f32 %v1061, %v5128
      %v5153 = vadd.f32 %v1062, %v5131
      %v5154 = vadd.f32 %v1063, %v5136
      %v5155 = vadd.f32 %v1064, %v5139
      %v5156 = vadd.f32 %v1065, %v5144
      %v5157 = vadd.f32 %v1066, %v5147
      %v5158 = vsel %vm1095, %v5150, 0.0
      %5159 = vadd.xlane.f32.xlu0 %v5158
      %v5160 = vpop.xlane.xlu0 %5159
      %v5161 = vsel %vm1095, %v5151, 0.0
      %5162 = vadd.xlane.f32.xlu0 %v5161
      %v5163 = vpop.xlane.xlu0 %5162
      %v5164 = vsel %vm1095, %v5152, 0.0
      %5165 = vadd.xlane.f32.xlu0 %v5164
      %v5166 = vpop.xlane.xlu0 %5165
      %v5167 = vsel %vm1095, %v5153, 0.0
      %5168 = vadd.xlane.f32.xlu0 %v5167
      %v5169 = vpop.xlane.xlu0 %5168
      %v5170 = vsel %vm1095, %v5154, 0.0
      %5171 = vadd.xlane.f32.xlu0 %v5170
      %v5172 = vpop.xlane.xlu0 %5171
      %v5173 = vsel %vm1095, %v5155, 0.0
      %5174 = vadd.xlane.f32.xlu0 %v5173
      %v5175 = vpop.xlane.xlu0 %5174
      %v5176 = vsel %vm1095, %v5156, 0.0
      %5177 = vadd.xlane.f32.xlu0 %v5176
      %v5178 = vpop.xlane.xlu0 %5177
      %v5179 = vsel %vm1095, %v5157, 0.0
      %5180 = vadd.xlane.f32.xlu0 %v5179
      %v5181 = vpop.xlane.xlu0 %5180
      %v5182 = vmul.f32 %v5160, %v1120
      %v5183 = vmul.f32 %v5163, %v1120
      %v5184 = vmul.f32 %v5166, %v1120
      %v5185 = vmul.f32 %v5169, %v1120
      %v5186 = vmul.f32 %v5172, %v1120
      %v5187 = vmul.f32 %v5175, %v1120
      %v5188 = vmul.f32 %v5178, %v1120
      %v5189 = vmul.f32 %v5181, %v1120
      %v5190 = vsub.f32 %v5150, %v5182
      %v5191 = vsub.f32 %v5151, %v5183
      %v5192 = vsub.f32 %v5152, %v5184
      %v5193 = vsub.f32 %v5153, %v5185
      %v5194 = vsub.f32 %v5154, %v5186
      %v5195 = vsub.f32 %v5155, %v5187
      %v5196 = vsub.f32 %v5156, %v5188
      %v5197 = vsub.f32 %v5157, %v5189
      %v5198 = vmul.f32 %v5190, %v5190
      %v5199 = vmul.f32 %v5191, %v5191
      %v5200 = vmul.f32 %v5192, %v5192
      %v5201 = vmul.f32 %v5193, %v5193
      %v5202 = vmul.f32 %v5194, %v5194
      %v5203 = vmul.f32 %v5195, %v5195
      %v5204 = vmul.f32 %v5196, %v5196
      %v5205 = vmul.f32 %v5197, %v5197
      %v5206 = vsel %vm1095, %v5198, 0.0
      %5207 = vadd.xlane.f32.xlu0 %v5206
      %v5208 = vpop.xlane.xlu0 %5207
      %v5209 = vsel %vm1095, %v5199, 0.0
      %5210 = vadd.xlane.f32.xlu0 %v5209
      %v5211 = vpop.xlane.xlu0 %5210
      %v5212 = vsel %vm1095, %v5200, 0.0
      %5213 = vadd.xlane.f32.xlu0 %v5212
      %v5214 = vpop.xlane.xlu0 %5213
      %v5215 = vsel %vm1095, %v5201, 0.0
      %5216 = vadd.xlane.f32.xlu0 %v5215
      %v5217 = vpop.xlane.xlu0 %5216
      %v5218 = vsel %vm1095, %v5202, 0.0
      %5219 = vadd.xlane.f32.xlu0 %v5218
      %v5220 = vpop.xlane.xlu0 %5219
      %v5221 = vsel %vm1095, %v5203, 0.0
      %5222 = vadd.xlane.f32.xlu0 %v5221
      %v5223 = vpop.xlane.xlu0 %5222
      %v5224 = vsel %vm1095, %v5204, 0.0
      %5225 = vadd.xlane.f32.xlu0 %v5224
      %v5226 = vpop.xlane.xlu0 %5225
      %v5227 = vsel %vm1095, %v5205, 0.0
      %5228 = vadd.xlane.f32.xlu0 %v5227
      %v5229 = vpop.xlane.xlu0 %5228
      %v5230 = vmul.f32 %v5208, %v1120
      %v5231 = vmul.f32 %v5211, %v1120
      %v5232 = vmul.f32 %v5214, %v1120
      %v5233 = vmul.f32 %v5217, %v1120
      %v5234 = vmul.f32 %v5220, %v1120
      %v5235 = vmul.f32 %v5223, %v1120
      %v5236 = vmul.f32 %v5226, %v1120
      %v5237 = vmul.f32 %v5229, %v1120
      %v5238 = vadd.f32 %v5230, 1e-05
      %v5239 = vadd.f32 %v5231, 1e-05
      %v5240 = vadd.f32 %v5232, 1e-05
      %v5241 = vadd.f32 %v5233, 1e-05
      %v5242 = vadd.f32 %v5234, 1e-05
      %v5243 = vadd.f32 %v5235, 1e-05
      %v5244 = vadd.f32 %v5236, 1e-05
      %v5245 = vadd.f32 %v5237, 1e-05
      %v5246 = vrsqrt.pop %v5238
      %v5247 = vrsqrt.pop %v5239
      %v5248 = vrsqrt.pop %v5240
      %v5249 = vrsqrt.pop %v5241
      %v5250 = vrsqrt.pop %v5242
      %v5251 = vrsqrt.pop %v5243
      %v5252 = vrsqrt.pop %v5244
      %v5253 = vrsqrt.pop %v5245
      %v5254 = vmul.f32 %v5190, %v5246
      %v5255 = vmul.f32 %v5191, %v5247
      %v5256 = vmul.f32 %v5192, %v5248
      %v5257 = vmul.f32 %v5193, %v5249
      %v5258 = vmul.f32 %v5194, %v5250
      %v5259 = vmul.f32 %v5195, %v5251
      %v5260 = vmul.f32 %v5196, %v5252
      %v5261 = vmul.f32 %v5197, %v5253
      %v5263 = vlaneseq
      %v5264 = vshrl.u32 %v5263, 7
      %v5265 = vsub.s32 0, %v5264
      %v5266 = vrot.slane %v1089, %v5265
      %v5268 = vmul.f32 %v5254, %v5266
      %v5269 = vmul.f32 %v5255, %v5266
      %v5270 = vmul.f32 %v5256, %v5266
      %v5271 = vmul.f32 %v5257, %v5266
      %v5272 = vmul.f32 %v5258, %v5266
      %v5273 = vmul.f32 %v5259, %v5266
      %v5274 = vmul.f32 %v5260, %v5266
      %v5275 = vmul.f32 %v5261, %v5266
      %v5277 = vlaneseq
      %v5278 = vshrl.u32 %v5277, 7
      %v5279 = vsub.s32 0, %v5278
      %v5280 = vrot.slane %v1090, %v5279
      %v5282 = vadd.f32 %v5268, %v5280
      %v5283 = vadd.f32 %v5269, %v5280
      %v5284 = vadd.f32 %v5270, %v5280
      %v5285 = vadd.f32 %v5271, %v5280
      %v5286 = vadd.f32 %v5272, %v5280
      %v5287 = vadd.f32 %v5273, %v5280
      %v5288 = vadd.f32 %v5274, %v5280
      %v5289 = vadd.f32 %v5275, %v5280
      %v5290 = vpack.c.bf16 %v5283, %v5282
      %v5291 = vpack.c.bf16 %v5285, %v5284
      %v5292 = vpack.c.bf16 %v5287, %v5286
      %v5293 = vpack.c.bf16 %v5289, %v5288
      %v5295 = vlaneseq
      %v5296 = vshrl.u32 %v5295, 7
      %v5297 = vsub.s32 0, %v5296
      %v5298 = vrot.slane %v1093, %v5297
      %v5304 = vunpack.c.l.b16 %v1075
      %v5305 = vunpack.c.l.b16 %v1076
      %v5306 = vunpack.c.l.b16 %v1077
      %v5307 = vunpack.c.l.b16 %v1078
      %v5308 = vpack.c.b16 %v5305, %v5304
      %v5309 = vpack.c.b16 %v5307, %v5306
      %v5313 = vsel %vm1095, %v5290, 0
      %v5316 = vsel %vm1095, %v5291, 0
      %v5319 = vsel %vm1095, %v5292, 0
      %v5322 = vsel %vm1095, %v5293, 0
      %5324 = vmatprep.subr.bf16.mxu0 0
      %5325 = vmatpush1.bf16.msra.mxu0 %v5308
      %5326 = vmatprep.subr.bf16.mxu0 0
      %5327 = vmatpush1.bf16.msra.mxu0 %v5309
      %5328 = vmatprep.subr.bf16.mxu0 0
      %5329 = vmatpush1.bf16.msra.mxu0 0
      %5330 = vmatprep.subr.bf16.mxu0 0
      %5331 = vmatpush1.bf16.msra.mxu0 0
      %5332 = vmatprep.subr.bf16.mxu0 0
      %5333 = vmatpush1.bf16.msra.mxu0 0
      %5334 = vmatprep.subr.bf16.mxu0 0
      %5335 = vmatpush1.bf16.msra.mxu0 0
      %5336 = vmatprep.subr.bf16.mxu0 0
      %5337 = vmatpush1.bf16.msra.mxu0 0
      %5338 = vmatprep.subr.bf16.mxu0 0
      %5339 = vmatpush1.bf16.msra.mxu0 0
      %5340 = vmatprep.subr.bf16.mxu0 0
      %5341 = vmatpush1.bf16.msra.mxu0 0
      %5342 = vmatprep.subr.bf16.mxu0 0
      %5343 = vmatpush1.bf16.msra.mxu0 0
      %5344 = vmatprep.subr.bf16.mxu0 0
      %5345 = vmatpush1.bf16.msra.mxu0 0
      %5346 = vmatprep.subr.bf16.mxu0 0
      %5347 = vmatpush1.bf16.msra.mxu0 0
      %5348 = vmatprep.subr.bf16.mxu0 0
      %5349 = vmatpush1.bf16.msra.mxu0 0
      %5350 = vmatprep.subr.bf16.mxu0 0
      %5351 = vmatpush1.bf16.msra.mxu0 0
      %5352 = vmatprep.subr.bf16.mxu0 0
      %5353 = vmatpush1.bf16.msra.mxu0 0
      %5354 = vmatprep.subr.bf16.mxu0 0
      %5355 = vmatpush1.bf16.msra.mxu0 0
      %5356 = vmatprep.mubr.bf16.mxu0 0
      %5357 = vmatmul.mubr.bf16.gmra.mrb[0].mxu0 %v5313
      %v5358 = vpop.f32.mrb[0].mxu0
      %v5359 = vadd.f32 %v5298, %v5358
      %v5360 = vpop.f32.mrb[0].mxu0
      %v5361 = vpop.f32.mrb[0].mxu0
      %v5362 = vadd.f32 %v5298, %v5361
      %v5363 = vpop.f32.mrb[0].mxu0
      %5364 = vmatprep.mubr.bf16.mxu0 0
      %5365 = vmatmul.mubr.bf16.gmra.mrb[0].mxu0 %v5316
      %v5366 = vpop.f32.mrb[0].mxu0
      %v5367 = vadd.f32 %v5298, %v5366
      %v5368 = vpop.f32.mrb[0].mxu0
      %v5369 = vpop.f32.mrb[0].mxu0
      %v5370 = vadd.f32 %v5298, %v5369
      %v5371 = vpop.f32.mrb[0].mxu0
      %5372 = vmatprep.mubr.bf16.mxu0 0
      %5373 = vmatmul.mubr.bf16.gmra.mrb[0].mxu0 %v5319
      %v5374 = vpop.f32.mrb[0].mxu0
      %v5375 = vadd.f32 %v5298, %v5374
      %v5376 = vpop.f32.mrb[0].mxu0
      %v5377 = vpop.f32.mrb[0].mxu0
      %v5378 = vadd.f32 %v5298, %v5377
      %v5379 = vpop.f32.mrb[0].mxu0
      %5380 = vmatprep.mubr.bf16.mxu0 0
      %5381 = vmatmul.mubr.bf16.gmra.mrb[0].mxu0 %v5322
      %v5382 = vpop.f32.mrb[0].mxu0
      %v5383 = vadd.f32 %v5298, %v5382
      %v5384 = vpop.f32.mrb[0].mxu0
      %v5385 = vpop.f32.mrb[0].mxu0
      %v5386 = vadd.f32 %v5298, %v5385
      %v5387 = vpop.f32.mrb[0].mxu0
      %5388 = vdwg.mxu0
      %v5389 = vmul.f32 %v5359, 0.5
      %v5390 = vmul.f32 %v5362, 0.5
      %v5391 = vmul.f32 %v5367, 0.5
      %v5392 = vmul.f32 %v5370, 0.5
      %v5393 = vmul.f32 %v5375, 0.5
      %v5394 = vmul.f32 %v5378, 0.5
      %v5395 = vmul.f32 %v5383, 0.5
      %v5396 = vmul.f32 %v5386, 0.5
      %v5397 = vmul.f32 %v5359, %v5359
      %v5398 = vmul.f32 %v5362, %v5362
      %v5399 = vmul.f32 %v5367, %v5367
      %v5400 = vmul.f32 %v5370, %v5370
      %v5401 = vmul.f32 %v5375, %v5375
      %v5402 = vmul.f32 %v5378, %v5378
      %v5403 = vmul.f32 %v5383, %v5383
      %v5404 = vmul.f32 %v5386, %v5386
      %v5405 = vmul.f32 %v5397, %v5359
      %v5406 = vmul.f32 %v5398, %v5362
      %v5407 = vmul.f32 %v5399, %v5367
      %v5408 = vmul.f32 %v5400, %v5370
      %v5409 = vmul.f32 %v5401, %v5375
      %v5410 = vmul.f32 %v5402, %v5378
      %v5411 = vmul.f32 %v5403, %v5383
      %v5412 = vmul.f32 %v5404, %v5386
      %v5413 = vmul.f32 %v5405, 0.044715
      %v5414 = vmul.f32 %v5406, 0.044715
      %v5415 = vmul.f32 %v5407, 0.044715
      %v5416 = vmul.f32 %v5408, 0.044715
      %v5417 = vmul.f32 %v5409, 0.044715
      %v5418 = vmul.f32 %v5410, 0.044715
      %v5419 = vmul.f32 %v5411, 0.044715
      %v5420 = vmul.f32 %v5412, 0.044715
      %v5421 = vadd.f32 %v5359, %v5413
      %v5422 = vadd.f32 %v5362, %v5414
      %v5423 = vadd.f32 %v5367, %v5415
      %v5424 = vadd.f32 %v5370, %v5416
      %v5425 = vadd.f32 %v5375, %v5417
      %v5426 = vadd.f32 %v5378, %v5418
      %v5427 = vadd.f32 %v5383, %v5419
      %v5428 = vadd.f32 %v5386, %v5420
      %v5429 = vmul.f32 %v5421, 0.7978846
      %v5430 = vmul.f32 %v5422, 0.7978846
      %v5431 = vmul.f32 %v5423, 0.7978846
      %v5432 = vmul.f32 %v5424, 0.7978846
      %v5433 = vmul.f32 %v5425, 0.7978846
      %v5434 = vmul.f32 %v5426, 0.7978846
      %v5435 = vmul.f32 %v5427, 0.7978846
      %v5436 = vmul.f32 %v5428, 0.7978846
      %v5437 = vtanh.pop %v5429
      %v5438 = vtanh.pop %v5430
      %v5439 = vtanh.pop %v5431
      %v5440 = vtanh.pop %v5432
      %v5441 = vtanh.pop %v5433
      %v5442 = vtanh.pop %v5434
      %v5443 = vtanh.pop %v5435
      %v5444 = vtanh.pop %v5436
      %v5445 = vadd.f32 %v5437, 1.0
      %v5446 = vadd.f32 %v5438, 1.0
      %v5447 = vadd.f32 %v5439, 1.0
      %v5448 = vadd.f32 %v5440, 1.0
      %v5449 = vadd.f32 %v5441, 1.0
      %v5450 = vadd.f32 %v5442, 1.0
      %v5451 = vadd.f32 %v5443, 1.0
      %v5452 = vadd.f32 %v5444, 1.0
      %v5453 = vmul.f32 %v5389, %v5445
      %v5454 = vmul.f32 %v5390, %v5446
      %v5455 = vmul.f32 %v5391, %v5447
      %v5456 = vmul.f32 %v5392, %v5448
      %v5457 = vmul.f32 %v5393, %v5449
      %v5458 = vmul.f32 %v5394, %v5450
      %v5459 = vmul.f32 %v5395, %v5451
      %v5460 = vmul.f32 %v5396, %v5452
      %v5461 = vpack.c.bf16 %v5454, %v5453
      %v5462 = vpack.c.bf16 %v5456, %v5455
      %v5463 = vpack.c.bf16 %v5458, %v5457
      %v5464 = vpack.c.bf16 %v5460, %v5459
      %v5466 = vlaneseq
      %v5467 = vshrl.u32 %v5466, 7
      %v5468 = vsub.s32 0, %v5467
      %v5469 = vrot.slane %v1094, %v5468
      %v5479 = vunpack.c.l.b16 %v1079
      %v5480 = vunpack.c.l.b16 %v1080
      %v5481 = vunpack.c.l.b16 %v1081
      %v5482 = vunpack.c.l.b16 %v1082
      %v5483 = vunpack.c.l.b16 %v1083
      %v5484 = vunpack.c.l.b16 %v1084
      %v5485 = vunpack.c.l.b16 %v1085
      %v5486 = vunpack.c.l.b16 %v1086
      %v5487 = vpack.c.b16 %v5480, %v5479
      %v5488 = vpack.c.b16 %v5482, %v5481
      %v5489 = vpack.c.b16 %v5484, %v5483
      %v5490 = vpack.c.b16 %v5486, %v5485
      %vm5495 = vcmask 523264
      %v5497 = vsel %vm5495, %v5461, 0
      %v5500 = vsel %vm5495, %v5462, 0
      %v5503 = vsel %vm5495, %v5463, 0
      %v5506 = vsel %vm5495, %v5464, 0
      %5508 = vmatprep.subr.bf16.mxu0 0
      %5509 = vmatpush1.bf16.msra.mxu0 %v5487
      %5510 = vmatprep.subr.bf16.mxu0 0
      %5511 = vmatpush1.bf16.msra.mxu0 %v5488
      %5512 = vmatprep.subr.bf16.mxu0 0
      %5513 = vmatpush1.bf16.msra.mxu0 %v5489
      %5514 = vmatprep.subr.bf16.mxu0 0
      %5515 = vmatpush1.bf16.msra.mxu0 %v5490
      %5516 = vmatprep.subr.bf16.mxu0 0
      %5517 = vmatpush1.bf16.msra.mxu0 0
      %5518 = vmatprep.subr.bf16.mxu0 0
      %5519 = vmatpush1.bf16.msra.mxu0 0
      %5520 = vmatprep.subr.bf16.mxu0 0
      %5521 = vmatpush1.bf16.msra.mxu0 0
      %5522 = vmatprep.subr.bf16.mxu0 0
      %5523 = vmatpush1.bf16.msra.mxu0 0
      %5524 = vmatprep.subr.bf16.mxu0 0
      %5525 = vmatpush1.bf16.msra.mxu0 0
      %5526 = vmatprep.subr.bf16.mxu0 0
      %5527 = vmatpush1.bf16.msra.mxu0 0
      %5528 = vmatprep.subr.bf16.mxu0 0
      %5529 = vmatpush1.bf16.msra.mxu0 0
      %5530 = vmatprep.subr.bf16.mxu0 0
      %5531 = vmatpush1.bf16.msra.mxu0 0
      %5532 = vmatprep.subr.bf16.mxu0 0
      %5533 = vmatpush1.bf16.msra.mxu0 0
      %5534 = vmatprep.subr.bf16.mxu0 0
      %5535 = vmatpush1.bf16.msra.mxu0 0
      %5536 = vmatprep.subr.bf16.mxu0 0
      %5537 = vmatpush1.bf16.msra.mxu0 0
      %5538 = vmatprep.subr.bf16.mxu0 0
      %5539 = vmatpush1.bf16.msra.mxu0 0
      %5540 = vmatprep.mubr.bf16.mxu0 0
      %5541 = vmatmul.mubr.bf16.gmra.mrb[0].mxu0 %v5497
      %v5542 = vpop.f32.mrb[0].mxu0
      %v5543 = vadd.f32 %v5469, %v5542
      %v5544 = vpop.f32.mrb[0].mxu0
      %v5545 = vpop.f32.mrb[0].mxu0
      %v5546 = vadd.f32 %v5469, %v5545
      %v5547 = vpop.f32.mrb[0].mxu0
      %5548 = vmatprep.mubr.bf16.mxu0 0
      %5549 = vmatmul.mubr.bf16.gmra.mrb[0].mxu0 %v5500
      %v5550 = vpop.f32.mrb[0].mxu0
      %v5551 = vadd.f32 %v5469, %v5550
      %v5552 = vpop.f32.mrb[0].mxu0
      %v5553 = vpop.f32.mrb[0].mxu0
      %v5554 = vadd.f32 %v5469, %v5553
      %v5555 = vpop.f32.mrb[0].mxu0
      %5556 = vmatprep.mubr.bf16.mxu0 0
      %5557 = vmatmul.mubr.bf16.gmra.mrb[0].mxu0 %v5503
      %v5558 = vpop.f32.mrb[0].mxu0
      %v5559 = vadd.f32 %v5469, %v5558
      %v5560 = vpop.f32.mrb[0].mxu0
      %v5561 = vpop.f32.mrb[0].mxu0
      %v5562 = vadd.f32 %v5469, %v5561
      %v5563 = vpop.f32.mrb[0].mxu0
      %5564 = vmatprep.mubr.bf16.mxu0 0
      %5565 = vmatmul.mubr.bf16.gmra.mrb[0].mxu0 %v5506
      %v5566 = vpop.f32.mrb[0].mxu0
      %v5567 = vadd.f32 %v5469, %v5566
      %v5568 = vpop.f32.mrb[0].mxu0
      %v5569 = vpop.f32.mrb[0].mxu0
      %v5570 = vadd.f32 %v5469, %v5569
      %v5571 = vpop.f32.mrb[0].mxu0
      %5572 = vdwg.mxu0
      %v5573 = vadd.f32 %v5150, %v5543
      %v5574 = vadd.f32 %v5151, %v5546
      %v5575 = vadd.f32 %v5152, %v5551
      %v5576 = vadd.f32 %v5153, %v5554
      %v5577 = vadd.f32 %v5154, %v5559
      %v5578 = vadd.f32 %v5155, %v5562
      %v5579 = vadd.f32 %v5156, %v5567
      %v5580 = vadd.f32 %v5157, %v5570
      %s5581 = scalar_lea.vmem %s11, 16
      %v5582 = vld [vmem:[%s5581] sm:$0xf]
      %v5583 = vld [vmem:[%s5581 + $0x4] sm:$0xf]
      %v5584 = vld [vmem:[%s5581 + $0x8] sm:$0xf]
      %v5585 = vld [vmem:[%s5581 + $0xc] sm:$0xf]
      %s5586 = scalar_lea.vmem %s13, 16
      %v5587 = vld [vmem:[%s5586] sm:$0xf]
      %v5588 = vld [vmem:[%s5586 + $0x4] sm:$0xf]
      %v5589 = vld [vmem:[%s5586 + $0x8] sm:$0xf]
      %v5590 = vld [vmem:[%s5586 + $0xc] sm:$0xf]
      %s5591 = scalar_lea.vmem %s15, 16
      %v5592 = vld [vmem:[%s5591] sm:$0xf]
      %v5593 = vld [vmem:[%s5591 + $0x4] sm:$0xf]
      %v5594 = vld [vmem:[%s5591 + $0x8] sm:$0xf]
      %v5595 = vld [vmem:[%s5591 + $0xc] sm:$0xf]
      %s5596 = scalar_lea.vmem %s17, 32
      %v5597 = vld [vmem:[%s5596] sm:$0xf]
      %v5598 = vld [vmem:[%s5596 + $0x4] sm:$0xf]
      %v5599 = vld [vmem:[%s5596 + $0x8] sm:$0xf]
      %v5600 = vld [vmem:[%s5596 + $0xc] sm:$0xf]
      %v5601 = vld [vmem:[%s5596 + $0x10] sm:$0xf]
      %v5602 = vld [vmem:[%s5596 + $0x14] sm:$0xf]
      %v5603 = vld [vmem:[%s5596 + $0x18] sm:$0xf]
      %v5604 = vld [vmem:[%s5596 + $0x1c] sm:$0xf]
      %s5605 = scalar_lea.vmem %s19, 1
      %v5606 = vld [vmem:[%s5605] sm:$0x1]
      %s5607 = scalar_lea.vmem %s21, 1
      %v5608 = vld [vmem:[%s5607] sm:$0x1]
      %s5609 = scalar_lea.vmem %s23, 1
      %v5610 = vld [vmem:[%s5609] sm:$0x1]
      %s5611 = scalar_lea.vmem %s25, 1
      %v5612 = vld [vmem:[%s5611] sm:$0x1]
      %s5613 = scalar_lea.vmem %s27, 1
      %v5614 = vld [vmem:[%s5613] sm:$0x1]
      %s5615 = scalar_lea.vmem %s29, 1
      %v5616 = vld [vmem:[%s5615] sm:$0x1]
      %s5617 = scalar_lea.vmem %s31, 1
      %v5618 = vld [vmem:[%s5617] sm:$0x1]
      %s5619 = scalar_lea.vmem %s33, 1
      %v5620 = vld [vmem:[%s5619] sm:$0x1]
      %v5621 = vsel %vm1095, %v5573, 0.0
      %5622 = vadd.xlane.f32.xlu0 %v5621
      %v5623 = vpop.xlane.xlu0 %5622
      %v5624 = vsel %vm1095, %v5574, 0.0
      %5625 = vadd.xlane.f32.xlu0 %v5624
      %v5626 = vpop.xlane.xlu0 %5625
      %v5627 = vsel %vm1095, %v5575, 0.0
      %5628 = vadd.xlane.f32.xlu0 %v5627
      %v5629 = vpop.xlane.xlu0 %5628
      %v5630 = vsel %vm1095, %v5576, 0.0
      %5631 = vadd.xlane.f32.xlu0 %v5630
      %v5632 = vpop.xlane.xlu0 %5631
      %v5633 = vsel %vm1095, %v5577, 0.0
      %5634 = vadd.xlane.f32.xlu0 %v5633
      %v5635 = vpop.xlane.xlu0 %5634
      %v5636 = vsel %vm1095, %v5578, 0.0
      %5637 = vadd.xlane.f32.xlu0 %v5636
      %v5638 = vpop.xlane.xlu0 %5637
      %v5639 = vsel %vm1095, %v5579, 0.0
      %5640 = vadd.xlane.f32.xlu0 %v5639
      %v5641 = vpop.xlane.xlu0 %5640
      %v5642 = vsel %vm1095, %v5580, 0.0
      %5643 = vadd.xlane.f32.xlu0 %v5642
      %v5644 = vpop.xlane.xlu0 %5643
      %v5645 = vmul.f32 %v5623, %v1120
      %v5646 = vmul.f32 %v5626, %v1120
      %v5647 = vmul.f32 %v5629, %v1120
      %v5648 = vmul.f32 %v5632, %v1120
      %v5649 = vmul.f32 %v5635, %v1120
      %v5650 = vmul.f32 %v5638, %v1120
      %v5651 = vmul.f32 %v5641, %v1120
      %v5652 = vmul.f32 %v5644, %v1120
      %v5653 = vsub.f32 %v5573, %v5645
      %v5654 = vsub.f32 %v5574, %v5646
      %v5655 = vsub.f32 %v5575, %v5647
      %v5656 = vsub.f32 %v5576, %v5648
      %v5657 = vsub.f32 %v5577, %v5649
      %v5658 = vsub.f32 %v5578, %v5650
      %v5659 = vsub.f32 %v5579, %v5651
      %v5660 = vsub.f32 %v5580, %v5652
      %v5661 = vmul.f32 %v5653, %v5653
      %v5662 = vmul.f32 %v5654, %v5654
      %v5663 = vmul.f32 %v5655, %v5655
      %v5664 = vmul.f32 %v5656, %v5656
      %v5665 = vmul.f32 %v5657, %v5657
      %v5666 = vmul.f32 %v5658, %v5658
      %v5667 = vmul.f32 %v5659, %v5659
      %v5668 = vmul.f32 %v5660, %v5660
      %v5669 = vsel %vm1095, %v5661, 0.0
      %5670 = vadd.xlane.f32.xlu0 %v5669
      %v5671 = vpop.xlane.xlu0 %5670
      %v5672 = vsel %vm1095, %v5662, 0.0
      %5673 = vadd.xlane.f32.xlu0 %v5672
      %v5674 = vpop.xlane.xlu0 %5673
      %v5675 = vsel %vm1095, %v5663, 0.0
      %5676 = vadd.xlane.f32.xlu0 %v5675
      %v5677 = vpop.xlane.xlu0 %5676
      %v5678 = vsel %vm1095, %v5664, 0.0
      %5679 = vadd.xlane.f32.xlu0 %v5678
      %v5680 = vpop.xlane.xlu0 %5679
      %v5681 = vsel %vm1095, %v5665, 0.0
      %5682 = vadd.xlane.f32.xlu0 %v5681
      %v5683 = vpop.xlane.xlu0 %5682
      %v5684 = vsel %vm1095, %v5666, 0.0
      %5685 = vadd.xlane.f32.xlu0 %v5684
      %v5686 = vpop.xlane.xlu0 %5685
      %v5687 = vsel %vm1095, %v5667, 0.0
      %5688 = vadd.xlane.f32.xlu0 %v5687
      %v5689 = vpop.xlane.xlu0 %5688
      %v5690 = vsel %vm1095, %v5668, 0.0
      %5691 = vadd.xlane.f32.xlu0 %v5690
      %v5692 = vpop.xlane.xlu0 %5691
      %v5693 = vmul.f32 %v5671, %v1120
      %v5694 = vmul.f32 %v5674, %v1120
      %v5695 = vmul.f32 %v5677, %v1120
      %v5696 = vmul.f32 %v5680, %v1120
      %v5697 = vmul.f32 %v5683, %v1120
      %v5698 = vmul.f32 %v5686, %v1120
      %v5699 = vmul.f32 %v5689, %v1120
      %v5700 = vmul.f32 %v5692, %v1120
      %v5701 = vadd.f32 %v5693, 1e-05
      %v5702 = vadd.f32 %v5694, 1e-05
      %v5703 = vadd.f32 %v5695, 1e-05
      %v5704 = vadd.f32 %v5696, 1e-05
      %v5705 = vadd.f32 %v5697, 1e-05
      %v5706 = vadd.f32 %v5698, 1e-05
      %v5707 = vadd.f32 %v5699, 1e-05
      %v5708 = vadd.f32 %v5700, 1e-05
      %v5709 = vrsqrt.pop %v5701
      %v5710 = vrsqrt.pop %v5702
      %v5711 = vrsqrt.pop %v5703
      %v5712 = vrsqrt.pop %v5704
      %v5713 = vrsqrt.pop %v5705
      %v5714 = vrsqrt.pop %v5706
      %v5715 = vrsqrt.pop %v5707
      %v5716 = vrsqrt.pop %v5708
      %v5717 = vmul.f32 %v5653, %v5709
      %v5718 = vmul.f32 %v5654, %v5710
      %v5719 = vmul.f32 %v5655, %v5711
      %v5720 = vmul.f32 %v5656, %v5712
      %v5721 = vmul.f32 %v5657, %v5713
      %v5722 = vmul.f32 %v5658, %v5714
      %v5723 = vmul.f32 %v5659, %v5715
      %v5724 = vmul.f32 %v5660, %v5716
      %v5726 = vlaneseq
      %v5727 = vshrl.u32 %v5726, 7
      %v5728 = vsub.s32 0, %v5727
      %v5729 = vrot.slane %v5606, %v5728
      %v5731 = vmul.f32 %v5717, %v5729
      %v5732 = vmul.f32 %v5718, %v5729
      %v5733 = vmul.f32 %v5719, %v5729
      %v5734 = vmul.f32 %v5720, %v5729
      %v5735 = vmul.f32 %v5721, %v5729
      %v5736 = vmul.f32 %v5722, %v5729
      %v5737 = vmul.f32 %v5723, %v5729
      %v5738 = vmul.f32 %v5724, %v5729
      %v5740 = vlaneseq
      %v5741 = vshrl.u32 %v5740, 7
      %v5742 = vsub.s32 0, %v5741
      %v5743 = vrot.slane %v5608, %v5742
      %v5745 = vadd.f32 %v5731, %v5743
      %v5746 = vadd.f32 %v5732, %v5743
      %v5747 = vadd.f32 %v5733, %v5743
      %v5748 = vadd.f32 %v5734, %v5743
      %v5749 = vadd.f32 %v5735, %v5743
      %v5750 = vadd.f32 %v5736, %v5743
      %v5751 = vadd.f32 %v5737, %v5743
      %v5752 = vadd.f32 %v5738, %v5743
      %v5753 = vpack.c.bf16 %v5746, %v5745
      %v5754 = vpack.c.bf16 %v5748, %v5747
      %v5755 = vpack.c.bf16 %v5750, %v5749
      %v5756 = vpack.c.bf16 %v5752, %v5751
      %v5758 = vlaneseq
      %v5759 = vshrl.u32 %v5758, 7
      %v5760 = vsub.s32 0, %v5759
      %v5761 = vrot.slane %v5614, %v5760
      %v5767 = vunpack.c.l.b16 %v5582
      %v5768 = vunpack.c.l.b16 %v5583
      %v5769 = vunpack.c.l.b16 %v5584
      %v5770 = vunpack.c.l.b16 %v5585
      %v5771 = vpack.c.b16 %v5768, %v5767
      %v5772 = vpack.c.b16 %v5770, %v5769
      %v5776 = vsel %vm1095, %v5753, 0
      %v5779 = vsel %vm1095, %v5754, 0
      %v5782 = vsel %vm1095, %v5755, 0
      %v5785 = vsel %vm1095, %v5756, 0
      %5787 = vmatprep.subr.bf16.mxu0 0
      %5788 = vmatpush1.bf16.msra.mxu0 %v5771
      %5789 = vmatprep.subr.bf16.mxu0 0
      %5790 = vmatpush1.bf16.msra.mxu0 %v5772
      %5791 = vmatprep.subr.bf16.mxu0 0
      %5792 = vmatpush1.bf16.msra.mxu0 0
      %5793 = vmatprep.subr.bf16.mxu0 0
      %5794 = vmatpush1.bf16.msra.mxu0 0
      %5795 = vmatprep.subr.bf16.mxu0 0
      %5796 = vmatpush1.bf16.msra.mxu0 0
      %5797 = vmatprep.subr.bf16.mxu0 0
      %5798 = vmatpush1.bf16.msra.mxu0 0
      %5799 = vmatprep.subr.bf16.mxu0 0
      %5800 = vmatpush1.bf16.msra.mxu0 0
      %5801 = vmatprep.subr.bf16.mxu0 0
      %5802 = vmatpush1.bf16.msra.mxu0 0
      %5803 = vmatprep.subr.bf16.mxu0 0
      %5804 = vmatpush1.bf16.msra.mxu0 0
      %5805 = vmatprep.subr.bf16.mxu0 0
      %5806 = vmatpush1.bf16.msra.mxu0 0
      %5807 = vmatprep.subr.bf16.mxu0 0
      %5808 = vmatpush1.bf16.msra.mxu0 0
      %5809 = vmatprep.subr.bf16.mxu0 0
      %5810 = vmatpush1.bf16.msra.mxu0 0
      %5811 = vmatprep.subr.bf16.mxu0 0
      %5812 = vmatpush1.bf16.msra.mxu0 0
      %5813 = vmatprep.subr.bf16.mxu0 0
      %5814 = vmatpush1.bf16.msra.mxu0 0
      %5815 = vmatprep.subr.bf16.mxu0 0
      %5816 = vmatpush1.bf16.msra.mxu0 0
      %5817 = vmatprep.subr.bf16.mxu0 0
      %5818 = vmatpush1.bf16.msra.mxu0 0
      %5819 = vmatprep.mubr.bf16.mxu0 0
      %5820 = vmatmul.mubr.bf16.gmra.mrb[0].mxu0 %v5776
      %v5821 = vpop.f32.mrb[0].mxu0
      %v5822 = vadd.f32 %v5761, %v5821
      %v5823 = vpop.f32.mrb[0].mxu0
      %v5824 = vpop.f32.mrb[0].mxu0
      %v5825 = vadd.f32 %v5761, %v5824
      %v5826 = vpop.f32.mrb[0].mxu0
      %5827 = vmatprep.mubr.bf16.mxu0 0
      %5828 = vmatmul.mubr.bf16.gmra.mrb[0].mxu0 %v5779
      %v5829 = vpop.f32.mrb[0].mxu0
      %v5830 = vadd.f32 %v5761, %v5829
      %v5831 = vpop.f32.mrb[0].mxu0
      %v5832 = vpop.f32.mrb[0].mxu0
      %v5833 = vadd.f32 %v5761, %v5832
      %v5834 = vpop.f32.mrb[0].mxu0
      %5835 = vmatprep.mubr.bf16.mxu0 0
      %5836 = vmatmul.mubr.bf16.gmra.mrb[0].mxu0 %v5782
      %v5837 = vpop.f32.mrb[0].mxu0
      %v5838 = vadd.f32 %v5761, %v5837
      %v5839 = vpop.f32.mrb[0].mxu0
      %v5840 = vpop.f32.mrb[0].mxu0
      %v5841 = vadd.f32 %v5761, %v5840
      %v5842 = vpop.f32.mrb[0].mxu0
      %5843 = vmatprep.mubr.bf16.mxu0 0
      %5844 = vmatmul.mubr.bf16.gmra.mrb[0].mxu0 %v5785
      %v5845 = vpop.f32.mrb[0].mxu0
      %v5846 = vadd.f32 %v5761, %v5845
      %v5847 = vpop.f32.mrb[0].mxu0
      %v5848 = vpop.f32.mrb[0].mxu0
      %v5849 = vadd.f32 %v5761, %v5848
      %v5850 = vpop.f32.mrb[0].mxu0
      %5851 = vdwg.mxu0
      %5860 = vrot.lane.b32.xlu0 %v5822, 120
      %v5861 = vpop.permute.xlu0 %5860
      %5862 = vrot.lane.b32.xlu0 %v5825, 120
      %v5863 = vpop.permute.xlu0 %5862
      %5864 = vrot.lane.b32.xlu0 %v5830, 120
      %v5865 = vpop.permute.xlu0 %5864
      %5866 = vrot.lane.b32.xlu0 %v5833, 120
      %v5867 = vpop.permute.xlu0 %5866
      %5868 = vrot.lane.b32.xlu0 %v5838, 120
      %v5869 = vpop.permute.xlu0 %5868
      %5870 = vrot.lane.b32.xlu0 %v5841, 120
      %v5871 = vpop.permute.xlu0 %5870
      %5872 = vrot.lane.b32.xlu0 %v5846, 120
      %v5873 = vpop.permute.xlu0 %5872
      %5874 = vrot.lane.b32.xlu0 %v5849, 120
      %v5875 = vpop.permute.xlu0 %5874
      %5884 = vrot.lane.b32.xlu0 %v5822, 112
      %v5885 = vpop.permute.xlu0 %5884
      %5886 = vrot.lane.b32.xlu0 %v5825, 112
      %v5887 = vpop.permute.xlu0 %5886
      %5888 = vrot.lane.b32.xlu0 %v5830, 112
      %v5889 = vpop.permute.xlu0 %5888
      %5890 = vrot.lane.b32.xlu0 %v5833, 112
      %v5891 = vpop.permute.xlu0 %5890
      %5892 = vrot.lane.b32.xlu0 %v5838, 112
      %v5893 = vpop.permute.xlu0 %5892
      %5894 = vrot.lane.b32.xlu0 %v5841, 112
      %v5895 = vpop.permute.xlu0 %5894
      %5896 = vrot.lane.b32.xlu0 %v5846, 112
      %v5897 = vpop.permute.xlu0 %5896
      %5898 = vrot.lane.b32.xlu0 %v5849, 112
      %v5899 = vpop.permute.xlu0 %5898
      %5908 = vrot.lane.b32.xlu0 %v5822, 104
      %v5909 = vpop.permute.xlu0 %5908
      %5910 = vrot.lane.b32.xlu0 %v5825, 104
      %v5911 = vpop.permute.xlu0 %5910
      %5912 = vrot.lane.b32.xlu0 %v5830, 104
      %v5913 = vpop.permute.xlu0 %5912
      %5914 = vrot.lane.b32.xlu0 %v5833, 104
      %v5915 = vpop.permute.xlu0 %5914
      %5916 = vrot.lane.b32.xlu0 %v5838, 104
      %v5917 = vpop.permute.xlu0 %5916
      %5918 = vrot.lane.b32.xlu0 %v5841, 104
      %v5919 = vpop.permute.xlu0 %5918
      %5920 = vrot.lane.b32.xlu0 %v5846, 104
      %v5921 = vpop.permute.xlu0 %5920
      %5922 = vrot.lane.b32.xlu0 %v5849, 104
      %v5923 = vpop.permute.xlu0 %5922
      %v5932 = vpack.c.bf16 %v5822, %v5822
      %v5933 = vpack.c.bf16 %v5825, %v5825
      %v5934 = vpack.c.bf16 %v5830, %v5830
      %v5935 = vpack.c.bf16 %v5833, %v5833
      %v5936 = vpack.c.bf16 %v5838, %v5838
      %v5937 = vpack.c.bf16 %v5841, %v5841
      %v5938 = vpack.c.bf16 %v5846, %v5846
      %v5939 = vpack.c.bf16 %v5849, %v5849
      %v5940 = vpack.c.bf16 %v5861, %v5861
      %v5941 = vpack.c.bf16 %v5863, %v5863
      %v5942 = vpack.c.bf16 %v5865, %v5865
      %v5943 = vpack.c.bf16 %v5867, %v5867
      %v5944 = vpack.c.bf16 %v5869, %v5869
      %v5945 = vpack.c.bf16 %v5871, %v5871
      %v5946 = vpack.c.bf16 %v5873, %v5873
      %v5947 = vpack.c.bf16 %v5875, %v5875
      %v5948 = vpack.c.bf16 %v5885, %v5885
      %v5949 = vpack.c.bf16 %v5887, %v5887
      %v5950 = vpack.c.bf16 %v5889, %v5889
      %v5951 = vpack.c.bf16 %v5891, %v5891
      %v5952 = vpack.c.bf16 %v5893, %v5893
      %v5953 = vpack.c.bf16 %v5895, %v5895
      %v5954 = vpack.c.bf16 %v5897, %v5897
      %v5955 = vpack.c.bf16 %v5899, %v5899
      %v5956 = vpack.c.bf16 %v5909, %v5909
      %v5957 = vpack.c.bf16 %v5911, %v5911
      %v5958 = vpack.c.bf16 %v5913, %v5913
      %v5959 = vpack.c.bf16 %v5915, %v5915
      %v5960 = vpack.c.bf16 %v5917, %v5917
      %v5961 = vpack.c.bf16 %v5919, %v5919
      %v5962 = vpack.c.bf16 %v5921, %v5921
      %v5963 = vpack.c.bf16 %v5923, %v5923
      %5965 = vrot.lane.b32.xlu0 %v5932, 96
      %v5966 = vpop.permute.xlu0 %5965
      %v5968 = vsel %vm1443, %v5932, 0
      %v5971 = vsel %vm1443, %v5966, 0
      %5973 = vmatprep.subr.bf16.mxu0 0
      %5974 = vmatpush1.bf16.xpose.msra.mxu0 %v5971
      %5975 = vmatprep.subr.bf16.mxu0 0
      %5976 = vmatpush1.bf16.xpose.msra.mxu0 0
      %5977 = vmatprep.subr.bf16.mxu0 0
      %5978 = vmatpush1.bf16.xpose.msra.mxu0 0
      %5979 = vmatprep.subr.bf16.mxu0 0
      %5980 = vmatpush1.bf16.xpose.msra.mxu0 0
      %5981 = vmatprep.subr.bf16.mxu0 0
      %5982 = vmatpush1.bf16.xpose.msra.mxu0 0
      %5983 = vmatprep.subr.bf16.mxu0 0
      %5984 = vmatpush1.bf16.xpose.msra.mxu0 0
      %5985 = vmatprep.subr.bf16.mxu0 0
      %5986 = vmatpush1.bf16.xpose.msra.mxu0 0
      %5987 = vmatprep.subr.bf16.mxu0 0
      %5988 = vmatpush1.bf16.xpose.msra.mxu0 0
      %5989 = vmatprep.subr.bf16.mxu0 0
      %5990 = vmatpush1.bf16.xpose.msra.mxu0 0
      %5991 = vmatprep.subr.bf16.mxu0 0
      %5992 = vmatpush1.bf16.xpose.msra.mxu0 0
      %5993 = vmatprep.subr.bf16.mxu0 0
      %5994 = vmatpush1.bf16.xpose.msra.mxu0 0
      %5995 = vmatprep.subr.bf16.mxu0 0
      %5996 = vmatpush1.bf16.xpose.msra.mxu0 0
      %5997 = vmatprep.subr.bf16.mxu0 0
      %5998 = vmatpush1.bf16.xpose.msra.mxu0 0
      %5999 = vmatprep.subr.bf16.mxu0 0
      %6000 = vmatpush1.bf16.xpose.msra.mxu0 0
      %6001 = vmatprep.subr.bf16.mxu0 0
      %6002 = vmatpush1.bf16.xpose.msra.mxu0 0
      %6003 = vmatprep.subr.bf16.mxu0 0
      %6004 = vmatpush1.bf16.xpose.msra.mxu0 0
      %6005 = vmatprep.mubr.bf16.mxu0 0
      %6006 = vmatmul.mubr.bf16.gmra.mrb[0].mxu0 %v5968
      %v6007 = vpop.f32.mrb[0].mxu0
      %v6008 = vadd.f32 0.0, %v6007
      %v6009 = vpop.f32.mrb[0].mxu0
      %v6010 = vpop.f32.mrb[0].mxu0
      %v6011 = vpop.f32.mrb[0].mxu0
      %6012 = vdwg.mxu0
      %6014 = vrot.lane.b32.xlu0 %v5933, 96
      %v6015 = vpop.permute.xlu0 %6014
      %v6017 = vsel %vm1443, %v5933, 0
      %v6020 = vsel %vm1443, %v6015, 0
      %6022 = vmatprep.subr.bf16.mxu0 0
      %6023 = vmatpush1.bf16.xpose.msra.mxu0 %v6020
      %6024 = vmatprep.subr.bf16.mxu0 0
      %6025 = vmatpush1.bf16.xpose.msra.mxu0 0
      %6026 = vmatprep.subr.bf16.mxu0 0
      %6027 = vmatpush1.bf16.xpose.msra.mxu0 0
      %6028 = vmatprep.subr.bf16.mxu0 0
      %6029 = vmatpush1.bf16.xpose.msra.mxu0 0
      %6030 = vmatprep.subr.bf16.mxu0 0
      %6031 = vmatpush1.bf16.xpose.msra.mxu0 0
      %6032 = vmatprep.subr.bf16.mxu0 0
      %6033 = vmatpush1.bf16.xpose.msra.mxu0 0
      %6034 = vmatprep.subr.bf16.mxu0 0
      %6035 = vmatpush1.bf16.xpose.msra.mxu0 0
      %6036 = vmatprep.subr.bf16.mxu0 0
      %6037 = vmatpush1.bf16.xpose.msra.mxu0 0
      %6038 = vmatprep.subr.bf16.mxu0 0
      %6039 = vmatpush1.bf16.xpose.msra.mxu0 0
      %6040 = vmatprep.subr.bf16.mxu0 0
      %6041 = vmatpush1.bf16.xpose.msra.mxu0 0
      %6042 = vmatprep.subr.bf16.mxu0 0
      %6043 = vmatpush1.bf16.xpose.msra.mxu0 0
      %6044 = vmatprep.subr.bf16.mxu0 0
      %6045 = vmatpush1.bf16.xpose.msra.mxu0 0
      %6046 = vmatprep.subr.bf16.mxu0 0
      %6047 = vmatpush1.bf16.xpose.msra.mxu0 0
      %6048 = vmatprep.subr.bf16.mxu0 0
      %6049 = vmatpush1.bf16.xpose.msra.mxu0 0
      %6050 = vmatprep.subr.bf16.mxu0 0
      %6051 = vmatpush1.bf16.xpose.msra.mxu0 0
      %6052 = vmatprep.subr.bf16.mxu0 0
      %6053 = vmatpush1.bf16.xpose.msra.mxu0 0
      %6054 = vmatprep.mubr.bf16.mxu0 0
      %6055 = vmatmul.mubr.bf16.gmra.mrb[0].mxu0 %v6017
      %v6056 = vpop.f32.mrb[0].mxu0
      %v6057 = vadd.f32 0.0, %v6056
      %v6058 = vpop.f32.mrb[0].mxu0
      %v6059 = vpop.f32.mrb[0].mxu0
      %v6060 = vpop.f32.mrb[0].mxu0
      %6061 = vdwg.mxu0
      %6063 = vrot.lane.b32.xlu0 %v5934, 96
      %v6064 = vpop.permute.xlu0 %6063
      %v6066 = vsel %vm1443, %v5934, 0
      %v6069 = vsel %vm1443, %v6064, 0
      %6071 = vmatprep.subr.bf16.mxu0 0
      %6072 = vmatpush1.bf16.xpose.msra.mxu0 %v6069
      %6073 = vmatprep.subr.bf16.mxu0 0
      %6074 = vmatpush1.bf16.xpose.msra.mxu0 0
      %6075 = vmatprep.subr.bf16.mxu0 0
      %6076 = vmatpush1.bf16.xpose.msra.mxu0 0
      %6077 = vmatprep.subr.bf16.mxu0 0
      %6078 = vmatpush1.bf16.xpose.msra.mxu0 0
      %6079 = vmatprep.subr.bf16.mxu0 0
      %6080 = vmatpush1.bf16.xpose.msra.mxu0 0
      %6081 = vmatprep.subr.bf16.mxu0 0
      %6082 = vmatpush1.bf16.xpose.msra.mxu0 0
      %6083 = vmatprep.subr.bf16.mxu0 0
      %6084 = vmatpush1.bf16.xpose.msra.mxu0 0
      %6085 = vmatprep.subr.bf16.mxu0 0
      %6086 = vmatpush1.bf16.xpose.msra.mxu0 0
      %6087 = vmatprep.subr.bf16.mxu0 0
      %6088 = vmatpush1.bf16.xpose.msra.mxu0 0
      %6089 = vmatprep.subr.bf16.mxu0 0
      %6090 = vmatpush1.bf16.xpose.msra.mxu0 0
      %6091 = vmatprep.subr.bf16.mxu0 0
      %6092 = vmatpush1.bf16.xpose.msra.mxu0 0
      %6093 = vmatprep.subr.bf16.mxu0 0
      %6094 = vmatpush1.bf16.xpose.msra.mxu0 0
      %6095 = vmatprep.subr.bf16.mxu0 0
      %6096 = vmatpush1.bf16.xpose.msra.mxu0 0
      %6097 = vmatprep.subr.bf16.mxu0 0
      %6098 = vmatpush1.bf16.xpose.msra.mxu0 0
      %6099 = vmatprep.subr.bf16.mxu0 0
      %6100 = vmatpush1.bf16.xpose.msra.mxu0 0
      %6101 = vmatprep.subr.bf16.mxu0 0
      %6102 = vmatpush1.bf16.xpose.msra.mxu0 0
      %6103 = vmatprep.mubr.bf16.mxu0 0
      %6104 = vmatmul.mubr.bf16.gmra.mrb[0].mxu0 %v6066
      %v6105 = vpop.f32.mrb[0].mxu0
      %v6106 = vadd.f32 0.0, %v6105
      %v6107 = vpop.f32.mrb[0].mxu0
      %v6108 = vpop.f32.mrb[0].mxu0
      %v6109 = vpop.f32.mrb[0].mxu0
      %6110 = vdwg.mxu0
      %6112 = vrot.lane.b32.xlu0 %v5935, 96
      %v6113 = vpop.permute.xlu0 %6112
      %v6115 = vsel %vm1443, %v5935, 0
      %v6118 = vsel %vm1443, %v6113, 0
      %6120 = vmatprep.subr.bf16.mxu0 0
      %6121 = vmatpush1.bf16.xpose.msra.mxu0 %v6118
      %6122 = vmatprep.subr.bf16.mxu0 0
      %6123 = vmatpush1.bf16.xpose.msra.mxu0 0
      %6124 = vmatprep.subr.bf16.mxu0 0
      %6125 = vmatpush1.bf16.xpose.msra.mxu0 0
      %6126 = vmatprep.subr.bf16.mxu0 0
      %6127 = vmatpush1.bf16.xpose.msra.mxu0 0
      %6128 = vmatprep.subr.bf16.mxu0 0
      %6129 = vmatpush1.bf16.xpose.msra.mxu0 0
      %6130 = vmatprep.subr.bf16.mxu0 0
      %6131 = vmatpush1.bf16.xpose.msra.mxu0 0
      %6132 = vmatprep.subr.bf16.mxu0 0
      %6133 = vmatpush1.bf16.xpose.msra.mxu0 0
      %6134 = vmatprep.subr.bf16.mxu0 0
      %6135 = vmatpush1.bf16.xpose.msra.mxu0 0
      %6136 = vmatprep.subr.bf16.mxu0 0
      %6137 = vmatpush1.bf16.xpose.msra.mxu0 0
      %6138 = vmatprep.subr.bf16.mxu0 0
      %6139 = vmatpush1.bf16.xpose.msra.mxu0 0
      %6140 = vmatprep.subr.bf16.mxu0 0
      %6141 = vmatpush1.bf16.xpose.msra.mxu0 0
      %6142 = vmatprep.subr.bf16.mxu0 0
      %6143 = vmatpush1.bf16.xpose.msra.mxu0 0
      %6144 = vmatprep.subr.bf16.mxu0 0
      %6145 = vmatpush1.bf16.xpose.msra.mxu0 0
      %6146 = vmatprep.subr.bf16.mxu0 0
      %6147 = vmatpush1.bf16.xpose.msra.mxu0 0
      %6148 = vmatprep.subr.bf16.mxu0 0
      %6149 = vmatpush1.bf16.xpose.msra.mxu0 0
      %6150 = vmatprep.subr.bf16.mxu0 0
      %6151 = vmatpush1.bf16.xpose.msra.mxu0 0
      %6152 = vmatprep.mubr.bf16.mxu0 0
      %6153 = vmatmul.mubr.bf16.gmra.mrb[0].mxu0 %v6115
      %v6154 = vpop.f32.mrb[0].mxu0
      %v6155 = vadd.f32 0.0, %v6154
      %v6156 = vpop.f32.mrb[0].mxu0
      %v6157 = vpop.f32.mrb[0].mxu0
      %v6158 = vpop.f32.mrb[0].mxu0
      %6159 = vdwg.mxu0
      %6161 = vrot.lane.b32.xlu0 %v5936, 96
      %v6162 = vpop.permute.xlu0 %6161
      %v6164 = vsel %vm1443, %v5936, 0
      %v6167 = vsel %vm1443, %v6162, 0
      %6169 = vmatprep.subr.bf16.mxu0 0
      %6170 = vmatpush1.bf16.xpose.msra.mxu0 %v6167
      %6171 = vmatprep.subr.bf16.mxu0 0
      %6172 = vmatpush1.bf16.xpose.msra.mxu0 0
      %6173 = vmatprep.subr.bf16.mxu0 0
      %6174 = vmatpush1.bf16.xpose.msra.mxu0 0
      %6175 = vmatprep.subr.bf16.mxu0 0
      %6176 = vmatpush1.bf16.xpose.msra.mxu0 0
      %6177 = vmatprep.subr.bf16.mxu0 0
      %6178 = vmatpush1.bf16.xpose.msra.mxu0 0
      %6179 = vmatprep.subr.bf16.mxu0 0
      %6180 = vmatpush1.bf16.xpose.msra.mxu0 0
      %6181 = vmatprep.subr.bf16.mxu0 0
      %6182 = vmatpush1.bf16.xpose.msra.mxu0 0
      %6183 = vmatprep.subr.bf16.mxu0 0
      %6184 = vmatpush1.bf16.xpose.msra.mxu0 0
      %6185 = vmatprep.subr.bf16.mxu0 0
      %6186 = vmatpush1.bf16.xpose.msra.mxu0 0
      %6187 = vmatprep.subr.bf16.mxu0 0
      %6188 = vmatpush1.bf16.xpose.msra.mxu0 0
      %6189 = vmatprep.subr.bf16.mxu0 0
      %6190 = vmatpush1.bf16.xpose.msra.mxu0 0
      %6191 = vmatprep.subr.bf16.mxu0 0
      %6192 = vmatpush1.bf16.xpose.msra.mxu0 0
      %6193 = vmatprep.subr.bf16.mxu0 0
      %6194 = vmatpush1.bf16.xpose.msra.mxu0 0
      %6195 = vmatprep.subr.bf16.mxu0 0
      %6196 = vmatpush1.bf16.xpose.msra.mxu0 0
      %6197 = vmatprep.subr.bf16.mxu0 0
      %6198 = vmatpush1.bf16.xpose.msra.mxu0 0
      %6199 = vmatprep.subr.bf16.mxu0 0
      %6200 = vmatpush1.bf16.xpose.msra.mxu0 0
      %6201 = vmatprep.mubr.bf16.mxu0 0
      %6202 = vmatmul.mubr.bf16.gmra.mrb[0].mxu0 %v6164
      %v6203 = vpop.f32.mrb[0].mxu0
      %v6204 = vadd.f32 0.0, %v6203
      %v6205 = vpop.f32.mrb[0].mxu0
      %v6206 = vpop.f32.mrb[0].mxu0
      %v6207 = vpop.f32.mrb[0].mxu0
      %6208 = vdwg.mxu0
      %6210 = vrot.lane.b32.xlu0 %v5937, 96
      %v6211 = vpop.permute.xlu0 %6210
      %v6213 = vsel %vm1443, %v5937, 0
      %v6216 = vsel %vm1443, %v6211, 0
      %6218 = vmatprep.subr.bf16.mxu0 0
      %6219 = vmatpush1.bf16.xpose.msra.mxu0 %v6216
      %6220 = vmatprep.subr.bf16.mxu0 0
      %6221 = vmatpush1.bf16.xpose.msra.mxu0 0
      %6222 = vmatprep.subr.bf16.mxu0 0
      %6223 = vmatpush1.bf16.xpose.msra.mxu0 0
      %6224 = vmatprep.subr.bf16.mxu0 0
      %6225 = vmatpush1.bf16.xpose.msra.mxu0 0
      %6226 = vmatprep.subr.bf16.mxu0 0
      %6227 = vmatpush1.bf16.xpose.msra.mxu0 0
      %6228 = vmatprep.subr.bf16.mxu0 0
      %6229 = vmatpush1.bf16.xpose.msra.mxu0 0
      %6230 = vmatprep.subr.bf16.mxu0 0
      %6231 = vmatpush1.bf16.xpose.msra.mxu0 0
      %6232 = vmatprep.subr.bf16.mxu0 0
      %6233 = vmatpush1.bf16.xpose.msra.mxu0 0
      %6234 = vmatprep.subr.bf16.mxu0 0
      %6235 = vmatpush1.bf16.xpose.msra.mxu0 0
      %6236 = vmatprep.subr.bf16.mxu0 0
      %6237 = vmatpush1.bf16.xpose.msra.mxu0 0
      %6238 = vmatprep.subr.bf16.mxu0 0
      %6239 = vmatpush1.bf16.xpose.msra.mxu0 0
      %6240 = vmatprep.subr.bf16.mxu0 0
      %6241 = vmatpush1.bf16.xpose.msra.mxu0 0
      %6242 = vmatprep.subr.bf16.mxu0 0
      %6243 = vmatpush1.bf16.xpose.msra.mxu0 0
      %6244 = vmatprep.subr.bf16.mxu0 0
      %6245 = vmatpush1.bf16.xpose.msra.mxu0 0
      %6246 = vmatprep.subr.bf16.mxu0 0
      %6247 = vmatpush1.bf16.xpose.msra.mxu0 0
      %6248 = vmatprep.subr.bf16.mxu0 0
      %6249 = vmatpush1.bf16.xpose.msra.mxu0 0
      %6250 = vmatprep.mubr.bf16.mxu0 0
      %6251 = vmatmul.mubr.bf16.gmra.mrb[0].mxu0 %v6213
      %v6252 = vpop.f32.mrb[0].mxu0
      %v6253 = vadd.f32 0.0, %v6252
      %v6254 = vpop.f32.mrb[0].mxu0
      %v6255 = vpop.f32.mrb[0].mxu0
      %v6256 = vpop.f32.mrb[0].mxu0
      %6257 = vdwg.mxu0
      %6259 = vrot.lane.b32.xlu0 %v5938, 96
      %v6260 = vpop.permute.xlu0 %6259
      %v6262 = vsel %vm1443, %v5938, 0
      %v6265 = vsel %vm1443, %v6260, 0
      %6267 = vmatprep.subr.bf16.mxu0 0
      %6268 = vmatpush1.bf16.xpose.msra.mxu0 %v6265
      %6269 = vmatprep.subr.bf16.mxu0 0
      %6270 = vmatpush1.bf16.xpose.msra.mxu0 0
      %6271 = vmatprep.subr.bf16.mxu0 0
      %6272 = vmatpush1.bf16.xpose.msra.mxu0 0
      %6273 = vmatprep.subr.bf16.mxu0 0
      %6274 = vmatpush1.bf16.xpose.msra.mxu0 0
      %6275 = vmatprep.subr.bf16.mxu0 0
      %6276 = vmatpush1.bf16.xpose.msra.mxu0 0
      %6277 = vmatprep.subr.bf16.mxu0 0
      %6278 = vmatpush1.bf16.xpose.msra.mxu0 0
      %6279 = vmatprep.subr.bf16.mxu0 0
      %6280 = vmatpush1.bf16.xpose.msra.mxu0 0
      %6281 = vmatprep.subr.bf16.mxu0 0
      %6282 = vmatpush1.bf16.xpose.msra.mxu0 0
      %6283 = vmatprep.subr.bf16.mxu0 0
      %6284 = vmatpush1.bf16.xpose.msra.mxu0 0
      %6285 = vmatprep.subr.bf16.mxu0 0
      %6286 = vmatpush1.bf16.xpose.msra.mxu0 0
      %6287 = vmatprep.subr.bf16.mxu0 0
      %6288 = vmatpush1.bf16.xpose.msra.mxu0 0
      %6289 = vmatprep.subr.bf16.mxu0 0
      %6290 = vmatpush1.bf16.xpose.msra.mxu0 0
      %6291 = vmatprep.subr.bf16.mxu0 0
      %6292 = vmatpush1.bf16.xpose.msra.mxu0 0
      %6293 = vmatprep.subr.bf16.mxu0 0
      %6294 = vmatpush1.bf16.xpose.msra.mxu0 0
      %6295 = vmatprep.subr.bf16.mxu0 0
      %6296 = vmatpush1.bf16.xpose.msra.mxu0 0
      %6297 = vmatprep.subr.bf16.mxu0 0
      %6298 = vmatpush1.bf16.xpose.msra.mxu0 0
      %6299 = vmatprep.mubr.bf16.mxu0 0
      %6300 = vmatmul.mubr.bf16.gmra.mrb[0].mxu0 %v6262
      %v6301 = vpop.f32.mrb[0].mxu0
      %v6302 = vadd.f32 0.0, %v6301
      %v6303 = vpop.f32.mrb[0].mxu0
      %v6304 = vpop.f32.mrb[0].mxu0
      %v6305 = vpop.f32.mrb[0].mxu0
      %6306 = vdwg.mxu0
      %6308 = vrot.lane.b32.xlu0 %v5939, 96
      %v6309 = vpop.permute.xlu0 %6308
      %v6311 = vsel %vm1443, %v5939, 0
      %v6314 = vsel %vm1443, %v6309, 0
      %6316 = vmatprep.subr.bf16.mxu0 0
      %6317 = vmatpush1.bf16.xpose.msra.mxu0 %v6314
      %6318 = vmatprep.subr.bf16.mxu0 0
      %6319 = vmatpush1.bf16.xpose.msra.mxu0 0
      %6320 = vmatprep.subr.bf16.mxu0 0
      %6321 = vmatpush1.bf16.xpose.msra.mxu0 0
      %6322 = vmatprep.subr.bf16.mxu0 0
      %6323 = vmatpush1.bf16.xpose.msra.mxu0 0
      %6324 = vmatprep.subr.bf16.mxu0 0
      %6325 = vmatpush1.bf16.xpose.msra.mxu0 0
      %6326 = vmatprep.subr.bf16.mxu0 0
      %6327 = vmatpush1.bf16.xpose.msra.mxu0 0
      %6328 = vmatprep.subr.bf16.mxu0 0
      %6329 = vmatpush1.bf16.xpose.msra.mxu0 0
      %6330 = vmatprep.subr.bf16.mxu0 0
      %6331 = vmatpush1.bf16.xpose.msra.mxu0 0
      %6332 = vmatprep.subr.bf16.mxu0 0
      %6333 = vmatpush1.bf16.xpose.msra.mxu0 0
      %6334 = vmatprep.subr.bf16.mxu0 0
      %6335 = vmatpush1.bf16.xpose.msra.mxu0 0
      %6336 = vmatprep.subr.bf16.mxu0 0
      %6337 = vmatpush1.bf16.xpose.msra.mxu0 0
      %6338 = vmatprep.subr.bf16.mxu0 0
      %6339 = vmatpush1.bf16.xpose.msra.mxu0 0
      %6340 = vmatprep.subr.bf16.mxu0 0
      %6341 = vmatpush1.bf16.xpose.msra.mxu0 0
      %6342 = vmatprep.subr.bf16.mxu0 0
      %6343 = vmatpush1.bf16.xpose.msra.mxu0 0
      %6344 = vmatprep.subr.bf16.mxu0 0
      %6345 = vmatpush1.bf16.xpose.msra.mxu0 0
      %6346 = vmatprep.subr.bf16.mxu0 0
      %6347 = vmatpush1.bf16.xpose.msra.mxu0 0
      %6348 = vmatprep.mubr.bf16.mxu0 0
      %6349 = vmatmul.mubr.bf16.gmra.mrb[0].mxu0 %v6311
      %v6350 = vpop.f32.mrb[0].mxu0
      %v6351 = vadd.f32 0.0, %v6350
      %v6352 = vpop.f32.mrb[0].mxu0
      %v6353 = vpop.f32.mrb[0].mxu0
      %v6354 = vpop.f32.mrb[0].mxu0
      %6355 = vdwg.mxu0
      %6357 = vrot.lane.b32.xlu0 %v5940, 96
      %v6358 = vpop.permute.xlu0 %6357
      %v6360 = vsel %vm1443, %v5940, 0
      %v6363 = vsel %vm1443, %v6358, 0
      %6365 = vmatprep.subr.bf16.mxu0 0
      %6366 = vmatpush1.bf16.xpose.msra.mxu0 %v6363
      %6367 = vmatprep.subr.bf16.mxu0 0
      %6368 = vmatpush1.bf16.xpose.msra.mxu0 0
      %6369 = vmatprep.subr.bf16.mxu0 0
      %6370 = vmatpush1.bf16.xpose.msra.mxu0 0
      %6371 = vmatprep.subr.bf16.mxu0 0
      %6372 = vmatpush1.bf16.xpose.msra.mxu0 0
      %6373 = vmatprep.subr.bf16.mxu0 0
      %6374 = vmatpush1.bf16.xpose.msra.mxu0 0
      %6375 = vmatprep.subr.bf16.mxu0 0
      %6376 = vmatpush1.bf16.xpose.msra.mxu0 0
      %6377 = vmatprep.subr.bf16.mxu0 0
      %6378 = vmatpush1.bf16.xpose.msra.mxu0 0
      %6379 = vmatprep.subr.bf16.mxu0 0
      %6380 = vmatpush1.bf16.xpose.msra.mxu0 0
      %6381 = vmatprep.subr.bf16.mxu0 0
      %6382 = vmatpush1.bf16.xpose.msra.mxu0 0
      %6383 = vmatprep.subr.bf16.mxu0 0
      %6384 = vmatpush1.bf16.xpose.msra.mxu0 0
      %6385 = vmatprep.subr.bf16.mxu0 0
      %6386 = vmatpush1.bf16.xpose.msra.mxu0 0
      %6387 = vmatprep.subr.bf16.mxu0 0
      %6388 = vmatpush1.bf16.xpose.msra.mxu0 0
      %6389 = vmatprep.subr.bf16.mxu0 0
      %6390 = vmatpush1.bf16.xpose.msra.mxu0 0
      %6391 = vmatprep.subr.bf16.mxu0 0
      %6392 = vmatpush1.bf16.xpose.msra.mxu0 0
      %6393 = vmatprep.subr.bf16.mxu0 0
      %6394 = vmatpush1.bf16.xpose.msra.mxu0 0
      %6395 = vmatprep.subr.bf16.mxu0 0
      %6396 = vmatpush1.bf16.xpose.msra.mxu0 0
      %6397 = vmatprep.mubr.bf16.mxu0 0
      %6398 = vmatmul.mubr.bf16.gmra.mrb[0].mxu0 %v6360
      %v6399 = vpop.f32.mrb[0].mxu0
      %v6400 = vadd.f32 0.0, %v6399
      %v6401 = vpop.f32.mrb[0].mxu0
      %v6402 = vpop.f32.mrb[0].mxu0
      %v6403 = vpop.f32.mrb[0].mxu0
      %6404 = vdwg.mxu0
      %6406 = vrot.lane.b32.xlu0 %v5941, 96
      %v6407 = vpop.permute.xlu0 %6406
      %v6409 = vsel %vm1443, %v5941, 0
      %v6412 = vsel %vm1443, %v6407, 0
      %6414 = vmatprep.subr.bf16.mxu0 0
      %6415 = vmatpush1.bf16.xpose.msra.mxu0 %v6412
      %6416 = vmatprep.subr.bf16.mxu0 0
      %6417 = vmatpush1.bf16.xpose.msra.mxu0 0
      %6418 = vmatprep.subr.bf16.mxu0 0
      %6419 = vmatpush1.bf16.xpose.msra.mxu0 0
      %6420 = vmatprep.subr.bf16.mxu0 0
      %6421 = vmatpush1.bf16.xpose.msra.mxu0 0
      %6422 = vmatprep.subr.bf16.mxu0 0
      %6423 = vmatpush1.bf16.xpose.msra.mxu0 0
      %6424 = vmatprep.subr.bf16.mxu0 0
      %6425 = vmatpush1.bf16.xpose.msra.mxu0 0
      %6426 = vmatprep.subr.bf16.mxu0 0
      %6427 = vmatpush1.bf16.xpose.msra.mxu0 0
      %6428 = vmatprep.subr.bf16.mxu0 0
      %6429 = vmatpush1.bf16.xpose.msra.mxu0 0
      %6430 = vmatprep.subr.bf16.mxu0 0
      %6431 = vmatpush1.bf16.xpose.msra.mxu0 0
      %6432 = vmatprep.subr.bf16.mxu0 0
      %6433 = vmatpush1.bf16.xpose.msra.mxu0 0
      %6434 = vmatprep.subr.bf16.mxu0 0
      %6435 = vmatpush1.bf16.xpose.msra.mxu0 0
      %6436 = vmatprep.subr.bf16.mxu0 0
      %6437 = vmatpush1.bf16.xpose.msra.mxu0 0
      %6438 = vmatprep.subr.bf16.mxu0 0
      %6439 = vmatpush1.bf16.xpose.msra.mxu0 0
      %6440 = vmatprep.subr.bf16.mxu0 0
      %6441 = vmatpush1.bf16.xpose.msra.mxu0 0
      %6442 = vmatprep.subr.bf16.mxu0 0
      %6443 = vmatpush1.bf16.xpose.msra.mxu0 0
      %6444 = vmatprep.subr.bf16.mxu0 0
      %6445 = vmatpush1.bf16.xpose.msra.mxu0 0
      %6446 = vmatprep.mubr.bf16.mxu0 0
      %6447 = vmatmul.mubr.bf16.gmra.mrb[0].mxu0 %v6409
      %v6448 = vpop.f32.mrb[0].mxu0
      %v6449 = vadd.f32 0.0, %v6448
      %v6450 = vpop.f32.mrb[0].mxu0
      %v6451 = vpop.f32.mrb[0].mxu0
      %v6452 = vpop.f32.mrb[0].mxu0
      %6453 = vdwg.mxu0
      %6455 = vrot.lane.b32.xlu0 %v5942, 96
      %v6456 = vpop.permute.xlu0 %6455
      %v6458 = vsel %vm1443, %v5942, 0
      %v6461 = vsel %vm1443, %v6456, 0
      %6463 = vmatprep.subr.bf16.mxu0 0
      %6464 = vmatpush1.bf16.xpose.msra.mxu0 %v6461
      %6465 = vmatprep.subr.bf16.mxu0 0
      %6466 = vmatpush1.bf16.xpose.msra.mxu0 0
      %6467 = vmatprep.subr.bf16.mxu0 0
      %6468 = vmatpush1.bf16.xpose.msra.mxu0 0
      %6469 = vmatprep.subr.bf16.mxu0 0
      %6470 = vmatpush1.bf16.xpose.msra.mxu0 0
      %6471 = vmatprep.subr.bf16.mxu0 0
      %6472 = vmatpush1.bf16.xpose.msra.mxu0 0
      %6473 = vmatprep.subr.bf16.mxu0 0
      %6474 = vmatpush1.bf16.xpose.msra.mxu0 0
      %6475 = vmatprep.subr.bf16.mxu0 0
      %6476 = vmatpush1.bf16.xpose.msra.mxu0 0
      %6477 = vmatprep.subr.bf16.mxu0 0
      %6478 = vmatpush1.bf16.xpose.msra.mxu0 0
      %6479 = vmatprep.subr.bf16.mxu0 0
      %6480 = vmatpush1.bf16.xpose.msra.mxu0 0
      %6481 = vmatprep.subr.bf16.mxu0 0
      %6482 = vmatpush1.bf16.xpose.msra.mxu0 0
      %6483 = vmatprep.subr.bf16.mxu0 0
      %6484 = vmatpush1.bf16.xpose.msra.mxu0 0
      %6485 = vmatprep.subr.bf16.mxu0 0
      %6486 = vmatpush1.bf16.xpose.msra.mxu0 0
      %6487 = vmatprep.subr.bf16.mxu0 0
      %6488 = vmatpush1.bf16.xpose.msra.mxu0 0
      %6489 = vmatprep.subr.bf16.mxu0 0
      %6490 = vmatpush1.bf16.xpose.msra.mxu0 0
      %6491 = vmatprep.subr.bf16.mxu0 0
      %6492 = vmatpush1.bf16.xpose.msra.mxu0 0
      %6493 = vmatprep.subr.bf16.mxu0 0
      %6494 = vmatpush1.bf16.xpose.msra.mxu0 0
      %6495 = vmatprep.mubr.bf16.mxu0 0
      %6496 = vmatmul.mubr.bf16.gmra.mrb[0].mxu0 %v6458
      %v6497 = vpop.f32.mrb[0].mxu0
      %v6498 = vadd.f32 0.0, %v6497
      %v6499 = vpop.f32.mrb[0].mxu0
      %v6500 = vpop.f32.mrb[0].mxu0
      %v6501 = vpop.f32.mrb[0].mxu0
      %6502 = vdwg.mxu0
      %6504 = vrot.lane.b32.xlu0 %v5943, 96
      %v6505 = vpop.permute.xlu0 %6504
      %v6507 = vsel %vm1443, %v5943, 0
      %v6510 = vsel %vm1443, %v6505, 0
      %6512 = vmatprep.subr.bf16.mxu0 0
      %6513 = vmatpush1.bf16.xpose.msra.mxu0 %v6510
      %6514 = vmatprep.subr.bf16.mxu0 0
      %6515 = vmatpush1.bf16.xpose.msra.mxu0 0
      %6516 = vmatprep.subr.bf16.mxu0 0
      %6517 = vmatpush1.bf16.xpose.msra.mxu0 0
      %6518 = vmatprep.subr.bf16.mxu0 0
      %6519 = vmatpush1.bf16.xpose.msra.mxu0 0
      %6520 = vmatprep.subr.bf16.mxu0 0
      %6521 = vmatpush1.bf16.xpose.msra.mxu0 0
      %6522 = vmatprep.subr.bf16.mxu0 0
      %6523 = vmatpush1.bf16.xpose.msra.mxu0 0
      %6524 = vmatprep.subr.bf16.mxu0 0
      %6525 = vmatpush1.bf16.xpose.msra.mxu0 0
      %6526 = vmatprep.subr.bf16.mxu0 0
      %6527 = vmatpush1.bf16.xpose.msra.mxu0 0
      %6528 = vmatprep.subr.bf16.mxu0 0
      %6529 = vmatpush1.bf16.xpose.msra.mxu0 0
      %6530 = vmatprep.subr.bf16.mxu0 0
      %6531 = vmatpush1.bf16.xpose.msra.mxu0 0
      %6532 = vmatprep.subr.bf16.mxu0 0
      %6533 = vmatpush1.bf16.xpose.msra.mxu0 0
      %6534 = vmatprep.subr.bf16.mxu0 0
      %6535 = vmatpush1.bf16.xpose.msra.mxu0 0
      %6536 = vmatprep.subr.bf16.mxu0 0
      %6537 = vmatpush1.bf16.xpose.msra.mxu0 0
      %6538 = vmatprep.subr.bf16.mxu0 0
      %6539 = vmatpush1.bf16.xpose.msra.mxu0 0
      %6540 = vmatprep.subr.bf16.mxu0 0
      %6541 = vmatpush1.bf16.xpose.msra.mxu0 0
      %6542 = vmatprep.subr.bf16.mxu0 0
      %6543 = vmatpush1.bf16.xpose.msra.mxu0 0
      %6544 = vmatprep.mubr.bf16.mxu0 0
      %6545 = vmatmul.mubr.bf16.gmra.mrb[0].mxu0 %v6507
      %v6546 = vpop.f32.mrb[0].mxu0
      %v6547 = vadd.f32 0.0, %v6546
      %v6548 = vpop.f32.mrb[0].mxu0
      %v6549 = vpop.f32.mrb[0].mxu0
      %v6550 = vpop.f32.mrb[0].mxu0
      %6551 = vdwg.mxu0
      %6553 = vrot.lane.b32.xlu0 %v5944, 96
      %v6554 = vpop.permute.xlu0 %6553
      %v6556 = vsel %vm1443, %v5944, 0
      %v6559 = vsel %vm1443, %v6554, 0
      %6561 = vmatprep.subr.bf16.mxu0 0
      %6562 = vmatpush1.bf16.xpose.msra.mxu0 %v6559
      %6563 = vmatprep.subr.bf16.mxu0 0
      %6564 = vmatpush1.bf16.xpose.msra.mxu0 0
      %6565 = vmatprep.subr.bf16.mxu0 0
      %6566 = vmatpush1.bf16.xpose.msra.mxu0 0
      %6567 = vmatprep.subr.bf16.mxu0 0
      %6568 = vmatpush1.bf16.xpose.msra.mxu0 0
      %6569 = vmatprep.subr.bf16.mxu0 0
      %6570 = vmatpush1.bf16.xpose.msra.mxu0 0
      %6571 = vmatprep.subr.bf16.mxu0 0
      %6572 = vmatpush1.bf16.xpose.msra.mxu0 0
      %6573 = vmatprep.subr.bf16.mxu0 0
      %6574 = vmatpush1.bf16.xpose.msra.mxu0 0
      %6575 = vmatprep.subr.bf16.mxu0 0
      %6576 = vmatpush1.bf16.xpose.msra.mxu0 0
      %6577 = vmatprep.subr.bf16.mxu0 0
      %6578 = vmatpush1.bf16.xpose.msra.mxu0 0
      %6579 = vmatprep.subr.bf16.mxu0 0
      %6580 = vmatpush1.bf16.xpose.msra.mxu0 0
      %6581 = vmatprep.subr.bf16.mxu0 0
      %6582 = vmatpush1.bf16.xpose.msra.mxu0 0
      %6583 = vmatprep.subr.bf16.mxu0 0
      %6584 = vmatpush1.bf16.xpose.msra.mxu0 0
      %6585 = vmatprep.subr.bf16.mxu0 0
      %6586 = vmatpush1.bf16.xpose.msra.mxu0 0
      %6587 = vmatprep.subr.bf16.mxu0 0
      %6588 = vmatpush1.bf16.xpose.msra.mxu0 0
      %6589 = vmatprep.subr.bf16.mxu0 0
      %6590 = vmatpush1.bf16.xpose.msra.mxu0 0
      %6591 = vmatprep.subr.bf16.mxu0 0
      %6592 = vmatpush1.bf16.xpose.msra.mxu0 0
      %6593 = vmatprep.mubr.bf16.mxu0 0
      %6594 = vmatmul.mubr.bf16.gmra.mrb[0].mxu0 %v6556
      %v6595 = vpop.f32.mrb[0].mxu0
      %v6596 = vadd.f32 0.0, %v6595
      %v6597 = vpop.f32.mrb[0].mxu0
      %v6598 = vpop.f32.mrb[0].mxu0
      %v6599 = vpop.f32.mrb[0].mxu0
      %6600 = vdwg.mxu0
      %6602 = vrot.lane.b32.xlu0 %v5945, 96
      %v6603 = vpop.permute.xlu0 %6602
      %v6605 = vsel %vm1443, %v5945, 0
      %v6608 = vsel %vm1443, %v6603, 0
      %6610 = vmatprep.subr.bf16.mxu0 0
      %6611 = vmatpush1.bf16.xpose.msra.mxu0 %v6608
      %6612 = vmatprep.subr.bf16.mxu0 0
      %6613 = vmatpush1.bf16.xpose.msra.mxu0 0
      %6614 = vmatprep.subr.bf16.mxu0 0
      %6615 = vmatpush1.bf16.xpose.msra.mxu0 0
      %6616 = vmatprep.subr.bf16.mxu0 0
      %6617 = vmatpush1.bf16.xpose.msra.mxu0 0
      %6618 = vmatprep.subr.bf16.mxu0 0
      %6619 = vmatpush1.bf16.xpose.msra.mxu0 0
      %6620 = vmatprep.subr.bf16.mxu0 0
      %6621 = vmatpush1.bf16.xpose.msra.mxu0 0
      %6622 = vmatprep.subr.bf16.mxu0 0
      %6623 = vmatpush1.bf16.xpose.msra.mxu0 0
      %6624 = vmatprep.subr.bf16.mxu0 0
      %6625 = vmatpush1.bf16.xpose.msra.mxu0 0
      %6626 = vmatprep.subr.bf16.mxu0 0
      %6627 = vmatpush1.bf16.xpose.msra.mxu0 0
      %6628 = vmatprep.subr.bf16.mxu0 0
      %6629 = vmatpush1.bf16.xpose.msra.mxu0 0
      %6630 = vmatprep.subr.bf16.mxu0 0
      %6631 = vmatpush1.bf16.xpose.msra.mxu0 0
      %6632 = vmatprep.subr.bf16.mxu0 0
      %6633 = vmatpush1.bf16.xpose.msra.mxu0 0
      %6634 = vmatprep.subr.bf16.mxu0 0
      %6635 = vmatpush1.bf16.xpose.msra.mxu0 0
      %6636 = vmatprep.subr.bf16.mxu0 0
      %6637 = vmatpush1.bf16.xpose.msra.mxu0 0
      %6638 = vmatprep.subr.bf16.mxu0 0
      %6639 = vmatpush1.bf16.xpose.msra.mxu0 0
      %6640 = vmatprep.subr.bf16.mxu0 0
      %6641 = vmatpush1.bf16.xpose.msra.mxu0 0
      %6642 = vmatprep.mubr.bf16.mxu0 0
      %6643 = vmatmul.mubr.bf16.gmra.mrb[0].mxu0 %v6605
      %v6644 = vpop.f32.mrb[0].mxu0
      %v6645 = vadd.f32 0.0, %v6644
      %v6646 = vpop.f32.mrb[0].mxu0
      %v6647 = vpop.f32.mrb[0].mxu0
      %v6648 = vpop.f32.mrb[0].mxu0
      %6649 = vdwg.mxu0
      %6651 = vrot.lane.b32.xlu0 %v5946, 96
      %v6652 = vpop.permute.xlu0 %6651
      %v6654 = vsel %vm1443, %v5946, 0
      %v6657 = vsel %vm1443, %v6652, 0
      %6659 = vmatprep.subr.bf16.mxu0 0
      %6660 = vmatpush1.bf16.xpose.msra.mxu0 %v6657
      %6661 = vmatprep.subr.bf16.mxu0 0
      %6662 = vmatpush1.bf16.xpose.msra.mxu0 0
      %6663 = vmatprep.subr.bf16.mxu0 0
      %6664 = vmatpush1.bf16.xpose.msra.mxu0 0
      %6665 = vmatprep.subr.bf16.mxu0 0
      %6666 = vmatpush1.bf16.xpose.msra.mxu0 0
      %6667 = vmatprep.subr.bf16.mxu0 0
      %6668 = vmatpush1.bf16.xpose.msra.mxu0 0
      %6669 = vmatprep.subr.bf16.mxu0 0
      %6670 = vmatpush1.bf16.xpose.msra.mxu0 0
      %6671 = vmatprep.subr.bf16.mxu0 0
      %6672 = vmatpush1.bf16.xpose.msra.mxu0 0
      %6673 = vmatprep.subr.bf16.mxu0 0
      %6674 = vmatpush1.bf16.xpose.msra.mxu0 0
      %6675 = vmatprep.subr.bf16.mxu0 0
      %6676 = vmatpush1.bf16.xpose.msra.mxu0 0
      %6677 = vmatprep.subr.bf16.mxu0 0
      %6678 = vmatpush1.bf16.xpose.msra.mxu0 0
      %6679 = vmatprep.subr.bf16.mxu0 0
      %6680 = vmatpush1.bf16.xpose.msra.mxu0 0
      %6681 = vmatprep.subr.bf16.mxu0 0
      %6682 = vmatpush1.bf16.xpose.msra.mxu0 0
      %6683 = vmatprep.subr.bf16.mxu0 0
      %6684 = vmatpush1.bf16.xpose.msra.mxu0 0
      %6685 = vmatprep.subr.bf16.mxu0 0
      %6686 = vmatpush1.bf16.xpose.msra.mxu0 0
      %6687 = vmatprep.subr.bf16.mxu0 0
      %6688 = vmatpush1.bf16.xpose.msra.mxu0 0
      %6689 = vmatprep.subr.bf16.mxu0 0
      %6690 = vmatpush1.bf16.xpose.msra.mxu0 0
      %6691 = vmatprep.mubr.bf16.mxu0 0
      %6692 = vmatmul.mubr.bf16.gmra.mrb[0].mxu0 %v6654
      %v6693 = vpop.f32.mrb[0].mxu0
      %v6694 = vadd.f32 0.0, %v6693
      %v6695 = vpop.f32.mrb[0].mxu0
      %v6696 = vpop.f32.mrb[0].mxu0
      %v6697 = vpop.f32.mrb[0].mxu0
      %6698 = vdwg.mxu0
      %6700 = vrot.lane.b32.xlu0 %v5947, 96
      %v6701 = vpop.permute.xlu0 %6700
      %v6703 = vsel %vm1443, %v5947, 0
      %v6706 = vsel %vm1443, %v6701, 0
      %6708 = vmatprep.subr.bf16.mxu0 0
      %6709 = vmatpush1.bf16.xpose.msra.mxu0 %v6706
      %6710 = vmatprep.subr.bf16.mxu0 0
      %6711 = vmatpush1.bf16.xpose.msra.mxu0 0
      %6712 = vmatprep.subr.bf16.mxu0 0
      %6713 = vmatpush1.bf16.xpose.msra.mxu0 0
      %6714 = vmatprep.subr.bf16.mxu0 0
      %6715 = vmatpush1.bf16.xpose.msra.mxu0 0
      %6716 = vmatprep.subr.bf16.mxu0 0
      %6717 = vmatpush1.bf16.xpose.msra.mxu0 0
      %6718 = vmatprep.subr.bf16.mxu0 0
      %6719 = vmatpush1.bf16.xpose.msra.mxu0 0
      %6720 = vmatprep.subr.bf16.mxu0 0
      %6721 = vmatpush1.bf16.xpose.msra.mxu0 0
      %6722 = vmatprep.subr.bf16.mxu0 0
      %6723 = vmatpush1.bf16.xpose.msra.mxu0 0
      %6724 = vmatprep.subr.bf16.mxu0 0
      %6725 = vmatpush1.bf16.xpose.msra.mxu0 0
      %6726 = vmatprep.subr.bf16.mxu0 0
      %6727 = vmatpush1.bf16.xpose.msra.mxu0 0
      %6728 = vmatprep.subr.bf16.mxu0 0
      %6729 = vmatpush1.bf16.xpose.msra.mxu0 0
      %6730 = vmatprep.subr.bf16.mxu0 0
      %6731 = vmatpush1.bf16.xpose.msra.mxu0 0
      %6732 = vmatprep.subr.bf16.mxu0 0
      %6733 = vmatpush1.bf16.xpose.msra.mxu0 0
      %6734 = vmatprep.subr.bf16.mxu0 0
      %6735 = vmatpush1.bf16.xpose.msra.mxu0 0
      %6736 = vmatprep.subr.bf16.mxu0 0
      %6737 = vmatpush1.bf16.xpose.msra.mxu0 0
      %6738 = vmatprep.subr.bf16.mxu0 0
      %6739 = vmatpush1.bf16.xpose.msra.mxu0 0
      %6740 = vmatprep.mubr.bf16.mxu0 0
      %6741 = vmatmul.mubr.bf16.gmra.mrb[0].mxu0 %v6703
      %v6742 = vpop.f32.mrb[0].mxu0
      %v6743 = vadd.f32 0.0, %v6742
      %v6744 = vpop.f32.mrb[0].mxu0
      %v6745 = vpop.f32.mrb[0].mxu0
      %v6746 = vpop.f32.mrb[0].mxu0
      %6747 = vdwg.mxu0
      %6749 = vrot.lane.b32.xlu0 %v5948, 96
      %v6750 = vpop.permute.xlu0 %6749
      %v6752 = vsel %vm1443, %v5948, 0
      %v6755 = vsel %vm1443, %v6750, 0
      %6757 = vmatprep.subr.bf16.mxu0 0
      %6758 = vmatpush1.bf16.xpose.msra.mxu0 %v6755
      %6759 = vmatprep.subr.bf16.mxu0 0
      %6760 = vmatpush1.bf16.xpose.msra.mxu0 0
      %6761 = vmatprep.subr.bf16.mxu0 0
      %6762 = vmatpush1.bf16.xpose.msra.mxu0 0
      %6763 = vmatprep.subr.bf16.mxu0 0
      %6764 = vmatpush1.bf16.xpose.msra.mxu0 0
      %6765 = vmatprep.subr.bf16.mxu0 0
      %6766 = vmatpush1.bf16.xpose.msra.mxu0 0
      %6767 = vmatprep.subr.bf16.mxu0 0
      %6768 = vmatpush1.bf16.xpose.msra.mxu0 0
      %6769 = vmatprep.subr.bf16.mxu0 0
      %6770 = vmatpush1.bf16.xpose.msra.mxu0 0
      %6771 = vmatprep.subr.bf16.mxu0 0
      %6772 = vmatpush1.bf16.xpose.msra.mxu0 0
      %6773 = vmatprep.subr.bf16.mxu0 0
      %6774 = vmatpush1.bf16.xpose.msra.mxu0 0
      %6775 = vmatprep.subr.bf16.mxu0 0
      %6776 = vmatpush1.bf16.xpose.msra.mxu0 0
      %6777 = vmatprep.subr.bf16.mxu0 0
      %6778 = vmatpush1.bf16.xpose.msra.mxu0 0
      %6779 = vmatprep.subr.bf16.mxu0 0
      %6780 = vmatpush1.bf16.xpose.msra.mxu0 0
      %6781 = vmatprep.subr.bf16.mxu0 0
      %6782 = vmatpush1.bf16.xpose.msra.mxu0 0
      %6783 = vmatprep.subr.bf16.mxu0 0
      %6784 = vmatpush1.bf16.xpose.msra.mxu0 0
      %6785 = vmatprep.subr.bf16.mxu0 0
      %6786 = vmatpush1.bf16.xpose.msra.mxu0 0
      %6787 = vmatprep.subr.bf16.mxu0 0
      %6788 = vmatpush1.bf16.xpose.msra.mxu0 0
      %6789 = vmatprep.mubr.bf16.mxu0 0
      %6790 = vmatmul.mubr.bf16.gmra.mrb[0].mxu0 %v6752
      %v6791 = vpop.f32.mrb[0].mxu0
      %v6792 = vadd.f32 0.0, %v6791
      %v6793 = vpop.f32.mrb[0].mxu0
      %v6794 = vpop.f32.mrb[0].mxu0
      %v6795 = vpop.f32.mrb[0].mxu0
      %6796 = vdwg.mxu0
      %6798 = vrot.lane.b32.xlu0 %v5949, 96
      %v6799 = vpop.permute.xlu0 %6798
      %v6801 = vsel %vm1443, %v5949, 0
      %v6804 = vsel %vm1443, %v6799, 0
      %6806 = vmatprep.subr.bf16.mxu0 0
      %6807 = vmatpush1.bf16.xpose.msra.mxu0 %v6804
      %6808 = vmatprep.subr.bf16.mxu0 0
      %6809 = vmatpush1.bf16.xpose.msra.mxu0 0
      %6810 = vmatprep.subr.bf16.mxu0 0
      %6811 = vmatpush1.bf16.xpose.msra.mxu0 0
      %6812 = vmatprep.subr.bf16.mxu0 0
      %6813 = vmatpush1.bf16.xpose.msra.mxu0 0
      %6814 = vmatprep.subr.bf16.mxu0 0
      %6815 = vmatpush1.bf16.xpose.msra.mxu0 0
      %6816 = vmatprep.subr.bf16.mxu0 0
      %6817 = vmatpush1.bf16.xpose.msra.mxu0 0
      %6818 = vmatprep.subr.bf16.mxu0 0
      %6819 = vmatpush1.bf16.xpose.msra.mxu0 0
      %6820 = vmatprep.subr.bf16.mxu0 0
      %6821 = vmatpush1.bf16.xpose.msra.mxu0 0
      %6822 = vmatprep.subr.bf16.mxu0 0
      %6823 = vmatpush1.bf16.xpose.msra.mxu0 0
      %6824 = vmatprep.subr.bf16.mxu0 0
      %6825 = vmatpush1.bf16.xpose.msra.mxu0 0
      %6826 = vmatprep.subr.bf16.mxu0 0
      %6827 = vmatpush1.bf16.xpose.msra.mxu0 0
      %6828 = vmatprep.subr.bf16.mxu0 0
      %6829 = vmatpush1.bf16.xpose.msra.mxu0 0
      %6830 = vmatprep.subr.bf16.mxu0 0
      %6831 = vmatpush1.bf16.xpose.msra.mxu0 0
      %6832 = vmatprep.subr.bf16.mxu0 0
      %6833 = vmatpush1.bf16.xpose.msra.mxu0 0
      %6834 = vmatprep.subr.bf16.mxu0 0
      %6835 = vmatpush1.bf16.xpose.msra.mxu0 0
      %6836 = vmatprep.subr.bf16.mxu0 0
      %6837 = vmatpush1.bf16.xpose.msra.mxu0 0
      %6838 = vmatprep.mubr.bf16.mxu0 0
      %6839 = vmatmul.mubr.bf16.gmra.mrb[0].mxu0 %v6801
      %v6840 = vpop.f32.mrb[0].mxu0
      %v6841 = vadd.f32 0.0, %v6840
      %v6842 = vpop.f32.mrb[0].mxu0
      %v6843 = vpop.f32.mrb[0].mxu0
      %v6844 = vpop.f32.mrb[0].mxu0
      %6845 = vdwg.mxu0
      %6847 = vrot.lane.b32.xlu0 %v5950, 96
      %v6848 = vpop.permute.xlu0 %6847
      %v6850 = vsel %vm1443, %v5950, 0
      %v6853 = vsel %vm1443, %v6848, 0
      %6855 = vmatprep.subr.bf16.mxu0 0
      %6856 = vmatpush1.bf16.xpose.msra.mxu0 %v6853
      %6857 = vmatprep.subr.bf16.mxu0 0
      %6858 = vmatpush1.bf16.xpose.msra.mxu0 0
      %6859 = vmatprep.subr.bf16.mxu0 0
      %6860 = vmatpush1.bf16.xpose.msra.mxu0 0
      %6861 = vmatprep.subr.bf16.mxu0 0
      %6862 = vmatpush1.bf16.xpose.msra.mxu0 0
      %6863 = vmatprep.subr.bf16.mxu0 0
      %6864 = vmatpush1.bf16.xpose.msra.mxu0 0
      %6865 = vmatprep.subr.bf16.mxu0 0
      %6866 = vmatpush1.bf16.xpose.msra.mxu0 0
      %6867 = vmatprep.subr.bf16.mxu0 0
      %6868 = vmatpush1.bf16.xpose.msra.mxu0 0
      %6869 = vmatprep.subr.bf16.mxu0 0
      %6870 = vmatpush1.bf16.xpose.msra.mxu0 0
      %6871 = vmatprep.subr.bf16.mxu0 0
      %6872 = vmatpush1.bf16.xpose.msra.mxu0 0
      %6873 = vmatprep.subr.bf16.mxu0 0
      %6874 = vmatpush1.bf16.xpose.msra.mxu0 0
      %6875 = vmatprep.subr.bf16.mxu0 0
      %6876 = vmatpush1.bf16.xpose.msra.mxu0 0
      %6877 = vmatprep.subr.bf16.mxu0 0
      %6878 = vmatpush1.bf16.xpose.msra.mxu0 0
      %6879 = vmatprep.subr.bf16.mxu0 0
      %6880 = vmatpush1.bf16.xpose.msra.mxu0 0
      %6881 = vmatprep.subr.bf16.mxu0 0
      %6882 = vmatpush1.bf16.xpose.msra.mxu0 0
      %6883 = vmatprep.subr.bf16.mxu0 0
      %6884 = vmatpush1.bf16.xpose.msra.mxu0 0
      %6885 = vmatprep.subr.bf16.mxu0 0
      %6886 = vmatpush1.bf16.xpose.msra.mxu0 0
      %6887 = vmatprep.mubr.bf16.mxu0 0
      %6888 = vmatmul.mubr.bf16.gmra.mrb[0].mxu0 %v6850
      %v6889 = vpop.f32.mrb[0].mxu0
      %v6890 = vadd.f32 0.0, %v6889
      %v6891 = vpop.f32.mrb[0].mxu0
      %v6892 = vpop.f32.mrb[0].mxu0
      %v6893 = vpop.f32.mrb[0].mxu0
      %6894 = vdwg.mxu0
      %6896 = vrot.lane.b32.xlu0 %v5951, 96
      %v6897 = vpop.permute.xlu0 %6896
      %v6899 = vsel %vm1443, %v5951, 0
      %v6902 = vsel %vm1443, %v6897, 0
      %6904 = vmatprep.subr.bf16.mxu0 0
      %6905 = vmatpush1.bf16.xpose.msra.mxu0 %v6902
      %6906 = vmatprep.subr.bf16.mxu0 0
      %6907 = vmatpush1.bf16.xpose.msra.mxu0 0
      %6908 = vmatprep.subr.bf16.mxu0 0
      %6909 = vmatpush1.bf16.xpose.msra.mxu0 0
      %6910 = vmatprep.subr.bf16.mxu0 0
      %6911 = vmatpush1.bf16.xpose.msra.mxu0 0
      %6912 = vmatprep.subr.bf16.mxu0 0
      %6913 = vmatpush1.bf16.xpose.msra.mxu0 0
      %6914 = vmatprep.subr.bf16.mxu0 0
      %6915 = vmatpush1.bf16.xpose.msra.mxu0 0
      %6916 = vmatprep.subr.bf16.mxu0 0
      %6917 = vmatpush1.bf16.xpose.msra.mxu0 0
      %6918 = vmatprep.subr.bf16.mxu0 0
      %6919 = vmatpush1.bf16.xpose.msra.mxu0 0
      %6920 = vmatprep.subr.bf16.mxu0 0
      %6921 = vmatpush1.bf16.xpose.msra.mxu0 0
      %6922 = vmatprep.subr.bf16.mxu0 0
      %6923 = vmatpush1.bf16.xpose.msra.mxu0 0
      %6924 = vmatprep.subr.bf16.mxu0 0
      %6925 = vmatpush1.bf16.xpose.msra.mxu0 0
      %6926 = vmatprep.subr.bf16.mxu0 0
      %6927 = vmatpush1.bf16.xpose.msra.mxu0 0
      %6928 = vmatprep.subr.bf16.mxu0 0
      %6929 = vmatpush1.bf16.xpose.msra.mxu0 0
      %6930 = vmatprep.subr.bf16.mxu0 0
      %6931 = vmatpush1.bf16.xpose.msra.mxu0 0
      %6932 = vmatprep.subr.bf16.mxu0 0
      %6933 = vmatpush1.bf16.xpose.msra.mxu0 0
      %6934 = vmatprep.subr.bf16.mxu0 0
      %6935 = vmatpush1.bf16.xpose.msra.mxu0 0
      %6936 = vmatprep.mubr.bf16.mxu0 0
      %6937 = vmatmul.mubr.bf16.gmra.mrb[0].mxu0 %v6899
      %v6938 = vpop.f32.mrb[0].mxu0
      %v6939 = vadd.f32 0.0, %v6938
      %v6940 = vpop.f32.mrb[0].mxu0
      %v6941 = vpop.f32.mrb[0].mxu0
      %v6942 = vpop.f32.mrb[0].mxu0
      %6943 = vdwg.mxu0
      %6945 = vrot.lane.b32.xlu0 %v5952, 96
      %v6946 = vpop.permute.xlu0 %6945
      %v6948 = vsel %vm1443, %v5952, 0
      %v6951 = vsel %vm1443, %v6946, 0
      %6953 = vmatprep.subr.bf16.mxu0 0
      %6954 = vmatpush1.bf16.xpose.msra.mxu0 %v6951
      %6955 = vmatprep.subr.bf16.mxu0 0
      %6956 = vmatpush1.bf16.xpose.msra.mxu0 0
      %6957 = vmatprep.subr.bf16.mxu0 0
      %6958 = vmatpush1.bf16.xpose.msra.mxu0 0
      %6959 = vmatprep.subr.bf16.mxu0 0
      %6960 = vmatpush1.bf16.xpose.msra.mxu0 0
      %6961 = vmatprep.subr.bf16.mxu0 0
      %6962 = vmatpush1.bf16.xpose.msra.mxu0 0
      %6963 = vmatprep.subr.bf16.mxu0 0
      %6964 = vmatpush1.bf16.xpose.msra.mxu0 0
      %6965 = vmatprep.subr.bf16.mxu0 0
      %6966 = vmatpush1.bf16.xpose.msra.mxu0 0
      %6967 = vmatprep.subr.bf16.mxu0 0
      %6968 = vmatpush1.bf16.xpose.msra.mxu0 0
      %6969 = vmatprep.subr.bf16.mxu0 0
      %6970 = vmatpush1.bf16.xpose.msra.mxu0 0
      %6971 = vmatprep.subr.bf16.mxu0 0
      %6972 = vmatpush1.bf16.xpose.msra.mxu0 0
      %6973 = vmatprep.subr.bf16.mxu0 0
      %6974 = vmatpush1.bf16.xpose.msra.mxu0 0
      %6975 = vmatprep.subr.bf16.mxu0 0
      %6976 = vmatpush1.bf16.xpose.msra.mxu0 0
      %6977 = vmatprep.subr.bf16.mxu0 0
      %6978 = vmatpush1.bf16.xpose.msra.mxu0 0
      %6979 = vmatprep.subr.bf16.mxu0 0
      %6980 = vmatpush1.bf16.xpose.msra.mxu0 0
      %6981 = vmatprep.subr.bf16.mxu0 0
      %6982 = vmatpush1.bf16.xpose.msra.mxu0 0
      %6983 = vmatprep.subr.bf16.mxu0 0
      %6984 = vmatpush1.bf16.xpose.msra.mxu0 0
      %6985 = vmatprep.mubr.bf16.mxu0 0
      %6986 = vmatmul.mubr.bf16.gmra.mrb[0].mxu0 %v6948
      %v6987 = vpop.f32.mrb[0].mxu0
      %v6988 = vadd.f32 0.0, %v6987
      %v6989 = vpop.f32.mrb[0].mxu0
      %v6990 = vpop.f32.mrb[0].mxu0
      %v6991 = vpop.f32.mrb[0].mxu0
      %6992 = vdwg.mxu0
      %6994 = vrot.lane.b32.xlu0 %v5953, 96
      %v6995 = vpop.permute.xlu0 %6994
      %v6997 = vsel %vm1443, %v5953, 0
      %v7000 = vsel %vm1443, %v6995, 0
      %7002 = vmatprep.subr.bf16.mxu0 0
      %7003 = vmatpush1.bf16.xpose.msra.mxu0 %v7000
      %7004 = vmatprep.subr.bf16.mxu0 0
      %7005 = vmatpush1.bf16.xpose.msra.mxu0 0
      %7006 = vmatprep.subr.bf16.mxu0 0
      %7007 = vmatpush1.bf16.xpose.msra.mxu0 0
      %7008 = vmatprep.subr.bf16.mxu0 0
      %7009 = vmatpush1.bf16.xpose.msra.mxu0 0
      %7010 = vmatprep.subr.bf16.mxu0 0
      %7011 = vmatpush1.bf16.xpose.msra.mxu0 0
      %7012 = vmatprep.subr.bf16.mxu0 0
      %7013 = vmatpush1.bf16.xpose.msra.mxu0 0
      %7014 = vmatprep.subr.bf16.mxu0 0
      %7015 = vmatpush1.bf16.xpose.msra.mxu0 0
      %7016 = vmatprep.subr.bf16.mxu0 0
      %7017 = vmatpush1.bf16.xpose.msra.mxu0 0
      %7018 = vmatprep.subr.bf16.mxu0 0
      %7019 = vmatpush1.bf16.xpose.msra.mxu0 0
      %7020 = vmatprep.subr.bf16.mxu0 0
      %7021 = vmatpush1.bf16.xpose.msra.mxu0 0
      %7022 = vmatprep.subr.bf16.mxu0 0
      %7023 = vmatpush1.bf16.xpose.msra.mxu0 0
      %7024 = vmatprep.subr.bf16.mxu0 0
      %7025 = vmatpush1.bf16.xpose.msra.mxu0 0
      %7026 = vmatprep.subr.bf16.mxu0 0
      %7027 = vmatpush1.bf16.xpose.msra.mxu0 0
      %7028 = vmatprep.subr.bf16.mxu0 0
      %7029 = vmatpush1.bf16.xpose.msra.mxu0 0
      %7030 = vmatprep.subr.bf16.mxu0 0
      %7031 = vmatpush1.bf16.xpose.msra.mxu0 0
      %7032 = vmatprep.subr.bf16.mxu0 0
      %7033 = vmatpush1.bf16.xpose.msra.mxu0 0
      %7034 = vmatprep.mubr.bf16.mxu0 0
      %7035 = vmatmul.mubr.bf16.gmra.mrb[0].mxu0 %v6997
      %v7036 = vpop.f32.mrb[0].mxu0
      %v7037 = vadd.f32 0.0, %v7036
      %v7038 = vpop.f32.mrb[0].mxu0
      %v7039 = vpop.f32.mrb[0].mxu0
      %v7040 = vpop.f32.mrb[0].mxu0
      %7041 = vdwg.mxu0
      %7043 = vrot.lane.b32.xlu0 %v5954, 96
      %v7044 = vpop.permute.xlu0 %7043
      %v7046 = vsel %vm1443, %v5954, 0
      %v7049 = vsel %vm1443, %v7044, 0
      %7051 = vmatprep.subr.bf16.mxu0 0
      %7052 = vmatpush1.bf16.xpose.msra.mxu0 %v7049
      %7053 = vmatprep.subr.bf16.mxu0 0
      %7054 = vmatpush1.bf16.xpose.msra.mxu0 0
      %7055 = vmatprep.subr.bf16.mxu0 0
      %7056 = vmatpush1.bf16.xpose.msra.mxu0 0
      %7057 = vmatprep.subr.bf16.mxu0 0
      %7058 = vmatpush1.bf16.xpose.msra.mxu0 0
      %7059 = vmatprep.subr.bf16.mxu0 0
      %7060 = vmatpush1.bf16.xpose.msra.mxu0 0
      %7061 = vmatprep.subr.bf16.mxu0 0
      %7062 = vmatpush1.bf16.xpose.msra.mxu0 0
      %7063 = vmatprep.subr.bf16.mxu0 0
      %7064 = vmatpush1.bf16.xpose.msra.mxu0 0
      %7065 = vmatprep.subr.bf16.mxu0 0
      %7066 = vmatpush1.bf16.xpose.msra.mxu0 0
      %7067 = vmatprep.subr.bf16.mxu0 0
      %7068 = vmatpush1.bf16.xpose.msra.mxu0 0
      %7069 = vmatprep.subr.bf16.mxu0 0
      %7070 = vmatpush1.bf16.xpose.msra.mxu0 0
      %7071 = vmatprep.subr.bf16.mxu0 0
      %7072 = vmatpush1.bf16.xpose.msra.mxu0 0
      %7073 = vmatprep.subr.bf16.mxu0 0
      %7074 = vmatpush1.bf16.xpose.msra.mxu0 0
      %7075 = vmatprep.subr.bf16.mxu0 0
      %7076 = vmatpush1.bf16.xpose.msra.mxu0 0
      %7077 = vmatprep.subr.bf16.mxu0 0
      %7078 = vmatpush1.bf16.xpose.msra.mxu0 0
      %7079 = vmatprep.subr.bf16.mxu0 0
      %7080 = vmatpush1.bf16.xpose.msra.mxu0 0
      %7081 = vmatprep.subr.bf16.mxu0 0
      %7082 = vmatpush1.bf16.xpose.msra.mxu0 0
      %7083 = vmatprep.mubr.bf16.mxu0 0
      %7084 = vmatmul.mubr.bf16.gmra.mrb[0].mxu0 %v7046
      %v7085 = vpop.f32.mrb[0].mxu0
      %v7086 = vadd.f32 0.0, %v7085
      %v7087 = vpop.f32.mrb[0].mxu0
      %v7088 = vpop.f32.mrb[0].mxu0
      %v7089 = vpop.f32.mrb[0].mxu0
      %7090 = vdwg.mxu0
      %7092 = vrot.lane.b32.xlu0 %v5955, 96
      %v7093 = vpop.permute.xlu0 %7092
      %v7095 = vsel %vm1443, %v5955, 0
      %v7098 = vsel %vm1443, %v7093, 0
      %7100 = vmatprep.subr.bf16.mxu0 0
      %7101 = vmatpush1.bf16.xpose.msra.mxu0 %v7098
      %7102 = vmatprep.subr.bf16.mxu0 0
      %7103 = vmatpush1.bf16.xpose.msra.mxu0 0
      %7104 = vmatprep.subr.bf16.mxu0 0
      %7105 = vmatpush1.bf16.xpose.msra.mxu0 0
      %7106 = vmatprep.subr.bf16.mxu0 0
      %7107 = vmatpush1.bf16.xpose.msra.mxu0 0
      %7108 = vmatprep.subr.bf16.mxu0 0
      %7109 = vmatpush1.bf16.xpose.msra.mxu0 0
      %7110 = vmatprep.subr.bf16.mxu0 0
      %7111 = vmatpush1.bf16.xpose.msra.mxu0 0
      %7112 = vmatprep.subr.bf16.mxu0 0
      %7113 = vmatpush1.bf16.xpose.msra.mxu0 0
      %7114 = vmatprep.subr.bf16.mxu0 0
      %7115 = vmatpush1.bf16.xpose.msra.mxu0 0
      %7116 = vmatprep.subr.bf16.mxu0 0
      %7117 = vmatpush1.bf16.xpose.msra.mxu0 0
      %7118 = vmatprep.subr.bf16.mxu0 0
      %7119 = vmatpush1.bf16.xpose.msra.mxu0 0
      %7120 = vmatprep.subr.bf16.mxu0 0
      %7121 = vmatpush1.bf16.xpose.msra.mxu0 0
      %7122 = vmatprep.subr.bf16.mxu0 0
      %7123 = vmatpush1.bf16.xpose.msra.mxu0 0
      %7124 = vmatprep.subr.bf16.mxu0 0
      %7125 = vmatpush1.bf16.xpose.msra.mxu0 0
      %7126 = vmatprep.subr.bf16.mxu0 0
      %7127 = vmatpush1.bf16.xpose.msra.mxu0 0
      %7128 = vmatprep.subr.bf16.mxu0 0
      %7129 = vmatpush1.bf16.xpose.msra.mxu0 0
      %7130 = vmatprep.subr.bf16.mxu0 0
      %7131 = vmatpush1.bf16.xpose.msra.mxu0 0
      %7132 = vmatprep.mubr.bf16.mxu0 0
      %7133 = vmatmul.mubr.bf16.gmra.mrb[0].mxu0 %v7095
      %v7134 = vpop.f32.mrb[0].mxu0
      %v7135 = vadd.f32 0.0, %v7134
      %v7136 = vpop.f32.mrb[0].mxu0
      %v7137 = vpop.f32.mrb[0].mxu0
      %v7138 = vpop.f32.mrb[0].mxu0
      %7139 = vdwg.mxu0
      %7141 = vrot.lane.b32.xlu0 %v5956, 96
      %v7142 = vpop.permute.xlu0 %7141
      %v7144 = vsel %vm1443, %v5956, 0
      %v7147 = vsel %vm1443, %v7142, 0
      %7149 = vmatprep.subr.bf16.mxu0 0
      %7150 = vmatpush1.bf16.xpose.msra.mxu0 %v7147
      %7151 = vmatprep.subr.bf16.mxu0 0
      %7152 = vmatpush1.bf16.xpose.msra.mxu0 0
      %7153 = vmatprep.subr.bf16.mxu0 0
      %7154 = vmatpush1.bf16.xpose.msra.mxu0 0
      %7155 = vmatprep.subr.bf16.mxu0 0
      %7156 = vmatpush1.bf16.xpose.msra.mxu0 0
      %7157 = vmatprep.subr.bf16.mxu0 0
      %7158 = vmatpush1.bf16.xpose.msra.mxu0 0
      %7159 = vmatprep.subr.bf16.mxu0 0
      %7160 = vmatpush1.bf16.xpose.msra.mxu0 0
      %7161 = vmatprep.subr.bf16.mxu0 0
      %7162 = vmatpush1.bf16.xpose.msra.mxu0 0
      %7163 = vmatprep.subr.bf16.mxu0 0
      %7164 = vmatpush1.bf16.xpose.msra.mxu0 0
      %7165 = vmatprep.subr.bf16.mxu0 0
      %7166 = vmatpush1.bf16.xpose.msra.mxu0 0
      %7167 = vmatprep.subr.bf16.mxu0 0
      %7168 = vmatpush1.bf16.xpose.msra.mxu0 0
      %7169 = vmatprep.subr.bf16.mxu0 0
      %7170 = vmatpush1.bf16.xpose.msra.mxu0 0
      %7171 = vmatprep.subr.bf16.mxu0 0
      %7172 = vmatpush1.bf16.xpose.msra.mxu0 0
      %7173 = vmatprep.subr.bf16.mxu0 0
      %7174 = vmatpush1.bf16.xpose.msra.mxu0 0
      %7175 = vmatprep.subr.bf16.mxu0 0
      %7176 = vmatpush1.bf16.xpose.msra.mxu0 0
      %7177 = vmatprep.subr.bf16.mxu0 0
      %7178 = vmatpush1.bf16.xpose.msra.mxu0 0
      %7179 = vmatprep.subr.bf16.mxu0 0
      %7180 = vmatpush1.bf16.xpose.msra.mxu0 0
      %7181 = vmatprep.mubr.bf16.mxu0 0
      %7182 = vmatmul.mubr.bf16.gmra.mrb[0].mxu0 %v7144
      %v7183 = vpop.f32.mrb[0].mxu0
      %v7184 = vadd.f32 0.0, %v7183
      %v7185 = vpop.f32.mrb[0].mxu0
      %v7186 = vpop.f32.mrb[0].mxu0
      %v7187 = vpop.f32.mrb[0].mxu0
      %7188 = vdwg.mxu0
      %7190 = vrot.lane.b32.xlu0 %v5957, 96
      %v7191 = vpop.permute.xlu0 %7190
      %v7193 = vsel %vm1443, %v5957, 0
      %v7196 = vsel %vm1443, %v7191, 0
      %7198 = vmatprep.subr.bf16.mxu0 0
      %7199 = vmatpush1.bf16.xpose.msra.mxu0 %v7196
      %7200 = vmatprep.subr.bf16.mxu0 0
      %7201 = vmatpush1.bf16.xpose.msra.mxu0 0
      %7202 = vmatprep.subr.bf16.mxu0 0
      %7203 = vmatpush1.bf16.xpose.msra.mxu0 0
      %7204 = vmatprep.subr.bf16.mxu0 0
      %7205 = vmatpush1.bf16.xpose.msra.mxu0 0
      %7206 = vmatprep.subr.bf16.mxu0 0
      %7207 = vmatpush1.bf16.xpose.msra.mxu0 0
      %7208 = vmatprep.subr.bf16.mxu0 0
      %7209 = vmatpush1.bf16.xpose.msra.mxu0 0
      %7210 = vmatprep.subr.bf16.mxu0 0
      %7211 = vmatpush1.bf16.xpose.msra.mxu0 0
      %7212 = vmatprep.subr.bf16.mxu0 0
      %7213 = vmatpush1.bf16.xpose.msra.mxu0 0
      %7214 = vmatprep.subr.bf16.mxu0 0
      %7215 = vmatpush1.bf16.xpose.msra.mxu0 0
      %7216 = vmatprep.subr.bf16.mxu0 0
      %7217 = vmatpush1.bf16.xpose.msra.mxu0 0
      %7218 = vmatprep.subr.bf16.mxu0 0
      %7219 = vmatpush1.bf16.xpose.msra.mxu0 0
      %7220 = vmatprep.subr.bf16.mxu0 0
      %7221 = vmatpush1.bf16.xpose.msra.mxu0 0
      %7222 = vmatprep.subr.bf16.mxu0 0
      %7223 = vmatpush1.bf16.xpose.msra.mxu0 0
      %7224 = vmatprep.subr.bf16.mxu0 0
      %7225 = vmatpush1.bf16.xpose.msra.mxu0 0
      %7226 = vmatprep.subr.bf16.mxu0 0
      %7227 = vmatpush1.bf16.xpose.msra.mxu0 0
      %7228 = vmatprep.subr.bf16.mxu0 0
      %7229 = vmatpush1.bf16.xpose.msra.mxu0 0
      %7230 = vmatprep.mubr.bf16.mxu0 0
      %7231 = vmatmul.mubr.bf16.gmra.mrb[0].mxu0 %v7193
      %v7232 = vpop.f32.mrb[0].mxu0
      %v7233 = vadd.f32 0.0, %v7232
      %v7234 = vpop.f32.mrb[0].mxu0
      %v7235 = vpop.f32.mrb[0].mxu0
      %v7236 = vpop.f32.mrb[0].mxu0
      %7237 = vdwg.mxu0
      %7239 = vrot.lane.b32.xlu0 %v5958, 96
      %v7240 = vpop.permute.xlu0 %7239
      %v7242 = vsel %vm1443, %v5958, 0
      %v7245 = vsel %vm1443, %v7240, 0
      %7247 = vmatprep.subr.bf16.mxu0 0
      %7248 = vmatpush1.bf16.xpose.msra.mxu0 %v7245
      %7249 = vmatprep.subr.bf16.mxu0 0
      %7250 = vmatpush1.bf16.xpose.msra.mxu0 0
      %7251 = vmatprep.subr.bf16.mxu0 0
      %7252 = vmatpush1.bf16.xpose.msra.mxu0 0
      %7253 = vmatprep.subr.bf16.mxu0 0
      %7254 = vmatpush1.bf16.xpose.msra.mxu0 0
      %7255 = vmatprep.subr.bf16.mxu0 0
      %7256 = vmatpush1.bf16.xpose.msra.mxu0 0
      %7257 = vmatprep.subr.bf16.mxu0 0
      %7258 = vmatpush1.bf16.xpose.msra.mxu0 0
      %7259 = vmatprep.subr.bf16.mxu0 0
      %7260 = vmatpush1.bf16.xpose.msra.mxu0 0
      %7261 = vmatprep.subr.bf16.mxu0 0
      %7262 = vmatpush1.bf16.xpose.msra.mxu0 0
      %7263 = vmatprep.subr.bf16.mxu0 0
      %7264 = vmatpush1.bf16.xpose.msra.mxu0 0
      %7265 = vmatprep.subr.bf16.mxu0 0
      %7266 = vmatpush1.bf16.xpose.msra.mxu0 0
      %7267 = vmatprep.subr.bf16.mxu0 0
      %7268 = vmatpush1.bf16.xpose.msra.mxu0 0
      %7269 = vmatprep.subr.bf16.mxu0 0
      %7270 = vmatpush1.bf16.xpose.msra.mxu0 0
      %7271 = vmatprep.subr.bf16.mxu0 0
      %7272 = vmatpush1.bf16.xpose.msra.mxu0 0
      %7273 = vmatprep.subr.bf16.mxu0 0
      %7274 = vmatpush1.bf16.xpose.msra.mxu0 0
      %7275 = vmatprep.subr.bf16.mxu0 0
      %7276 = vmatpush1.bf16.xpose.msra.mxu0 0
      %7277 = vmatprep.subr.bf16.mxu0 0
      %7278 = vmatpush1.bf16.xpose.msra.mxu0 0
      %7279 = vmatprep.mubr.bf16.mxu0 0
      %7280 = vmatmul.mubr.bf16.gmra.mrb[0].mxu0 %v7242
      %v7281 = vpop.f32.mrb[0].mxu0
      %v7282 = vadd.f32 0.0, %v7281
      %v7283 = vpop.f32.mrb[0].mxu0
      %v7284 = vpop.f32.mrb[0].mxu0
      %v7285 = vpop.f32.mrb[0].mxu0
      %7286 = vdwg.mxu0
      %7288 = vrot.lane.b32.xlu0 %v5959, 96
      %v7289 = vpop.permute.xlu0 %7288
      %v7291 = vsel %vm1443, %v5959, 0
      %v7294 = vsel %vm1443, %v7289, 0
      %7296 = vmatprep.subr.bf16.mxu0 0
      %7297 = vmatpush1.bf16.xpose.msra.mxu0 %v7294
      %7298 = vmatprep.subr.bf16.mxu0 0
      %7299 = vmatpush1.bf16.xpose.msra.mxu0 0
      %7300 = vmatprep.subr.bf16.mxu0 0
      %7301 = vmatpush1.bf16.xpose.msra.mxu0 0
      %7302 = vmatprep.subr.bf16.mxu0 0
      %7303 = vmatpush1.bf16.xpose.msra.mxu0 0
      %7304 = vmatprep.subr.bf16.mxu0 0
      %7305 = vmatpush1.bf16.xpose.msra.mxu0 0
      %7306 = vmatprep.subr.bf16.mxu0 0
      %7307 = vmatpush1.bf16.xpose.msra.mxu0 0
      %7308 = vmatprep.subr.bf16.mxu0 0
      %7309 = vmatpush1.bf16.xpose.msra.mxu0 0
      %7310 = vmatprep.subr.bf16.mxu0 0
      %7311 = vmatpush1.bf16.xpose.msra.mxu0 0
      %7312 = vmatprep.subr.bf16.mxu0 0
      %7313 = vmatpush1.bf16.xpose.msra.mxu0 0
      %7314 = vmatprep.subr.bf16.mxu0 0
      %7315 = vmatpush1.bf16.xpose.msra.mxu0 0
      %7316 = vmatprep.subr.bf16.mxu0 0
      %7317 = vmatpush1.bf16.xpose.msra.mxu0 0
      %7318 = vmatprep.subr.bf16.mxu0 0
      %7319 = vmatpush1.bf16.xpose.msra.mxu0 0
      %7320 = vmatprep.subr.bf16.mxu0 0
      %7321 = vmatpush1.bf16.xpose.msra.mxu0 0
      %7322 = vmatprep.subr.bf16.mxu0 0
      %7323 = vmatpush1.bf16.xpose.msra.mxu0 0
      %7324 = vmatprep.subr.bf16.mxu0 0
      %7325 = vmatpush1.bf16.xpose.msra.mxu0 0
      %7326 = vmatprep.subr.bf16.mxu0 0
      %7327 = vmatpush1.bf16.xpose.msra.mxu0 0
      %7328 = vmatprep.mubr.bf16.mxu0 0
      %7329 = vmatmul.mubr.bf16.gmra.mrb[0].mxu0 %v7291
      %v7330 = vpop.f32.mrb[0].mxu0
      %v7331 = vadd.f32 0.0, %v7330
      %v7332 = vpop.f32.mrb[0].mxu0
      %v7333 = vpop.f32.mrb[0].mxu0
      %v7334 = vpop.f32.mrb[0].mxu0
      %7335 = vdwg.mxu0
      %7337 = vrot.lane.b32.xlu0 %v5960, 96
      %v7338 = vpop.permute.xlu0 %7337
      %v7340 = vsel %vm1443, %v5960, 0
      %v7343 = vsel %vm1443, %v7338, 0
      %7345 = vmatprep.subr.bf16.mxu0 0
      %7346 = vmatpush1.bf16.xpose.msra.mxu0 %v7343
      %7347 = vmatprep.subr.bf16.mxu0 0
      %7348 = vmatpush1.bf16.xpose.msra.mxu0 0
      %7349 = vmatprep.subr.bf16.mxu0 0
      %7350 = vmatpush1.bf16.xpose.msra.mxu0 0
      %7351 = vmatprep.subr.bf16.mxu0 0
      %7352 = vmatpush1.bf16.xpose.msra.mxu0 0
      %7353 = vmatprep.subr.bf16.mxu0 0
      %7354 = vmatpush1.bf16.xpose.msra.mxu0 0
      %7355 = vmatprep.subr.bf16.mxu0 0
      %7356 = vmatpush1.bf16.xpose.msra.mxu0 0
      %7357 = vmatprep.subr.bf16.mxu0 0
      %7358 = vmatpush1.bf16.xpose.msra.mxu0 0
      %7359 = vmatprep.subr.bf16.mxu0 0
      %7360 = vmatpush1.bf16.xpose.msra.mxu0 0
      %7361 = vmatprep.subr.bf16.mxu0 0
      %7362 = vmatpush1.bf16.xpose.msra.mxu0 0
      %7363 = vmatprep.subr.bf16.mxu0 0
      %7364 = vmatpush1.bf16.xpose.msra.mxu0 0
      %7365 = vmatprep.subr.bf16.mxu0 0
      %7366 = vmatpush1.bf16.xpose.msra.mxu0 0
      %7367 = vmatprep.subr.bf16.mxu0 0
      %7368 = vmatpush1.bf16.xpose.msra.mxu0 0
      %7369 = vmatprep.subr.bf16.mxu0 0
      %7370 = vmatpush1.bf16.xpose.msra.mxu0 0
      %7371 = vmatprep.subr.bf16.mxu0 0
      %7372 = vmatpush1.bf16.xpose.msra.mxu0 0
      %7373 = vmatprep.subr.bf16.mxu0 0
      %7374 = vmatpush1.bf16.xpose.msra.mxu0 0
      %7375 = vmatprep.subr.bf16.mxu0 0
      %7376 = vmatpush1.bf16.xpose.msra.mxu0 0
      %7377 = vmatprep.mubr.bf16.mxu0 0
      %7378 = vmatmul.mubr.bf16.gmra.mrb[0].mxu0 %v7340
      %v7379 = vpop.f32.mrb[0].mxu0
      %v7380 = vadd.f32 0.0, %v7379
      %v7381 = vpop.f32.mrb[0].mxu0
      %v7382 = vpop.f32.mrb[0].mxu0
      %v7383 = vpop.f32.mrb[0].mxu0
      %7384 = vdwg.mxu0
      %7386 = vrot.lane.b32.xlu0 %v5961, 96
      %v7387 = vpop.permute.xlu0 %7386
      %v7389 = vsel %vm1443, %v5961, 0
      %v7392 = vsel %vm1443, %v7387, 0
      %7394 = vmatprep.subr.bf16.mxu0 0
      %7395 = vmatpush1.bf16.xpose.msra.mxu0 %v7392
      %7396 = vmatprep.subr.bf16.mxu0 0
      %7397 = vmatpush1.bf16.xpose.msra.mxu0 0
      %7398 = vmatprep.subr.bf16.mxu0 0
      %7399 = vmatpush1.bf16.xpose.msra.mxu0 0
      %7400 = vmatprep.subr.bf16.mxu0 0
      %7401 = vmatpush1.bf16.xpose.msra.mxu0 0
      %7402 = vmatprep.subr.bf16.mxu0 0
      %7403 = vmatpush1.bf16.xpose.msra.mxu0 0
      %7404 = vmatprep.subr.bf16.mxu0 0
      %7405 = vmatpush1.bf16.xpose.msra.mxu0 0
      %7406 = vmatprep.subr.bf16.mxu0 0
      %7407 = vmatpush1.bf16.xpose.msra.mxu0 0
      %7408 = vmatprep.subr.bf16.mxu0 0
      %7409 = vmatpush1.bf16.xpose.msra.mxu0 0
      %7410 = vmatprep.subr.bf16.mxu0 0
      %7411 = vmatpush1.bf16.xpose.msra.mxu0 0
      %7412 = vmatprep.subr.bf16.mxu0 0
      %7413 = vmatpush1.bf16.xpose.msra.mxu0 0
      %7414 = vmatprep.subr.bf16.mxu0 0
      %7415 = vmatpush1.bf16.xpose.msra.mxu0 0
      %7416 = vmatprep.subr.bf16.mxu0 0
      %7417 = vmatpush1.bf16.xpose.msra.mxu0 0
      %7418 = vmatprep.subr.bf16.mxu0 0
      %7419 = vmatpush1.bf16.xpose.msra.mxu0 0
      %7420 = vmatprep.subr.bf16.mxu0 0
      %7421 = vmatpush1.bf16.xpose.msra.mxu0 0
      %7422 = vmatprep.subr.bf16.mxu0 0
      %7423 = vmatpush1.bf16.xpose.msra.mxu0 0
      %7424 = vmatprep.subr.bf16.mxu0 0
      %7425 = vmatpush1.bf16.xpose.msra.mxu0 0
      %7426 = vmatprep.mubr.bf16.mxu0 0
      %7427 = vmatmul.mubr.bf16.gmra.mrb[0].mxu0 %v7389
      %v7428 = vpop.f32.mrb[0].mxu0
      %v7429 = vadd.f32 0.0, %v7428
      %v7430 = vpop.f32.mrb[0].mxu0
      %v7431 = vpop.f32.mrb[0].mxu0
      %v7432 = vpop.f32.mrb[0].mxu0
      %7433 = vdwg.mxu0
      %7435 = vrot.lane.b32.xlu0 %v5962, 96
      %v7436 = vpop.permute.xlu0 %7435
      %v7438 = vsel %vm1443, %v5962, 0
      %v7441 = vsel %vm1443, %v7436, 0
      %7443 = vmatprep.subr.bf16.mxu0 0
      %7444 = vmatpush1.bf16.xpose.msra.mxu0 %v7441
      %7445 = vmatprep.subr.bf16.mxu0 0
      %7446 = vmatpush1.bf16.xpose.msra.mxu0 0
      %7447 = vmatprep.subr.bf16.mxu0 0
      %7448 = vmatpush1.bf16.xpose.msra.mxu0 0
      %7449 = vmatprep.subr.bf16.mxu0 0
      %7450 = vmatpush1.bf16.xpose.msra.mxu0 0
      %7451 = vmatprep.subr.bf16.mxu0 0
      %7452 = vmatpush1.bf16.xpose.msra.mxu0 0
      %7453 = vmatprep.subr.bf16.mxu0 0
      %7454 = vmatpush1.bf16.xpose.msra.mxu0 0
      %7455 = vmatprep.subr.bf16.mxu0 0
      %7456 = vmatpush1.bf16.xpose.msra.mxu0 0
      %7457 = vmatprep.subr.bf16.mxu0 0
      %7458 = vmatpush1.bf16.xpose.msra.mxu0 0
      %7459 = vmatprep.subr.bf16.mxu0 0
      %7460 = vmatpush1.bf16.xpose.msra.mxu0 0
      %7461 = vmatprep.subr.bf16.mxu0 0
      %7462 = vmatpush1.bf16.xpose.msra.mxu0 0
      %7463 = vmatprep.subr.bf16.mxu0 0
      %7464 = vmatpush1.bf16.xpose.msra.mxu0 0
      %7465 = vmatprep.subr.bf16.mxu0 0
      %7466 = vmatpush1.bf16.xpose.msra.mxu0 0
      %7467 = vmatprep.subr.bf16.mxu0 0
      %7468 = vmatpush1.bf16.xpose.msra.mxu0 0
      %7469 = vmatprep.subr.bf16.mxu0 0
      %7470 = vmatpush1.bf16.xpose.msra.mxu0 0
      %7471 = vmatprep.subr.bf16.mxu0 0
      %7472 = vmatpush1.bf16.xpose.msra.mxu0 0
      %7473 = vmatprep.subr.bf16.mxu0 0
      %7474 = vmatpush1.bf16.xpose.msra.mxu0 0
      %7475 = vmatprep.mubr.bf16.mxu0 0
      %7476 = vmatmul.mubr.bf16.gmra.mrb[0].mxu0 %v7438
      %v7477 = vpop.f32.mrb[0].mxu0
      %v7478 = vadd.f32 0.0, %v7477
      %v7479 = vpop.f32.mrb[0].mxu0
      %v7480 = vpop.f32.mrb[0].mxu0
      %v7481 = vpop.f32.mrb[0].mxu0
      %7482 = vdwg.mxu0
      %7484 = vrot.lane.b32.xlu0 %v5963, 96
      %v7485 = vpop.permute.xlu0 %7484
      %v7487 = vsel %vm1443, %v5963, 0
      %v7490 = vsel %vm1443, %v7485, 0
      %7492 = vmatprep.subr.bf16.mxu0 0
      %7493 = vmatpush1.bf16.xpose.msra.mxu0 %v7490
      %7494 = vmatprep.subr.bf16.mxu0 0
      %7495 = vmatpush1.bf16.xpose.msra.mxu0 0
      %7496 = vmatprep.subr.bf16.mxu0 0
      %7497 = vmatpush1.bf16.xpose.msra.mxu0 0
      %7498 = vmatprep.subr.bf16.mxu0 0
      %7499 = vmatpush1.bf16.xpose.msra.mxu0 0
      %7500 = vmatprep.subr.bf16.mxu0 0
      %7501 = vmatpush1.bf16.xpose.msra.mxu0 0
      %7502 = vmatprep.subr.bf16.mxu0 0
      %7503 = vmatpush1.bf16.xpose.msra.mxu0 0
      %7504 = vmatprep.subr.bf16.mxu0 0
      %7505 = vmatpush1.bf16.xpose.msra.mxu0 0
      %7506 = vmatprep.subr.bf16.mxu0 0
      %7507 = vmatpush1.bf16.xpose.msra.mxu0 0
      %7508 = vmatprep.subr.bf16.mxu0 0
      %7509 = vmatpush1.bf16.xpose.msra.mxu0 0
      %7510 = vmatprep.subr.bf16.mxu0 0
      %7511 = vmatpush1.bf16.xpose.msra.mxu0 0
      %7512 = vmatprep.subr.bf16.mxu0 0
      %7513 = vmatpush1.bf16.xpose.msra.mxu0 0
      %7514 = vmatprep.subr.bf16.mxu0 0
      %7515 = vmatpush1.bf16.xpose.msra.mxu0 0
      %7516 = vmatprep.subr.bf16.mxu0 0
      %7517 = vmatpush1.bf16.xpose.msra.mxu0 0
      %7518 = vmatprep.subr.bf16.mxu0 0
      %7519 = vmatpush1.bf16.xpose.msra.mxu0 0
      %7520 = vmatprep.subr.bf16.mxu0 0
      %7521 = vmatpush1.bf16.xpose.msra.mxu0 0
      %7522 = vmatprep.subr.bf16.mxu0 0
      %7523 = vmatpush1.bf16.xpose.msra.mxu0 0
      %7524 = vmatprep.mubr.bf16.mxu0 0
      %7525 = vmatmul.mubr.bf16.gmra.mrb[0].mxu0 %v7487
      %v7526 = vpop.f32.mrb[0].mxu0
      %v7527 = vadd.f32 0.0, %v7526
      %v7528 = vpop.f32.mrb[0].mxu0
      %v7529 = vpop.f32.mrb[0].mxu0
      %v7530 = vpop.f32.mrb[0].mxu0
      %7531 = vdwg.mxu0
      %v7532 = vsel %vm1443, %v6008, -inf
      %7533 = vmax.xlane.f32.xlu0 %v7532
      %v7534 = vpop.xlane.xlu0 %7533
      %v7535 = vsel %vm1443, %v6057, -inf
      %7536 = vmax.xlane.f32.xlu0 %v7535
      %v7537 = vpop.xlane.xlu0 %7536
      %v7538 = vsel %vm1443, %v6106, -inf
      %7539 = vmax.xlane.f32.xlu0 %v7538
      %v7540 = vpop.xlane.xlu0 %7539
      %v7541 = vsel %vm1443, %v6155, -inf
      %7542 = vmax.xlane.f32.xlu0 %v7541
      %v7543 = vpop.xlane.xlu0 %7542
      %v7544 = vsel %vm1443, %v6204, -inf
      %7545 = vmax.xlane.f32.xlu0 %v7544
      %v7546 = vpop.xlane.xlu0 %7545
      %v7547 = vsel %vm1443, %v6253, -inf
      %7548 = vmax.xlane.f32.xlu0 %v7547
      %v7549 = vpop.xlane.xlu0 %7548
      %v7550 = vsel %vm1443, %v6302, -inf
      %7551 = vmax.xlane.f32.xlu0 %v7550
      %v7552 = vpop.xlane.xlu0 %7551
      %v7553 = vsel %vm1443, %v6351, -inf
      %7554 = vmax.xlane.f32.xlu0 %v7553
      %v7555 = vpop.xlane.xlu0 %7554
      %v7556 = vsel %vm1443, %v6400, -inf
      %7557 = vmax.xlane.f32.xlu0 %v7556
      %v7558 = vpop.xlane.xlu0 %7557
      %v7559 = vsel %vm1443, %v6449, -inf
      %7560 = vmax.xlane.f32.xlu0 %v7559
      %v7561 = vpop.xlane.xlu0 %7560
      %v7562 = vsel %vm1443, %v6498, -inf
      %7563 = vmax.xlane.f32.xlu0 %v7562
      %v7564 = vpop.xlane.xlu0 %7563
      %v7565 = vsel %vm1443, %v6547, -inf
      %7566 = vmax.xlane.f32.xlu0 %v7565
      %v7567 = vpop.xlane.xlu0 %7566
      %v7568 = vsel %vm1443, %v6596, -inf
      %7569 = vmax.xlane.f32.xlu0 %v7568
      %v7570 = vpop.xlane.xlu0 %7569
      %v7571 = vsel %vm1443, %v6645, -inf
      %7572 = vmax.xlane.f32.xlu0 %v7571
      %v7573 = vpop.xlane.xlu0 %7572
      %v7574 = vsel %vm1443, %v6694, -inf
      %7575 = vmax.xlane.f32.xlu0 %v7574
      %v7576 = vpop.xlane.xlu0 %7575
      %v7577 = vsel %vm1443, %v6743, -inf
      %7578 = vmax.xlane.f32.xlu0 %v7577
      %v7579 = vpop.xlane.xlu0 %7578
      %v7580 = vsel %vm1443, %v6792, -inf
      %7581 = vmax.xlane.f32.xlu0 %v7580
      %v7582 = vpop.xlane.xlu0 %7581
      %v7583 = vsel %vm1443, %v6841, -inf
      %7584 = vmax.xlane.f32.xlu0 %v7583
      %v7585 = vpop.xlane.xlu0 %7584
      %v7586 = vsel %vm1443, %v6890, -inf
      %7587 = vmax.xlane.f32.xlu0 %v7586
      %v7588 = vpop.xlane.xlu0 %7587
      %v7589 = vsel %vm1443, %v6939, -inf
      %7590 = vmax.xlane.f32.xlu0 %v7589
      %v7591 = vpop.xlane.xlu0 %7590
      %v7592 = vsel %vm1443, %v6988, -inf
      %7593 = vmax.xlane.f32.xlu0 %v7592
      %v7594 = vpop.xlane.xlu0 %7593
      %v7595 = vsel %vm1443, %v7037, -inf
      %7596 = vmax.xlane.f32.xlu0 %v7595
      %v7597 = vpop.xlane.xlu0 %7596
      %v7598 = vsel %vm1443, %v7086, -inf
      %7599 = vmax.xlane.f32.xlu0 %v7598
      %v7600 = vpop.xlane.xlu0 %7599
      %v7601 = vsel %vm1443, %v7135, -inf
      %7602 = vmax.xlane.f32.xlu0 %v7601
      %v7603 = vpop.xlane.xlu0 %7602
      %v7604 = vsel %vm1443, %v7184, -inf
      %7605 = vmax.xlane.f32.xlu0 %v7604
      %v7606 = vpop.xlane.xlu0 %7605
      %v7607 = vsel %vm1443, %v7233, -inf
      %7608 = vmax.xlane.f32.xlu0 %v7607
      %v7609 = vpop.xlane.xlu0 %7608
      %v7610 = vsel %vm1443, %v7282, -inf
      %7611 = vmax.xlane.f32.xlu0 %v7610
      %v7612 = vpop.xlane.xlu0 %7611
      %v7613 = vsel %vm1443, %v7331, -inf
      %7614 = vmax.xlane.f32.xlu0 %v7613
      %v7615 = vpop.xlane.xlu0 %7614
      %v7616 = vsel %vm1443, %v7380, -inf
      %7617 = vmax.xlane.f32.xlu0 %v7616
      %v7618 = vpop.xlane.xlu0 %7617
      %v7619 = vsel %vm1443, %v7429, -inf
      %7620 = vmax.xlane.f32.xlu0 %v7619
      %v7621 = vpop.xlane.xlu0 %7620
      %v7622 = vsel %vm1443, %v7478, -inf
      %7623 = vmax.xlane.f32.xlu0 %v7622
      %v7624 = vpop.xlane.xlu0 %7623
      %v7625 = vsel %vm1443, %v7527, -inf
      %7626 = vmax.xlane.f32.xlu0 %v7625
      %v7627 = vpop.xlane.xlu0 %7626
      %v7628 = vsub.f32 %v6008, %v7534
      %v7629 = vsub.f32 %v6057, %v7537
      %v7630 = vsub.f32 %v6106, %v7540
      %v7631 = vsub.f32 %v6155, %v7543
      %v7632 = vsub.f32 %v6204, %v7546
      %v7633 = vsub.f32 %v6253, %v7549
      %v7634 = vsub.f32 %v6302, %v7552
      %v7635 = vsub.f32 %v6351, %v7555
      %v7636 = vsub.f32 %v6400, %v7558
      %v7637 = vsub.f32 %v6449, %v7561
      %v7638 = vsub.f32 %v6498, %v7564
      %v7639 = vsub.f32 %v6547, %v7567
      %v7640 = vsub.f32 %v6596, %v7570
      %v7641 = vsub.f32 %v6645, %v7573
      %v7642 = vsub.f32 %v6694, %v7576
      %v7643 = vsub.f32 %v6743, %v7579
      %v7644 = vsub.f32 %v6792, %v7582
      %v7645 = vsub.f32 %v6841, %v7585
      %v7646 = vsub.f32 %v6890, %v7588
      %v7647 = vsub.f32 %v6939, %v7591
      %v7648 = vsub.f32 %v6988, %v7594
      %v7649 = vsub.f32 %v7037, %v7597
      %v7650 = vsub.f32 %v7086, %v7600
      %v7651 = vsub.f32 %v7135, %v7603
      %v7652 = vsub.f32 %v7184, %v7606
      %v7653 = vsub.f32 %v7233, %v7609
      %v7654 = vsub.f32 %v7282, %v7612
      %v7655 = vsub.f32 %v7331, %v7615
      %v7656 = vsub.f32 %v7380, %v7618
      %v7657 = vsub.f32 %v7429, %v7621
      %v7658 = vsub.f32 %v7478, %v7624
      %v7659 = vsub.f32 %v7527, %v7627
      %v7660 = vmul.f32 %v7628, 1.442695
      %v7661 = vpow.pop %v7660
      %v7662 = vmul.f32 %v7629, 1.442695
      %v7663 = vpow.pop %v7662
      %v7664 = vmul.f32 %v7630, 1.442695
      %v7665 = vpow.pop %v7664
      %v7666 = vmul.f32 %v7631, 1.442695
      %v7667 = vpow.pop %v7666
      %v7668 = vmul.f32 %v7632, 1.442695
      %v7669 = vpow.pop %v7668
      %v7670 = vmul.f32 %v7633, 1.442695
      %v7671 = vpow.pop %v7670
      %v7672 = vmul.f32 %v7634, 1.442695
      %v7673 = vpow.pop %v7672
      %v7674 = vmul.f32 %v7635, 1.442695
      %v7675 = vpow.pop %v7674
      %v7676 = vmul.f32 %v7636, 1.442695
      %v7677 = vpow.pop %v7676
      %v7678 = vmul.f32 %v7637, 1.442695
      %v7679 = vpow.pop %v7678
      %v7680 = vmul.f32 %v7638, 1.442695
      %v7681 = vpow.pop %v7680
      %v7682 = vmul.f32 %v7639, 1.442695
      %v7683 = vpow.pop %v7682
      %v7684 = vmul.f32 %v7640, 1.442695
      %v7685 = vpow.pop %v7684
      %v7686 = vmul.f32 %v7641, 1.442695
      %v7687 = vpow.pop %v7686
      %v7688 = vmul.f32 %v7642, 1.442695
      %v7689 = vpow.pop %v7688
      %v7690 = vmul.f32 %v7643, 1.442695
      %v7691 = vpow.pop %v7690
      %v7692 = vmul.f32 %v7644, 1.442695
      %v7693 = vpow.pop %v7692
      %v7694 = vmul.f32 %v7645, 1.442695
      %v7695 = vpow.pop %v7694
      %v7696 = vmul.f32 %v7646, 1.442695
      %v7697 = vpow.pop %v7696
      %v7698 = vmul.f32 %v7647, 1.442695
      %v7699 = vpow.pop %v7698
      %v7700 = vmul.f32 %v7648, 1.442695
      %v7701 = vpow.pop %v7700
      %v7702 = vmul.f32 %v7649, 1.442695
      %v7703 = vpow.pop %v7702
      %v7704 = vmul.f32 %v7650, 1.442695
      %v7705 = vpow.pop %v7704
      %v7706 = vmul.f32 %v7651, 1.442695
      %v7707 = vpow.pop %v7706
      %v7708 = vmul.f32 %v7652, 1.442695
      %v7709 = vpow.pop %v7708
      %v7710 = vmul.f32 %v7653, 1.442695
      %v7711 = vpow.pop %v7710
      %v7712 = vmul.f32 %v7654, 1.442695
      %v7713 = vpow.pop %v7712
      %v7714 = vmul.f32 %v7655, 1.442695
      %v7715 = vpow.pop %v7714
      %v7716 = vmul.f32 %v7656, 1.442695
      %v7717 = vpow.pop %v7716
      %v7718 = vmul.f32 %v7657, 1.442695
      %v7719 = vpow.pop %v7718
      %v7720 = vmul.f32 %v7658, 1.442695
      %v7721 = vpow.pop %v7720
      %v7722 = vmul.f32 %v7659, 1.442695
      %v7723 = vpow.pop %v7722
      %v7724 = vsel %vm1443, %v7661, 0.0
      %7725 = vadd.xlane.f32.xlu0 %v7724
      %v7726 = vpop.xlane.xlu0 %7725
      %v7727 = vsel %vm1443, %v7663, 0.0
      %7728 = vadd.xlane.f32.xlu0 %v7727
      %v7729 = vpop.xlane.xlu0 %7728
      %v7730 = vsel %vm1443, %v7665, 0.0
      %7731 = vadd.xlane.f32.xlu0 %v7730
      %v7732 = vpop.xlane.xlu0 %7731
      %v7733 = vsel %vm1443, %v7667, 0.0
      %7734 = vadd.xlane.f32.xlu0 %v7733
      %v7735 = vpop.xlane.xlu0 %7734
      %v7736 = vsel %vm1443, %v7669, 0.0
      %7737 = vadd.xlane.f32.xlu0 %v7736
      %v7738 = vpop.xlane.xlu0 %7737
      %v7739 = vsel %vm1443, %v7671, 0.0
      %7740 = vadd.xlane.f32.xlu0 %v7739
      %v7741 = vpop.xlane.xlu0 %7740
      %v7742 = vsel %vm1443, %v7673, 0.0
      %7743 = vadd.xlane.f32.xlu0 %v7742
      %v7744 = vpop.xlane.xlu0 %7743
      %v7745 = vsel %vm1443, %v7675, 0.0
      %7746 = vadd.xlane.f32.xlu0 %v7745
      %v7747 = vpop.xlane.xlu0 %7746
      %v7748 = vsel %vm1443, %v7677, 0.0
      %7749 = vadd.xlane.f32.xlu0 %v7748
      %v7750 = vpop.xlane.xlu0 %7749
      %v7751 = vsel %vm1443, %v7679, 0.0
      %7752 = vadd.xlane.f32.xlu0 %v7751
      %v7753 = vpop.xlane.xlu0 %7752
      %v7754 = vsel %vm1443, %v7681, 0.0
      %7755 = vadd.xlane.f32.xlu0 %v7754
      %v7756 = vpop.xlane.xlu0 %7755
      %v7757 = vsel %vm1443, %v7683, 0.0
      %7758 = vadd.xlane.f32.xlu0 %v7757
      %v7759 = vpop.xlane.xlu0 %7758
      %v7760 = vsel %vm1443, %v7685, 0.0
      %7761 = vadd.xlane.f32.xlu0 %v7760
      %v7762 = vpop.xlane.xlu0 %7761
      %v7763 = vsel %vm1443, %v7687, 0.0
      %7764 = vadd.xlane.f32.xlu0 %v7763
      %v7765 = vpop.xlane.xlu0 %7764
      %v7766 = vsel %vm1443, %v7689, 0.0
      %7767 = vadd.xlane.f32.xlu0 %v7766
      %v7768 = vpop.xlane.xlu0 %7767
      %v7769 = vsel %vm1443, %v7691, 0.0
      %7770 = vadd.xlane.f32.xlu0 %v7769
      %v7771 = vpop.xlane.xlu0 %7770
      %v7772 = vsel %vm1443, %v7693, 0.0
      %7773 = vadd.xlane.f32.xlu0 %v7772
      %v7774 = vpop.xlane.xlu0 %7773
      %v7775 = vsel %vm1443, %v7695, 0.0
      %7776 = vadd.xlane.f32.xlu0 %v7775
      %v7777 = vpop.xlane.xlu0 %7776
      %v7778 = vsel %vm1443, %v7697, 0.0
      %7779 = vadd.xlane.f32.xlu0 %v7778
      %v7780 = vpop.xlane.xlu0 %7779
      %v7781 = vsel %vm1443, %v7699, 0.0
      %7782 = vadd.xlane.f32.xlu0 %v7781
      %v7783 = vpop.xlane.xlu0 %7782
      %v7784 = vsel %vm1443, %v7701, 0.0
      %7785 = vadd.xlane.f32.xlu0 %v7784
      %v7786 = vpop.xlane.xlu0 %7785
      %v7787 = vsel %vm1443, %v7703, 0.0
      %7788 = vadd.xlane.f32.xlu0 %v7787
      %v7789 = vpop.xlane.xlu0 %7788
      %v7790 = vsel %vm1443, %v7705, 0.0
      %7791 = vadd.xlane.f32.xlu0 %v7790
      %v7792 = vpop.xlane.xlu0 %7791
      %v7793 = vsel %vm1443, %v7707, 0.0
      %7794 = vadd.xlane.f32.xlu0 %v7793
      %v7795 = vpop.xlane.xlu0 %7794
      %v7796 = vsel %vm1443, %v7709, 0.0
      %7797 = vadd.xlane.f32.xlu0 %v7796
      %v7798 = vpop.xlane.xlu0 %7797
      %v7799 = vsel %vm1443, %v7711, 0.0
      %7800 = vadd.xlane.f32.xlu0 %v7799
      %v7801 = vpop.xlane.xlu0 %7800
      %v7802 = vsel %vm1443, %v7713, 0.0
      %7803 = vadd.xlane.f32.xlu0 %v7802
      %v7804 = vpop.xlane.xlu0 %7803
      %v7805 = vsel %vm1443, %v7715, 0.0
      %7806 = vadd.xlane.f32.xlu0 %v7805
      %v7807 = vpop.xlane.xlu0 %7806
      %v7808 = vsel %vm1443, %v7717, 0.0
      %7809 = vadd.xlane.f32.xlu0 %v7808
      %v7810 = vpop.xlane.xlu0 %7809
      %v7811 = vsel %vm1443, %v7719, 0.0
      %7812 = vadd.xlane.f32.xlu0 %v7811
      %v7813 = vpop.xlane.xlu0 %7812
      %v7814 = vsel %vm1443, %v7721, 0.0
      %7815 = vadd.xlane.f32.xlu0 %v7814
      %v7816 = vpop.xlane.xlu0 %7815
      %v7817 = vsel %vm1443, %v7723, 0.0
      %7818 = vadd.xlane.f32.xlu0 %v7817
      %v7819 = vpop.xlane.xlu0 %7818
      %v7820 = vrcp.pop %v7726
      %v7821 = vrcp.pop %v7729
      %v7822 = vrcp.pop %v7732
      %v7823 = vrcp.pop %v7735
      %v7824 = vrcp.pop %v7738
      %v7825 = vrcp.pop %v7741
      %v7826 = vrcp.pop %v7744
      %v7827 = vrcp.pop %v7747
      %v7828 = vrcp.pop %v7750
      %v7829 = vrcp.pop %v7753
      %v7830 = vrcp.pop %v7756
      %v7831 = vrcp.pop %v7759
      %v7832 = vrcp.pop %v7762
      %v7833 = vrcp.pop %v7765
      %v7834 = vrcp.pop %v7768
      %v7835 = vrcp.pop %v7771
      %v7836 = vrcp.pop %v7774
      %v7837 = vrcp.pop %v7777
      %v7838 = vrcp.pop %v7780
      %v7839 = vrcp.pop %v7783
      %v7840 = vrcp.pop %v7786
      %v7841 = vrcp.pop %v7789
      %v7842 = vrcp.pop %v7792
      %v7843 = vrcp.pop %v7795
      %v7844 = vrcp.pop %v7798
      %v7845 = vrcp.pop %v7801
      %v7846 = vrcp.pop %v7804
      %v7847 = vrcp.pop %v7807
      %v7848 = vrcp.pop %v7810
      %v7849 = vrcp.pop %v7813
      %v7850 = vrcp.pop %v7816
      %v7851 = vrcp.pop %v7819
      %v7852 = vmul.f32 %v7661, %v7820
      %v7853 = vmul.f32 %v7663, %v7821
      %v7854 = vmul.f32 %v7665, %v7822
      %v7855 = vmul.f32 %v7667, %v7823
      %v7856 = vmul.f32 %v7669, %v7824
      %v7857 = vmul.f32 %v7671, %v7825
      %v7858 = vmul.f32 %v7673, %v7826
      %v7859 = vmul.f32 %v7675, %v7827
      %v7860 = vmul.f32 %v7677, %v7828
      %v7861 = vmul.f32 %v7679, %v7829
      %v7862 = vmul.f32 %v7681, %v7830
      %v7863 = vmul.f32 %v7683, %v7831
      %v7864 = vmul.f32 %v7685, %v7832
      %v7865 = vmul.f32 %v7687, %v7833
      %v7866 = vmul.f32 %v7689, %v7834
      %v7867 = vmul.f32 %v7691, %v7835
      %v7868 = vmul.f32 %v7693, %v7836
      %v7869 = vmul.f32 %v7695, %v7837
      %v7870 = vmul.f32 %v7697, %v7838
      %v7871 = vmul.f32 %v7699, %v7839
      %v7872 = vmul.f32 %v7701, %v7840
      %v7873 = vmul.f32 %v7703, %v7841
      %v7874 = vmul.f32 %v7705, %v7842
      %v7875 = vmul.f32 %v7707, %v7843
      %v7876 = vmul.f32 %v7709, %v7844
      %v7877 = vmul.f32 %v7711, %v7845
      %v7878 = vmul.f32 %v7713, %v7846
      %v7879 = vmul.f32 %v7715, %v7847
      %v7880 = vmul.f32 %v7717, %v7848
      %v7881 = vmul.f32 %v7719, %v7849
      %v7882 = vmul.f32 %v7721, %v7850
      %v7883 = vmul.f32 %v7723, %v7851
      %v7884 = vpack.c.bf16 %v7852, %v7852
      %v7885 = vpack.c.bf16 %v7853, %v7853
      %v7886 = vpack.c.bf16 %v7854, %v7854
      %v7887 = vpack.c.bf16 %v7855, %v7855
      %v7888 = vpack.c.bf16 %v7856, %v7856
      %v7889 = vpack.c.bf16 %v7857, %v7857
      %v7890 = vpack.c.bf16 %v7858, %v7858
      %v7891 = vpack.c.bf16 %v7859, %v7859
      %v7892 = vpack.c.bf16 %v7860, %v7860
      %v7893 = vpack.c.bf16 %v7861, %v7861
      %v7894 = vpack.c.bf16 %v7862, %v7862
      %v7895 = vpack.c.bf16 %v7863, %v7863
      %v7896 = vpack.c.bf16 %v7864, %v7864
      %v7897 = vpack.c.bf16 %v7865, %v7865
      %v7898 = vpack.c.bf16 %v7866, %v7866
      %v7899 = vpack.c.bf16 %v7867, %v7867
      %v7900 = vpack.c.bf16 %v7868, %v7868
      %v7901 = vpack.c.bf16 %v7869, %v7869
      %v7902 = vpack.c.bf16 %v7870, %v7870
      %v7903 = vpack.c.bf16 %v7871, %v7871
      %v7904 = vpack.c.bf16 %v7872, %v7872
      %v7905 = vpack.c.bf16 %v7873, %v7873
      %v7906 = vpack.c.bf16 %v7874, %v7874
      %v7907 = vpack.c.bf16 %v7875, %v7875
      %v7908 = vpack.c.bf16 %v7876, %v7876
      %v7909 = vpack.c.bf16 %v7877, %v7877
      %v7910 = vpack.c.bf16 %v7878, %v7878
      %v7911 = vpack.c.bf16 %v7879, %v7879
      %v7912 = vpack.c.bf16 %v7880, %v7880
      %v7913 = vpack.c.bf16 %v7881, %v7881
      %v7914 = vpack.c.bf16 %v7882, %v7882
      %v7915 = vpack.c.bf16 %v7883, %v7883
      %7916 = vrot.lane.b32.xlu0 %v5932, 64
      %v7917 = vpop.permute.xlu0 %7916
      %v7919 = vsel %vm1443, %v7884, 0
      %v7922 = vsel %vm1058, %v7917, 0
      %7924 = vmatprep.subr.bf16.mxu0 0
      %7925 = vmatpush1.bf16.msra.mxu0 %v7922
      %7926 = vmatprep.subr.bf16.mxu0 0
      %7927 = vmatpush1.bf16.msra.mxu0 0
      %7928 = vmatprep.subr.bf16.mxu0 0
      %7929 = vmatpush1.bf16.msra.mxu0 0
      %7930 = vmatprep.subr.bf16.mxu0 0
      %7931 = vmatpush1.bf16.msra.mxu0 0
      %7932 = vmatprep.subr.bf16.mxu0 0
      %7933 = vmatpush1.bf16.msra.mxu0 0
      %7934 = vmatprep.subr.bf16.mxu0 0
      %7935 = vmatpush1.bf16.msra.mxu0 0
      %7936 = vmatprep.subr.bf16.mxu0 0
      %7937 = vmatpush1.bf16.msra.mxu0 0
      %7938 = vmatprep.subr.bf16.mxu0 0
      %7939 = vmatpush1.bf16.msra.mxu0 0
      %7940 = vmatprep.subr.bf16.mxu0 0
      %7941 = vmatpush1.bf16.msra.mxu0 0
      %7942 = vmatprep.subr.bf16.mxu0 0
      %7943 = vmatpush1.bf16.msra.mxu0 0
      %7944 = vmatprep.subr.bf16.mxu0 0
      %7945 = vmatpush1.bf16.msra.mxu0 0
      %7946 = vmatprep.subr.bf16.mxu0 0
      %7947 = vmatpush1.bf16.msra.mxu0 0
      %7948 = vmatprep.subr.bf16.mxu0 0
      %7949 = vmatpush1.bf16.msra.mxu0 0
      %7950 = vmatprep.subr.bf16.mxu0 0
      %7951 = vmatpush1.bf16.msra.mxu0 0
      %7952 = vmatprep.subr.bf16.mxu0 0
      %7953 = vmatpush1.bf16.msra.mxu0 0
      %7954 = vmatprep.subr.bf16.mxu0 0
      %7955 = vmatpush1.bf16.msra.mxu0 0
      %7956 = vmatprep.mubr.bf16.mxu0 0
      %7957 = vmatmul.mubr.bf16.gmra.mrb[0].mxu0 %v7919
      %v7958 = vpop.f32.mrb[0].mxu0
      %v7959 = vadd.f32 0.0, %v7958
      %v7960 = vpop.f32.mrb[0].mxu0
      %v7961 = vpop.f32.mrb[0].mxu0
      %v7962 = vpop.f32.mrb[0].mxu0
      %7963 = vdwg.mxu0
      %7964 = vrot.lane.b32.xlu0 %v5933, 64
      %v7965 = vpop.permute.xlu0 %7964
      %v7967 = vsel %vm1443, %v7885, 0
      %v7970 = vsel %vm1058, %v7965, 0
      %7972 = vmatprep.subr.bf16.mxu0 0
      %7973 = vmatpush1.bf16.msra.mxu0 %v7970
      %7974 = vmatprep.subr.bf16.mxu0 0
      %7975 = vmatpush1.bf16.msra.mxu0 0
      %7976 = vmatprep.subr.bf16.mxu0 0
      %7977 = vmatpush1.bf16.msra.mxu0 0
      %7978 = vmatprep.subr.bf16.mxu0 0
      %7979 = vmatpush1.bf16.msra.mxu0 0
      %7980 = vmatprep.subr.bf16.mxu0 0
      %7981 = vmatpush1.bf16.msra.mxu0 0
      %7982 = vmatprep.subr.bf16.mxu0 0
      %7983 = vmatpush1.bf16.msra.mxu0 0
      %7984 = vmatprep.subr.bf16.mxu0 0
      %7985 = vmatpush1.bf16.msra.mxu0 0
      %7986 = vmatprep.subr.bf16.mxu0 0
      %7987 = vmatpush1.bf16.msra.mxu0 0
      %7988 = vmatprep.subr.bf16.mxu0 0
      %7989 = vmatpush1.bf16.msra.mxu0 0
      %7990 = vmatprep.subr.bf16.mxu0 0
      %7991 = vmatpush1.bf16.msra.mxu0 0
      %7992 = vmatprep.subr.bf16.mxu0 0
      %7993 = vmatpush1.bf16.msra.mxu0 0
      %7994 = vmatprep.subr.bf16.mxu0 0
      %7995 = vmatpush1.bf16.msra.mxu0 0
      %7996 = vmatprep.subr.bf16.mxu0 0
      %7997 = vmatpush1.bf16.msra.mxu0 0
      %7998 = vmatprep.subr.bf16.mxu0 0
      %7999 = vmatpush1.bf16.msra.mxu0 0
      %8000 = vmatprep.subr.bf16.mxu0 0
      %8001 = vmatpush1.bf16.msra.mxu0 0
      %8002 = vmatprep.subr.bf16.mxu0 0
      %8003 = vmatpush1.bf16.msra.mxu0 0
      %8004 = vmatprep.mubr.bf16.mxu0 0
      %8005 = vmatmul.mubr.bf16.gmra.mrb[0].mxu0 %v7967
      %v8006 = vpop.f32.mrb[0].mxu0
      %v8007 = vadd.f32 0.0, %v8006
      %v8008 = vpop.f32.mrb[0].mxu0
      %v8009 = vpop.f32.mrb[0].mxu0
      %v8010 = vpop.f32.mrb[0].mxu0
      %8011 = vdwg.mxu0
      %8012 = vrot.lane.b32.xlu0 %v5934, 64
      %v8013 = vpop.permute.xlu0 %8012
      %v8015 = vsel %vm1443, %v7886, 0
      %v8018 = vsel %vm1058, %v8013, 0
      %8020 = vmatprep.subr.bf16.mxu0 0
      %8021 = vmatpush1.bf16.msra.mxu0 %v8018
      %8022 = vmatprep.subr.bf16.mxu0 0
      %8023 = vmatpush1.bf16.msra.mxu0 0
      %8024 = vmatprep.subr.bf16.mxu0 0
      %8025 = vmatpush1.bf16.msra.mxu0 0
      %8026 = vmatprep.subr.bf16.mxu0 0
      %8027 = vmatpush1.bf16.msra.mxu0 0
      %8028 = vmatprep.subr.bf16.mxu0 0
      %8029 = vmatpush1.bf16.msra.mxu0 0
      %8030 = vmatprep.subr.bf16.mxu0 0
      %8031 = vmatpush1.bf16.msra.mxu0 0
      %8032 = vmatprep.subr.bf16.mxu0 0
      %8033 = vmatpush1.bf16.msra.mxu0 0
      %8034 = vmatprep.subr.bf16.mxu0 0
      %8035 = vmatpush1.bf16.msra.mxu0 0
      %8036 = vmatprep.subr.bf16.mxu0 0
      %8037 = vmatpush1.bf16.msra.mxu0 0
      %8038 = vmatprep.subr.bf16.mxu0 0
      %8039 = vmatpush1.bf16.msra.mxu0 0
      %8040 = vmatprep.subr.bf16.mxu0 0
      %8041 = vmatpush1.bf16.msra.mxu0 0
      %8042 = vmatprep.subr.bf16.mxu0 0
      %8043 = vmatpush1.bf16.msra.mxu0 0
      %8044 = vmatprep.subr.bf16.mxu0 0
      %8045 = vmatpush1.bf16.msra.mxu0 0
      %8046 = vmatprep.subr.bf16.mxu0 0
      %8047 = vmatpush1.bf16.msra.mxu0 0
      %8048 = vmatprep.subr.bf16.mxu0 0
      %8049 = vmatpush1.bf16.msra.mxu0 0
      %8050 = vmatprep.subr.bf16.mxu0 0
      %8051 = vmatpush1.bf16.msra.mxu0 0
      %8052 = vmatprep.mubr.bf16.mxu0 0
      %8053 = vmatmul.mubr.bf16.gmra.mrb[0].mxu0 %v8015
      %v8054 = vpop.f32.mrb[0].mxu0
      %v8055 = vadd.f32 0.0, %v8054
      %v8056 = vpop.f32.mrb[0].mxu0
      %v8057 = vpop.f32.mrb[0].mxu0
      %v8058 = vpop.f32.mrb[0].mxu0
      %8059 = vdwg.mxu0
      %8060 = vrot.lane.b32.xlu0 %v5935, 64
      %v8061 = vpop.permute.xlu0 %8060
      %v8063 = vsel %vm1443, %v7887, 0
      %v8066 = vsel %vm1058, %v8061, 0
      %8068 = vmatprep.subr.bf16.mxu0 0
      %8069 = vmatpush1.bf16.msra.mxu0 %v8066
      %8070 = vmatprep.subr.bf16.mxu0 0
      %8071 = vmatpush1.bf16.msra.mxu0 0
      %8072 = vmatprep.subr.bf16.mxu0 0
      %8073 = vmatpush1.bf16.msra.mxu0 0
      %8074 = vmatprep.subr.bf16.mxu0 0
      %8075 = vmatpush1.bf16.msra.mxu0 0
      %8076 = vmatprep.subr.bf16.mxu0 0
      %8077 = vmatpush1.bf16.msra.mxu0 0
      %8078 = vmatprep.subr.bf16.mxu0 0
      %8079 = vmatpush1.bf16.msra.mxu0 0
      %8080 = vmatprep.subr.bf16.mxu0 0
      %8081 = vmatpush1.bf16.msra.mxu0 0
      %8082 = vmatprep.subr.bf16.mxu0 0
      %8083 = vmatpush1.bf16.msra.mxu0 0
      %8084 = vmatprep.subr.bf16.mxu0 0
      %8085 = vmatpush1.bf16.msra.mxu0 0
      %8086 = vmatprep.subr.bf16.mxu0 0
      %8087 = vmatpush1.bf16.msra.mxu0 0
      %8088 = vmatprep.subr.bf16.mxu0 0
      %8089 = vmatpush1.bf16.msra.mxu0 0
      %8090 = vmatprep.subr.bf16.mxu0 0
      %8091 = vmatpush1.bf16.msra.mxu0 0
      %8092 = vmatprep.subr.bf16.mxu0 0
      %8093 = vmatpush1.bf16.msra.mxu0 0
      %8094 = vmatprep.subr.bf16.mxu0 0
      %8095 = vmatpush1.bf16.msra.mxu0 0
      %8096 = vmatprep.subr.bf16.mxu0 0
      %8097 = vmatpush1.bf16.msra.mxu0 0
      %8098 = vmatprep.subr.bf16.mxu0 0
      %8099 = vmatpush1.bf16.msra.mxu0 0
      %8100 = vmatprep.mubr.bf16.mxu0 0
      %8101 = vmatmul.mubr.bf16.gmra.mrb[0].mxu0 %v8063
      %v8102 = vpop.f32.mrb[0].mxu0
      %v8103 = vadd.f32 0.0, %v8102
      %v8104 = vpop.f32.mrb[0].mxu0
      %v8105 = vpop.f32.mrb[0].mxu0
      %v8106 = vpop.f32.mrb[0].mxu0
      %8107 = vdwg.mxu0
      %8108 = vrot.lane.b32.xlu0 %v5936, 64
      %v8109 = vpop.permute.xlu0 %8108
      %v8111 = vsel %vm1443, %v7888, 0
      %v8114 = vsel %vm1058, %v8109, 0
      %8116 = vmatprep.subr.bf16.mxu0 0
      %8117 = vmatpush1.bf16.msra.mxu0 %v8114
      %8118 = vmatprep.subr.bf16.mxu0 0
      %8119 = vmatpush1.bf16.msra.mxu0 0
      %8120 = vmatprep.subr.bf16.mxu0 0
      %8121 = vmatpush1.bf16.msra.mxu0 0
      %8122 = vmatprep.subr.bf16.mxu0 0
      %8123 = vmatpush1.bf16.msra.mxu0 0
      %8124 = vmatprep.subr.bf16.mxu0 0
      %8125 = vmatpush1.bf16.msra.mxu0 0
      %8126 = vmatprep.subr.bf16.mxu0 0
      %8127 = vmatpush1.bf16.msra.mxu0 0
      %8128 = vmatprep.subr.bf16.mxu0 0
      %8129 = vmatpush1.bf16.msra.mxu0 0
      %8130 = vmatprep.subr.bf16.mxu0 0
      %8131 = vmatpush1.bf16.msra.mxu0 0
      %8132 = vmatprep.subr.bf16.mxu0 0
      %8133 = vmatpush1.bf16.msra.mxu0 0
      %8134 = vmatprep.subr.bf16.mxu0 0
      %8135 = vmatpush1.bf16.msra.mxu0 0
      %8136 = vmatprep.subr.bf16.mxu0 0
      %8137 = vmatpush1.bf16.msra.mxu0 0
      %8138 = vmatprep.subr.bf16.mxu0 0
      %8139 = vmatpush1.bf16.msra.mxu0 0
      %8140 = vmatprep.subr.bf16.mxu0 0
      %8141 = vmatpush1.bf16.msra.mxu0 0
      %8142 = vmatprep.subr.bf16.mxu0 0
      %8143 = vmatpush1.bf16.msra.mxu0 0
      %8144 = vmatprep.subr.bf16.mxu0 0
      %8145 = vmatpush1.bf16.msra.mxu0 0
      %8146 = vmatprep.subr.bf16.mxu0 0
      %8147 = vmatpush1.bf16.msra.mxu0 0
      %8148 = vmatprep.mubr.bf16.mxu0 0
      %8149 = vmatmul.mubr.bf16.gmra.mrb[0].mxu0 %v8111
      %v8150 = vpop.f32.mrb[0].mxu0
      %v8151 = vadd.f32 0.0, %v8150
      %v8152 = vpop.f32.mrb[0].mxu0
      %v8153 = vpop.f32.mrb[0].mxu0
      %v8154 = vpop.f32.mrb[0].mxu0
      %8155 = vdwg.mxu0
      %8156 = vrot.lane.b32.xlu0 %v5937, 64
      %v8157 = vpop.permute.xlu0 %8156
      %v8159 = vsel %vm1443, %v7889, 0
      %v8162 = vsel %vm1058, %v8157, 0
      %8164 = vmatprep.subr.bf16.mxu0 0
      %8165 = vmatpush1.bf16.msra.mxu0 %v8162
      %8166 = vmatprep.subr.bf16.mxu0 0
      %8167 = vmatpush1.bf16.msra.mxu0 0
      %8168 = vmatprep.subr.bf16.mxu0 0
      %8169 = vmatpush1.bf16.msra.mxu0 0
      %8170 = vmatprep.subr.bf16.mxu0 0
      %8171 = vmatpush1.bf16.msra.mxu0 0
      %8172 = vmatprep.subr.bf16.mxu0 0
      %8173 = vmatpush1.bf16.msra.mxu0 0
      %8174 = vmatprep.subr.bf16.mxu0 0
      %8175 = vmatpush1.bf16.msra.mxu0 0
      %8176 = vmatprep.subr.bf16.mxu0 0
      %8177 = vmatpush1.bf16.msra.mxu0 0
      %8178 = vmatprep.subr.bf16.mxu0 0
      %8179 = vmatpush1.bf16.msra.mxu0 0
      %8180 = vmatprep.subr.bf16.mxu0 0
      %8181 = vmatpush1.bf16.msra.mxu0 0
      %8182 = vmatprep.subr.bf16.mxu0 0
      %8183 = vmatpush1.bf16.msra.mxu0 0
      %8184 = vmatprep.subr.bf16.mxu0 0
      %8185 = vmatpush1.bf16.msra.mxu0 0
      %8186 = vmatprep.subr.bf16.mxu0 0
      %8187 = vmatpush1.bf16.msra.mxu0 0
      %8188 = vmatprep.subr.bf16.mxu0 0
      %8189 = vmatpush1.bf16.msra.mxu0 0
      %8190 = vmatprep.subr.bf16.mxu0 0
      %8191 = vmatpush1.bf16.msra.mxu0 0
      %8192 = vmatprep.subr.bf16.mxu0 0
      %8193 = vmatpush1.bf16.msra.mxu0 0
      %8194 = vmatprep.subr.bf16.mxu0 0
      %8195 = vmatpush1.bf16.msra.mxu0 0
      %8196 = vmatprep.mubr.bf16.mxu0 0
      %8197 = vmatmul.mubr.bf16.gmra.mrb[0].mxu0 %v8159
      %v8198 = vpop.f32.mrb[0].mxu0
      %v8199 = vadd.f32 0.0, %v8198
      %v8200 = vpop.f32.mrb[0].mxu0
      %v8201 = vpop.f32.mrb[0].mxu0
      %v8202 = vpop.f32.mrb[0].mxu0
      %8203 = vdwg.mxu0
      %8204 = vrot.lane.b32.xlu0 %v5938, 64
      %v8205 = vpop.permute.xlu0 %8204
      %v8207 = vsel %vm1443, %v7890, 0
      %v8210 = vsel %vm1058, %v8205, 0
      %8212 = vmatprep.subr.bf16.mxu0 0
      %8213 = vmatpush1.bf16.msra.mxu0 %v8210
      %8214 = vmatprep.subr.bf16.mxu0 0
      %8215 = vmatpush1.bf16.msra.mxu0 0
      %8216 = vmatprep.subr.bf16.mxu0 0
      %8217 = vmatpush1.bf16.msra.mxu0 0
      %8218 = vmatprep.subr.bf16.mxu0 0
      %8219 = vmatpush1.bf16.msra.mxu0 0
      %8220 = vmatprep.subr.bf16.mxu0 0
      %8221 = vmatpush1.bf16.msra.mxu0 0
      %8222 = vmatprep.subr.bf16.mxu0 0
      %8223 = vmatpush1.bf16.msra.mxu0 0
      %8224 = vmatprep.subr.bf16.mxu0 0
      %8225 = vmatpush1.bf16.msra.mxu0 0
      %8226 = vmatprep.subr.bf16.mxu0 0
      %8227 = vmatpush1.bf16.msra.mxu0 0
      %8228 = vmatprep.subr.bf16.mxu0 0
      %8229 = vmatpush1.bf16.msra.mxu0 0
      %8230 = vmatprep.subr.bf16.mxu0 0
      %8231 = vmatpush1.bf16.msra.mxu0 0
      %8232 = vmatprep.subr.bf16.mxu0 0
      %8233 = vmatpush1.bf16.msra.mxu0 0
      %8234 = vmatprep.subr.bf16.mxu0 0
      %8235 = vmatpush1.bf16.msra.mxu0 0
      %8236 = vmatprep.subr.bf16.mxu0 0
      %8237 = vmatpush1.bf16.msra.mxu0 0
      %8238 = vmatprep.subr.bf16.mxu0 0
      %8239 = vmatpush1.bf16.msra.mxu0 0
      %8240 = vmatprep.subr.bf16.mxu0 0
      %8241 = vmatpush1.bf16.msra.mxu0 0
      %8242 = vmatprep.subr.bf16.mxu0 0
      %8243 = vmatpush1.bf16.msra.mxu0 0
      %8244 = vmatprep.mubr.bf16.mxu0 0
      %8245 = vmatmul.mubr.bf16.gmra.mrb[0].mxu0 %v8207
      %v8246 = vpop.f32.mrb[0].mxu0
      %v8247 = vadd.f32 0.0, %v8246
      %v8248 = vpop.f32.mrb[0].mxu0
      %v8249 = vpop.f32.mrb[0].mxu0
      %v8250 = vpop.f32.mrb[0].mxu0
      %8251 = vdwg.mxu0
      %8252 = vrot.lane.b32.xlu0 %v5939, 64
      %v8253 = vpop.permute.xlu0 %8252
      %v8255 = vsel %vm1443, %v7891, 0
      %v8258 = vsel %vm1058, %v8253, 0
      %8260 = vmatprep.subr.bf16.mxu0 0
      %8261 = vmatpush1.bf16.msra.mxu0 %v8258
      %8262 = vmatprep.subr.bf16.mxu0 0
      %8263 = vmatpush1.bf16.msra.mxu0 0
      %8264 = vmatprep.subr.bf16.mxu0 0
      %8265 = vmatpush1.bf16.msra.mxu0 0
      %8266 = vmatprep.subr.bf16.mxu0 0
      %8267 = vmatpush1.bf16.msra.mxu0 0
      %8268 = vmatprep.subr.bf16.mxu0 0
      %8269 = vmatpush1.bf16.msra.mxu0 0
      %8270 = vmatprep.subr.bf16.mxu0 0
      %8271 = vmatpush1.bf16.msra.mxu0 0
      %8272 = vmatprep.subr.bf16.mxu0 0
      %8273 = vmatpush1.bf16.msra.mxu0 0
      %8274 = vmatprep.subr.bf16.mxu0 0
      %8275 = vmatpush1.bf16.msra.mxu0 0
      %8276 = vmatprep.subr.bf16.mxu0 0
      %8277 = vmatpush1.bf16.msra.mxu0 0
      %8278 = vmatprep.subr.bf16.mxu0 0
      %8279 = vmatpush1.bf16.msra.mxu0 0
      %8280 = vmatprep.subr.bf16.mxu0 0
      %8281 = vmatpush1.bf16.msra.mxu0 0
      %8282 = vmatprep.subr.bf16.mxu0 0
      %8283 = vmatpush1.bf16.msra.mxu0 0
      %8284 = vmatprep.subr.bf16.mxu0 0
      %8285 = vmatpush1.bf16.msra.mxu0 0
      %8286 = vmatprep.subr.bf16.mxu0 0
      %8287 = vmatpush1.bf16.msra.mxu0 0
      %8288 = vmatprep.subr.bf16.mxu0 0
      %8289 = vmatpush1.bf16.msra.mxu0 0
      %8290 = vmatprep.subr.bf16.mxu0 0
      %8291 = vmatpush1.bf16.msra.mxu0 0
      %8292 = vmatprep.mubr.bf16.mxu0 0
      %8293 = vmatmul.mubr.bf16.gmra.mrb[0].mxu0 %v8255
      %v8294 = vpop.f32.mrb[0].mxu0
      %v8295 = vadd.f32 0.0, %v8294
      %v8296 = vpop.f32.mrb[0].mxu0
      %v8297 = vpop.f32.mrb[0].mxu0
      %v8298 = vpop.f32.mrb[0].mxu0
      %8299 = vdwg.mxu0
      %8300 = vrot.lane.b32.xlu0 %v5940, 64
      %v8301 = vpop.permute.xlu0 %8300
      %v8303 = vsel %vm1443, %v7892, 0
      %v8306 = vsel %vm1058, %v8301, 0
      %8308 = vmatprep.subr.bf16.mxu0 0
      %8309 = vmatpush1.bf16.msra.mxu0 %v8306
      %8310 = vmatprep.subr.bf16.mxu0 0
      %8311 = vmatpush1.bf16.msra.mxu0 0
      %8312 = vmatprep.subr.bf16.mxu0 0
      %8313 = vmatpush1.bf16.msra.mxu0 0
      %8314 = vmatprep.subr.bf16.mxu0 0
      %8315 = vmatpush1.bf16.msra.mxu0 0
      %8316 = vmatprep.subr.bf16.mxu0 0
      %8317 = vmatpush1.bf16.msra.mxu0 0
      %8318 = vmatprep.subr.bf16.mxu0 0
      %8319 = vmatpush1.bf16.msra.mxu0 0
      %8320 = vmatprep.subr.bf16.mxu0 0
      %8321 = vmatpush1.bf16.msra.mxu0 0
      %8322 = vmatprep.subr.bf16.mxu0 0
      %8323 = vmatpush1.bf16.msra.mxu0 0
      %8324 = vmatprep.subr.bf16.mxu0 0
      %8325 = vmatpush1.bf16.msra.mxu0 0
      %8326 = vmatprep.subr.bf16.mxu0 0
      %8327 = vmatpush1.bf16.msra.mxu0 0
      %8328 = vmatprep.subr.bf16.mxu0 0
      %8329 = vmatpush1.bf16.msra.mxu0 0
      %8330 = vmatprep.subr.bf16.mxu0 0
      %8331 = vmatpush1.bf16.msra.mxu0 0
      %8332 = vmatprep.subr.bf16.mxu0 0
      %8333 = vmatpush1.bf16.msra.mxu0 0
      %8334 = vmatprep.subr.bf16.mxu0 0
      %8335 = vmatpush1.bf16.msra.mxu0 0
      %8336 = vmatprep.subr.bf16.mxu0 0
      %8337 = vmatpush1.bf16.msra.mxu0 0
      %8338 = vmatprep.subr.bf16.mxu0 0
      %8339 = vmatpush1.bf16.msra.mxu0 0
      %8340 = vmatprep.mubr.bf16.mxu0 0
      %8341 = vmatmul.mubr.bf16.gmra.mrb[0].mxu0 %v8303
      %v8342 = vpop.f32.mrb[0].mxu0
      %v8343 = vadd.f32 0.0, %v8342
      %v8344 = vpop.f32.mrb[0].mxu0
      %v8345 = vpop.f32.mrb[0].mxu0
      %v8346 = vpop.f32.mrb[0].mxu0
      %8347 = vdwg.mxu0
      %8348 = vrot.lane.b32.xlu0 %v5941, 64
      %v8349 = vpop.permute.xlu0 %8348
      %v8351 = vsel %vm1443, %v7893, 0
      %v8354 = vsel %vm1058, %v8349, 0
      %8356 = vmatprep.subr.bf16.mxu0 0
      %8357 = vmatpush1.bf16.msra.mxu0 %v8354
      %8358 = vmatprep.subr.bf16.mxu0 0
      %8359 = vmatpush1.bf16.msra.mxu0 0
      %8360 = vmatprep.subr.bf16.mxu0 0
      %8361 = vmatpush1.bf16.msra.mxu0 0
      %8362 = vmatprep.subr.bf16.mxu0 0
      %8363 = vmatpush1.bf16.msra.mxu0 0
      %8364 = vmatprep.subr.bf16.mxu0 0
      %8365 = vmatpush1.bf16.msra.mxu0 0
      %8366 = vmatprep.subr.bf16.mxu0 0
      %8367 = vmatpush1.bf16.msra.mxu0 0
      %8368 = vmatprep.subr.bf16.mxu0 0
      %8369 = vmatpush1.bf16.msra.mxu0 0
      %8370 = vmatprep.subr.bf16.mxu0 0
      %8371 = vmatpush1.bf16.msra.mxu0 0
      %8372 = vmatprep.subr.bf16.mxu0 0
      %8373 = vmatpush1.bf16.msra.mxu0 0
      %8374 = vmatprep.subr.bf16.mxu0 0
      %8375 = vmatpush1.bf16.msra.mxu0 0
      %8376 = vmatprep.subr.bf16.mxu0 0
      %8377 = vmatpush1.bf16.msra.mxu0 0
      %8378 = vmatprep.subr.bf16.mxu0 0
      %8379 = vmatpush1.bf16.msra.mxu0 0
      %8380 = vmatprep.subr.bf16.mxu0 0
      %8381 = vmatpush1.bf16.msra.mxu0 0
      %8382 = vmatprep.subr.bf16.mxu0 0
      %8383 = vmatpush1.bf16.msra.mxu0 0
      %8384 = vmatprep.subr.bf16.mxu0 0
      %8385 = vmatpush1.bf16.msra.mxu0 0
      %8386 = vmatprep.subr.bf16.mxu0 0
      %8387 = vmatpush1.bf16.msra.mxu0 0
      %8388 = vmatprep.mubr.bf16.mxu0 0
      %8389 = vmatmul.mubr.bf16.gmra.mrb[0].mxu0 %v8351
      %v8390 = vpop.f32.mrb[0].mxu0
      %v8391 = vadd.f32 0.0, %v8390
      %v8392 = vpop.f32.mrb[0].mxu0
      %v8393 = vpop.f32.mrb[0].mxu0
      %v8394 = vpop.f32.mrb[0].mxu0
      %8395 = vdwg.mxu0
      %8396 = vrot.lane.b32.xlu0 %v5942, 64
      %v8397 = vpop.permute.xlu0 %8396
      %v8399 = vsel %vm1443, %v7894, 0
      %v8402 = vsel %vm1058, %v8397, 0
      %8404 = vmatprep.subr.bf16.mxu0 0
      %8405 = vmatpush1.bf16.msra.mxu0 %v8402
      %8406 = vmatprep.subr.bf16.mxu0 0
      %8407 = vmatpush1.bf16.msra.mxu0 0
      %8408 = vmatprep.subr.bf16.mxu0 0
      %8409 = vmatpush1.bf16.msra.mxu0 0
      %8410 = vmatprep.subr.bf16.mxu0 0
      %8411 = vmatpush1.bf16.msra.mxu0 0
      %8412 = vmatprep.subr.bf16.mxu0 0
      %8413 = vmatpush1.bf16.msra.mxu0 0
      %8414 = vmatprep.subr.bf16.mxu0 0
      %8415 = vmatpush1.bf16.msra.mxu0 0
      %8416 = vmatprep.subr.bf16.mxu0 0
      %8417 = vmatpush1.bf16.msra.mxu0 0
      %8418 = vmatprep.subr.bf16.mxu0 0
      %8419 = vmatpush1.bf16.msra.mxu0 0
      %8420 = vmatprep.subr.bf16.mxu0 0
      %8421 = vmatpush1.bf16.msra.mxu0 0
      %8422 = vmatprep.subr.bf16.mxu0 0
      %8423 = vmatpush1.bf16.msra.mxu0 0
      %8424 = vmatprep.subr.bf16.mxu0 0
      %8425 = vmatpush1.bf16.msra.mxu0 0
      %8426 = vmatprep.subr.bf16.mxu0 0
      %8427 = vmatpush1.bf16.msra.mxu0 0
      %8428 = vmatprep.subr.bf16.mxu0 0
      %8429 = vmatpush1.bf16.msra.mxu0 0
      %8430 = vmatprep.subr.bf16.mxu0 0
      %8431 = vmatpush1.bf16.msra.mxu0 0
      %8432 = vmatprep.subr.bf16.mxu0 0
      %8433 = vmatpush1.bf16.msra.mxu0 0
      %8434 = vmatprep.subr.bf16.mxu0 0
      %8435 = vmatpush1.bf16.msra.mxu0 0
      %8436 = vmatprep.mubr.bf16.mxu0 0
      %8437 = vmatmul.mubr.bf16.gmra.mrb[0].mxu0 %v8399
      %v8438 = vpop.f32.mrb[0].mxu0
      %v8439 = vadd.f32 0.0, %v8438
      %v8440 = vpop.f32.mrb[0].mxu0
      %v8441 = vpop.f32.mrb[0].mxu0
      %v8442 = vpop.f32.mrb[0].mxu0
      %8443 = vdwg.mxu0
      %8444 = vrot.lane.b32.xlu0 %v5943, 64
      %v8445 = vpop.permute.xlu0 %8444
      %v8447 = vsel %vm1443, %v7895, 0
      %v8450 = vsel %vm1058, %v8445, 0
      %8452 = vmatprep.subr.bf16.mxu0 0
      %8453 = vmatpush1.bf16.msra.mxu0 %v8450
      %8454 = vmatprep.subr.bf16.mxu0 0
      %8455 = vmatpush1.bf16.msra.mxu0 0
      %8456 = vmatprep.subr.bf16.mxu0 0
      %8457 = vmatpush1.bf16.msra.mxu0 0
      %8458 = vmatprep.subr.bf16.mxu0 0
      %8459 = vmatpush1.bf16.msra.mxu0 0
      %8460 = vmatprep.subr.bf16.mxu0 0
      %8461 = vmatpush1.bf16.msra.mxu0 0
      %8462 = vmatprep.subr.bf16.mxu0 0
      %8463 = vmatpush1.bf16.msra.mxu0 0
      %8464 = vmatprep.subr.bf16.mxu0 0
      %8465 = vmatpush1.bf16.msra.mxu0 0
      %8466 = vmatprep.subr.bf16.mxu0 0
      %8467 = vmatpush1.bf16.msra.mxu0 0
      %8468 = vmatprep.subr.bf16.mxu0 0
      %8469 = vmatpush1.bf16.msra.mxu0 0
      %8470 = vmatprep.subr.bf16.mxu0 0
      %8471 = vmatpush1.bf16.msra.mxu0 0
      %8472 = vmatprep.subr.bf16.mxu0 0
      %8473 = vmatpush1.bf16.msra.mxu0 0
      %8474 = vmatprep.subr.bf16.mxu0 0
      %8475 = vmatpush1.bf16.msra.mxu0 0
      %8476 = vmatprep.subr.bf16.mxu0 0
      %8477 = vmatpush1.bf16.msra.mxu0 0
      %8478 = vmatprep.subr.bf16.mxu0 0
      %8479 = vmatpush1.bf16.msra.mxu0 0
      %8480 = vmatprep.subr.bf16.mxu0 0
      %8481 = vmatpush1.bf16.msra.mxu0 0
      %8482 = vmatprep.subr.bf16.mxu0 0
      %8483 = vmatpush1.bf16.msra.mxu0 0
      %8484 = vmatprep.mubr.bf16.mxu0 0
      %8485 = vmatmul.mubr.bf16.gmra.mrb[0].mxu0 %v8447
      %v8486 = vpop.f32.mrb[0].mxu0
      %v8487 = vadd.f32 0.0, %v8486
      %v8488 = vpop.f32.mrb[0].mxu0
      %v8489 = vpop.f32.mrb[0].mxu0
      %v8490 = vpop.f32.mrb[0].mxu0
      %8491 = vdwg.mxu0
      %8492 = vrot.lane.b32.xlu0 %v5944, 64
      %v8493 = vpop.permute.xlu0 %8492
      %v8495 = vsel %vm1443, %v7896, 0
      %v8498 = vsel %vm1058, %v8493, 0
      %8500 = vmatprep.subr.bf16.mxu0 0
      %8501 = vmatpush1.bf16.msra.mxu0 %v8498
      %8502 = vmatprep.subr.bf16.mxu0 0
      %8503 = vmatpush1.bf16.msra.mxu0 0
      %8504 = vmatprep.subr.bf16.mxu0 0
      %8505 = vmatpush1.bf16.msra.mxu0 0
      %8506 = vmatprep.subr.bf16.mxu0 0
      %8507 = vmatpush1.bf16.msra.mxu0 0
      %8508 = vmatprep.subr.bf16.mxu0 0
      %8509 = vmatpush1.bf16.msra.mxu0 0
      %8510 = vmatprep.subr.bf16.mxu0 0
      %8511 = vmatpush1.bf16.msra.mxu0 0
      %8512 = vmatprep.subr.bf16.mxu0 0
      %8513 = vmatpush1.bf16.msra.mxu0 0
      %8514 = vmatprep.subr.bf16.mxu0 0
      %8515 = vmatpush1.bf16.msra.mxu0 0
      %8516 = vmatprep.subr.bf16.mxu0 0
      %8517 = vmatpush1.bf16.msra.mxu0 0
      %8518 = vmatprep.subr.bf16.mxu0 0
      %8519 = vmatpush1.bf16.msra.mxu0 0
      %8520 = vmatprep.subr.bf16.mxu0 0
      %8521 = vmatpush1.bf16.msra.mxu0 0
      %8522 = vmatprep.subr.bf16.mxu0 0
      %8523 = vmatpush1.bf16.msra.mxu0 0
      %8524 = vmatprep.subr.bf16.mxu0 0
      %8525 = vmatpush1.bf16.msra.mxu0 0
      %8526 = vmatprep.subr.bf16.mxu0 0
      %8527 = vmatpush1.bf16.msra.mxu0 0
      %8528 = vmatprep.subr.bf16.mxu0 0
      %8529 = vmatpush1.bf16.msra.mxu0 0
      %8530 = vmatprep.subr.bf16.mxu0 0
      %8531 = vmatpush1.bf16.msra.mxu0 0
      %8532 = vmatprep.mubr.bf16.mxu0 0
      %8533 = vmatmul.mubr.bf16.gmra.mrb[0].mxu0 %v8495
      %v8534 = vpop.f32.mrb[0].mxu0
      %v8535 = vadd.f32 0.0, %v8534
      %v8536 = vpop.f32.mrb[0].mxu0
      %v8537 = vpop.f32.mrb[0].mxu0
      %v8538 = vpop.f32.mrb[0].mxu0
      %8539 = vdwg.mxu0
      %8540 = vrot.lane.b32.xlu0 %v5945, 64
      %v8541 = vpop.permute.xlu0 %8540
      %v8543 = vsel %vm1443, %v7897, 0
      %v8546 = vsel %vm1058, %v8541, 0
      %8548 = vmatprep.subr.bf16.mxu0 0
      %8549 = vmatpush1.bf16.msra.mxu0 %v8546
      %8550 = vmatprep.subr.bf16.mxu0 0
      %8551 = vmatpush1.bf16.msra.mxu0 0
      %8552 = vmatprep.subr.bf16.mxu0 0
      %8553 = vmatpush1.bf16.msra.mxu0 0
      %8554 = vmatprep.subr.bf16.mxu0 0
      %8555 = vmatpush1.bf16.msra.mxu0 0
      %8556 = vmatprep.subr.bf16.mxu0 0
      %8557 = vmatpush1.bf16.msra.mxu0 0
      %8558 = vmatprep.subr.bf16.mxu0 0
      %8559 = vmatpush1.bf16.msra.mxu0 0
      %8560 = vmatprep.subr.bf16.mxu0 0
      %8561 = vmatpush1.bf16.msra.mxu0 0
      %8562 = vmatprep.subr.bf16.mxu0 0
      %8563 = vmatpush1.bf16.msra.mxu0 0
      %8564 = vmatprep.subr.bf16.mxu0 0
      %8565 = vmatpush1.bf16.msra.mxu0 0
      %8566 = vmatprep.subr.bf16.mxu0 0
      %8567 = vmatpush1.bf16.msra.mxu0 0
      %8568 = vmatprep.subr.bf16.mxu0 0
      %8569 = vmatpush1.bf16.msra.mxu0 0
      %8570 = vmatprep.subr.bf16.mxu0 0
      %8571 = vmatpush1.bf16.msra.mxu0 0
      %8572 = vmatprep.subr.bf16.mxu0 0
      %8573 = vmatpush1.bf16.msra.mxu0 0
      %8574 = vmatprep.subr.bf16.mxu0 0
      %8575 = vmatpush1.bf16.msra.mxu0 0
      %8576 = vmatprep.subr.bf16.mxu0 0
      %8577 = vmatpush1.bf16.msra.mxu0 0
      %8578 = vmatprep.subr.bf16.mxu0 0
      %8579 = vmatpush1.bf16.msra.mxu0 0
      %8580 = vmatprep.mubr.bf16.mxu0 0
      %8581 = vmatmul.mubr.bf16.gmra.mrb[0].mxu0 %v8543
      %v8582 = vpop.f32.mrb[0].mxu0
      %v8583 = vadd.f32 0.0, %v8582
      %v8584 = vpop.f32.mrb[0].mxu0
      %v8585 = vpop.f32.mrb[0].mxu0
      %v8586 = vpop.f32.mrb[0].mxu0
      %8587 = vdwg.mxu0
      %8588 = vrot.lane.b32.xlu0 %v5946, 64
      %v8589 = vpop.permute.xlu0 %8588
      %v8591 = vsel %vm1443, %v7898, 0
      %v8594 = vsel %vm1058, %v8589, 0
      %8596 = vmatprep.subr.bf16.mxu0 0
      %8597 = vmatpush1.bf16.msra.mxu0 %v8594
      %8598 = vmatprep.subr.bf16.mxu0 0
      %8599 = vmatpush1.bf16.msra.mxu0 0
      %8600 = vmatprep.subr.bf16.mxu0 0
      %8601 = vmatpush1.bf16.msra.mxu0 0
      %8602 = vmatprep.subr.bf16.mxu0 0
      %8603 = vmatpush1.bf16.msra.mxu0 0
      %8604 = vmatprep.subr.bf16.mxu0 0
      %8605 = vmatpush1.bf16.msra.mxu0 0
      %8606 = vmatprep.subr.bf16.mxu0 0
      %8607 = vmatpush1.bf16.msra.mxu0 0
      %8608 = vmatprep.subr.bf16.mxu0 0
      %8609 = vmatpush1.bf16.msra.mxu0 0
      %8610 = vmatprep.subr.bf16.mxu0 0
      %8611 = vmatpush1.bf16.msra.mxu0 0
      %8612 = vmatprep.subr.bf16.mxu0 0
      %8613 = vmatpush1.bf16.msra.mxu0 0
      %8614 = vmatprep.subr.bf16.mxu0 0
      %8615 = vmatpush1.bf16.msra.mxu0 0
      %8616 = vmatprep.subr.bf16.mxu0 0
      %8617 = vmatpush1.bf16.msra.mxu0 0
      %8618 = vmatprep.subr.bf16.mxu0 0
      %8619 = vmatpush1.bf16.msra.mxu0 0
      %8620 = vmatprep.subr.bf16.mxu0 0
      %8621 = vmatpush1.bf16.msra.mxu0 0
      %8622 = vmatprep.subr.bf16.mxu0 0
      %8623 = vmatpush1.bf16.msra.mxu0 0
      %8624 = vmatprep.subr.bf16.mxu0 0
      %8625 = vmatpush1.bf16.msra.mxu0 0
      %8626 = vmatprep.subr.bf16.mxu0 0
      %8627 = vmatpush1.bf16.msra.mxu0 0
      %8628 = vmatprep.mubr.bf16.mxu0 0
      %8629 = vmatmul.mubr.bf16.gmra.mrb[0].mxu0 %v8591
      %v8630 = vpop.f32.mrb[0].mxu0
      %v8631 = vadd.f32 0.0, %v8630
      %v8632 = vpop.f32.mrb[0].mxu0
      %v8633 = vpop.f32.mrb[0].mxu0
      %v8634 = vpop.f32.mrb[0].mxu0
      %8635 = vdwg.mxu0
      %8636 = vrot.lane.b32.xlu0 %v5947, 64
      %v8637 = vpop.permute.xlu0 %8636
      %v8639 = vsel %vm1443, %v7899, 0
      %v8642 = vsel %vm1058, %v8637, 0
      %8644 = vmatprep.subr.bf16.mxu0 0
      %8645 = vmatpush1.bf16.msra.mxu0 %v8642
      %8646 = vmatprep.subr.bf16.mxu0 0
      %8647 = vmatpush1.bf16.msra.mxu0 0
      %8648 = vmatprep.subr.bf16.mxu0 0
      %8649 = vmatpush1.bf16.msra.mxu0 0
      %8650 = vmatprep.subr.bf16.mxu0 0
      %8651 = vmatpush1.bf16.msra.mxu0 0
      %8652 = vmatprep.subr.bf16.mxu0 0
      %8653 = vmatpush1.bf16.msra.mxu0 0
      %8654 = vmatprep.subr.bf16.mxu0 0
      %8655 = vmatpush1.bf16.msra.mxu0 0
      %8656 = vmatprep.subr.bf16.mxu0 0
      %8657 = vmatpush1.bf16.msra.mxu0 0
      %8658 = vmatprep.subr.bf16.mxu0 0
      %8659 = vmatpush1.bf16.msra.mxu0 0
      %8660 = vmatprep.subr.bf16.mxu0 0
      %8661 = vmatpush1.bf16.msra.mxu0 0
      %8662 = vmatprep.subr.bf16.mxu0 0
      %8663 = vmatpush1.bf16.msra.mxu0 0
      %8664 = vmatprep.subr.bf16.mxu0 0
      %8665 = vmatpush1.bf16.msra.mxu0 0
      %8666 = vmatprep.subr.bf16.mxu0 0
      %8667 = vmatpush1.bf16.msra.mxu0 0
      %8668 = vmatprep.subr.bf16.mxu0 0
      %8669 = vmatpush1.bf16.msra.mxu0 0
      %8670 = vmatprep.subr.bf16.mxu0 0
      %8671 = vmatpush1.bf16.msra.mxu0 0
      %8672 = vmatprep.subr.bf16.mxu0 0
      %8673 = vmatpush1.bf16.msra.mxu0 0
      %8674 = vmatprep.subr.bf16.mxu0 0
      %8675 = vmatpush1.bf16.msra.mxu0 0
      %8676 = vmatprep.mubr.bf16.mxu0 0
      %8677 = vmatmul.mubr.bf16.gmra.mrb[0].mxu0 %v8639
      %v8678 = vpop.f32.mrb[0].mxu0
      %v8679 = vadd.f32 0.0, %v8678
      %v8680 = vpop.f32.mrb[0].mxu0
      %v8681 = vpop.f32.mrb[0].mxu0
      %v8682 = vpop.f32.mrb[0].mxu0
      %8683 = vdwg.mxu0
      %8684 = vrot.lane.b32.xlu0 %v5948, 64
      %v8685 = vpop.permute.xlu0 %8684
      %v8687 = vsel %vm1443, %v7900, 0
      %v8690 = vsel %vm1058, %v8685, 0
      %8692 = vmatprep.subr.bf16.mxu0 0
      %8693 = vmatpush1.bf16.msra.mxu0 %v8690
      %8694 = vmatprep.subr.bf16.mxu0 0
      %8695 = vmatpush1.bf16.msra.mxu0 0
      %8696 = vmatprep.subr.bf16.mxu0 0
      %8697 = vmatpush1.bf16.msra.mxu0 0
      %8698 = vmatprep.subr.bf16.mxu0 0
      %8699 = vmatpush1.bf16.msra.mxu0 0
      %8700 = vmatprep.subr.bf16.mxu0 0
      %8701 = vmatpush1.bf16.msra.mxu0 0
      %8702 = vmatprep.subr.bf16.mxu0 0
      %8703 = vmatpush1.bf16.msra.mxu0 0
      %8704 = vmatprep.subr.bf16.mxu0 0
      %8705 = vmatpush1.bf16.msra.mxu0 0
      %8706 = vmatprep.subr.bf16.mxu0 0
      %8707 = vmatpush1.bf16.msra.mxu0 0
      %8708 = vmatprep.subr.bf16.mxu0 0
      %8709 = vmatpush1.bf16.msra.mxu0 0
      %8710 = vmatprep.subr.bf16.mxu0 0
      %8711 = vmatpush1.bf16.msra.mxu0 0
      %8712 = vmatprep.subr.bf16.mxu0 0
      %8713 = vmatpush1.bf16.msra.mxu0 0
      %8714 = vmatprep.subr.bf16.mxu0 0
      %8715 = vmatpush1.bf16.msra.mxu0 0
      %8716 = vmatprep.subr.bf16.mxu0 0
      %8717 = vmatpush1.bf16.msra.mxu0 0
      %8718 = vmatprep.subr.bf16.mxu0 0
      %8719 = vmatpush1.bf16.msra.mxu0 0
      %8720 = vmatprep.subr.bf16.mxu0 0
      %8721 = vmatpush1.bf16.msra.mxu0 0
      %8722 = vmatprep.subr.bf16.mxu0 0
      %8723 = vmatpush1.bf16.msra.mxu0 0
      %8724 = vmatprep.mubr.bf16.mxu0 0
      %8725 = vmatmul.mubr.bf16.gmra.mrb[0].mxu0 %v8687
      %v8726 = vpop.f32.mrb[0].mxu0
      %v8727 = vadd.f32 0.0, %v8726
      %v8728 = vpop.f32.mrb[0].mxu0
      %v8729 = vpop.f32.mrb[0].mxu0
      %v8730 = vpop.f32.mrb[0].mxu0
      %8731 = vdwg.mxu0
      %8732 = vrot.lane.b32.xlu0 %v5949, 64
      %v8733 = vpop.permute.xlu0 %8732
      %v8735 = vsel %vm1443, %v7901, 0
      %v8738 = vsel %vm1058, %v8733, 0
      %8740 = vmatprep.subr.bf16.mxu0 0
      %8741 = vmatpush1.bf16.msra.mxu0 %v8738
      %8742 = vmatprep.subr.bf16.mxu0 0
      %8743 = vmatpush1.bf16.msra.mxu0 0
      %8744 = vmatprep.subr.bf16.mxu0 0
      %8745 = vmatpush1.bf16.msra.mxu0 0
      %8746 = vmatprep.subr.bf16.mxu0 0
      %8747 = vmatpush1.bf16.msra.mxu0 0
      %8748 = vmatprep.subr.bf16.mxu0 0
      %8749 = vmatpush1.bf16.msra.mxu0 0
      %8750 = vmatprep.subr.bf16.mxu0 0
      %8751 = vmatpush1.bf16.msra.mxu0 0
      %8752 = vmatprep.subr.bf16.mxu0 0
      %8753 = vmatpush1.bf16.msra.mxu0 0
      %8754 = vmatprep.subr.bf16.mxu0 0
      %8755 = vmatpush1.bf16.msra.mxu0 0
      %8756 = vmatprep.subr.bf16.mxu0 0
      %8757 = vmatpush1.bf16.msra.mxu0 0
      %8758 = vmatprep.subr.bf16.mxu0 0
      %8759 = vmatpush1.bf16.msra.mxu0 0
      %8760 = vmatprep.subr.bf16.mxu0 0
      %8761 = vmatpush1.bf16.msra.mxu0 0
      %8762 = vmatprep.subr.bf16.mxu0 0
      %8763 = vmatpush1.bf16.msra.mxu0 0
      %8764 = vmatprep.subr.bf16.mxu0 0
      %8765 = vmatpush1.bf16.msra.mxu0 0
      %8766 = vmatprep.subr.bf16.mxu0 0
      %8767 = vmatpush1.bf16.msra.mxu0 0
      %8768 = vmatprep.subr.bf16.mxu0 0
      %8769 = vmatpush1.bf16.msra.mxu0 0
      %8770 = vmatprep.subr.bf16.mxu0 0
      %8771 = vmatpush1.bf16.msra.mxu0 0
      %8772 = vmatprep.mubr.bf16.mxu0 0
      %8773 = vmatmul.mubr.bf16.gmra.mrb[0].mxu0 %v8735
      %v8774 = vpop.f32.mrb[0].mxu0
      %v8775 = vadd.f32 0.0, %v8774
      %v8776 = vpop.f32.mrb[0].mxu0
      %v8777 = vpop.f32.mrb[0].mxu0
      %v8778 = vpop.f32.mrb[0].mxu0
      %8779 = vdwg.mxu0
      %8780 = vrot.lane.b32.xlu0 %v5950, 64
      %v8781 = vpop.permute.xlu0 %8780
      %v8783 = vsel %vm1443, %v7902, 0
      %v8786 = vsel %vm1058, %v8781, 0
      %8788 = vmatprep.subr.bf16.mxu0 0
      %8789 = vmatpush1.bf16.msra.mxu0 %v8786
      %8790 = vmatprep.subr.bf16.mxu0 0
      %8791 = vmatpush1.bf16.msra.mxu0 0
      %8792 = vmatprep.subr.bf16.mxu0 0
      %8793 = vmatpush1.bf16.msra.mxu0 0
      %8794 = vmatprep.subr.bf16.mxu0 0
      %8795 = vmatpush1.bf16.msra.mxu0 0
      %8796 = vmatprep.subr.bf16.mxu0 0
      %8797 = vmatpush1.bf16.msra.mxu0 0
      %8798 = vmatprep.subr.bf16.mxu0 0
      %8799 = vmatpush1.bf16.msra.mxu0 0
      %8800 = vmatprep.subr.bf16.mxu0 0
      %8801 = vmatpush1.bf16.msra.mxu0 0
      %8802 = vmatprep.subr.bf16.mxu0 0
      %8803 = vmatpush1.bf16.msra.mxu0 0
      %8804 = vmatprep.subr.bf16.mxu0 0
      %8805 = vmatpush1.bf16.msra.mxu0 0
      %8806 = vmatprep.subr.bf16.mxu0 0
      %8807 = vmatpush1.bf16.msra.mxu0 0
      %8808 = vmatprep.subr.bf16.mxu0 0
      %8809 = vmatpush1.bf16.msra.mxu0 0
      %8810 = vmatprep.subr.bf16.mxu0 0
      %8811 = vmatpush1.bf16.msra.mxu0 0
      %8812 = vmatprep.subr.bf16.mxu0 0
      %8813 = vmatpush1.bf16.msra.mxu0 0
      %8814 = vmatprep.subr.bf16.mxu0 0
      %8815 = vmatpush1.bf16.msra.mxu0 0
      %8816 = vmatprep.subr.bf16.mxu0 0
      %8817 = vmatpush1.bf16.msra.mxu0 0
      %8818 = vmatprep.subr.bf16.mxu0 0
      %8819 = vmatpush1.bf16.msra.mxu0 0
      %8820 = vmatprep.mubr.bf16.mxu0 0
      %8821 = vmatmul.mubr.bf16.gmra.mrb[0].mxu0 %v8783
      %v8822 = vpop.f32.mrb[0].mxu0
      %v8823 = vadd.f32 0.0, %v8822
      %v8824 = vpop.f32.mrb[0].mxu0
      %v8825 = vpop.f32.mrb[0].mxu0
      %v8826 = vpop.f32.mrb[0].mxu0
      %8827 = vdwg.mxu0
      %8828 = vrot.lane.b32.xlu0 %v5951, 64
      %v8829 = vpop.permute.xlu0 %8828
      %v8831 = vsel %vm1443, %v7903, 0
      %v8834 = vsel %vm1058, %v8829, 0
      %8836 = vmatprep.subr.bf16.mxu0 0
      %8837 = vmatpush1.bf16.msra.mxu0 %v8834
      %8838 = vmatprep.subr.bf16.mxu0 0
      %8839 = vmatpush1.bf16.msra.mxu0 0
      %8840 = vmatprep.subr.bf16.mxu0 0
      %8841 = vmatpush1.bf16.msra.mxu0 0
      %8842 = vmatprep.subr.bf16.mxu0 0
      %8843 = vmatpush1.bf16.msra.mxu0 0
      %8844 = vmatprep.subr.bf16.mxu0 0
      %8845 = vmatpush1.bf16.msra.mxu0 0
      %8846 = vmatprep.subr.bf16.mxu0 0
      %8847 = vmatpush1.bf16.msra.mxu0 0
      %8848 = vmatprep.subr.bf16.mxu0 0
      %8849 = vmatpush1.bf16.msra.mxu0 0
      %8850 = vmatprep.subr.bf16.mxu0 0
      %8851 = vmatpush1.bf16.msra.mxu0 0
      %8852 = vmatprep.subr.bf16.mxu0 0
      %8853 = vmatpush1.bf16.msra.mxu0 0
      %8854 = vmatprep.subr.bf16.mxu0 0
      %8855 = vmatpush1.bf16.msra.mxu0 0
      %8856 = vmatprep.subr.bf16.mxu0 0
      %8857 = vmatpush1.bf16.msra.mxu0 0
      %8858 = vmatprep.subr.bf16.mxu0 0
      %8859 = vmatpush1.bf16.msra.mxu0 0
      %8860 = vmatprep.subr.bf16.mxu0 0
      %8861 = vmatpush1.bf16.msra.mxu0 0
      %8862 = vmatprep.subr.bf16.mxu0 0
      %8863 = vmatpush1.bf16.msra.mxu0 0
      %8864 = vmatprep.subr.bf16.mxu0 0
      %8865 = vmatpush1.bf16.msra.mxu0 0
      %8866 = vmatprep.subr.bf16.mxu0 0
      %8867 = vmatpush1.bf16.msra.mxu0 0
      %8868 = vmatprep.mubr.bf16.mxu0 0
      %8869 = vmatmul.mubr.bf16.gmra.mrb[0].mxu0 %v8831
      %v8870 = vpop.f32.mrb[0].mxu0
      %v8871 = vadd.f32 0.0, %v8870
      %v8872 = vpop.f32.mrb[0].mxu0
      %v8873 = vpop.f32.mrb[0].mxu0
      %v8874 = vpop.f32.mrb[0].mxu0
      %8875 = vdwg.mxu0
      %8876 = vrot.lane.b32.xlu0 %v5952, 64
      %v8877 = vpop.permute.xlu0 %8876
      %v8879 = vsel %vm1443, %v7904, 0
      %v8882 = vsel %vm1058, %v8877, 0
      %8884 = vmatprep.subr.bf16.mxu0 0
      %8885 = vmatpush1.bf16.msra.mxu0 %v8882
      %8886 = vmatprep.subr.bf16.mxu0 0
      %8887 = vmatpush1.bf16.msra.mxu0 0
      %8888 = vmatprep.subr.bf16.mxu0 0
      %8889 = vmatpush1.bf16.msra.mxu0 0
      %8890 = vmatprep.subr.bf16.mxu0 0
      %8891 = vmatpush1.bf16.msra.mxu0 0
      %8892 = vmatprep.subr.bf16.mxu0 0
      %8893 = vmatpush1.bf16.msra.mxu0 0
      %8894 = vmatprep.subr.bf16.mxu0 0
      %8895 = vmatpush1.bf16.msra.mxu0 0
      %8896 = vmatprep.subr.bf16.mxu0 0
      %8897 = vmatpush1.bf16.msra.mxu0 0
      %8898 = vmatprep.subr.bf16.mxu0 0
      %8899 = vmatpush1.bf16.msra.mxu0 0
      %8900 = vmatprep.subr.bf16.mxu0 0
      %8901 = vmatpush1.bf16.msra.mxu0 0
      %8902 = vmatprep.subr.bf16.mxu0 0
      %8903 = vmatpush1.bf16.msra.mxu0 0
      %8904 = vmatprep.subr.bf16.mxu0 0
      %8905 = vmatpush1.bf16.msra.mxu0 0
      %8906 = vmatprep.subr.bf16.mxu0 0
      %8907 = vmatpush1.bf16.msra.mxu0 0
      %8908 = vmatprep.subr.bf16.mxu0 0
      %8909 = vmatpush1.bf16.msra.mxu0 0
      %8910 = vmatprep.subr.bf16.mxu0 0
      %8911 = vmatpush1.bf16.msra.mxu0 0
      %8912 = vmatprep.subr.bf16.mxu0 0
      %8913 = vmatpush1.bf16.msra.mxu0 0
      %8914 = vmatprep.subr.bf16.mxu0 0
      %8915 = vmatpush1.bf16.msra.mxu0 0
      %8916 = vmatprep.mubr.bf16.mxu0 0
      %8917 = vmatmul.mubr.bf16.gmra.mrb[0].mxu0 %v8879
      %v8918 = vpop.f32.mrb[0].mxu0
      %v8919 = vadd.f32 0.0, %v8918
      %v8920 = vpop.f32.mrb[0].mxu0
      %v8921 = vpop.f32.mrb[0].mxu0
      %v8922 = vpop.f32.mrb[0].mxu0
      %8923 = vdwg.mxu0
      %8924 = vrot.lane.b32.xlu0 %v5953, 64
      %v8925 = vpop.permute.xlu0 %8924
      %v8927 = vsel %vm1443, %v7905, 0
      %v8930 = vsel %vm1058, %v8925, 0
      %8932 = vmatprep.subr.bf16.mxu0 0
      %8933 = vmatpush1.bf16.msra.mxu0 %v8930
      %8934 = vmatprep.subr.bf16.mxu0 0
      %8935 = vmatpush1.bf16.msra.mxu0 0
      %8936 = vmatprep.subr.bf16.mxu0 0
      %8937 = vmatpush1.bf16.msra.mxu0 0
      %8938 = vmatprep.subr.bf16.mxu0 0
      %8939 = vmatpush1.bf16.msra.mxu0 0
      %8940 = vmatprep.subr.bf16.mxu0 0
      %8941 = vmatpush1.bf16.msra.mxu0 0
      %8942 = vmatprep.subr.bf16.mxu0 0
      %8943 = vmatpush1.bf16.msra.mxu0 0
      %8944 = vmatprep.subr.bf16.mxu0 0
      %8945 = vmatpush1.bf16.msra.mxu0 0
      %8946 = vmatprep.subr.bf16.mxu0 0
      %8947 = vmatpush1.bf16.msra.mxu0 0
      %8948 = vmatprep.subr.bf16.mxu0 0
      %8949 = vmatpush1.bf16.msra.mxu0 0
      %8950 = vmatprep.subr.bf16.mxu0 0
      %8951 = vmatpush1.bf16.msra.mxu0 0
      %8952 = vmatprep.subr.bf16.mxu0 0
      %8953 = vmatpush1.bf16.msra.mxu0 0
      %8954 = vmatprep.subr.bf16.mxu0 0
      %8955 = vmatpush1.bf16.msra.mxu0 0
      %8956 = vmatprep.subr.bf16.mxu0 0
      %8957 = vmatpush1.bf16.msra.mxu0 0
      %8958 = vmatprep.subr.bf16.mxu0 0
      %8959 = vmatpush1.bf16.msra.mxu0 0
      %8960 = vmatprep.subr.bf16.mxu0 0
      %8961 = vmatpush1.bf16.msra.mxu0 0
      %8962 = vmatprep.subr.bf16.mxu0 0
      %8963 = vmatpush1.bf16.msra.mxu0 0
      %8964 = vmatprep.mubr.bf16.mxu0 0
      %8965 = vmatmul.mubr.bf16.gmra.mrb[0].mxu0 %v8927
      %v8966 = vpop.f32.mrb[0].mxu0
      %v8967 = vadd.f32 0.0, %v8966
      %v8968 = vpop.f32.mrb[0].mxu0
      %v8969 = vpop.f32.mrb[0].mxu0
      %v8970 = vpop.f32.mrb[0].mxu0
      %8971 = vdwg.mxu0
      %8972 = vrot.lane.b32.xlu0 %v5954, 64
      %v8973 = vpop.permute.xlu0 %8972
      %v8975 = vsel %vm1443, %v7906, 0
      %v8978 = vsel %vm1058, %v8973, 0
      %8980 = vmatprep.subr.bf16.mxu0 0
      %8981 = vmatpush1.bf16.msra.mxu0 %v8978
      %8982 = vmatprep.subr.bf16.mxu0 0
      %8983 = vmatpush1.bf16.msra.mxu0 0
      %8984 = vmatprep.subr.bf16.mxu0 0
      %8985 = vmatpush1.bf16.msra.mxu0 0
      %8986 = vmatprep.subr.bf16.mxu0 0
      %8987 = vmatpush1.bf16.msra.mxu0 0
      %8988 = vmatprep.subr.bf16.mxu0 0
      %8989 = vmatpush1.bf16.msra.mxu0 0
      %8990 = vmatprep.subr.bf16.mxu0 0
      %8991 = vmatpush1.bf16.msra.mxu0 0
      %8992 = vmatprep.subr.bf16.mxu0 0
      %8993 = vmatpush1.bf16.msra.mxu0 0
      %8994 = vmatprep.subr.bf16.mxu0 0
      %8995 = vmatpush1.bf16.msra.mxu0 0
      %8996 = vmatprep.subr.bf16.mxu0 0
      %8997 = vmatpush1.bf16.msra.mxu0 0
      %8998 = vmatprep.subr.bf16.mxu0 0
      %8999 = vmatpush1.bf16.msra.mxu0 0
      %9000 = vmatprep.subr.bf16.mxu0 0
      %9001 = vmatpush1.bf16.msra.mxu0 0
      %9002 = vmatprep.subr.bf16.mxu0 0
      %9003 = vmatpush1.bf16.msra.mxu0 0
      %9004 = vmatprep.subr.bf16.mxu0 0
      %9005 = vmatpush1.bf16.msra.mxu0 0
      %9006 = vmatprep.subr.bf16.mxu0 0
      %9007 = vmatpush1.bf16.msra.mxu0 0
      %9008 = vmatprep.subr.bf16.mxu0 0
      %9009 = vmatpush1.bf16.msra.mxu0 0
      %9010 = vmatprep.subr.bf16.mxu0 0
      %9011 = vmatpush1.bf16.msra.mxu0 0
      %9012 = vmatprep.mubr.bf16.mxu0 0
      %9013 = vmatmul.mubr.bf16.gmra.mrb[0].mxu0 %v8975
      %v9014 = vpop.f32.mrb[0].mxu0
      %v9015 = vadd.f32 0.0, %v9014
      %v9016 = vpop.f32.mrb[0].mxu0
      %v9017 = vpop.f32.mrb[0].mxu0
      %v9018 = vpop.f32.mrb[0].mxu0
      %9019 = vdwg.mxu0
      %9020 = vrot.lane.b32.xlu0 %v5955, 64
      %v9021 = vpop.permute.xlu0 %9020
      %v9023 = vsel %vm1443, %v7907, 0
      %v9026 = vsel %vm1058, %v9021, 0
      %9028 = vmatprep.subr.bf16.mxu0 0
      %9029 = vmatpush1.bf16.msra.mxu0 %v9026
      %9030 = vmatprep.subr.bf16.mxu0 0
      %9031 = vmatpush1.bf16.msra.mxu0 0
      %9032 = vmatprep.subr.bf16.mxu0 0
      %9033 = vmatpush1.bf16.msra.mxu0 0
      %9034 = vmatprep.subr.bf16.mxu0 0
      %9035 = vmatpush1.bf16.msra.mxu0 0
      %9036 = vmatprep.subr.bf16.mxu0 0
      %9037 = vmatpush1.bf16.msra.mxu0 0
      %9038 = vmatprep.subr.bf16.mxu0 0
      %9039 = vmatpush1.bf16.msra.mxu0 0
      %9040 = vmatprep.subr.bf16.mxu0 0
      %9041 = vmatpush1.bf16.msra.mxu0 0
      %9042 = vmatprep.subr.bf16.mxu0 0
      %9043 = vmatpush1.bf16.msra.mxu0 0
      %9044 = vmatprep.subr.bf16.mxu0 0
      %9045 = vmatpush1.bf16.msra.mxu0 0
      %9046 = vmatprep.subr.bf16.mxu0 0
      %9047 = vmatpush1.bf16.msra.mxu0 0
      %9048 = vmatprep.subr.bf16.mxu0 0
      %9049 = vmatpush1.bf16.msra.mxu0 0
      %9050 = vmatprep.subr.bf16.mxu0 0
      %9051 = vmatpush1.bf16.msra.mxu0 0
      %9052 = vmatprep.subr.bf16.mxu0 0
      %9053 = vmatpush1.bf16.msra.mxu0 0
      %9054 = vmatprep.subr.bf16.mxu0 0
      %9055 = vmatpush1.bf16.msra.mxu0 0
      %9056 = vmatprep.subr.bf16.mxu0 0
      %9057 = vmatpush1.bf16.msra.mxu0 0
      %9058 = vmatprep.subr.bf16.mxu0 0
      %9059 = vmatpush1.bf16.msra.mxu0 0
      %9060 = vmatprep.mubr.bf16.mxu0 0
      %9061 = vmatmul.mubr.bf16.gmra.mrb[0].mxu0 %v9023
      %v9062 = vpop.f32.mrb[0].mxu0
      %v9063 = vadd.f32 0.0, %v9062
      %v9064 = vpop.f32.mrb[0].mxu0
      %v9065 = vpop.f32.mrb[0].mxu0
      %v9066 = vpop.f32.mrb[0].mxu0
      %9067 = vdwg.mxu0
      %9068 = vrot.lane.b32.xlu0 %v5956, 64
      %v9069 = vpop.permute.xlu0 %9068
      %v9071 = vsel %vm1443, %v7908, 0
      %v9074 = vsel %vm1058, %v9069, 0
      %9076 = vmatprep.subr.bf16.mxu0 0
      %9077 = vmatpush1.bf16.msra.mxu0 %v9074
      %9078 = vmatprep.subr.bf16.mxu0 0
      %9079 = vmatpush1.bf16.msra.mxu0 0
      %9080 = vmatprep.subr.bf16.mxu0 0
      %9081 = vmatpush1.bf16.msra.mxu0 0
      %9082 = vmatprep.subr.bf16.mxu0 0
      %9083 = vmatpush1.bf16.msra.mxu0 0
      %9084 = vmatprep.subr.bf16.mxu0 0
      %9085 = vmatpush1.bf16.msra.mxu0 0
      %9086 = vmatprep.subr.bf16.mxu0 0
      %9087 = vmatpush1.bf16.msra.mxu0 0
      %9088 = vmatprep.subr.bf16.mxu0 0
      %9089 = vmatpush1.bf16.msra.mxu0 0
      %9090 = vmatprep.subr.bf16.mxu0 0
      %9091 = vmatpush1.bf16.msra.mxu0 0
      %9092 = vmatprep.subr.bf16.mxu0 0
      %9093 = vmatpush1.bf16.msra.mxu0 0
      %9094 = vmatprep.subr.bf16.mxu0 0
      %9095 = vmatpush1.bf16.msra.mxu0 0
      %9096 = vmatprep.subr.bf16.mxu0 0
      %9097 = vmatpush1.bf16.msra.mxu0 0
      %9098 = vmatprep.subr.bf16.mxu0 0
      %9099 = vmatpush1.bf16.msra.mxu0 0
      %9100 = vmatprep.subr.bf16.mxu0 0
      %9101 = vmatpush1.bf16.msra.mxu0 0
      %9102 = vmatprep.subr.bf16.mxu0 0
      %9103 = vmatpush1.bf16.msra.mxu0 0
      %9104 = vmatprep.subr.bf16.mxu0 0
      %9105 = vmatpush1.bf16.msra.mxu0 0
      %9106 = vmatprep.subr.bf16.mxu0 0
      %9107 = vmatpush1.bf16.msra.mxu0 0
      %9108 = vmatprep.mubr.bf16.mxu0 0
      %9109 = vmatmul.mubr.bf16.gmra.mrb[0].mxu0 %v9071
      %v9110 = vpop.f32.mrb[0].mxu0
      %v9111 = vadd.f32 0.0, %v9110
      %v9112 = vpop.f32.mrb[0].mxu0
      %v9113 = vpop.f32.mrb[0].mxu0
      %v9114 = vpop.f32.mrb[0].mxu0
      %9115 = vdwg.mxu0
      %9116 = vrot.lane.b32.xlu0 %v5957, 64
      %v9117 = vpop.permute.xlu0 %9116
      %v9119 = vsel %vm1443, %v7909, 0
      %v9122 = vsel %vm1058, %v9117, 0
      %9124 = vmatprep.subr.bf16.mxu0 0
      %9125 = vmatpush1.bf16.msra.mxu0 %v9122
      %9126 = vmatprep.subr.bf16.mxu0 0
      %9127 = vmatpush1.bf16.msra.mxu0 0
      %9128 = vmatprep.subr.bf16.mxu0 0
      %9129 = vmatpush1.bf16.msra.mxu0 0
      %9130 = vmatprep.subr.bf16.mxu0 0
      %9131 = vmatpush1.bf16.msra.mxu0 0
      %9132 = vmatprep.subr.bf16.mxu0 0
      %9133 = vmatpush1.bf16.msra.mxu0 0
      %9134 = vmatprep.subr.bf16.mxu0 0
      %9135 = vmatpush1.bf16.msra.mxu0 0
      %9136 = vmatprep.subr.bf16.mxu0 0
      %9137 = vmatpush1.bf16.msra.mxu0 0
      %9138 = vmatprep.subr.bf16.mxu0 0
      %9139 = vmatpush1.bf16.msra.mxu0 0
      %9140 = vmatprep.subr.bf16.mxu0 0
      %9141 = vmatpush1.bf16.msra.mxu0 0
      %9142 = vmatprep.subr.bf16.mxu0 0
      %9143 = vmatpush1.bf16.msra.mxu0 0
      %9144 = vmatprep.subr.bf16.mxu0 0
      %9145 = vmatpush1.bf16.msra.mxu0 0
      %9146 = vmatprep.subr.bf16.mxu0 0
      %9147 = vmatpush1.bf16.msra.mxu0 0
      %9148 = vmatprep.subr.bf16.mxu0 0
      %9149 = vmatpush1.bf16.msra.mxu0 0
      %9150 = vmatprep.subr.bf16.mxu0 0
      %9151 = vmatpush1.bf16.msra.mxu0 0
      %9152 = vmatprep.subr.bf16.mxu0 0
      %9153 = vmatpush1.bf16.msra.mxu0 0
      %9154 = vmatprep.subr.bf16.mxu0 0
      %9155 = vmatpush1.bf16.msra.mxu0 0
      %9156 = vmatprep.mubr.bf16.mxu0 0
      %9157 = vmatmul.mubr.bf16.gmra.mrb[0].mxu0 %v9119
      %v9158 = vpop.f32.mrb[0].mxu0
      %v9159 = vadd.f32 0.0, %v9158
      %v9160 = vpop.f32.mrb[0].mxu0
      %v9161 = vpop.f32.mrb[0].mxu0
      %v9162 = vpop.f32.mrb[0].mxu0
      %9163 = vdwg.mxu0
      %9164 = vrot.lane.b32.xlu0 %v5958, 64
      %v9165 = vpop.permute.xlu0 %9164
      %v9167 = vsel %vm1443, %v7910, 0
      %v9170 = vsel %vm1058, %v9165, 0
      %9172 = vmatprep.subr.bf16.mxu0 0
      %9173 = vmatpush1.bf16.msra.mxu0 %v9170
      %9174 = vmatprep.subr.bf16.mxu0 0
      %9175 = vmatpush1.bf16.msra.mxu0 0
      %9176 = vmatprep.subr.bf16.mxu0 0
      %9177 = vmatpush1.bf16.msra.mxu0 0
      %9178 = vmatprep.subr.bf16.mxu0 0
      %9179 = vmatpush1.bf16.msra.mxu0 0
      %9180 = vmatprep.subr.bf16.mxu0 0
      %9181 = vmatpush1.bf16.msra.mxu0 0
      %9182 = vmatprep.subr.bf16.mxu0 0
      %9183 = vmatpush1.bf16.msra.mxu0 0
      %9184 = vmatprep.subr.bf16.mxu0 0
      %9185 = vmatpush1.bf16.msra.mxu0 0
      %9186 = vmatprep.subr.bf16.mxu0 0
      %9187 = vmatpush1.bf16.msra.mxu0 0
      %9188 = vmatprep.subr.bf16.mxu0 0
      %9189 = vmatpush1.bf16.msra.mxu0 0
      %9190 = vmatprep.subr.bf16.mxu0 0
      %9191 = vmatpush1.bf16.msra.mxu0 0
      %9192 = vmatprep.subr.bf16.mxu0 0
      %9193 = vmatpush1.bf16.msra.mxu0 0
      %9194 = vmatprep.subr.bf16.mxu0 0
      %9195 = vmatpush1.bf16.msra.mxu0 0
      %9196 = vmatprep.subr.bf16.mxu0 0
      %9197 = vmatpush1.bf16.msra.mxu0 0
      %9198 = vmatprep.subr.bf16.mxu0 0
      %9199 = vmatpush1.bf16.msra.mxu0 0
      %9200 = vmatprep.subr.bf16.mxu0 0
      %9201 = vmatpush1.bf16.msra.mxu0 0
      %9202 = vmatprep.subr.bf16.mxu0 0
      %9203 = vmatpush1.bf16.msra.mxu0 0
      %9204 = vmatprep.mubr.bf16.mxu0 0
      %9205 = vmatmul.mubr.bf16.gmra.mrb[0].mxu0 %v9167
      %v9206 = vpop.f32.mrb[0].mxu0
      %v9207 = vadd.f32 0.0, %v9206
      %v9208 = vpop.f32.mrb[0].mxu0
      %v9209 = vpop.f32.mrb[0].mxu0
      %v9210 = vpop.f32.mrb[0].mxu0
      %9211 = vdwg.mxu0
      %9212 = vrot.lane.b32.xlu0 %v5959, 64
      %v9213 = vpop.permute.xlu0 %9212
      %v9215 = vsel %vm1443, %v7911, 0
      %v9218 = vsel %vm1058, %v9213, 0
      %9220 = vmatprep.subr.bf16.mxu0 0
      %9221 = vmatpush1.bf16.msra.mxu0 %v9218
      %9222 = vmatprep.subr.bf16.mxu0 0
      %9223 = vmatpush1.bf16.msra.mxu0 0
      %9224 = vmatprep.subr.bf16.mxu0 0
      %9225 = vmatpush1.bf16.msra.mxu0 0
      %9226 = vmatprep.subr.bf16.mxu0 0
      %9227 = vmatpush1.bf16.msra.mxu0 0
      %9228 = vmatprep.subr.bf16.mxu0 0
      %9229 = vmatpush1.bf16.msra.mxu0 0
      %9230 = vmatprep.subr.bf16.mxu0 0
      %9231 = vmatpush1.bf16.msra.mxu0 0
      %9232 = vmatprep.subr.bf16.mxu0 0
      %9233 = vmatpush1.bf16.msra.mxu0 0
      %9234 = vmatprep.subr.bf16.mxu0 0
      %9235 = vmatpush1.bf16.msra.mxu0 0
      %9236 = vmatprep.subr.bf16.mxu0 0
      %9237 = vmatpush1.bf16.msra.mxu0 0
      %9238 = vmatprep.subr.bf16.mxu0 0
      %9239 = vmatpush1.bf16.msra.mxu0 0
      %9240 = vmatprep.subr.bf16.mxu0 0
      %9241 = vmatpush1.bf16.msra.mxu0 0
      %9242 = vmatprep.subr.bf16.mxu0 0
      %9243 = vmatpush1.bf16.msra.mxu0 0
      %9244 = vmatprep.subr.bf16.mxu0 0
      %9245 = vmatpush1.bf16.msra.mxu0 0
      %9246 = vmatprep.subr.bf16.mxu0 0
      %9247 = vmatpush1.bf16.msra.mxu0 0
      %9248 = vmatprep.subr.bf16.mxu0 0
      %9249 = vmatpush1.bf16.msra.mxu0 0
      %9250 = vmatprep.subr.bf16.mxu0 0
      %9251 = vmatpush1.bf16.msra.mxu0 0
      %9252 = vmatprep.mubr.bf16.mxu0 0
      %9253 = vmatmul.mubr.bf16.gmra.mrb[0].mxu0 %v9215
      %v9254 = vpop.f32.mrb[0].mxu0
      %v9255 = vadd.f32 0.0, %v9254
      %v9256 = vpop.f32.mrb[0].mxu0
      %v9257 = vpop.f32.mrb[0].mxu0
      %v9258 = vpop.f32.mrb[0].mxu0
      %9259 = vdwg.mxu0
      %9260 = vrot.lane.b32.xlu0 %v5960, 64
      %v9261 = vpop.permute.xlu0 %9260
      %v9263 = vsel %vm1443, %v7912, 0
      %v9266 = vsel %vm1058, %v9261, 0
      %9268 = vmatprep.subr.bf16.mxu0 0
      %9269 = vmatpush1.bf16.msra.mxu0 %v9266
      %9270 = vmatprep.subr.bf16.mxu0 0
      %9271 = vmatpush1.bf16.msra.mxu0 0
      %9272 = vmatprep.subr.bf16.mxu0 0
      %9273 = vmatpush1.bf16.msra.mxu0 0
      %9274 = vmatprep.subr.bf16.mxu0 0
      %9275 = vmatpush1.bf16.msra.mxu0 0
      %9276 = vmatprep.subr.bf16.mxu0 0
      %9277 = vmatpush1.bf16.msra.mxu0 0
      %9278 = vmatprep.subr.bf16.mxu0 0
      %9279 = vmatpush1.bf16.msra.mxu0 0
      %9280 = vmatprep.subr.bf16.mxu0 0
      %9281 = vmatpush1.bf16.msra.mxu0 0
      %9282 = vmatprep.subr.bf16.mxu0 0
      %9283 = vmatpush1.bf16.msra.mxu0 0
      %9284 = vmatprep.subr.bf16.mxu0 0
      %9285 = vmatpush1.bf16.msra.mxu0 0
      %9286 = vmatprep.subr.bf16.mxu0 0
      %9287 = vmatpush1.bf16.msra.mxu0 0
      %9288 = vmatprep.subr.bf16.mxu0 0
      %9289 = vmatpush1.bf16.msra.mxu0 0
      %9290 = vmatprep.subr.bf16.mxu0 0
      %9291 = vmatpush1.bf16.msra.mxu0 0
      %9292 = vmatprep.subr.bf16.mxu0 0
      %9293 = vmatpush1.bf16.msra.mxu0 0
      %9294 = vmatprep.subr.bf16.mxu0 0
      %9295 = vmatpush1.bf16.msra.mxu0 0
      %9296 = vmatprep.subr.bf16.mxu0 0
      %9297 = vmatpush1.bf16.msra.mxu0 0
      %9298 = vmatprep.subr.bf16.mxu0 0
      %9299 = vmatpush1.bf16.msra.mxu0 0
      %9300 = vmatprep.mubr.bf16.mxu0 0
      %9301 = vmatmul.mubr.bf16.gmra.mrb[0].mxu0 %v9263
      %v9302 = vpop.f32.mrb[0].mxu0
      %v9303 = vadd.f32 0.0, %v9302
      %v9304 = vpop.f32.mrb[0].mxu0
      %v9305 = vpop.f32.mrb[0].mxu0
      %v9306 = vpop.f32.mrb[0].mxu0
      %9307 = vdwg.mxu0
      %9308 = vrot.lane.b32.xlu0 %v5961, 64
      %v9309 = vpop.permute.xlu0 %9308
      %v9311 = vsel %vm1443, %v7913, 0
      %v9314 = vsel %vm1058, %v9309, 0
      %9316 = vmatprep.subr.bf16.mxu0 0
      %9317 = vmatpush1.bf16.msra.mxu0 %v9314
      %9318 = vmatprep.subr.bf16.mxu0 0
      %9319 = vmatpush1.bf16.msra.mxu0 0
      %9320 = vmatprep.subr.bf16.mxu0 0
      %9321 = vmatpush1.bf16.msra.mxu0 0
      %9322 = vmatprep.subr.bf16.mxu0 0
      %9323 = vmatpush1.bf16.msra.mxu0 0
      %9324 = vmatprep.subr.bf16.mxu0 0
      %9325 = vmatpush1.bf16.msra.mxu0 0
      %9326 = vmatprep.subr.bf16.mxu0 0
      %9327 = vmatpush1.bf16.msra.mxu0 0
      %9328 = vmatprep.subr.bf16.mxu0 0
      %9329 = vmatpush1.bf16.msra.mxu0 0
      %9330 = vmatprep.subr.bf16.mxu0 0
      %9331 = vmatpush1.bf16.msra.mxu0 0
      %9332 = vmatprep.subr.bf16.mxu0 0
      %9333 = vmatpush1.bf16.msra.mxu0 0
      %9334 = vmatprep.subr.bf16.mxu0 0
      %9335 = vmatpush1.bf16.msra.mxu0 0
      %9336 = vmatprep.subr.bf16.mxu0 0
      %9337 = vmatpush1.bf16.msra.mxu0 0
      %9338 = vmatprep.subr.bf16.mxu0 0
      %9339 = vmatpush1.bf16.msra.mxu0 0
      %9340 = vmatprep.subr.bf16.mxu0 0
      %9341 = vmatpush1.bf16.msra.mxu0 0
      %9342 = vmatprep.subr.bf16.mxu0 0
      %9343 = vmatpush1.bf16.msra.mxu0 0
      %9344 = vmatprep.subr.bf16.mxu0 0
      %9345 = vmatpush1.bf16.msra.mxu0 0
      %9346 = vmatprep.subr.bf16.mxu0 0
      %9347 = vmatpush1.bf16.msra.mxu0 0
      %9348 = vmatprep.mubr.bf16.mxu0 0
      %9349 = vmatmul.mubr.bf16.gmra.mrb[0].mxu0 %v9311
      %v9350 = vpop.f32.mrb[0].mxu0
      %v9351 = vadd.f32 0.0, %v9350
      %v9352 = vpop.f32.mrb[0].mxu0
      %v9353 = vpop.f32.mrb[0].mxu0
      %v9354 = vpop.f32.mrb[0].mxu0
      %9355 = vdwg.mxu0
      %9356 = vrot.lane.b32.xlu0 %v5962, 64
      %v9357 = vpop.permute.xlu0 %9356
      %v9359 = vsel %vm1443, %v7914, 0
      %v9362 = vsel %vm1058, %v9357, 0
      %9364 = vmatprep.subr.bf16.mxu0 0
      %9365 = vmatpush1.bf16.msra.mxu0 %v9362
      %9366 = vmatprep.subr.bf16.mxu0 0
      %9367 = vmatpush1.bf16.msra.mxu0 0
      %9368 = vmatprep.subr.bf16.mxu0 0
      %9369 = vmatpush1.bf16.msra.mxu0 0
      %9370 = vmatprep.subr.bf16.mxu0 0
      %9371 = vmatpush1.bf16.msra.mxu0 0
      %9372 = vmatprep.subr.bf16.mxu0 0
      %9373 = vmatpush1.bf16.msra.mxu0 0
      %9374 = vmatprep.subr.bf16.mxu0 0
      %9375 = vmatpush1.bf16.msra.mxu0 0
      %9376 = vmatprep.subr.bf16.mxu0 0
      %9377 = vmatpush1.bf16.msra.mxu0 0
      %9378 = vmatprep.subr.bf16.mxu0 0
      %9379 = vmatpush1.bf16.msra.mxu0 0
      %9380 = vmatprep.subr.bf16.mxu0 0
      %9381 = vmatpush1.bf16.msra.mxu0 0
      %9382 = vmatprep.subr.bf16.mxu0 0
      %9383 = vmatpush1.bf16.msra.mxu0 0
      %9384 = vmatprep.subr.bf16.mxu0 0
      %9385 = vmatpush1.bf16.msra.mxu0 0
      %9386 = vmatprep.subr.bf16.mxu0 0
      %9387 = vmatpush1.bf16.msra.mxu0 0
      %9388 = vmatprep.subr.bf16.mxu0 0
      %9389 = vmatpush1.bf16.msra.mxu0 0
      %9390 = vmatprep.subr.bf16.mxu0 0
      %9391 = vmatpush1.bf16.msra.mxu0 0
      %9392 = vmatprep.subr.bf16.mxu0 0
      %9393 = vmatpush1.bf16.msra.mxu0 0
      %9394 = vmatprep.subr.bf16.mxu0 0
      %9395 = vmatpush1.bf16.msra.mxu0 0
      %9396 = vmatprep.mubr.bf16.mxu0 0
      %9397 = vmatmul.mubr.bf16.gmra.mrb[0].mxu0 %v9359
      %v9398 = vpop.f32.mrb[0].mxu0
      %v9399 = vadd.f32 0.0, %v9398
      %v9400 = vpop.f32.mrb[0].mxu0
      %v9401 = vpop.f32.mrb[0].mxu0
      %v9402 = vpop.f32.mrb[0].mxu0
      %9403 = vdwg.mxu0
      %9404 = vrot.lane.b32.xlu0 %v5963, 64
      %v9405 = vpop.permute.xlu0 %9404
      %v9407 = vsel %vm1443, %v7915, 0
      %v9410 = vsel %vm1058, %v9405, 0
      %9412 = vmatprep.subr.bf16.mxu0 0
      %9413 = vmatpush1.bf16.msra.mxu0 %v9410
      %9414 = vmatprep.subr.bf16.mxu0 0
      %9415 = vmatpush1.bf16.msra.mxu0 0
      %9416 = vmatprep.subr.bf16.mxu0 0
      %9417 = vmatpush1.bf16.msra.mxu0 0
      %9418 = vmatprep.subr.bf16.mxu0 0
      %9419 = vmatpush1.bf16.msra.mxu0 0
      %9420 = vmatprep.subr.bf16.mxu0 0
      %9421 = vmatpush1.bf16.msra.mxu0 0
      %9422 = vmatprep.subr.bf16.mxu0 0
      %9423 = vmatpush1.bf16.msra.mxu0 0
      %9424 = vmatprep.subr.bf16.mxu0 0
      %9425 = vmatpush1.bf16.msra.mxu0 0
      %9426 = vmatprep.subr.bf16.mxu0 0
      %9427 = vmatpush1.bf16.msra.mxu0 0
      %9428 = vmatprep.subr.bf16.mxu0 0
      %9429 = vmatpush1.bf16.msra.mxu0 0
      %9430 = vmatprep.subr.bf16.mxu0 0
      %9431 = vmatpush1.bf16.msra.mxu0 0
      %9432 = vmatprep.subr.bf16.mxu0 0
      %9433 = vmatpush1.bf16.msra.mxu0 0
      %9434 = vmatprep.subr.bf16.mxu0 0
      %9435 = vmatpush1.bf16.msra.mxu0 0
      %9436 = vmatprep.subr.bf16.mxu0 0
      %9437 = vmatpush1.bf16.msra.mxu0 0
      %9438 = vmatprep.subr.bf16.mxu0 0
      %9439 = vmatpush1.bf16.msra.mxu0 0
      %9440 = vmatprep.subr.bf16.mxu0 0
      %9441 = vmatpush1.bf16.msra.mxu0 0
      %9442 = vmatprep.subr.bf16.mxu0 0
      %9443 = vmatpush1.bf16.msra.mxu0 0
      %9444 = vmatprep.mubr.bf16.mxu0 0
      %9445 = vmatmul.mubr.bf16.gmra.mrb[0].mxu0 %v9407
      %v9446 = vpop.f32.mrb[0].mxu0
      %v9447 = vadd.f32 0.0, %v9446
      %v9448 = vpop.f32.mrb[0].mxu0
      %v9449 = vpop.f32.mrb[0].mxu0
      %v9450 = vpop.f32.mrb[0].mxu0
      %9451 = vdwg.mxu0
      %9460 = vrot.lane.b32.xlu0 %v8343, 8
      %v9461 = vpop.permute.xlu0 %9460
      %9462 = vrot.lane.b32.xlu0 %v8391, 8
      %v9463 = vpop.permute.xlu0 %9462
      %9464 = vrot.lane.b32.xlu0 %v8439, 8
      %v9465 = vpop.permute.xlu0 %9464
      %9466 = vrot.lane.b32.xlu0 %v8487, 8
      %v9467 = vpop.permute.xlu0 %9466
      %9468 = vrot.lane.b32.xlu0 %v8535, 8
      %v9469 = vpop.permute.xlu0 %9468
      %9470 = vrot.lane.b32.xlu0 %v8583, 8
      %v9471 = vpop.permute.xlu0 %9470
      %9472 = vrot.lane.b32.xlu0 %v8631, 8
      %v9473 = vpop.permute.xlu0 %9472
      %9474 = vrot.lane.b32.xlu0 %v8679, 8
      %v9475 = vpop.permute.xlu0 %9474
      %9492 = vrot.lane.b32.xlu0 %v8727, 16
      %v9493 = vpop.permute.xlu0 %9492
      %9494 = vrot.lane.b32.xlu0 %v8775, 16
      %v9495 = vpop.permute.xlu0 %9494
      %9496 = vrot.lane.b32.xlu0 %v8823, 16
      %v9497 = vpop.permute.xlu0 %9496
      %9498 = vrot.lane.b32.xlu0 %v8871, 16
      %v9499 = vpop.permute.xlu0 %9498
      %9500 = vrot.lane.b32.xlu0 %v8919, 16
      %v9501 = vpop.permute.xlu0 %9500
      %9502 = vrot.lane.b32.xlu0 %v8967, 16
      %v9503 = vpop.permute.xlu0 %9502
      %9504 = vrot.lane.b32.xlu0 %v9015, 16
      %v9505 = vpop.permute.xlu0 %9504
      %9506 = vrot.lane.b32.xlu0 %v9063, 16
      %v9507 = vpop.permute.xlu0 %9506
      %9524 = vrot.lane.b32.xlu0 %v9111, 24
      %v9525 = vpop.permute.xlu0 %9524
      %9526 = vrot.lane.b32.xlu0 %v9159, 24
      %v9527 = vpop.permute.xlu0 %9526
      %9528 = vrot.lane.b32.xlu0 %v9207, 24
      %v9529 = vpop.permute.xlu0 %9528
      %9530 = vrot.lane.b32.xlu0 %v9255, 24
      %v9531 = vpop.permute.xlu0 %9530
      %9532 = vrot.lane.b32.xlu0 %v9303, 24
      %v9533 = vpop.permute.xlu0 %9532
      %9534 = vrot.lane.b32.xlu0 %v9351, 24
      %v9535 = vpop.permute.xlu0 %9534
      %9536 = vrot.lane.b32.xlu0 %v9399, 24
      %v9537 = vpop.permute.xlu0 %9536
      %9538 = vrot.lane.b32.xlu0 %v9447, 24
      %v9539 = vpop.permute.xlu0 %9538
      %v9548 = vsel %vm1443, %v7959, %v9461
      %v9549 = vsel %vm1443, %v8007, %v9463
      %v9550 = vsel %vm1443, %v8055, %v9465
      %v9551 = vsel %vm1443, %v8103, %v9467
      %v9552 = vsel %vm1443, %v8151, %v9469
      %v9553 = vsel %vm1443, %v8199, %v9471
      %v9554 = vsel %vm1443, %v8247, %v9473
      %v9555 = vsel %vm1443, %v8295, %v9475
      %v9556 = vsel %vm5033, %v9548, %v9493
      %v9557 = vsel %vm5033, %v9549, %v9495
      %v9558 = vsel %vm5033, %v9550, %v9497
      %v9559 = vsel %vm5033, %v9551, %v9499
      %v9560 = vsel %vm5033, %v9552, %v9501
      %v9561 = vsel %vm5033, %v9553, %v9503
      %v9562 = vsel %vm5033, %v9554, %v9505
      %v9563 = vsel %vm5033, %v9555, %v9507
      %v9564 = vsel %vm5042, %v9556, %v9525
      %v9565 = vsel %vm5042, %v9557, %v9527
      %v9566 = vsel %vm5042, %v9558, %v9529
      %v9567 = vsel %vm5042, %v9559, %v9531
      %v9568 = vsel %vm5042, %v9560, %v9533
      %v9569 = vsel %vm5042, %v9561, %v9535
      %v9570 = vsel %vm5042, %v9562, %v9537
      %v9571 = vsel %vm5042, %v9563, %v9539
      %v9572 = vpack.c.bf16 %v9565, %v9564
      %v9573 = vpack.c.bf16 %v9567, %v9566
      %v9574 = vpack.c.bf16 %v9569, %v9568
      %v9575 = vpack.c.bf16 %v9571, %v9570
      %v9577 = vlaneseq
      %v9578 = vshrl.u32 %v9577, 7
      %v9579 = vsub.s32 0, %v9578
      %v9580 = vrot.slane %v5616, %v9579
      %v9586 = vunpack.c.l.b16 %v5587
      %v9587 = vunpack.c.l.b16 %v5588
      %v9588 = vunpack.c.l.b16 %v5589
      %v9589 = vunpack.c.l.b16 %v5590
      %v9590 = vpack.c.b16 %v9587, %v9586
      %v9591 = vpack.c.b16 %v9589, %v9588
      %v9595 = vsel %vm1095, %v9572, 0
      %v9598 = vsel %vm1095, %v9573, 0
      %v9601 = vsel %vm1095, %v9574, 0
      %v9604 = vsel %vm1095, %v9575, 0
      %9606 = vmatprep.subr.bf16.mxu0 0
      %9607 = vmatpush1.bf16.msra.mxu0 %v9590
      %9608 = vmatprep.subr.bf16.mxu0 0
      %9609 = vmatpush1.bf16.msra.mxu0 %v9591
      %9610 = vmatprep.subr.bf16.mxu0 0
      %9611 = vmatpush1.bf16.msra.mxu0 0
      %9612 = vmatprep.subr.bf16.mxu0 0
      %9613 = vmatpush1.bf16.msra.mxu0 0
      %9614 = vmatprep.subr.bf16.mxu0 0
      %9615 = vmatpush1.bf16.msra.mxu0 0
      %9616 = vmatprep.subr.bf16.mxu0 0
      %9617 = vmatpush1.bf16.msra.mxu0 0
      %9618 = vmatprep.subr.bf16.mxu0 0
      %9619 = vmatpush1.bf16.msra.mxu0 0
      %9620 = vmatprep.subr.bf16.mxu0 0
      %9621 = vmatpush1.bf16.msra.mxu0 0
      %9622 = vmatprep.subr.bf16.mxu0 0
      %9623 = vmatpush1.bf16.msra.mxu0 0
      %9624 = vmatprep.subr.bf16.mxu0 0
      %9625 = vmatpush1.bf16.msra.mxu0 0
      %9626 = vmatprep.subr.bf16.mxu0 0
      %9627 = vmatpush1.bf16.msra.mxu0 0
      %9628 = vmatprep.subr.bf16.mxu0 0
      %9629 = vmatpush1.bf16.msra.mxu0 0
      %9630 = vmatprep.subr.bf16.mxu0 0
      %9631 = vmatpush1.bf16.msra.mxu0 0
      %9632 = vmatprep.subr.bf16.mxu0 0
      %9633 = vmatpush1.bf16.msra.mxu0 0
      %9634 = vmatprep.subr.bf16.mxu0 0
      %9635 = vmatpush1.bf16.msra.mxu0 0
      %9636 = vmatprep.subr.bf16.mxu0 0
      %9637 = vmatpush1.bf16.msra.mxu0 0
      %9638 = vmatprep.mubr.bf16.mxu0 0
      %9639 = vmatmul.mubr.bf16.gmra.mrb[0].mxu0 %v9595
      %v9640 = vpop.f32.mrb[0].mxu0
      %v9641 = vadd.f32 %v9580, %v9640
      %v9642 = vpop.f32.mrb[0].mxu0
      %v9643 = vpop.f32.mrb[0].mxu0
      %v9644 = vadd.f32 %v9580, %v9643
      %v9645 = vpop.f32.mrb[0].mxu0
      %9646 = vmatprep.mubr.bf16.mxu0 0
      %9647 = vmatmul.mubr.bf16.gmra.mrb[0].mxu0 %v9598
      %v9648 = vpop.f32.mrb[0].mxu0
      %v9649 = vadd.f32 %v9580, %v9648
      %v9650 = vpop.f32.mrb[0].mxu0
      %v9651 = vpop.f32.mrb[0].mxu0
      %v9652 = vadd.f32 %v9580, %v9651
      %v9653 = vpop.f32.mrb[0].mxu0
      %9654 = vmatprep.mubr.bf16.mxu0 0
      %9655 = vmatmul.mubr.bf16.gmra.mrb[0].mxu0 %v9601
      %v9656 = vpop.f32.mrb[0].mxu0
      %v9657 = vadd.f32 %v9580, %v9656
      %v9658 = vpop.f32.mrb[0].mxu0
      %v9659 = vpop.f32.mrb[0].mxu0
      %v9660 = vadd.f32 %v9580, %v9659
      %v9661 = vpop.f32.mrb[0].mxu0
      %9662 = vmatprep.mubr.bf16.mxu0 0
      %9663 = vmatmul.mubr.bf16.gmra.mrb[0].mxu0 %v9604
      %v9664 = vpop.f32.mrb[0].mxu0
      %v9665 = vadd.f32 %v9580, %v9664
      %v9666 = vpop.f32.mrb[0].mxu0
      %v9667 = vpop.f32.mrb[0].mxu0
      %v9668 = vadd.f32 %v9580, %v9667
      %v9669 = vpop.f32.mrb[0].mxu0
      %9670 = vdwg.mxu0
      %v9671 = vadd.f32 %v5573, %v9641
      %v9672 = vadd.f32 %v5574, %v9644
      %v9673 = vadd.f32 %v5575, %v9649
      %v9674 = vadd.f32 %v5576, %v9652
      %v9675 = vadd.f32 %v5577, %v9657
      %v9676 = vadd.f32 %v5578, %v9660
      %v9677 = vadd.f32 %v5579, %v9665
      %v9678 = vadd.f32 %v5580, %v9668
      %v9679 = vsel %vm1095, %v9671, 0.0
      %9680 = vadd.xlane.f32.xlu0 %v9679
      %v9681 = vpop.xlane.xlu0 %9680
      %v9682 = vsel %vm1095, %v9672, 0.0
      %9683 = vadd.xlane.f32.xlu0 %v9682
      %v9684 = vpop.xlane.xlu0 %9683
      %v9685 = vsel %vm1095, %v9673, 0.0
      %9686 = vadd.xlane.f32.xlu0 %v9685
      %v9687 = vpop.xlane.xlu0 %9686
      %v9688 = vsel %vm1095, %v9674, 0.0
      %9689 = vadd.xlane.f32.xlu0 %v9688
      %v9690 = vpop.xlane.xlu0 %9689
      %v9691 = vsel %vm1095, %v9675, 0.0
      %9692 = vadd.xlane.f32.xlu0 %v9691
      %v9693 = vpop.xlane.xlu0 %9692
      %v9694 = vsel %vm1095, %v9676, 0.0
      %9695 = vadd.xlane.f32.xlu0 %v9694
      %v9696 = vpop.xlane.xlu0 %9695
      %v9697 = vsel %vm1095, %v9677, 0.0
      %9698 = vadd.xlane.f32.xlu0 %v9697
      %v9699 = vpop.xlane.xlu0 %9698
      %v9700 = vsel %vm1095, %v9678, 0.0
      %9701 = vadd.xlane.f32.xlu0 %v9700
      %v9702 = vpop.xlane.xlu0 %9701
      %v9703 = vmul.f32 %v9681, %v1120
      %v9704 = vmul.f32 %v9684, %v1120
      %v9705 = vmul.f32 %v9687, %v1120
      %v9706 = vmul.f32 %v9690, %v1120
      %v9707 = vmul.f32 %v9693, %v1120
      %v9708 = vmul.f32 %v9696, %v1120
      %v9709 = vmul.f32 %v9699, %v1120
      %v9710 = vmul.f32 %v9702, %v1120
      %v9711 = vsub.f32 %v9671, %v9703
      %v9712 = vsub.f32 %v9672, %v9704
      %v9713 = vsub.f32 %v9673, %v9705
      %v9714 = vsub.f32 %v9674, %v9706
      %v9715 = vsub.f32 %v9675, %v9707
      %v9716 = vsub.f32 %v9676, %v9708
      %v9717 = vsub.f32 %v9677, %v9709
      %v9718 = vsub.f32 %v9678, %v9710
      %v9719 = vmul.f32 %v9711, %v9711
      %v9720 = vmul.f32 %v9712, %v9712
      %v9721 = vmul.f32 %v9713, %v9713
      %v9722 = vmul.f32 %v9714, %v9714
      %v9723 = vmul.f32 %v9715, %v9715
      %v9724 = vmul.f32 %v9716, %v9716
      %v9725 = vmul.f32 %v9717, %v9717
      %v9726 = vmul.f32 %v9718, %v9718
      %v9727 = vsel %vm1095, %v9719, 0.0
      %9728 = vadd.xlane.f32.xlu0 %v9727
      %v9729 = vpop.xlane.xlu0 %9728
      %v9730 = vsel %vm1095, %v9720, 0.0
      %9731 = vadd.xlane.f32.xlu0 %v9730
      %v9732 = vpop.xlane.xlu0 %9731
      %v9733 = vsel %vm1095, %v9721, 0.0
      %9734 = vadd.xlane.f32.xlu0 %v9733
      %v9735 = vpop.xlane.xlu0 %9734
      %v9736 = vsel %vm1095, %v9722, 0.0
      %9737 = vadd.xlane.f32.xlu0 %v9736
      %v9738 = vpop.xlane.xlu0 %9737
      %v9739 = vsel %vm1095, %v9723, 0.0
      %9740 = vadd.xlane.f32.xlu0 %v9739
      %v9741 = vpop.xlane.xlu0 %9740
      %v9742 = vsel %vm1095, %v9724, 0.0
      %9743 = vadd.xlane.f32.xlu0 %v9742
      %v9744 = vpop.xlane.xlu0 %9743
      %v9745 = vsel %vm1095, %v9725, 0.0
      %9746 = vadd.xlane.f32.xlu0 %v9745
      %v9747 = vpop.xlane.xlu0 %9746
      %v9748 = vsel %vm1095, %v9726, 0.0
      %9749 = vadd.xlane.f32.xlu0 %v9748
      %v9750 = vpop.xlane.xlu0 %9749
      %v9751 = vmul.f32 %v9729, %v1120
      %v9752 = vmul.f32 %v9732, %v1120
      %v9753 = vmul.f32 %v9735, %v1120
      %v9754 = vmul.f32 %v9738, %v1120
      %v9755 = vmul.f32 %v9741, %v1120
      %v9756 = vmul.f32 %v9744, %v1120
      %v9757 = vmul.f32 %v9747, %v1120
      %v9758 = vmul.f32 %v9750, %v1120
      %v9759 = vadd.f32 %v9751, 1e-05
      %v9760 = vadd.f32 %v9752, 1e-05
      %v9761 = vadd.f32 %v9753, 1e-05
      %v9762 = vadd.f32 %v9754, 1e-05
      %v9763 = vadd.f32 %v9755, 1e-05
      %v9764 = vadd.f32 %v9756, 1e-05
      %v9765 = vadd.f32 %v9757, 1e-05
      %v9766 = vadd.f32 %v9758, 1e-05
      %v9767 = vrsqrt.pop %v9759
      %v9768 = vrsqrt.pop %v9760
      %v9769 = vrsqrt.pop %v9761
      %v9770 = vrsqrt.pop %v9762
      %v9771 = vrsqrt.pop %v9763
      %v9772 = vrsqrt.pop %v9764
      %v9773 = vrsqrt.pop %v9765
      %v9774 = vrsqrt.pop %v9766
      %v9775 = vmul.f32 %v9711, %v9767
      %v9776 = vmul.f32 %v9712, %v9768
      %v9777 = vmul.f32 %v9713, %v9769
      %v9778 = vmul.f32 %v9714, %v9770
      %v9779 = vmul.f32 %v9715, %v9771
      %v9780 = vmul.f32 %v9716, %v9772
      %v9781 = vmul.f32 %v9717, %v9773
      %v9782 = vmul.f32 %v9718, %v9774
      %v9784 = vlaneseq
      %v9785 = vshrl.u32 %v9784, 7
      %v9786 = vsub.s32 0, %v9785
      %v9787 = vrot.slane %v5610, %v9786
      %v9789 = vmul.f32 %v9775, %v9787
      %v9790 = vmul.f32 %v9776, %v9787
      %v9791 = vmul.f32 %v9777, %v9787
      %v9792 = vmul.f32 %v9778, %v9787
      %v9793 = vmul.f32 %v9779, %v9787
      %v9794 = vmul.f32 %v9780, %v9787
      %v9795 = vmul.f32 %v9781, %v9787
      %v9796 = vmul.f32 %v9782, %v9787
      %v9798 = vlaneseq
      %v9799 = vshrl.u32 %v9798, 7
      %v9800 = vsub.s32 0, %v9799
      %v9801 = vrot.slane %v5612, %v9800
      %v9803 = vadd.f32 %v9789, %v9801
      %v9804 = vadd.f32 %v9790, %v9801
      %v9805 = vadd.f32 %v9791, %v9801
      %v9806 = vadd.f32 %v9792, %v9801
      %v9807 = vadd.f32 %v9793, %v9801
      %v9808 = vadd.f32 %v9794, %v9801
      %v9809 = vadd.f32 %v9795, %v9801
      %v9810 = vadd.f32 %v9796, %v9801
      %v9811 = vpack.c.bf16 %v9804, %v9803
      %v9812 = vpack.c.bf16 %v9806, %v9805
      %v9813 = vpack.c.bf16 %v9808, %v9807
      %v9814 = vpack.c.bf16 %v9810, %v9809
      %v9816 = vlaneseq
      %v9817 = vshrl.u32 %v9816, 7
      %v9818 = vsub.s32 0, %v9817
      %v9819 = vrot.slane %v5618, %v9818
      %v9825 = vunpack.c.l.b16 %v5592
      %v9826 = vunpack.c.l.b16 %v5593
      %v9827 = vunpack.c.l.b16 %v5594
      %v9828 = vunpack.c.l.b16 %v5595
      %v9829 = vpack.c.b16 %v9826, %v9825
      %v9830 = vpack.c.b16 %v9828, %v9827
      %v9834 = vsel %vm1095, %v9811, 0
      %v9837 = vsel %vm1095, %v9812, 0
      %v9840 = vsel %vm1095, %v9813, 0
      %v9843 = vsel %vm1095, %v9814, 0
      %9845 = vmatprep.subr.bf16.mxu0 0
      %9846 = vmatpush1.bf16.msra.mxu0 %v9829
      %9847 = vmatprep.subr.bf16.mxu0 0
      %9848 = vmatpush1.bf16.msra.mxu0 %v9830
      %9849 = vmatprep.subr.bf16.mxu0 0
      %9850 = vmatpush1.bf16.msra.mxu0 0
      %9851 = vmatprep.subr.bf16.mxu0 0
      %9852 = vmatpush1.bf16.msra.mxu0 0
      %9853 = vmatprep.subr.bf16.mxu0 0
      %9854 = vmatpush1.bf16.msra.mxu0 0
      %9855 = vmatprep.subr.bf16.mxu0 0
      %9856 = vmatpush1.bf16.msra.mxu0 0
      %9857 = vmatprep.subr.bf16.mxu0 0
      %9858 = vmatpush1.bf16.msra.mxu0 0
      %9859 = vmatprep.subr.bf16.mxu0 0
      %9860 = vmatpush1.bf16.msra.mxu0 0
      %9861 = vmatprep.subr.bf16.mxu0 0
      %9862 = vmatpush1.bf16.msra.mxu0 0
      %9863 = vmatprep.subr.bf16.mxu0 0
      %9864 = vmatpush1.bf16.msra.mxu0 0
      %9865 = vmatprep.subr.bf16.mxu0 0
      %9866 = vmatpush1.bf16.msra.mxu0 0
      %9867 = vmatprep.subr.bf16.mxu0 0
      %9868 = vmatpush1.bf16.msra.mxu0 0
      %9869 = vmatprep.subr.bf16.mxu0 0
      %9870 = vmatpush1.bf16.msra.mxu0 0
      %9871 = vmatprep.subr.bf16.mxu0 0
      %9872 = vmatpush1.bf16.msra.mxu0 0
      %9873 = vmatprep.subr.bf16.mxu0 0
      %9874 = vmatpush1.bf16.msra.mxu0 0
      %9875 = vmatprep.subr.bf16.mxu0 0
      %9876 = vmatpush1.bf16.msra.mxu0 0
      %9877 = vmatprep.mubr.bf16.mxu0 0
      %9878 = vmatmul.mubr.bf16.gmra.mrb[0].mxu0 %v9834
      %v9879 = vpop.f32.mrb[0].mxu0
      %v9880 = vadd.f32 %v9819, %v9879
      %v9881 = vpop.f32.mrb[0].mxu0
      %v9882 = vpop.f32.mrb[0].mxu0
      %v9883 = vadd.f32 %v9819, %v9882
      %v9884 = vpop.f32.mrb[0].mxu0
      %9885 = vmatprep.mubr.bf16.mxu0 0
      %9886 = vmatmul.mubr.bf16.gmra.mrb[0].mxu0 %v9837
      %v9887 = vpop.f32.mrb[0].mxu0
      %v9888 = vadd.f32 %v9819, %v9887
      %v9889 = vpop.f32.mrb[0].mxu0
      %v9890 = vpop.f32.mrb[0].mxu0
      %v9891 = vadd.f32 %v9819, %v9890
      %v9892 = vpop.f32.mrb[0].mxu0
      %9893 = vmatprep.mubr.bf16.mxu0 0
      %9894 = vmatmul.mubr.bf16.gmra.mrb[0].mxu0 %v9840
      %v9895 = vpop.f32.mrb[0].mxu0
      %v9896 = vadd.f32 %v9819, %v9895
      %v9897 = vpop.f32.mrb[0].mxu0
      %v9898 = vpop.f32.mrb[0].mxu0
      %v9899 = vadd.f32 %v9819, %v9898
      %v9900 = vpop.f32.mrb[0].mxu0
      %9901 = vmatprep.mubr.bf16.mxu0 0
      %9902 = vmatmul.mubr.bf16.gmra.mrb[0].mxu0 %v9843
      %v9903 = vpop.f32.mrb[0].mxu0
      %v9904 = vadd.f32 %v9819, %v9903
      %v9905 = vpop.f32.mrb[0].mxu0
      %v9906 = vpop.f32.mrb[0].mxu0
      %v9907 = vadd.f32 %v9819, %v9906
      %v9908 = vpop.f32.mrb[0].mxu0
      %9909 = vdwg.mxu0
      %v9910 = vmul.f32 %v9880, 0.5
      %v9911 = vmul.f32 %v9883, 0.5
      %v9912 = vmul.f32 %v9888, 0.5
      %v9913 = vmul.f32 %v9891, 0.5
      %v9914 = vmul.f32 %v9896, 0.5
      %v9915 = vmul.f32 %v9899, 0.5
      %v9916 = vmul.f32 %v9904, 0.5
      %v9917 = vmul.f32 %v9907, 0.5
      %v9918 = vmul.f32 %v9880, %v9880
      %v9919 = vmul.f32 %v9883, %v9883
      %v9920 = vmul.f32 %v9888, %v9888
      %v9921 = vmul.f32 %v9891, %v9891
      %v9922 = vmul.f32 %v9896, %v9896
      %v9923 = vmul.f32 %v9899, %v9899
      %v9924 = vmul.f32 %v9904, %v9904
      %v9925 = vmul.f32 %v9907, %v9907
      %v9926 = vmul.f32 %v9918, %v9880
      %v9927 = vmul.f32 %v9919, %v9883
      %v9928 = vmul.f32 %v9920, %v9888
      %v9929 = vmul.f32 %v9921, %v9891
      %v9930 = vmul.f32 %v9922, %v9896
      %v9931 = vmul.f32 %v9923, %v9899
      %v9932 = vmul.f32 %v9924, %v9904
      %v9933 = vmul.f32 %v9925, %v9907
      %v9934 = vmul.f32 %v9926, 0.044715
      %v9935 = vmul.f32 %v9927, 0.044715
      %v9936 = vmul.f32 %v9928, 0.044715
      %v9937 = vmul.f32 %v9929, 0.044715
      %v9938 = vmul.f32 %v9930, 0.044715
      %v9939 = vmul.f32 %v9931, 0.044715
      %v9940 = vmul.f32 %v9932, 0.044715
      %v9941 = vmul.f32 %v9933, 0.044715
      %v9942 = vadd.f32 %v9880, %v9934
      %v9943 = vadd.f32 %v9883, %v9935
      %v9944 = vadd.f32 %v9888, %v9936
      %v9945 = vadd.f32 %v9891, %v9937
      %v9946 = vadd.f32 %v9896, %v9938
      %v9947 = vadd.f32 %v9899, %v9939
      %v9948 = vadd.f32 %v9904, %v9940
      %v9949 = vadd.f32 %v9907, %v9941
      %v9950 = vmul.f32 %v9942, 0.7978846
      %v9951 = vmul.f32 %v9943, 0.7978846
      %v9952 = vmul.f32 %v9944, 0.7978846
      %v9953 = vmul.f32 %v9945, 0.7978846
      %v9954 = vmul.f32 %v9946, 0.7978846
      %v9955 = vmul.f32 %v9947, 0.7978846
      %v9956 = vmul.f32 %v9948, 0.7978846
      %v9957 = vmul.f32 %v9949, 0.7978846
      %v9958 = vtanh.pop %v9950
      %v9959 = vtanh.pop %v9951
      %v9960 = vtanh.pop %v9952
      %v9961 = vtanh.pop %v9953
      %v9962 = vtanh.pop %v9954
      %v9963 = vtanh.pop %v9955
      %v9964 = vtanh.pop %v9956
      %v9965 = vtanh.pop %v9957
      %v9966 = vadd.f32 %v9958, 1.0
      %v9967 = vadd.f32 %v9959, 1.0
      %v9968 = vadd.f32 %v9960, 1.0
      %v9969 = vadd.f32 %v9961, 1.0
      %v9970 = vadd.f32 %v9962, 1.0
      %v9971 = vadd.f32 %v9963, 1.0
      %v9972 = vadd.f32 %v9964, 1.0
      %v9973 = vadd.f32 %v9965, 1.0
      %v9974 = vmul.f32 %v9910, %v9966
      %v9975 = vmul.f32 %v9911, %v9967
      %v9976 = vmul.f32 %v9912, %v9968
      %v9977 = vmul.f32 %v9913, %v9969
      %v9978 = vmul.f32 %v9914, %v9970
      %v9979 = vmul.f32 %v9915, %v9971
      %v9980 = vmul.f32 %v9916, %v9972
      %v9981 = vmul.f32 %v9917, %v9973
      %v9982 = vpack.c.bf16 %v9975, %v9974
      %v9983 = vpack.c.bf16 %v9977, %v9976
      %v9984 = vpack.c.bf16 %v9979, %v9978
      %v9985 = vpack.c.bf16 %v9981, %v9980
      %v9987 = vlaneseq
      %v9988 = vshrl.u32 %v9987, 7
      %v9989 = vsub.s32 0, %v9988
      %v9990 = vrot.slane %v5620, %v9989
      %v10000 = vunpack.c.l.b16 %v5597
      %v10001 = vunpack.c.l.b16 %v5598
      %v10002 = vunpack.c.l.b16 %v5599
      %v10003 = vunpack.c.l.b16 %v5600
      %v10004 = vunpack.c.l.b16 %v5601
      %v10005 = vunpack.c.l.b16 %v5602
      %v10006 = vunpack.c.l.b16 %v5603
      %v10007 = vunpack.c.l.b16 %v5604
      %v10008 = vpack.c.b16 %v10001, %v10000
      %v10009 = vpack.c.b16 %v10003, %v10002
      %v10010 = vpack.c.b16 %v10005, %v10004
      %v10011 = vpack.c.b16 %v10007, %v10006
      %v10017 = vsel %vm5495, %v9982, 0
      %v10020 = vsel %vm5495, %v9983, 0
      %v10023 = vsel %vm5495, %v9984, 0
      %v10026 = vsel %vm5495, %v9985, 0
      %10028 = vmatprep.subr.bf16.mxu0 0
      %10029 = vmatpush1.bf16.msra.mxu0 %v10008
      %10030 = vmatprep.subr.bf16.mxu0 0
      %10031 = vmatpush1.bf16.msra.mxu0 %v10009
      %10032 = vmatprep.subr.bf16.mxu0 0
      %10033 = vmatpush1.bf16.msra.mxu0 %v10010
      %10034 = vmatprep.subr.bf16.mxu0 0
      %10035 = vmatpush1.bf16.msra.mxu0 %v10011
      %10036 = vmatprep.subr.bf16.mxu0 0
      %10037 = vmatpush1.bf16.msra.mxu0 0
      %10038 = vmatprep.subr.bf16.mxu0 0
      %10039 = vmatpush1.bf16.msra.mxu0 0
      %10040 = vmatprep.subr.bf16.mxu0 0
      %10041 = vmatpush1.bf16.msra.mxu0 0
      %10042 = vmatprep.subr.bf16.mxu0 0
      %10043 = vmatpush1.bf16.msra.mxu0 0
      %10044 = vmatprep.subr.bf16.mxu0 0
      %10045 = vmatpush1.bf16.msra.mxu0 0
      %10046 = vmatprep.subr.bf16.mxu0 0
      %10047 = vmatpush1.bf16.msra.mxu0 0
      %10048 = vmatprep.subr.bf16.mxu0 0
      %10049 = vmatpush1.bf16.msra.mxu0 0
      %10050 = vmatprep.subr.bf16.mxu0 0
      %10051 = vmatpush1.bf16.msra.mxu0 0
      %10052 = vmatprep.subr.bf16.mxu0 0
      %10053 = vmatpush1.bf16.msra.mxu0 0
      %10054 = vmatprep.subr.bf16.mxu0 0
      %10055 = vmatpush1.bf16.msra.mxu0 0
      %10056 = vmatprep.subr.bf16.mxu0 0
      %10057 = vmatpush1.bf16.msra.mxu0 0
      %10058 = vmatprep.subr.bf16.mxu0 0
      %10059 = vmatpush1.bf16.msra.mxu0 0
      %10060 = vmatprep.mubr.bf16.mxu0 0
      %10061 = vmatmul.mubr.bf16.gmra.mrb[0].mxu0 %v10017
      %v10062 = vpop.f32.mrb[0].mxu0
      %v10063 = vadd.f32 %v9990, %v10062
      %v10064 = vpop.f32.mrb[0].mxu0
      %v10065 = vpop.f32.mrb[0].mxu0
      %v10066 = vadd.f32 %v9990, %v10065
      %v10067 = vpop.f32.mrb[0].mxu0
      %10068 = vmatprep.mubr.bf16.mxu0 0
      %10069 = vmatmul.mubr.bf16.gmra.mrb[0].mxu0 %v10020
      %v10070 = vpop.f32.mrb[0].mxu0
      %v10071 = vadd.f32 %v9990, %v10070
      %v10072 = vpop.f32.mrb[0].mxu0
      %v10073 = vpop.f32.mrb[0].mxu0
      %v10074 = vadd.f32 %v9990, %v10073
      %v10075 = vpop.f32.mrb[0].mxu0
      %10076 = vmatprep.mubr.bf16.mxu0 0
      %10077 = vmatmul.mubr.bf16.gmra.mrb[0].mxu0 %v10023
      %v10078 = vpop.f32.mrb[0].mxu0
      %v10079 = vadd.f32 %v9990, %v10078
      %v10080 = vpop.f32.mrb[0].mxu0
      %v10081 = vpop.f32.mrb[0].mxu0
      %v10082 = vadd.f32 %v9990, %v10081
      %v10083 = vpop.f32.mrb[0].mxu0
      %10084 = vmatprep.mubr.bf16.mxu0 0
      %10085 = vmatmul.mubr.bf16.gmra.mrb[0].mxu0 %v10026
      %v10086 = vpop.f32.mrb[0].mxu0
      %v10087 = vadd.f32 %v9990, %v10086
      %v10088 = vpop.f32.mrb[0].mxu0
      %v10089 = vpop.f32.mrb[0].mxu0
      %v10090 = vadd.f32 %v9990, %v10089
      %v10091 = vpop.f32.mrb[0].mxu0
      %10092 = vdwg.mxu0
      %v10093 = vadd.f32 %v9671, %v10063
      %v10094 = vadd.f32 %v9672, %v10066
      %v10095 = vadd.f32 %v9673, %v10071
      %v10096 = vadd.f32 %v9674, %v10074
      %v10097 = vadd.f32 %v9675, %v10079
      %v10098 = vadd.f32 %v9676, %v10082
      %v10099 = vadd.f32 %v9677, %v10087
      %v10100 = vadd.f32 %v9678, %v10090
      %v10101 = vld [vmem:[%s35] sm:$0x1]
      %v10102 = vld [vmem:[%s37] sm:$0x1]
      %v10111 = vrot.slane %v10094, 7
      %vm10112 = vcmask 1041409
      %v10113 = vsel %vm10112, %v10111, %v10093
      %v10114 = vrot.slane %v10095, 6
      %vm10115 = vcmask 1042434
      %v10116 = vsel %vm10115, %v10114, %v10113
      %v10117 = vrot.slane %v10096, 5
      %vm10118 = vcmask 1043459
      %v10119 = vsel %vm10118, %v10117, %v10116
      %v10120 = vrot.slane %v10097, 4
      %vm10121 = vcmask 1044484
      %v10122 = vsel %vm10121, %v10120, %v10119
      %v10123 = vrot.slane %v10098, 3
      %vm10124 = vcmask 1045509
      %v10125 = vsel %vm10124, %v10123, %v10122
      %v10126 = vrot.slane %v10099, 2
      %vm10127 = vcmask 1046534
      %v10128 = vsel %vm10127, %v10126, %v10125
      %v10129 = vrot.slane %v10100, 1
      %vm10130 = vcmask 1047559
      %v10131 = vsel %vm10130, %v10129, %v10128
      %v10133 = vsel %vm1095, %v10131, 0.0
      %10134 = vadd.xlane.f32.xlu0 %v10133
      %v10135 = vpop.xlane.xlu0 %10134
      %v10136 = vmul.f32 %v10135, %v1120
      %v10138 = vrot.slane %v10136, 1
      %v10139 = vrot.slane %v10136, 2
      %v10140 = vrot.slane %v10136, 3
      %v10141 = vrot.slane %v10136, 4
      %v10142 = vrot.slane %v10136, 5
      %v10143 = vrot.slane %v10136, 6
      %v10144 = vrot.slane %v10136, 7
      %v10153 = vsub.f32 %v10093, %v10136
      %v10154 = vsub.f32 %v10094, %v10138
      %v10155 = vsub.f32 %v10095, %v10139
      %v10156 = vsub.f32 %v10096, %v10140
      %v10157 = vsub.f32 %v10097, %v10141
      %v10158 = vsub.f32 %v10098, %v10142
      %v10159 = vsub.f32 %v10099, %v10143
      %v10160 = vsub.f32 %v10100, %v10144
      %v10161 = vmul.f32 %v10153, %v10153
      %v10162 = vmul.f32 %v10154, %v10154
      %v10163 = vmul.f32 %v10155, %v10155
      %v10164 = vmul.f32 %v10156, %v10156
      %v10165 = vmul.f32 %v10157, %v10157
      %v10166 = vmul.f32 %v10158, %v10158
      %v10167 = vmul.f32 %v10159, %v10159
      %v10168 = vmul.f32 %v10160, %v10160
      %v10177 = vrot.slane %v10162, 7
      %v10178 = vsel %vm10112, %v10177, %v10161
      %v10179 = vrot.slane %v10163, 6
      %v10180 = vsel %vm10115, %v10179, %v10178
      %v10181 = vrot.slane %v10164, 5
      %v10182 = vsel %vm10118, %v10181, %v10180
      %v10183 = vrot.slane %v10165, 4
      %v10184 = vsel %vm10121, %v10183, %v10182
      %v10185 = vrot.slane %v10166, 3
      %v10186 = vsel %vm10124, %v10185, %v10184
      %v10187 = vrot.slane %v10167, 2
      %v10188 = vsel %vm10127, %v10187, %v10186
      %v10189 = vrot.slane %v10168, 1
      %v10190 = vsel %vm10130, %v10189, %v10188
      %v10192 = vsel %vm1095, %v10190, 0.0
      %10193 = vadd.xlane.f32.xlu0 %v10192
      %v10194 = vpop.xlane.xlu0 %10193
      %v10195 = vmul.f32 %v10194, %v1120
      %v10196 = vadd.f32 %v10195, 1e-05
      %v10197 = vrsqrt.pop %v10196
      %v10199 = vrot.slane %v10197, 1
      %v10200 = vrot.slane %v10197, 2
      %v10201 = vrot.slane %v10197, 3
      %v10202 = vrot.slane %v10197, 4
      %v10203 = vrot.slane %v10197, 5
      %v10204 = vrot.slane %v10197, 6
      %v10205 = vrot.slane %v10197, 7
      %v10214 = vmul.f32 %v10153, %v10197
      %v10215 = vmul.f32 %v10154, %v10199
      %v10216 = vmul.f32 %v10155, %v10200
      %v10217 = vmul.f32 %v10156, %v10201
      %v10218 = vmul.f32 %v10157, %v10202
      %v10219 = vmul.f32 %v10158, %v10203
      %v10220 = vmul.f32 %v10159, %v10204
      %v10221 = vmul.f32 %v10160, %v10205
      %v10223 = vlaneseq
      %v10224 = vshrl.u32 %v10223, 7
      %v10225 = vsub.s32 0, %v10224
      %v10226 = vrot.slane %v10101, %v10225
      %v10228 = vmul.f32 %v10214, %v10226
      %v10229 = vmul.f32 %v10215, %v10226
      %v10230 = vmul.f32 %v10216, %v10226
      %v10231 = vmul.f32 %v10217, %v10226
      %v10232 = vmul.f32 %v10218, %v10226
      %v10233 = vmul.f32 %v10219, %v10226
      %v10234 = vmul.f32 %v10220, %v10226
      %v10235 = vmul.f32 %v10221, %v10226
      %v10237 = vlaneseq
      %v10238 = vshrl.u32 %v10237, 7
      %v10239 = vsub.s32 0, %v10238
      %v10240 = vrot.slane %v10102, %v10239
      %v10242 = vadd.f32 %v10228, %v10240
      %v10243 = vadd.f32 %v10229, %v10240
      %v10244 = vadd.f32 %v10230, %v10240
      %v10245 = vadd.f32 %v10231, %v10240
      %v10246 = vadd.f32 %v10232, %v10240
      %v10247 = vadd.f32 %v10233, %v10240
      %v10248 = vadd.f32 %v10234, %v10240
      %v10249 = vadd.f32 %v10235, %v10240
      %v10250 = vld [vmem:[%s39] sm:$0xff]
      %v10251 = vld [vmem:[%s39 + $0x8] sm:$0xff]
      %v10252 = vld [vmem:[%s39 + $0x10] sm:$0xff]
      %v10253 = vld [vmem:[%s39 + $0x18] sm:$0xff]
      %v10254 = vld [vmem:[%s41] sm:$0x1]
      %v10255 = vld [vmem:[%s43] sm:$0x1]
      %v10256 = vld [vmem:[%s45] sm:$0x1]
      %v10258 = vlaneseq
      %v10259 = vshrl.u32 %v10258, 7
      %v10260 = vsub.s32 0, %v10259
      %v10261 = vrot.slane %v10254, %v10260
      %v10271 = vrot.slane %v10243, 7
      %v10272 = vsel %vm10112, %v10271, %v10242
      %v10273 = vrot.slane %v10244, 6
      %v10274 = vsel %vm10115, %v10273, %v10272
      %v10275 = vrot.slane %v10245, 5
      %v10276 = vsel %vm10118, %v10275, %v10274
      %v10277 = vrot.slane %v10246, 4
      %v10278 = vsel %vm10121, %v10277, %v10276
      %v10279 = vrot.slane %v10247, 3
      %v10280 = vsel %vm10124, %v10279, %v10278
      %v10281 = vrot.slane %v10248, 2
      %v10282 = vsel %vm10127, %v10281, %v10280
      %v10283 = vrot.slane %v10249, 1
      %v10284 = vsel %vm10130, %v10283, %v10282
      %v10285 = vsel %vm1095, %v10284, 0
      %10287 = vmatprep.subr.mxu0 0.0
      %10288 = vmatpush1.msra.mxu0 %v10250
      %10289 = vmatprep.subr.mxu0 0.0
      %10290 = vmatpush1.msra.mxu0 %v10251
      %10291 = vmatprep.subr.mxu0 0.0
      %10292 = vmatpush1.msra.mxu0 %v10252
      %10293 = vmatprep.subr.mxu0 0.0
      %10294 = vmatpush1.msra.mxu0 %v10253
      %10295 = vmatprep.subr.mxu0 0.0
      %10296 = vmatpush1.msra.mxu0 0.0
      %10297 = vmatprep.subr.mxu0 0.0
      %10298 = vmatpush1.msra.mxu0 0.0
      %10299 = vmatprep.subr.mxu0 0.0
      %10300 = vmatpush1.msra.mxu0 0.0
      %10301 = vmatprep.subr.mxu0 0.0
      %10302 = vmatpush1.msra.mxu0 0.0
      %10303 = vmatprep.subr.mxu0 0.0
      %10304 = vmatpush1.msra.mxu0 0.0
      %10305 = vmatprep.subr.mxu0 0.0
      %10306 = vmatpush1.msra.mxu0 0.0
      %10307 = vmatprep.subr.mxu0 0.0
      %10308 = vmatpush1.msra.mxu0 0.0
      %10309 = vmatprep.subr.mxu0 0.0
      %10310 = vmatpush1.msra.mxu0 0.0
      %10311 = vmatprep.subr.mxu0 0.0
      %10312 = vmatpush1.msra.mxu0 0.0
      %10313 = vmatprep.subr.mxu0 0.0
      %10314 = vmatpush1.msra.mxu0 0.0
      %10315 = vmatprep.subr.mxu0 0.0
      %10316 = vmatpush1.msra.mxu0 0.0
      %10317 = vmatprep.subr.mxu0 0.0
      %10318 = vmatpush1.msra.mxu0 0.0
      %10319 = vmatprep.subr.mxu0 0.0
      %10320 = vmatpush1.msra.mxu0 0.0
      %10321 = vmatprep.subr.mxu0 0.0
      %10322 = vmatpush1.msra.mxu0 0.0
      %10323 = vmatprep.subr.mxu0 0.0
      %10324 = vmatpush1.msra.mxu0 0.0
      %10325 = vmatprep.subr.mxu0 0.0
      %10326 = vmatpush1.msra.mxu0 0.0
      %10327 = vmatprep.subr.mxu0 0.0
      %10328 = vmatpush1.msra.mxu0 0.0
      %10329 = vmatprep.subr.mxu0 0.0
      %10330 = vmatpush1.msra.mxu0 0.0
      %10331 = vmatprep.subr.mxu0 0.0
      %10332 = vmatpush1.msra.mxu0 0.0
      %10333 = vmatprep.subr.mxu0 0.0
      %10334 = vmatpush1.msra.mxu0 0.0
      %10335 = vmatprep.subr.mxu0 0.0
      %10336 = vmatpush1.msra.mxu0 0.0
      %10337 = vmatprep.subr.mxu0 0.0
      %10338 = vmatpush1.msra.mxu0 0.0
      %10339 = vmatprep.subr.mxu0 0.0
      %10340 = vmatpush1.msra.mxu0 0.0
      %10341 = vmatprep.subr.mxu0 0.0
      %10342 = vmatpush1.msra.mxu0 0.0
      %10343 = vmatprep.subr.mxu0 0.0
      %10344 = vmatpush1.msra.mxu0 0.0
      %10345 = vmatprep.subr.mxu0 0.0
      %10346 = vmatpush1.msra.mxu0 0.0
      %10347 = vmatprep.subr.mxu0 0.0
      %10348 = vmatpush1.msra.mxu0 0.0
      %10349 = vmatprep.subr.mxu0 0.0
      %10350 = vmatpush1.msra.mxu0 0.0
      %10351 = vmatprep.mubr.f32.mxu0 0.0
      %10352 = vmatmul.mubr.f32.gmra.mrb[0].mxu0 %v10285
      %v10353 = vpop.f32.mrb[0].mxu0
      %v10354 = vadd.f32 %v10261, %v10353
      %v10355 = vpop.f32.mrb[0].mxu0
      %10356 = vdwg.mxu0
      %vm10357 = vcmask 392192
      %v10358 = vsel %vm10357, %v10354, 0.0
      %10359 = vadd.xlane.f32.xlu0 %v10358
      %v10360 = vpop.xlane.xlu0 %10359
      %v10361 = vrcp.pop 48.0
      %v10362 = vmul.f32 %v10360, %v10361
      %v10363 = vsub.f32 %v10354, %v10362
      %v10364 = vmul.f32 %v10363, %v10363
      %v10365 = vsel %vm10357, %v10364, 0.0
      %10366 = vadd.xlane.f32.xlu0 %v10365
      %v10367 = vpop.xlane.xlu0 %10366
      %v10368 = vmul.f32 %v10367, %v10361
      %v10369 = vadd.f32 %v10368, 1e-05
      %v10370 = vrsqrt.pop %v10369
      %v10371 = vmul.f32 %v10363, %v10370
      %v10373 = vlaneseq
      %v10374 = vshrl.u32 %v10373, 7
      %v10375 = vsub.s32 0, %v10374
      %v10376 = vrot.slane %v10255, %v10375
      %v10378 = vmul.f32 %v10371, %v10376
      %v10380 = vlaneseq
      %v10381 = vshrl.u32 %v10380, 7
      %v10382 = vsub.s32 0, %v10381
      %v10383 = vrot.slane %v10256, %v10382
      %v10385 = vadd.f32 %v10378, %v10383
      %v10386 = vmax.f32 %v10385, 0.0
      %v10387 = vld [vmem:[%s47] sm:$0xff]
      %v10388 = vld [vmem:[%s47 + $0x8] sm:$0xff]
      %v10389 = vld [vmem:[%s47 + $0x10] sm:$0xff]
      %v10390 = vld [vmem:[%s47 + $0x18] sm:$0xff]
      %v10391 = vld [vmem:[%s47 + $0x20] sm:$0xff]
      %v10392 = vld [vmem:[%s47 + $0x28] sm:$0xff]
      %v10393 = vld [vmem:[%s49] sm:$0x1]
      %v10394 = vld [vmem:[%s51] sm:$0x1]
      %v10395 = vld [vmem:[%s53] sm:$0x1]
      %v10397 = vlaneseq
      %v10398 = vshrl.u32 %v10397, 7
      %v10399 = vsub.s32 0, %v10398
      %v10400 = vrot.slane %v10393, %v10399
      %v10403 = vsel %vm10357, %v10386, 0
      %10405 = vmatprep.subr.mxu0 0.0
      %10406 = vmatpush1.msra.mxu0 %v10387
      %10407 = vmatprep.subr.mxu0 0.0
      %10408 = vmatpush1.msra.mxu0 %v10388
      %10409 = vmatprep.subr.mxu0 0.0
      %10410 = vmatpush1.msra.mxu0 %v10389
      %10411 = vmatprep.subr.mxu0 0.0
      %10412 = vmatpush1.msra.mxu0 %v10390
      %10413 = vmatprep.subr.mxu0 0.0
      %10414 = vmatpush1.msra.mxu0 %v10391
      %10415 = vmatprep.subr.mxu0 0.0
      %10416 = vmatpush1.msra.mxu0 %v10392
      %10417 = vmatprep.subr.mxu0 0.0
      %10418 = vmatpush1.msra.mxu0 0.0
      %10419 = vmatprep.subr.mxu0 0.0
      %10420 = vmatpush1.msra.mxu0 0.0
      %10421 = vmatprep.subr.mxu0 0.0
      %10422 = vmatpush1.msra.mxu0 0.0
      %10423 = vmatprep.subr.mxu0 0.0
      %10424 = vmatpush1.msra.mxu0 0.0
      %10425 = vmatprep.subr.mxu0 0.0
      %10426 = vmatpush1.msra.mxu0 0.0
      %10427 = vmatprep.subr.mxu0 0.0
      %10428 = vmatpush1.msra.mxu0 0.0
      %10429 = vmatprep.subr.mxu0 0.0
      %10430 = vmatpush1.msra.mxu0 0.0
      %10431 = vmatprep.subr.mxu0 0.0
      %10432 = vmatpush1.msra.mxu0 0.0
      %10433 = vmatprep.subr.mxu0 0.0
      %10434 = vmatpush1.msra.mxu0 0.0
      %10435 = vmatprep.subr.mxu0 0.0
      %10436 = vmatpush1.msra.mxu0 0.0
      %10437 = vmatprep.subr.mxu0 0.0
      %10438 = vmatpush1.msra.mxu0 0.0
      %10439 = vmatprep.subr.mxu0 0.0
      %10440 = vmatpush1.msra.mxu0 0.0
      %10441 = vmatprep.subr.mxu0 0.0
      %10442 = vmatpush1.msra.mxu0 0.0
      %10443 = vmatprep.subr.mxu0 0.0
      %10444 = vmatpush1.msra.mxu0 0.0
      %10445 = vmatprep.subr.mxu0 0.0
      %10446 = vmatpush1.msra.mxu0 0.0
      %10447 = vmatprep.subr.mxu0 0.0
      %10448 = vmatpush1.msra.mxu0 0.0
      %10449 = vmatprep.subr.mxu0 0.0
      %10450 = vmatpush1.msra.mxu0 0.0
      %10451 = vmatprep.subr.mxu0 0.0
      %10452 = vmatpush1.msra.mxu0 0.0
      %10453 = vmatprep.subr.mxu0 0.0
      %10454 = vmatpush1.msra.mxu0 0.0
      %10455 = vmatprep.subr.mxu0 0.0
      %10456 = vmatpush1.msra.mxu0 0.0
      %10457 = vmatprep.subr.mxu0 0.0
      %10458 = vmatpush1.msra.mxu0 0.0
      %10459 = vmatprep.subr.mxu0 0.0
      %10460 = vmatpush1.msra.mxu0 0.0
      %10461 = vmatprep.subr.mxu0 0.0
      %10462 = vmatpush1.msra.mxu0 0.0
      %10463 = vmatprep.subr.mxu0 0.0
      %10464 = vmatpush1.msra.mxu0 0.0
      %10465 = vmatprep.subr.mxu0 0.0
      %10466 = vmatpush1.msra.mxu0 0.0
      %10467 = vmatprep.subr.mxu0 0.0
      %10468 = vmatpush1.msra.mxu0 0.0
      %10469 = vmatprep.mubr.f32.mxu0 0.0
      %10470 = vmatmul.mubr.f32.gmra.mrb[0].mxu0 %v10403
      %v10471 = vpop.f32.mrb[0].mxu0
      %v10472 = vadd.f32 %v10400, %v10471
      %v10473 = vpop.f32.mrb[0].mxu0
      %10474 = vdwg.mxu0
      %v10475 = vsel %vm5042, %v10472, 0.0
      %10476 = vadd.xlane.f32.xlu0 %v10475
      %v10477 = vpop.xlane.xlu0 %10476
      %v10478 = vrcp.pop 24.0
      %v10479 = vmul.f32 %v10477, %v10478
      %v10480 = vsub.f32 %v10472, %v10479
      %v10481 = vmul.f32 %v10480, %v10480
      %v10482 = vsel %vm5042, %v10481, 0.0
      %10483 = vadd.xlane.f32.xlu0 %v10482
      %v10484 = vpop.xlane.xlu0 %10483
      %v10485 = vmul.f32 %v10484, %v10478
      %v10486 = vadd.f32 %v10485, 1e-05
      %v10487 = vrsqrt.pop %v10486
      %v10488 = vmul.f32 %v10480, %v10487
      %v10490 = vlaneseq
      %v10491 = vshrl.u32 %v10490, 7
      %v10492 = vsub.s32 0, %v10491
      %v10493 = vrot.slane %v10394, %v10492
      %v10495 = vmul.f32 %v10488, %v10493
      %v10497 = vlaneseq
      %v10498 = vshrl.u32 %v10497, 7
      %v10499 = vsub.s32 0, %v10498
      %v10500 = vrot.slane %v10395, %v10499
      %v10502 = vadd.f32 %v10495, %v10500
      %v10503 = vmax.f32 %v10502, 0.0
      %v10504 = vld [vmem:[%s55] sm:$0xff]
      %v10505 = vld [vmem:[%s55 + $0x8] sm:$0xff]
      %v10506 = vld [vmem:[%s55 + $0x10] sm:$0xff]
      %v10507 = vld [vmem:[%s57] sm:$0x1]
      %v10509 = vlaneseq
      %v10510 = vshrl.u32 %v10509, 7
      %v10511 = vsub.s32 0, %v10510
      %v10512 = vrot.slane %v10507, %v10511
      %v10515 = vsel %vm5042, %v10503, 0
      %10517 = vmatprep.subr.mxu0 0.0
      %10518 = vmatpush1.msra.mxu0 %v10504
      %10519 = vmatprep.subr.mxu0 0.0
      %10520 = vmatpush1.msra.mxu0 %v10505
      %10521 = vmatprep.subr.mxu0 0.0
      %10522 = vmatpush1.msra.mxu0 %v10506
      %10523 = vmatprep.subr.mxu0 0.0
      %10524 = vmatpush1.msra.mxu0 0.0
      %10525 = vmatprep.subr.mxu0 0.0
      %10526 = vmatpush1.msra.mxu0 0.0
      %10527 = vmatprep.subr.mxu0 0.0
      %10528 = vmatpush1.msra.mxu0 0.0
      %10529 = vmatprep.subr.mxu0 0.0
      %10530 = vmatpush1.msra.mxu0 0.0
      %10531 = vmatprep.subr.mxu0 0.0
      %10532 = vmatpush1.msra.mxu0 0.0
      %10533 = vmatprep.subr.mxu0 0.0
      %10534 = vmatpush1.msra.mxu0 0.0
      %10535 = vmatprep.subr.mxu0 0.0
      %10536 = vmatpush1.msra.mxu0 0.0
      %10537 = vmatprep.subr.mxu0 0.0
      %10538 = vmatpush1.msra.mxu0 0.0
      %10539 = vmatprep.subr.mxu0 0.0
      %10540 = vmatpush1.msra.mxu0 0.0
      %10541 = vmatprep.subr.mxu0 0.0
      %10542 = vmatpush1.msra.mxu0 0.0
      %10543 = vmatprep.subr.mxu0 0.0
      %10544 = vmatpush1.msra.mxu0 0.0
      %10545 = vmatprep.subr.mxu0 0.0
      %10546 = vmatpush1.msra.mxu0 0.0
      %10547 = vmatprep.subr.mxu0 0.0
      %10548 = vmatpush1.msra.mxu0 0.0
      %10549 = vmatprep.subr.mxu0 0.0
      %10550 = vmatpush1.msra.mxu0 0.0
      %10551 = vmatprep.subr.mxu0 0.0
      %10552 = vmatpush1.msra.mxu0 0.0
      %10553 = vmatprep.subr.mxu0 0.0
      %10554 = vmatpush1.msra.mxu0 0.0
      %10555 = vmatprep.subr.mxu0 0.0
      %10556 = vmatpush1.msra.mxu0 0.0
      %10557 = vmatprep.subr.mxu0 0.0
      %10558 = vmatpush1.msra.mxu0 0.0
      %10559 = vmatprep.subr.mxu0 0.0
      %10560 = vmatpush1.msra.mxu0 0.0
      %10561 = vmatprep.subr.mxu0 0.0
      %10562 = vmatpush1.msra.mxu0 0.0
      %10563 = vmatprep.subr.mxu0 0.0
      %10564 = vmatpush1.msra.mxu0 0.0
      %10565 = vmatprep.subr.mxu0 0.0
      %10566 = vmatpush1.msra.mxu0 0.0
      %10567 = vmatprep.subr.mxu0 0.0
      %10568 = vmatpush1.msra.mxu0 0.0
      %10569 = vmatprep.subr.mxu0 0.0
      %10570 = vmatpush1.msra.mxu0 0.0
      %10571 = vmatprep.subr.mxu0 0.0
      %10572 = vmatpush1.msra.mxu0 0.0
      %10573 = vmatprep.subr.mxu0 0.0
      %10574 = vmatpush1.msra.mxu0 0.0
      %10575 = vmatprep.subr.mxu0 0.0
      %10576 = vmatpush1.msra.mxu0 0.0
      %10577 = vmatprep.subr.mxu0 0.0
      %10578 = vmatpush1.msra.mxu0 0.0
      %10579 = vmatprep.subr.mxu0 0.0
      %10580 = vmatpush1.msra.mxu0 0.0
      %10581 = vmatprep.mubr.f32.mxu0 0.0
      %10582 = vmatmul.mubr.f32.gmra.mrb[0].mxu0 %v10515
      %v10583 = vpop.f32.mrb[0].mxu0
      %v10584 = vadd.f32 %v10512, %v10583
      %v10585 = vpop.f32.mrb[0].mxu0
      %10586 = vdwg.mxu0
      %vm10587 = vcmask 23552
      %10588 = vst.msk [vmem:[%s924] sm:$0xff] %vm10587, %v10584
      %p10589 = scmp.lt.s32.totalorder %s70, 1
      %s10590 = scalar_select %p10589, %s70, 1
      %s10591 = smul.addr %s10590, 8
      %s10592 = scalar_lea.vmem %s59, %s10591
      // Predicated region
      $region137: #{tpu_custom_call.1} parent=135 // pred_check
        %p10593 = pneg %p707
      $region138: #{tpu_custom_call.1} parent=135 // pred_check_branch
        %10595 = sbr.rel (%p10593) target = $region140
      $region139: #{tpu_custom_call.1} parent=135 // pred_region
        _
      $region140: #{tpu_custom_call.1} parent=135 // pred_fallthru
        _
    $region136: #{tpu_custom_call.1} parent=5 // pred_fallthru
      _
    %p10596 = scmp.le.s32.totalorder 2, %s65
    // Predicated region
    $region141: #{tpu_custom_call.1} parent=5 // pred_check
      %p10597 = pneg %p10596
    $region142: #{tpu_custom_call.1} parent=5 // pred_check_branch
      %10599 = sbr.rel (%p10597) target = $region144
    $region143: #{tpu_custom_call.1} parent=5 // pred_region
      %s10600 = ssub.s32 %s65, 2
      // Predicated region
      $region145: #{tpu_custom_call.1} parent=143 // pred_check
        %p10601 = pneg %p713
      $region146: #{tpu_custom_call.1} parent=143 // pred_check_branch
        %10603 = sbr.rel (%p10601) target = $region148
      $region147: #{tpu_custom_call.1} parent=143 // pred_region
        %p10604 = scmp.lt.s32.totalorder %s71, 1
        %s10605 = scalar_select %p10604, %s71, 1
        %s10606 = smul.addr %s10605, 8
        %s10607 = scalar_lea.vmem %s59, %s10606
      $region148: #{tpu_custom_call.1} parent=143 // pred_fallthru
        _
    $region144: #{tpu_custom_call.1} parent=5 // pred_fallthru
      _
  $region6: #{tpu_custom_call.1} parent=0 // loop_footer
    %s69 = sadd.s32 1, %s65
  $region7: #{tpu_custom_call.1} parent=0 // loop_footer_branch
    %64 = sbr.rel target = $region3
  $region8: #{tpu_custom_call.1} parent=0 // loop_exit
    _

</llo_original>
